<compile_context>
chip_gen: v7x
topology: tpu7x:2x2x1
jax: 0.10.0
libtpu: 0.0.40
codegen_flags: <defaults>
</compile_context>

<pallas_src>
import functools

import jax
import jax.numpy as jnp
from jax import lax
from jax.experimental import pallas as pl
from jax.experimental.pallas import tpu as pltpu


def _rup(x, m):
    return (x + m - 1) // m * m


def _vmem_limit_bytes():
    """Generation-aware scoped-VMEM limit (~96 MiB on v5e/v6e, ~48 MiB on v7x)."""
    try:
        cap = pltpu.get_tpu_info().vmem_capacity_bytes
    except Exception:                      # no info / unknown field -> conservative
        cap = 64 * 1024 * 1024
    return min(96 * 1024 * 1024, (cap * 3) // 4)


_VMEM_LIMIT = _vmem_limit_bytes()


def _choose_tm(mp, tk, tn, out_bytes, budget, cap=2048):
    """Largest row tile <= cap, multiple of 16, dividing mp, fitting the VMEM budget."""
    best = 16
    t = 16
    lim = min(cap, mp)
    while t <= lim:
        if mp % t == 0:
            foot = (2 * t * tk * 2            # A, bf16, double buffered
                    + 2 * t * tn * out_bytes  # y, double buffered
                    + 2 * tk * tn * 2         # B, bf16, double buffered
                    + 4 * 8 * tn * 4)         # stats partials
            if foot <= budget:
                best = t
        t += 16
    return best


# ----------------------------- Pallas kernels -------------------------------

def _stats_epilogue(acc, o_ref, s_ref, q_ref):
    """Store activation + per-column partial sum / sum-of-squares (f32)."""
    o_ref[...] = acc.astype(o_ref.dtype)
    s = jnp.sum(acc, axis=0, keepdims=True)
    q = jnp.sum(acc * acc, axis=0, keepdims=True)
    s_ref[...] = jnp.broadcast_to(s, s_ref.shape)
    q_ref[...] = jnp.broadcast_to(q, q_ref.shape)


def _mm_stats_kernel(a_ref, b_ref, o_ref, s_ref, q_ref):
    # whole K in one tile: no accumulator scratch, store straight off the MXU
    acc = jnp.dot(a_ref[...], b_ref[...], preferred_element_type=jnp.float32)
    _stats_epilogue(acc, o_ref, s_ref, q_ref)


def _mm_stats_multik_kernel(a_ref, b_ref, o_ref, s_ref, q_ref, acc_ref):
    @pl.when(pl.program_id(2) == 0)
    def _():
        acc_ref[...] = jnp.zeros_like(acc_ref)

    acc_ref[...] += jnp.dot(a_ref[...], b_ref[...],
                            preferred_element_type=jnp.float32)

    @pl.when(pl.program_id(2) == pl.num_programs(2) - 1)
    def _():
        _stats_epilogue(acc_ref[...], o_ref, s_ref, q_ref)


def _mm_plain_kernel(a_ref, b_ref, o_ref, *, act):
    acc = jnp.dot(a_ref[...], b_ref[...], preferred_element_type=jnp.float32)
    if act == "tanh":
        acc = jnp.tanh(acc)
    o_ref[...] = acc.astype(o_ref.dtype)


def _mm_plain_multik_kernel(a_ref, b_ref, o_ref, acc_ref, *, act):
    @pl.when(pl.program_id(2) == 0)
    def _():
        acc_ref[...] = jnp.zeros_like(acc_ref)

    acc_ref[...] += jnp.dot(a_ref[...], b_ref[...],
                            preferred_element_type=jnp.float32)

    @pl.when(pl.program_id(2) == pl.num_programs(2) - 1)
    def _():
        acc = acc_ref[...]
        if act == "tanh":
            acc = jnp.tanh(acc)
        o_ref[...] = acc.astype(o_ref.dtype)


# --------------------------- Pallas call wrapper -----------------------------

def convt_matmul(a, b, *, with_stats, act="none", out_dtype=jnp.bfloat16):
    """(M, K) @ (Kp, Cp) MXU matmul with optional fused BN stats / tanh epilogue.

    a : (M, K) activation / patch matrix (cast to bf16; rows/cols zero padded here).
    b : (Kp, Cp) pre-padded bf16 weight matrix (Kp % 128 == 0, Cp % 128 == 0).
    Returns y (Mp, Cp) [, psum (ni*8, Cp) f32, psq (ni*8, Cp) f32].  Padded rows and
    columns are exact zeros, so the partial sums stay exact.
    """
    m, k = a.shape
    kp, cp = b.shape
    assert kp >= k and kp % 128 == 0 and cp % 128 == 0

    tn = 256 if (cp >= 256 and cp % 256 == 0) else 128
    if kp <= 2048:
        tk = kp
    else:
        tk = next(t for t in (2048, 1024, 512, 256, 128) if kp % t == 0)

    mp = _rup(m, 16)
    out_bytes = jnp.dtype(out_dtype).itemsize
    tm = _choose_tm(mp, tk, tn, out_bytes, _VMEM_LIMIT // 2)

    if mp != m or kp != k:
        a = jnp.pad(a, ((0, mp - m), (0, kp - k)))
    a = a.astype(jnp.bfloat16)

    ni, nj, nk = mp // tm, cp // tn, kp // tk

    if with_stats:
        out_shape = (jax.ShapeDtypeStruct((mp, cp), out_dtype),
                     jax.ShapeDtypeStruct((ni * 8, cp), jnp.float32),
                     jax.ShapeDtypeStruct((ni * 8, cp), jnp.float32))
    else:
        out_shape = jax.ShapeDtypeStruct((mp, cp), out_dtype)

    if nk == 1:
        grid = (ni, nj)
        in_specs = [pl.BlockSpec((tm, kp), lambda i, j: (i, 0)),
                    pl.BlockSpec((kp, tn), lambda i, j: (0, j))]
        y_spec = pl.BlockSpec((tm, tn), lambda i, j: (i, j))
        st_spec = pl.BlockSpec((8, tn), lambda i, j: (i, j))
        scratch = []
        dims = ("parallel", "parallel")
        kernel = _mm_stats_kernel if with_stats else functools.partial(
            _mm_plain_kernel, act=act)
    else:
        grid = (ni, nj, nk)
        in_specs = [pl.BlockSpec((tm, tk), lambda i, j, kk: (i, kk)),
                    pl.BlockSpec((tk, tn), lambda i, j, kk: (kk, j))]
        y_spec = pl.BlockSpec((tm, tn), lambda i, j, kk: (i, j))
        st_spec = pl.BlockSpec((8, tn), lambda i, j, kk: (i, j))
        scratch = [pltpu.VMEM((tm, tn), jnp.float32)]
        dims = ("parallel", "parallel", "arbitrary")
        kernel = _mm_stats_multik_kernel if with_stats else functools.partial(
            _mm_plain_multik_kernel, act=act)

    out_specs = (y_spec, st_spec, st_spec) if with_stats else y_spec

    return pl.pallas_call(
        kernel,
        out_shape=out_shape,
        grid_spec=pltpu.PrefetchScalarGridSpec(
            num_scalar_prefetch=0, grid=grid,
            in_specs=in_specs, out_specs=out_specs, scratch_shapes=scratch),
        compiler_params=pltpu.CompilerParams(
            dimension_semantics=dims, vmem_limit_bytes=_VMEM_LIMIT),
    )(a, b)


# ------------------------------- glue (JAX) ----------------------------------

def _patches_3x3(h):
    """3x3 'valid' im2col of a 1-zero-padded NHWC tensor -> (N*H*W, 9*C) bf16."""
    n, hh, ww, c = h.shape
    xp = jnp.pad(h, ((0, 0), (1, 1), (1, 1), (0, 0)))
    cols = [xp[:, a:a + hh, b:b + ww, :] for a in range(3) for b in range(3)]
    return jnp.stack(cols, axis=3).reshape(n * hh * ww, 9 * c)


def _bn_scale_shift(ps, pq, n_cols, cout, count, gamma, beta, eps):
    """Reduce per-row-block partial sums to per-channel BN scale/shift (f32 math)."""
    cp = ps.shape[-1]
    s = ps.reshape(-1, 8, cp)[:, 0, :].sum(axis=0)[:n_cols].reshape(-1, cout).sum(axis=0)
    q = pq.reshape(-1, 8, cp)[:, 0, :].sum(axis=0)[:n_cols].reshape(-1, cout).sum(axis=0)
    mean = s / count
    var = jnp.maximum(q / count - mean * mean, 0.0)   # clamp f32 cancellation
    scale = gamma * lax.rsqrt(var + eps)
    shift = beta - mean * scale
    return scale, shift


def _bn_relu_shuffle(y, ps, pq, n, h, w, s, cout, gamma, beta, eps):
    """BN (batch stats) + ReLU + pixel-shuffle of a phase-layout conv output.

    y rows = n*h*w input pixels; columns = (phase_h, phase_w, cout).  Returns the
    (n, h*s, w*s, cout) bf16 activation.  All of this is plain XLA elementwise /
    transpose work that fuses with the next layer's patch construction.
    """
    m = n * h * w
    scale, shift = _bn_scale_shift(ps, pq, s * s * cout, cout, m * s * s,
                                   gamma, beta, eps)
    t = y[:m, :s * s * cout].reshape(n, h, w, s, s, cout).astype(jnp.float32)
    t = jnp.maximum(t * scale + shift, 0.0).astype(jnp.bfloat16)
    return t.transpose(0, 1, 3, 2, 4, 5).reshape(n, h * s, w * s, cout)


def generator_forward(x_nchw, prep, eps=1e-5, nc=3):
    n, nz = x_nchw.shape[0], x_nchw.shape[1]
    c1 = prep["conv1_gamma"].shape[0]
    c2 = prep["conv2_gamma"].shape[0]
    c3 = prep["conv3_gamma"].shape[0]
    c4 = prep["conv4_gamma"].shape[0]

    # conv1: ConvT(nz, c1, 7, 1, 0) on a 1x1 input == (N, nz) @ (nz, 49*c1)
    a = x_nchw.reshape(n, nz).astype(jnp.bfloat16)
    y, ps, pq = convt_matmul(a, prep["conv1"], with_stats=True)
    h = _bn_relu_shuffle(y, ps, pq, n, 1, 1, 7, c1,
                         prep["conv1_gamma"], prep["conv1_beta"], eps)   # (n,7,7,c1)

    # conv2: ConvT(c1, c2, 4, 2, 1) == one 3x3 stride-1 conv -> 4 phases -> shuffle
    hh, ww = h.shape[1], h.shape[2]
    y, ps, pq = convt_matmul(_patches_3x3(h), prep["conv2"], with_stats=True)
    h = _bn_relu_shuffle(y, ps, pq, n, hh, ww, 2, c2,
                         prep["conv2_gamma"], prep["conv2_beta"], eps)   # (n,14,14,c2)

    # conv3: same structure
    hh, ww = h.shape[1], h.shape[2]
    y, ps, pq = convt_matmul(_patches_3x3(h), prep["conv3"], with_stats=True)
    h = _bn_relu_shuffle(y, ps, pq, n, hh, ww, 2, c3,
                         prep["conv3_gamma"], prep["conv3_beta"], eps)   # (n,28,28,c3)

    # conv4: ConvT(c3, c4, 4, 4, 0) == per-pixel (c3 -> 16*c4) matmul (no im2col)
    hh, ww = h.shape[1], h.shape[2]
    a = h.reshape(n * hh * ww, c3)
    y, ps, pq = convt_matmul(a, prep["conv4"], with_stats=True)
    h = _bn_relu_shuffle(y, ps, pq, n, hh, ww, 4, c4,
                         prep["conv4_gamma"], prep["conv4_beta"], eps)   # (n,112,112,c4)

    # conv5: ConvT(c4, nc, 4, 2, 1) + tanh fused; no BN stats; bf16 out, upcast here
    hh, ww = h.shape[1], h.shape[2]
    y = convt_matmul(_patches_3x3(h), prep["conv5"], with_stats=False,
                     act="tanh", out_dtype=jnp.bfloat16)
    m = n * hh * ww
    out = y[:m, :4 * nc].reshape(n, hh, ww, 2, 2, nc)
    out = out.transpose(0, 1, 3, 2, 4, 5).reshape(n, hh * 2, ww * 2, nc)
    return jnp.transpose(out.astype(jnp.float32), (0, 3, 1, 2))          # NCHW f32


# ------------------------- one-time parameter prep ---------------------------

def _pad_b(b):
    k, c = b.shape
    kp = _rup(k, 128)
    cp = _rup(c, 256) if c >= 256 else _rup(c, 128)
    return jnp.zeros((kp, cp), jnp.bfloat16).at[:k, :c].set(b.astype(jnp.bfloat16))


def _subpixel_s2_weight(w):
    """ConvT(k=4, s=2, p=1) weight (Cin,Cout,4,4) -> (9*Cin, 4*Cout) sub-pixel matrix.

    Row index    = (a*3 + b)*Cin + ci   : 3x3 tap (a, b) on the 1-zero-padded input.
    Column index = (rh*2 + rw)*Cout + co: output phase (rh, rw).
    B[(a,b,ci),(rh,rw,co)] = W[ci, co, 3 + rh - 2a, 3 + rw - 2b] when the tap is live.
    """
    cin, cout = w.shape[0], w.shape[1]
    bmat = jnp.zeros((9 * cin, 4 * cout), w.dtype)
    for a in range(3):
        for b in range(3):
            for rh in range(2):
                for rw in range(2):
                    if 0 <= a - rh <= 1 and 0 <= b - rw <= 1:
                        blk = w[:, :, 3 + rh - 2 * a, 3 + rw - 2 * b]
                        bmat = bmat.at[(a * 3 + b) * cin:(a * 3 + b + 1) * cin,
                                       (rh * 2 + rw) * cout:(rh * 2 + rw + 1) * cout
                                       ].set(blk)
    return bmat


def prepare_params(params):
    """One-time weight re-layout: sub-pixel matrices, bf16 cast, (Kp, Cp) padding."""
    prep = {}
    w1 = params["conv1"]                                 # (nz, c1, 7, 7)
    prep["conv1"] = _pad_b(w1.transpose(0, 2, 3, 1).reshape(w1.shape[0], -1))
    prep["conv2"] = _pad_b(_subpixel_s2_weight(params["conv2"]))
    prep["conv3"] = _pad_b(_subpixel_s2_weight(params["conv3"]))
    w4 = params["conv4"]                                 # (c3, c4, 4, 4)
    prep["conv4"] = _pad_b(w4.transpose(0, 2, 3, 1).reshape(w4.shape[0], -1))
    prep["conv5"] = _pad_b(_subpixel_s2_weight(params["conv5"]))
    for name in ("conv1", "conv2", "conv3", "conv4"):
        prep[name + "_gamma"] = params[name + "_gamma"].astype(jnp.float32)
        prep[name + "_beta"] = params[name + "_beta"].astype(jnp.float32)
    return prep


def init_params(key, nz, ngf, nc):
    shapes = {"conv1": (nz, ngf * 8, 7, 7),
              "conv2": (ngf * 8, ngf * 4, 4, 4),
              "conv3": (ngf * 4, ngf * 2, 4, 4),
              "conv4": (ngf * 2, ngf, 4, 4),
              "conv5": (ngf, nc, 4, 4)}
    params = {}
    for name, shp in shapes.items():
        key, k1 = jax.random.split(key)
        fan_in = shp[0] * shp[2] * shp[3]
        params[name] = jax.random.normal(k1, shp, jnp.float32) / jnp.sqrt(
            jnp.float32(fan_in))
        if name != "conv5":
            params[name + "_gamma"] = jnp.ones((shp[1],), jnp.float32)  # PyTorch default
            params[name + "_beta"] = jnp.zeros((shp[1],), jnp.float32)
    return params


if __name__ == "__main__":
    # Small config consistent with the module: latent (N, nz, 1, 1) -> (N, nc, 224, 224)
    N, nz, ngf, nc = 2, 16, 8, 3
    key = jax.random.PRNGKey(0)
    kx, kw = jax.random.split(key)
    x = jax.random.normal(kx, (N, nz, 1, 1), jnp.float32)   # NCHW latent
    params = init_params(kw, nz, ngf, nc)
    prep = prepare_params(params)                           # one-time weight prep

    fwd = jax.jit(generator_forward)
    out = jax.block_until_ready(fwd(x, prep))

    assert out.shape == (N, nc, 224, 224), out.shape
    assert bool(jnp.all(jnp.isfinite(out)))
    assert bool(jnp.all(jnp.abs(out) <= 1.0 + 1e-6))        # tanh range
    print("KERNEL_OK")
</pallas_src>

<mosaic_0001>
module attributes {stable_mosaic.version = 11 : i64} {
  func.func @_mm_stats_kernel(%arg0: i32, %arg1: i32, %arg2: memref<16x128xbf16, #tpu.memory_space<vmem>>, %arg3: memref<128x256xbf16, #tpu.memory_space<vmem>>, %arg4: memref<16x256xbf16, #tpu.memory_space<vmem>>, %arg5: memref<8x256xf32, #tpu.memory_space<vmem>>, %arg6: memref<8x256xf32, #tpu.memory_space<vmem>>) attributes {dimension_semantics = [#tpu.dimension_semantics<parallel>, #tpu.dimension_semantics<parallel>], iteration_bounds = array<i64: 1, 13>, scalar_prefetch = 0 : i64, scratch_operands = 0 : i64, tpu.core_type = #tpu.core_type<tc>, window_params = [{transform_indices = @transform_0, window_bounds = array<i64: 16, 128>}, {transform_indices = @transform_1, window_bounds = array<i64: 128, 256>}, {transform_indices = @transform_2, window_bounds = array<i64: 16, 256>}, {transform_indices = @transform_3, window_bounds = array<i64: 8, 256>}, {transform_indices = @transform_4, window_bounds = array<i64: 8, 256>}]} {
    %c0 = arith.constant 0 : index
    %c0_0 = arith.constant 0 : index
    %0 = vector.load %arg2[%c0, %c0_0] : memref<16x128xbf16, #tpu.memory_space<vmem>>, vector<16x128xbf16>
    %c0_1 = arith.constant 0 : index
    %c0_2 = arith.constant 0 : index
    %1 = vector.load %arg3[%c0_1, %c0_2] : memref<128x256xbf16, #tpu.memory_space<vmem>>, vector<128x256xbf16>
    %cst = arith.constant dense<0.000000e+00> : vector<16x256xf32>
    %2 = tpu.matmul %0, %1, %cst {dimension_numbers = #tpu.dot_dimension_numbers<[1], [0], [0], [1], [0, 0, 1, 1], [], []>} : vector<16x128xbf16>, vector<128x256xbf16>, vector<16x256xf32> -> vector<16x256xf32>
    %3 = arith.truncf %2 : vector<16x256xf32> to vector<16x256xbf16>
    %c0_3 = arith.constant 0 : index
    %c0_4 = arith.constant 0 : index
    %4 = vector.load %arg4[%c0_3, %c0_4] : memref<16x256xbf16, #tpu.memory_space<vmem>>, vector<16x256xbf16>
    tpu.vector_store %arg4[%c0_3, %c0_4], %3 {strides = array<i32>} : memref<16x256xbf16, #tpu.memory_space<vmem>>, vector<16x256xbf16>,
    %cst_5 = arith.constant dense<0.000000e+00> : vector<256xf32>
    %5 = vector.multi_reduction <add>, %2, %cst_5 [0] : vector<16x256xf32> to vector<256xf32>
    %6 = vector.shape_cast %5 : vector<256xf32> to vector<1x256xf32>
    %7 = arith.mulf %2, %2 : vector<16x256xf32>
    %cst_6 = arith.constant dense<0.000000e+00> : vector<256xf32>
    %8 = vector.multi_reduction <add>, %7, %cst_6 [0] : vector<16x256xf32> to vector<256xf32>
    %9 = vector.shape_cast %8 : vector<256xf32> to vector<1x256xf32>
    %10 = vector.shape_cast %6 : vector<1x256xf32> to vector<1x256xf32>
    %11 = vector.broadcast %10 : vector<1x256xf32> to vector<8x256xf32>
    %c0_7 = arith.constant 0 : index
    %c0_8 = arith.constant 0 : index
    %12 = vector.load %arg5[%c0_7, %c0_8] : memref<8x256xf32, #tpu.memory_space<vmem>>, vector<8x256xf32>
    tpu.vector_store %arg5[%c0_7, %c0_8], %11 {strides = array<i32>} : memref<8x256xf32, #tpu.memory_space<vmem>>, vector<8x256xf32>,
    %13 = vector.shape_cast %9 : vector<1x256xf32> to vector<1x256xf32>
    %14 = vector.broadcast %13 : vector<1x256xf32> to vector<8x256xf32>
    %c0_9 = arith.constant 0 : index
    %c0_10 = arith.constant 0 : index
    %15 = vector.load %arg6[%c0_9, %c0_10] : memref<8x256xf32, #tpu.memory_space<vmem>>, vector<8x256xf32>
    tpu.vector_store %arg6[%c0_9, %c0_10], %14 {strides = array<i32>} : memref<8x256xf32, #tpu.memory_space<vmem>>, vector<8x256xf32>,
    return
  }
  func.func @transform_0(%arg0: i32, %arg1: i32) -> (i32, i32) {
    %c0_i32 = arith.constant 0 : i32
    %c0_i32_0 = arith.constant 0 : i32
    return %arg0, %c0_i32 : i32, i32
  }
  func.func @transform_1(%arg0: i32, %arg1: i32) -> (i32, i32) {
    %c0_i32 = arith.constant 0 : i32
    %c0_i32_0 = arith.constant 0 : i32
    return %c0_i32, %arg1 : i32, i32
  }
  func.func @transform_2(%arg0: i32, %arg1: i32) -> (i32, i32) {
    %c0_i32 = arith.constant 0 : i32
    return %arg0, %arg1 : i32, i32
  }
  func.func @transform_3(%arg0: i32, %arg1: i32) -> (i32, i32) {
    %c0_i32 = arith.constant 0 : i32
    return %arg0, %arg1 : i32, i32
  }
  func.func @transform_4(%arg0: i32, %arg1: i32) -> (i32, i32) {
    %c0_i32 = arith.constant 0 : i32
    return %arg0, %arg1 : i32, i32
  }
}

module attributes {stable_mosaic.version = 11 : i64} {
  func.func @_mm_stats_kernel(%arg0: i32, %arg1: i32, %arg2: memref<112x640xbf16, #tpu.memory_space<vmem>>, %arg3: memref<640x128xbf16, #tpu.memory_space<vmem>>, %arg4: memref<112x128xbf16, #tpu.memory_space<vmem>>, %arg5: memref<8x128xf32, #tpu.memory_space<vmem>>, %arg6: memref<8x128xf32, #tpu.memory_space<vmem>>) attributes {dimension_semantics = [#tpu.dimension_semantics<parallel>, #tpu.dimension_semantics<parallel>], iteration_bounds = array<i64: 1, 1>, scalar_prefetch = 0 : i64, scratch_operands = 0 : i64, tpu.core_type = #tpu.core_type<tc>, window_params = [{transform_indices = @transform_0, window_bounds = array<i64: 112, 640>}, {transform_indices = @transform_1, window_bounds = array<i64: 640, 128>}, {transform_indices = @transform_2, window_bounds = array<i64: 112, 128>}, {transform_indices = @transform_3, window_bounds = array<i64: 8, 128>}, {transform_indices = @transform_4, window_bounds = array<i64: 8, 128>}]} {
    %c0 = arith.constant 0 : index
    %c0_0 = arith.constant 0 : index
    %0 = vector.load %arg2[%c0, %c0_0] : memref<112x640xbf16, #tpu.memory_space<vmem>>, vector<112x640xbf16>
    %c0_1 = arith.constant 0 : index
    %c0_2 = arith.constant 0 : index
    %1 = vector.load %arg3[%c0_1, %c0_2] : memref<640x128xbf16, #tpu.memory_space<vmem>>, vector<640x128xbf16>
    %cst = arith.constant dense<0.000000e+00> : vector<112x128xf32>
    %2 = tpu.matmul %0, %1, %cst {dimension_numbers = #tpu.dot_dimension_numbers<[1], [0], [0], [1], [0, 0, 1, 1], [], []>} : vector<112x640xbf16>, vector<640x128xbf16>, vector<112x128xf32> -> vector<112x128xf32>
    %3 = arith.truncf %2 : vector<112x128xf32> to vector<112x128xbf16>
    %c0_3 = arith.constant 0 : index
    %c0_4 = arith.constant 0 : index
    %4 = vector.load %arg4[%c0_3, %c0_4] : memref<112x128xbf16, #tpu.memory_space<vmem>>, vector<112x128xbf16>
    tpu.vector_store %arg4[%c0_3, %c0_4], %3 {strides = array<i32>} : memref<112x128xbf16, #tpu.memory_space<vmem>>, vector<112x128xbf16>,
    %cst_5 = arith.constant dense<0.000000e+00> : vector<128xf32>
    %5 = vector.multi_reduction <add>, %2, %cst_5 [0] : vector<112x128xf32> to vector<128xf32>
    %6 = vector.shape_cast %5 : vector<128xf32> to vector<1x128xf32>
    %7 = arith.mulf %2, %2 : vector<112x128xf32>
    %cst_6 = arith.constant dense<0.000000e+00> : vector<128xf32>
    %8 = vector.multi_reduction <add>, %7, %cst_6 [0] : vector<112x128xf32> to vector<128xf32>
    %9 = vector.shape_cast %8 : vector<128xf32> to vector<1x128xf32>
    %10 = vector.shape_cast %6 : vector<1x128xf32> to vector<1x128xf32>
    %11 = vector.broadcast %10 : vector<1x128xf32> to vector<8x128xf32>
    %c0_7 = arith.constant 0 : index
    %c0_8 = arith.constant 0 : index
    %12 = vector.load %arg5[%c0_7, %c0_8] : memref<8x128xf32, #tpu.memory_space<vmem>>, vector<8x128xf32>
    tpu.vector_store %arg5[%c0_7, %c0_8], %11 {strides = array<i32>} : memref<8x128xf32, #tpu.memory_space<vmem>>, vector<8x128xf32>,
    %13 = vector.shape_cast %9 : vector<1x128xf32> to vector<1x128xf32>
    %14 = vector.broadcast %13 : vector<1x128xf32> to vector<8x128xf32>
    %c0_9 = arith.constant 0 : index
    %c0_10 = arith.constant 0 : index
    %15 = vector.load %arg6[%c0_9, %c0_10] : memref<8x128xf32, #tpu.memory_space<vmem>>, vector<8x128xf32>
    tpu.vector_store %arg6[%c0_9, %c0_10], %14 {strides = array<i32>} : memref<8x128xf32, #tpu.memory_space<vmem>>, vector<8x128xf32>,
    return
  }
  func.func @transform_0(%arg0: i32, %arg1: i32) -> (i32, i32) {
    %c0_i32 = arith.constant 0 : i32
    %c0_i32_0 = arith.constant 0 : i32
    return %arg0, %c0_i32 : i32, i32
  }
  func.func @transform_1(%arg0: i32, %arg1: i32) -> (i32, i32) {
    %c0_i32 = arith.constant 0 : i32
    %c0_i32_0 = arith.constant 0 : i32
    return %c0_i32, %arg1 : i32, i32
  }
  func.func @transform_2(%arg0: i32, %arg1: i32) -> (i32, i32) {
    %c0_i32 = arith.constant 0 : i32
    return %arg0, %arg1 : i32, i32
  }
  func.func @transform_3(%arg0: i32, %arg1: i32) -> (i32, i32) {
    %c0_i32 = arith.constant 0 : i32
    return %arg0, %arg1 : i32, i32
  }
  func.func @transform_4(%arg0: i32, %arg1: i32) -> (i32, i32) {
    %c0_i32 = arith.constant 0 : i32
    return %arg0, %arg1 : i32, i32
  }
}

module attributes {stable_mosaic.version = 11 : i64} {
  func.func @_mm_stats_kernel(%arg0: i32, %arg1: i32, %arg2: memref<400x384xbf16, #tpu.memory_space<vmem>>, %arg3: memref<384x128xbf16, #tpu.memory_space<vmem>>, %arg4: memref<400x128xbf16, #tpu.memory_space<vmem>>, %arg5: memref<8x128xf32, #tpu.memory_space<vmem>>, %arg6: memref<8x128xf32, #tpu.memory_space<vmem>>) attributes {dimension_semantics = [#tpu.dimension_semantics<parallel>, #tpu.dimension_semantics<parallel>], iteration_bounds = array<i64: 1, 1>, scalar_prefetch = 0 : i64, scratch_operands = 0 : i64, tpu.core_type = #tpu.core_type<tc>, window_params = [{transform_indices = @transform_0, window_bounds = array<i64: 400, 384>}, {transform_indices = @transform_1, window_bounds = array<i64: 384, 128>}, {transform_indices = @transform_2, window_bounds = array<i64: 400, 128>}, {transform_indices = @transform_3, window_bounds = array<i64: 8, 128>}, {transform_indices = @transform_4, window_bounds = array<i64: 8, 128>}]} {
    %c0 = arith.constant 0 : index
    %c0_0 = arith.constant 0 : index
    %0 = vector.load %arg2[%c0, %c0_0] : memref<400x384xbf16, #tpu.memory_space<vmem>>, vector<400x384xbf16>
    %c0_1 = arith.constant 0 : index
    %c0_2 = arith.constant 0 : index
    %1 = vector.load %arg3[%c0_1, %c0_2] : memref<384x128xbf16, #tpu.memory_space<vmem>>, vector<384x128xbf16>
    %cst = arith.constant dense<0.000000e+00> : vector<400x128xf32>
    %2 = tpu.matmul %0, %1, %cst {dimension_numbers = #tpu.dot_dimension_numbers<[1], [0], [0], [1], [0, 0, 1, 1], [], []>} : vector<400x384xbf16>, vector<384x128xbf16>, vector<400x128xf32> -> vector<400x128xf32>
    %3 = arith.truncf %2 : vector<400x128xf32> to vector<400x128xbf16>
    %c0_3 = arith.constant 0 : index
    %c0_4 = arith.constant 0 : index
    %4 = vector.load %arg4[%c0_3, %c0_4] : memref<400x128xbf16, #tpu.memory_space<vmem>>, vector<400x128xbf16>
    tpu.vector_store %arg4[%c0_3, %c0_4], %3 {strides = array<i32>} : memref<400x128xbf16, #tpu.memory_space<vmem>>, vector<400x128xbf16>,
    %cst_5 = arith.constant dense<0.000000e+00> : vector<128xf32>
    %5 = vector.multi_reduction <add>, %2, %cst_5 [0] : vector<400x128xf32> to vector<128xf32>
    %6 = vector.shape_cast %5 : vector<128xf32> to vector<1x128xf32>
    %7 = arith.mulf %2, %2 : vector<400x128xf32>
    %cst_6 = arith.constant dense<0.000000e+00> : vector<128xf32>
    %8 = vector.multi_reduction <add>, %7, %cst_6 [0] : vector<400x128xf32> to vector<128xf32>
    %9 = vector.shape_cast %8 : vector<128xf32> to vector<1x128xf32>
    %10 = vector.shape_cast %6 : vector<1x128xf32> to vector<1x128xf32>
    %11 = vector.broadcast %10 : vector<1x128xf32> to vector<8x128xf32>
    %c0_7 = arith.constant 0 : index
    %c0_8 = arith.constant 0 : index
    %12 = vector.load %arg5[%c0_7, %c0_8] : memref<8x128xf32, #tpu.memory_space<vmem>>, vector<8x128xf32>
    tpu.vector_store %arg5[%c0_7, %c0_8], %11 {strides = array<i32>} : memref<8x128xf32, #tpu.memory_space<vmem>>, vector<8x128xf32>,
    %13 = vector.shape_cast %9 : vector<1x128xf32> to vector<1x128xf32>
    %14 = vector.broadcast %13 : vector<1x128xf32> to vector<8x128xf32>
    %c0_9 = arith.constant 0 : index
    %c0_10 = arith.constant 0 : index
    %15 = vector.load %arg6[%c0_9, %c0_10] : memref<8x128xf32, #tpu.memory_space<vmem>>, vector<8x128xf32>
    tpu.vector_store %arg6[%c0_9, %c0_10], %14 {strides = array<i32>} : memref<8x128xf32, #tpu.memory_space<vmem>>, vector<8x128xf32>,
    return
  }
  func.func @transform_0(%arg0: i32, %arg1: i32) -> (i32, i32) {
    %c0_i32 = arith.constant 0 : i32
    %c0_i32_0 = arith.constant 0 : i32
    return %arg0, %c0_i32 : i32, i32
  }
  func.func @transform_1(%arg0: i32, %arg1: i32) -> (i32, i32) {
    %c0_i32 = arith.constant 0 : i32
    %c0_i32_0 = arith.constant 0 : i32
    return %c0_i32, %arg1 : i32, i32
  }
  func.func @transform_2(%arg0: i32, %arg1: i32) -> (i32, i32) {
    %c0_i32 = arith.constant 0 : i32
    return %arg0, %arg1 : i32, i32
  }
  func.func @transform_3(%arg0: i32, %arg1: i32) -> (i32, i32) {
    %c0_i32 = arith.constant 0 : i32
    return %arg0, %arg1 : i32, i32
  }
  func.func @transform_4(%arg0: i32, %arg1: i32) -> (i32, i32) {
    %c0_i32 = arith.constant 0 : i32
    return %arg0, %arg1 : i32, i32
  }
}

module attributes {stable_mosaic.version = 11 : i64} {
  func.func @_mm_stats_kernel(%arg0: i32, %arg1: i32, %arg2: memref<1568x128xbf16, #tpu.memory_space<vmem>>, %arg3: memref<128x128xbf16, #tpu.memory_space<vmem>>, %arg4: memref<1568x128xbf16, #tpu.memory_space<vmem>>, %arg5: memref<8x128xf32, #tpu.memory_space<vmem>>, %arg6: memref<8x128xf32, #tpu.memory_space<vmem>>) attributes {dimension_semantics = [#tpu.dimension_semantics<parallel>, #tpu.dimension_semantics<parallel>], iteration_bounds = array<i64: 1, 1>, scalar_prefetch = 0 : i64, scratch_operands = 0 : i64, tpu.core_type = #tpu.core_type<tc>, window_params = [{transform_indices = @transform_0, window_bounds = array<i64: 1568, 128>}, {transform_indices = @transform_1, window_bounds = array<i64: 128, 128>}, {transform_indices = @transform_2, window_bounds = array<i64: 1568, 128>}, {transform_indices = @transform_3, window_bounds = array<i64: 8, 128>}, {transform_indices = @transform_4, window_bounds = array<i64: 8, 128>}]} {
    %c0 = arith.constant 0 : index
    %c0_0 = arith.constant 0 : index
    %0 = vector.load %arg2[%c0, %c0_0] : memref<1568x128xbf16, #tpu.memory_space<vmem>>, vector<1568x128xbf16>
    %c0_1 = arith.constant 0 : index
    %c0_2 = arith.constant 0 : index
    %1 = vector.load %arg3[%c0_1, %c0_2] : memref<128x128xbf16, #tpu.memory_space<vmem>>, vector<128x128xbf16>
    %cst = arith.constant dense<0.000000e+00> : vector<1568x128xf32>
    %2 = tpu.matmul %0, %1, %cst {dimension_numbers = #tpu.dot_dimension_numbers<[1], [0], [0], [1], [0, 0, 1, 1], [], []>} : vector<1568x128xbf16>, vector<128x128xbf16>, vector<1568x128xf32> -> vector<1568x128xf32>
    %3 = arith.truncf %2 : vector<1568x128xf32> to vector<1568x128xbf16>
    %c0_3 = arith.constant 0 : index
    %c0_4 = arith.constant 0 : index
    %4 = vector.load %arg4[%c0_3, %c0_4] : memref<1568x128xbf16, #tpu.memory_space<vmem>>, vector<1568x128xbf16>
    tpu.vector_store %arg4[%c0_3, %c0_4], %3 {strides = array<i32>} : memref<1568x128xbf16, #tpu.memory_space<vmem>>, vector<1568x128xbf16>,
    %cst_5 = arith.constant dense<0.000000e+00> : vector<128xf32>
    %5 = vector.multi_reduction <add>, %2, %cst_5 [0] : vector<1568x128xf32> to vector<128xf32>
    %6 = vector.shape_cast %5 : vector<128xf32> to vector<1x128xf32>
    %7 = arith.mulf %2, %2 : vector<1568x128xf32>
    %cst_6 = arith.constant dense<0.000000e+00> : vector<128xf32>
    %8 = vector.multi_reduction <add>, %7, %cst_6 [0] : vector<1568x128xf32> to vector<128xf32>
    %9 = vector.shape_cast %8 : vector<128xf32> to vector<1x128xf32>
    %10 = vector.shape_cast %6 : vector<1x128xf32> to vector<1x128xf32>
    %11 = vector.broadcast %10 : vector<1x128xf32> to vector<8x128xf32>
    %c0_7 = arith.constant 0 : index
    %c0_8 = arith.constant 0 : index
    %12 = vector.load %arg5[%c0_7, %c0_8] : memref<8x128xf32, #tpu.memory_space<vmem>>, vector<8x128xf32>
    tpu.vector_store %arg5[%c0_7, %c0_8], %11 {strides = array<i32>} : memref<8x128xf32, #tpu.memory_space<vmem>>, vector<8x128xf32>,
    %13 = vector.shape_cast %9 : vector<1x128xf32> to vector<1x128xf32>
    %14 = vector.broadcast %13 : vector<1x128xf32> to vector<8x128xf32>
    %c0_9 = arith.constant 0 : index
    %c0_10 = arith.constant 0 : index
    %15 = vector.load %arg6[%c0_9, %c0_10] : memref<8x128xf32, #tpu.memory_space<vmem>>, vector<8x128xf32>
    tpu.vector_store %arg6[%c0_9, %c0_10], %14 {strides = array<i32>} : memref<8x128xf32, #tpu.memory_space<vmem>>, vector<8x128xf32>,
    return
  }
  func.func @transform_0(%arg0: i32, %arg1: i32) -> (i32, i32) {
    %c0_i32 = arith.constant 0 : i32
    %c0_i32_0 = arith.constant 0 : i32
    return %arg0, %c0_i32 : i32, i32
  }
  func.func @transform_1(%arg0: i32, %arg1: i32) -> (i32, i32) {
    %c0_i32 = arith.constant 0 : i32
    %c0_i32_0 = arith.constant 0 : i32
    return %c0_i32, %arg1 : i32, i32
  }
  func.func @transform_2(%arg0: i32, %arg1: i32) -> (i32, i32) {
    %c0_i32 = arith.constant 0 : i32
    return %arg0, %arg1 : i32, i32
  }
  func.func @transform_3(%arg0: i32, %arg1: i32) -> (i32, i32) {
    %c0_i32 = arith.constant 0 : i32
    return %arg0, %arg1 : i32, i32
  }
  func.func @transform_4(%arg0: i32, %arg1: i32) -> (i32, i32) {
    %c0_i32 = arith.constant 0 : i32
    return %arg0, %arg1 : i32, i32
  }
}

module attributes {stable_mosaic.version = 11 : i64} {
  func.func @_mm_plain_kernel(%arg0: i32, %arg1: i32, %arg2: memref<1792x128xbf16, #tpu.memory_space<vmem>>, %arg3: memref<128x128xbf16, #tpu.memory_space<vmem>>, %arg4: memref<1792x128xbf16, #tpu.memory_space<vmem>>) attributes {dimension_semantics = [#tpu.dimension_semantics<parallel>, #tpu.dimension_semantics<parallel>], iteration_bounds = array<i64: 14, 1>, scalar_prefetch = 0 : i64, scratch_operands = 0 : i64, tpu.core_type = #tpu.core_type<tc>, window_params = [{transform_indices = @transform_0, window_bounds = array<i64: 1792, 128>}, {transform_indices = @transform_1, window_bounds = array<i64: 128, 128>}, {transform_indices = @transform_2, window_bounds = array<i64: 1792, 128>}]} {
    %c0 = arith.constant 0 : index
    %c0_0 = arith.constant 0 : index
    %0 = vector.load %arg2[%c0, %c0_0] : memref<1792x128xbf16, #tpu.memory_space<vmem>>, vector<1792x128xbf16>
    %c0_1 = arith.constant 0 : index
    %c0_2 = arith.constant 0 : index
    %1 = vector.load %arg3[%c0_1, %c0_2] : memref<128x128xbf16, #tpu.memory_space<vmem>>, vector<128x128xbf16>
    %cst = arith.constant dense<0.000000e+00> : vector<1792x128xf32>
    %2 = tpu.matmul %0, %1, %cst {dimension_numbers = #tpu.dot_dimension_numbers<[1], [0], [0], [1], [0, 0, 1, 1], [], []>} : vector<1792x128xbf16>, vector<128x128xbf16>, vector<1792x128xf32> -> vector<1792x128xf32>
    %3 = math.tanh %2 : vector<1792x128xf32>
    %4 = arith.truncf %3 : vector<1792x128xf32> to vector<1792x128xbf16>
    %c0_3 = arith.constant 0 : index
    %c0_4 = arith.constant 0 : index
    %5 = vector.load %arg4[%c0_3, %c0_4] : memref<1792x128xbf16, #tpu.memory_space<vmem>>, vector<1792x128xbf16>
    tpu.vector_store %arg4[%c0_3, %c0_4], %4 {strides = array<i32>} : memref<1792x128xbf16, #tpu.memory_space<vmem>>, vector<1792x128xbf16>,
    return
  }
  func.func @transform_0(%arg0: i32, %arg1: i32) -> (i32, i32) {
    %c0_i32 = arith.constant 0 : i32
    %c0_i32_0 = arith.constant 0 : i32
    return %arg0, %c0_i32 : i32, i32
  }
  func.func @transform_1(%arg0: i32, %arg1: i32) -> (i32, i32) {
    %c0_i32 = arith.constant 0 : i32
    %c0_i32_0 = arith.constant 0 : i32
    return %c0_i32, %arg1 : i32, i32
  }
  func.func @transform_2(%arg0: i32, %arg1: i32) -> (i32, i32) {
    %c0_i32 = arith.constant 0 : i32
    return %arg0, %arg1 : i32, i32
  }
}

</mosaic_0001>

<llo_original>
// kernel: generator_forward.5
$region0: #{generator_forward.5}
  #allocation0 [shape = 'u32[]', space=smem, size = 0x4, offset = 0x4, fixed_abs, tag = 'smem constant byte address 0x4 - core index']
  #allocation1 [shape = 'u32[144,128]{1,0:T(1,128)}', space=vmem, size = 0x12000, scoped, tag = 'internal scratch']
  %s0 = inlined_call_operand.vmem [shape: bf16[16,128], index: 0, kind: input, shape index: {}]
  %s1 = inlined_call_operand.hbm [shape: bf16[128,3328], index: 1, kind: input, shape index: {}]
  %s2 = inlined_call_operand.vmem [shape: bf16[16,3328], index: 2, kind: output, shape index: {0}]
  %s3 = inlined_call_operand.vmem [shape: f32[8,3328], index: 3, kind: output, shape index: {1}]
  %s4 = inlined_call_operand.vmem [shape: f32[8,3328], index: 4, kind: output, shape index: {2}]
  %5 = xla_tuple %s2, %s3, %s4
  %s6 = sld [smem:[#allocation0]]
  $region95: #{generator_forward.5} parent=0
    _
  %s8 = ssub.s32 1, %s6
  %s9 = scalar_select 0, %s8, %s6
  $region1: #{generator_forward.5} parent=0
    #allocation2 [shape = 'u8[131072]{0}', space=vmem, size = 0x20000, scoped, tag = 'input window, operand 1']
    #allocation3 [shape = 's32[2]{0}', space=sflag, size = 0x8, scoped, tag = 'scoped memory for generator_forward.5']
    #allocation4 [shape = 'u8[16384]{0}', space=vmem, size = 0x4000, scoped, tag = 'output window, operand 0']
    %10 = vsyncpa [#allocation3], 0
    %s11 = scalar_lea.sflag [#allocation3], 1
    %12 = vsyncpa %s11, 0
    loop: start=0, step=1, limit=15
    $region2: #{generator_forward.5} parent=1 // loop_pre_header
      _
    $region3: #{generator_forward.5} parent=1 // loop_header
      %s14 = sphi 0, %s18
      %p15 = scmp.ge.s32.totalorder %s14, 15
      %s21 = sphi 0, %s33
      %s22 = sphi 0, %s29
      %s23 = sphi 0, %s21
      %s24 = sphi 0, %s22
      %s25 = sphi 0, %s23
      %s26 = sphi 0, %s24
      %s36 = sphi 0, %s38
      %s39 = sphi 0, %s36
      %s40 = sphi 0, %s39
      %s56 = sphi 0, %s40
      %s62 = sphi 0, %s64
      %s65 = sphi 0, %s62
      %s66 = sphi 0, %s65
      %s82 = sphi 0, %s66
      %s90 = sphi 0, %s92
      %s93 = sphi 0, %s90
      %s94 = sphi 0, %s93
      %s110 = sphi 0, %s94
      %s118 = sphi 0, %s120
      %s121 = sphi 0, %s118
      %s122 = sphi 0, %s121
      %s138 = sphi 0, %s122
      %s146 = sphi 0, %s148
      %s149 = sphi 0, %s146
      %s150 = sphi 0, %s149
      %s166 = sphi 0, %s150
    $region4: #{generator_forward.5} parent=1 // loop_header_branch
      %17 = sbr.rel (%p15) target = $region8
    $region5: #{generator_forward.5} parent=1 // loop_body
      %s19 = ssub.s32 %s14, 1
      %s20 = ssub.s32 %s14, 2
      %s27 = sadd.s32 1, %s22
      %p28 = scmp.ge.s32.totalorder %s27, 13
      %s29 = scalar_select %p28, 0, %s27
      %s30 = sadd.s32 1, %s21
      %s31 = scalar_select %p28, %s30, %s21
      %p32 = scmp.ge.s32.totalorder %s31, 1
      %s33 = scalar_select %p32, 0, %s31
      %s34 = ssub.s32 %s21, %s33
      %p35 = scmp.eq.s32.totalorder %s34, 0
      %s37 = sadd.s32 %s36, 1
      %s38 = scalar_select %p35, %s36, %s37
      %p41 = pneg %p35
      %p42 = scmp.eq.s32.totalorder %s14, 12
      %p43 = por %p41, %p42
      %p44 = scmp.ne.s32.totalorder %s36, %s39
      %p45 = scmp.eq.s32.totalorder %s14, 0
      %p46 = por %p44, %p45
      %p47 = scmp.ne.s32.totalorder %s36, %s39
      %p48 = scmp.eq.s32.totalorder %s19, 12
      %p49 = por %p47, %p48
      %p50 = scmp.ne.s32.totalorder %s39, %s40
      %p51 = scmp.eq.s32.totalorder %s19, 0
      %p52 = por %p50, %p51
      %p53 = scmp.ne.s32.totalorder %s39, %s40
      %p54 = scmp.eq.s32.totalorder %s20, 12
      %p55 = por %p53, %p54
      %p57 = scmp.ne.s32.totalorder %s40, %s56
      %p58 = scmp.eq.s32.totalorder %s20, 0
      %p59 = por %p57, %p58
      %s60 = ssub.s32 %s22, %s29
      %p61 = scmp.eq.s32.totalorder %s60, 0
      %s63 = sadd.s32 %s62, 1
      %s64 = scalar_select %p61, %s62, %s63
      %p67 = pneg %p61
      %p68 = scmp.eq.s32.totalorder %s14, 12
      %p69 = por %p67, %p68
      %p70 = scmp.ne.s32.totalorder %s62, %s65
      %p71 = scmp.eq.s32.totalorder %s14, 0
      %p72 = por %p70, %p71
      %p73 = scmp.ne.s32.totalorder %s62, %s65
      %p74 = scmp.eq.s32.totalorder %s19, 12
      %p75 = por %p73, %p74
      %p76 = scmp.ne.s32.totalorder %s65, %s66
      %p77 = scmp.eq.s32.totalorder %s19, 0
      %p78 = por %p76, %p77
      %p79 = scmp.ne.s32.totalorder %s65, %s66
      %p80 = scmp.eq.s32.totalorder %s20, 12
      %p81 = por %p79, %p80
      %p83 = scmp.ne.s32.totalorder %s66, %s82
      %p84 = scmp.eq.s32.totalorder %s20, 0
      %p85 = por %p83, %p84
      %s86 = ssub.s32 %s21, %s33
      %s87 = ssub.s32 %s22, %s29
      %s88 = sor.u32 %s86, %s87
      %p89 = scmp.eq.s32.totalorder %s88, 0
      %s91 = sadd.s32 %s90, 1
      %s92 = scalar_select %p89, %s90, %s91
      %p95 = pneg %p89
      %p96 = scmp.eq.s32.totalorder %s14, 12
      %p97 = por %p95, %p96
      %p98 = scmp.ne.s32.totalorder %s90, %s93
      %p99 = scmp.eq.s32.totalorder %s14, 0
      %p100 = por %p98, %p99
      %p101 = scmp.ne.s32.totalorder %s90, %s93
      %p102 = scmp.eq.s32.totalorder %s19, 12
      %p103 = por %p101, %p102
      %p104 = scmp.ne.s32.totalorder %s93, %s94
      %p105 = scmp.eq.s32.totalorder %s19, 0
      %p106 = por %p104, %p105
      %p107 = scmp.ne.s32.totalorder %s93, %s94
      %p108 = scmp.eq.s32.totalorder %s20, 12
      %p109 = por %p107, %p108
      %p111 = scmp.ne.s32.totalorder %s94, %s110
      %p112 = scmp.eq.s32.totalorder %s20, 0
      %p113 = por %p111, %p112
      %s114 = ssub.s32 %s21, %s33
      %s115 = ssub.s32 %s22, %s29
      %s116 = sor.u32 %s114, %s115
      %p117 = scmp.eq.s32.totalorder %s116, 0
      %s119 = sadd.s32 %s118, 1
      %s120 = scalar_select %p117, %s118, %s119
      %p123 = pneg %p117
      %p124 = scmp.eq.s32.totalorder %s14, 12
      %p125 = por %p123, %p124
      %p126 = scmp.ne.s32.totalorder %s118, %s121
      %p127 = scmp.eq.s32.totalorder %s14, 0
      %p128 = por %p126, %p127
      %p129 = scmp.ne.s32.totalorder %s118, %s121
      %p130 = scmp.eq.s32.totalorder %s19, 12
      %p131 = por %p129, %p130
      %p132 = scmp.ne.s32.totalorder %s121, %s122
      %p133 = scmp.eq.s32.totalorder %s19, 0
      %p134 = por %p132, %p133
      %p135 = scmp.ne.s32.totalorder %s121, %s122
      %p136 = scmp.eq.s32.totalorder %s20, 12
      %p137 = por %p135, %p136
      %p139 = scmp.ne.s32.totalorder %s122, %s138
      %p140 = scmp.eq.s32.totalorder %s20, 0
      %p141 = por %p139, %p140
      %s142 = ssub.s32 %s21, %s33
      %s143 = ssub.s32 %s22, %s29
      %s144 = sor.u32 %s142, %s143
      %p145 = scmp.eq.s32.totalorder %s144, 0
      %s147 = sadd.s32 %s146, 1
      %s148 = scalar_select %p145, %s146, %s147
      %p151 = pneg %p145
      %p152 = scmp.eq.s32.totalorder %s14, 12
      %p153 = por %p151, %p152
      %p154 = scmp.ne.s32.totalorder %s146, %s149
      %p155 = scmp.eq.s32.totalorder %s14, 0
      %p156 = por %p154, %p155
      %p157 = scmp.ne.s32.totalorder %s146, %s149
      %p158 = scmp.eq.s32.totalorder %s19, 12
      %p159 = por %p157, %p158
      %p160 = scmp.ne.s32.totalorder %s149, %s150
      %p161 = scmp.eq.s32.totalorder %s19, 0
      %p162 = por %p160, %p161
      %p163 = scmp.ne.s32.totalorder %s149, %s150
      %p164 = scmp.eq.s32.totalorder %s20, 12
      %p165 = por %p163, %p164
      %p167 = scmp.ne.s32.totalorder %s150, %s166
      %p168 = scmp.eq.s32.totalorder %s20, 0
      %p169 = por %p167, %p168
      %p170 = scmp.le.s32.totalorder 1, %s14
      %p171 = scmp.lt.s32.totalorder %s14, 14
      %p172 = pnand %p170, %p171
      %p173 = pneg %p172
      // Predicated region
      $region9: #{generator_forward.5} parent=5 // pred_check
        _
      $region10: #{generator_forward.5} parent=5 // pred_check_branch
        %175 = sbr.rel (%p172) target = $region12
      $region11: #{generator_forward.5} parent=5 // pred_region
        %s176 = ssub.s32 %s14, 1
        // Predicated region
        $region13: #{generator_forward.5} parent=11 // pred_check
          %p177 = pneg %p52
        $region14: #{generator_forward.5} parent=11 // pred_check_branch
          %179 = sbr.rel (%p177) target = $region16
        $region15: #{generator_forward.5} parent=11 // pred_region
          %s180 = smul.u32 2, %s23
          %p181 = scmp.lt.s32.totalorder %s180, 1
          %s182 = scalar_select %p181, %s180, 1
          %s183 = smul.addr %s182, 4
          %s184 = scalar_lea.vmem %s0, %s183
          %s185 = smul.u32 2, %s23
        $region16: #{generator_forward.5} parent=11 // pred_fallthru
          _
      $region12: #{generator_forward.5} parent=5 // pred_fallthru
        _
      %p186 = scmp.lt.s32.totalorder %s14, 13
      // Predicated region
      $region17: #{generator_forward.5} parent=5 // pred_check
        %p187 = pneg %p186
      $region18: #{generator_forward.5} parent=5 // pred_check_branch
        %189 = sbr.rel (%p187) target = $region20
      $region19: #{generator_forward.5} parent=5 // pred_region
        // Predicated region
        $region21: #{generator_forward.5} parent=19 // pred_check
          %p190 = pneg %p72
        $region22: #{generator_forward.5} parent=19 // pred_check_branch
          %192 = sbr.rel (%p190) target = $region24
        $region23: #{generator_forward.5} parent=19 // pred_region
          %s193 = sand.u32 %s62, 1
          %s194 = scalar_lea.sflag [#allocation3], %s193
          %s195 = sand.u32 %s62, 1
          %s196 = smul.addr %s195, 128
          %s197 = scalar_lea.vmem [#allocation2], %s196
          %s198 = smul.u32 2, %s22
          %s200 = ssub.s32 2048, 2048
          %201 = vsyncadd %s194, %s200
          %s202 = smul.addr %s198, 64
          %s203 = scalar_lea.hbm %s1, %s202
          %s204 = sshll.u32 %s197, 4
          %s205 = int_to_ptr.vmem [resolvable:$true] %s204
          %210 = dma.hbm_to_vmem [thread:$0]  %s203, 2048, %s205, %s194, 1664, 128, 8
        $region24: #{generator_forward.5} parent=19 // pred_fallthru
          _
      $region20: #{generator_forward.5} parent=5 // pred_fallthru
        _
      %p211 = scmp.le.s32.totalorder 1, %s14
      %p212 = scmp.lt.s32.totalorder %s14, 14
      %p213 = pnand %p211, %p212
      %p214 = pneg %p213
      // Predicated region
      $region25: #{generator_forward.5} parent=5 // pred_check
        _
      $region26: #{generator_forward.5} parent=5 // pred_check_branch
        %216 = sbr.rel (%p213) target = $region28
      $region27: #{generator_forward.5} parent=5 // pred_region
        %s217 = ssub.s32 %s14, 1
        %s218 = sand.u32 %s65, 1
        %s219 = scalar_lea.sflag [#allocation3], %s218
        %s220 = sand.u32 %s65, 1
        %s221 = smul.addr %s220, 128
        %s222 = scalar_lea.vmem [#allocation2], %s221
        // Predicated region
        $region29: #{generator_forward.5} parent=27 // pred_check
          %p223 = pneg %p78
        $region30: #{generator_forward.5} parent=27 // pred_check_branch
          %225 = sbr.rel (%p223) target = $region32
        $region31: #{generator_forward.5} parent=27 // pred_region
          %226 = dma.done %s219, 2048
        $region32: #{generator_forward.5} parent=27 // pred_fallthru
          _
        %s227 = smul.u32 2, %s23
        %p228 = scmp.lt.s32.totalorder %s227, 1
        %s229 = scalar_select %p228, %s227, 1
        %s230 = smul.addr %s229, 4
        %s231 = scalar_lea.vmem %s0, %s230
        %p232 = pneg %p52
        %p233 = pneg %p49
        %s234 = sand.u32 %s65, 1
        %s235 = scalar_lea.sflag [#allocation3], %s234
        %s236 = sand.u32 %s65, 1
        %s237 = smul.addr %s236, 128
        %s238 = scalar_lea.vmem [#allocation2], %s237
        %p239 = pneg %p78
        %p240 = pneg %p75
        %p241 = pneg %p106
        %p242 = pneg %p103
        %s243 = sand.u32 %s93, 1
        %s244 = sand.u32 %s93, 1
        %s245 = smul.addr %s244, 16
        %s246 = scalar_lea.vmem [#allocation4], %s245
        %p247 = pneg %p134
        %p248 = pneg %p131
        %s249 = smul.u32 2, %s24
        %p250 = scmp.lt.s32.totalorder %s23, 0
        %s251 = scalar_select %p250, %s23, 0
        %p252 = scmp.lt.s32.totalorder %s249, 25
        %s253 = scalar_select %p252, %s249, 25
        %s254 = smul.addr %s251, 26
        %s255 = sadd.s32 %s253, %s254
        %s256 = smul.addr %s255, 8
        %s257 = scalar_lea.vmem %s3, %s256
        %p258 = pneg %p162
        %p259 = pneg %p159
        %s260 = smul.u32 2, %s24
        %p261 = scmp.lt.s32.totalorder %s23, 0
        %s262 = scalar_select %p261, %s23, 0
        %p263 = scmp.lt.s32.totalorder %s260, 25
        %s264 = scalar_select %p263, %s260, 25
        %s265 = smul.addr %s262, 26
        %s266 = sadd.s32 %s264, %s265
        %s267 = smul.addr %s266, 8
        %s268 = scalar_lea.vmem %s4, %s267
        %s269 = smul.u32 2, %s23
        %p270 = scmp.lt.s32.totalorder %s269, 1
        %s271 = scalar_select %p270, %s269, 1
        %s272 = smul.addr %s271, 4
        %s273 = scalar_lea.vmem %s0, %s272
        %s274 = smul.u32 2, %s23
        %s275 = smul.u32 2, %s24
        %s276 = smul.u32 2, %s23
        %s277 = smul.u32 2, %s24
        %s278 = smul.u32 2, %s24
        %p279 = scmp.lt.s32.totalorder %s23, 0
        %s280 = scalar_select %p279, %s23, 0
        %p281 = scmp.lt.s32.totalorder %s278, 25
        %s282 = scalar_select %p281, %s278, 25
        %s283 = smul.addr %s280, 26
        %s284 = sadd.s32 %s282, %s283
        %s285 = smul.addr %s284, 8
        %s286 = scalar_lea.vmem %s3, %s285
        %s287 = smul.u32 2, %s24
        %s288 = smul.u32 2, %s24
        %p289 = scmp.lt.s32.totalorder %s23, 0
        %s290 = scalar_select %p289, %s23, 0
        %p291 = scmp.lt.s32.totalorder %s288, 25
        %s292 = scalar_select %p291, %s288, 25
        %s293 = smul.addr %s290, 26
        %s294 = sadd.s32 %s292, %s293
        %s295 = smul.addr %s294, 8
        %s296 = scalar_lea.vmem %s4, %s295
        %s297 = smul.u32 2, %s24
        %v299 = vld [vmem:[%s273] sm:$0xf]
        %v300 = vld [vmem:[%s273 + $0x4] sm:$0xf]
        %v301 = vld [vmem:[%s222] sm:$0xff]
        %v302 = vld [vmem:[%s222 + $0x8] sm:$0xff]
        %v303 = vld [vmem:[%s222 + $0x10] sm:$0xff]
        %v304 = vld [vmem:[%s222 + $0x18] sm:$0xff]
        %v305 = vld [vmem:[%s222 + $0x20] sm:$0xff]
        %v306 = vld [vmem:[%s222 + $0x28] sm:$0xff]
        %v307 = vld [vmem:[%s222 + $0x30] sm:$0xff]
        %v308 = vld [vmem:[%s222 + $0x38] sm:$0xff]
        %v309 = vld [vmem:[%s222 + $0x40] sm:$0xff]
        %v310 = vld [vmem:[%s222 + $0x48] sm:$0xff]
        %v311 = vld [vmem:[%s222 + $0x50] sm:$0xff]
        %v312 = vld [vmem:[%s222 + $0x58] sm:$0xff]
        %v313 = vld [vmem:[%s222 + $0x60] sm:$0xff]
        %v314 = vld [vmem:[%s222 + $0x68] sm:$0xff]
        %v315 = vld [vmem:[%s222 + $0x70] sm:$0xff]
        %v316 = vld [vmem:[%s222 + $0x78] sm:$0xff]
        %v319 = vunpack.c.l.b16 %v299
        %v320 = vunpack.c.l.b16 %v300
        %v321 = vpack.c.b16 %v320, %v319
        %v339 = vunpack.c.l.b16 %v301
        %v340 = vunpack.c.h.b16 %v301
        %v341 = vunpack.c.l.b16 %v302
        %v342 = vunpack.c.h.b16 %v302
        %v343 = vunpack.c.l.b16 %v303
        %v344 = vunpack.c.h.b16 %v303
        %v345 = vunpack.c.l.b16 %v304
        %v346 = vunpack.c.h.b16 %v304
        %v347 = vunpack.c.l.b16 %v305
        %v348 = vunpack.c.h.b16 %v305
        %v349 = vunpack.c.l.b16 %v306
        %v350 = vunpack.c.h.b16 %v306
        %v351 = vunpack.c.l.b16 %v307
        %v352 = vunpack.c.h.b16 %v307
        %v353 = vunpack.c.l.b16 %v308
        %v354 = vunpack.c.h.b16 %v308
        %v355 = vunpack.c.l.b16 %v309
        %v356 = vunpack.c.h.b16 %v309
        %v357 = vunpack.c.l.b16 %v310
        %v358 = vunpack.c.h.b16 %v310
        %v359 = vunpack.c.l.b16 %v311
        %v360 = vunpack.c.h.b16 %v311
        %v361 = vunpack.c.l.b16 %v312
        %v362 = vunpack.c.h.b16 %v312
        %v363 = vunpack.c.l.b16 %v313
        %v364 = vunpack.c.h.b16 %v313
        %v365 = vunpack.c.l.b16 %v314
        %v366 = vunpack.c.h.b16 %v314
        %v367 = vunpack.c.l.b16 %v315
        %v368 = vunpack.c.h.b16 %v315
        %v369 = vunpack.c.l.b16 %v316
        %v370 = vunpack.c.h.b16 %v316
        %v371 = vpack.c.b16 %v341, %v339
        %v372 = vpack.c.b16 %v342, %v340
        %v373 = vpack.c.b16 %v345, %v343
        %v374 = vpack.c.b16 %v346, %v344
        %v375 = vpack.c.b16 %v349, %v347
        %v376 = vpack.c.b16 %v350, %v348
        %v377 = vpack.c.b16 %v353, %v351
        %v378 = vpack.c.b16 %v354, %v352
        %v379 = vpack.c.b16 %v357, %v355
        %v380 = vpack.c.b16 %v358, %v356
        %v381 = vpack.c.b16 %v361, %v359
        %v382 = vpack.c.b16 %v362, %v360
        %v383 = vpack.c.b16 %v365, %v363
        %v384 = vpack.c.b16 %v366, %v364
        %v385 = vpack.c.b16 %v369, %v367
        %v386 = vpack.c.b16 %v370, %v368
        %403 = vmatprep.subr.bf16.mxu0 %v372
        %404 = vmatpush1.bf16.msra.mxu0 %v371
        %405 = vmatprep.subr.bf16.mxu0 %v374
        %406 = vmatpush1.bf16.msra.mxu0 %v373
        %407 = vmatprep.subr.bf16.mxu0 %v376
        %408 = vmatpush1.bf16.msra.mxu0 %v375
        %409 = vmatprep.subr.bf16.mxu0 %v378
        %410 = vmatpush1.bf16.msra.mxu0 %v377
        %411 = vmatprep.subr.bf16.mxu0 %v380
        %412 = vmatpush1.bf16.msra.mxu0 %v379
        %413 = vmatprep.subr.bf16.mxu0 %v382
        %414 = vmatpush1.bf16.msra.mxu0 %v381
        %415 = vmatprep.subr.bf16.mxu0 %v384
        %416 = vmatpush1.bf16.msra.mxu0 %v383
        %417 = vmatprep.subr.bf16.mxu0 %v386
        %418 = vmatpush1.bf16.msra.mxu0 %v385
        %419 = vmatprep.subr.bf16.mxu0 0
        %420 = vmatpush1.bf16.msra.mxu0 0
        %421 = vmatprep.subr.bf16.mxu0 0
        %422 = vmatpush1.bf16.msra.mxu0 0
        %423 = vmatprep.subr.bf16.mxu0 0
        %424 = vmatpush1.bf16.msra.mxu0 0
        %425 = vmatprep.subr.bf16.mxu0 0
        %426 = vmatpush1.bf16.msra.mxu0 0
        %427 = vmatprep.subr.bf16.mxu0 0
        %428 = vmatpush1.bf16.msra.mxu0 0
        %429 = vmatprep.subr.bf16.mxu0 0
        %430 = vmatpush1.bf16.msra.mxu0 0
        %431 = vmatprep.subr.bf16.mxu0 0
        %432 = vmatpush1.bf16.msra.mxu0 0
        %433 = vmatprep.subr.bf16.mxu0 0
        %434 = vmatpush1.bf16.msra.mxu0 0
        %435 = vmatprep.mubr.bf16.mxu0 0
        %436 = vmatmul.mubr.bf16.gmra.mrb[0].mxu0 %v321
        %v437 = vpop.f32.mrb[0].mxu0
        %v438 = vadd.f32 0.0, %v437
        %v439 = vpop.f32.mrb[0].mxu0
        %v440 = vadd.f32 0.0, %v439
        %v441 = vpop.f32.mrb[0].mxu0
        %v442 = vadd.f32 0.0, %v441
        %v443 = vpop.f32.mrb[0].mxu0
        %v444 = vadd.f32 0.0, %v443
        %445 = vdwg.mxu0
        %v446 = vpack.c.bf16 %v442, %v438
        %v447 = vpack.c.bf16 %v444, %v440
        %v450 = vunpack.c.l.b16 %v446
        %v451 = vunpack.c.l.b16 %v447
        %v452 = vunpack.c.h.b16 %v446
        %v453 = vunpack.c.h.b16 %v447
        %v454 = vpack.c.b16 %v451, %v450
        %v455 = vpack.c.b16 %v453, %v452
        %458 = vst [vmem:[%s246] sm:$0xff] %v454
        %459 = vst [vmem:[%s246 + $0x8] sm:$0xff] %v455
        %v460 = vadd.f32 %v438, %v442
        %v461 = vrot.slane %v460, 4
        %v462 = vadd.f32 %v460, %v461
        %v463 = vrot.slane %v462, 2
        %v464 = vadd.f32 %v462, %v463
        %v465 = vrot.slane %v464, 1
        %v466 = vadd.f32 %v464, %v465
        %v467 = vadd.f32 %v440, %v444
        %v468 = vrot.slane %v467, 4
        %v469 = vadd.f32 %v467, %v468
        %v470 = vrot.slane %v469, 2
        %v471 = vadd.f32 %v469, %v470
        %v472 = vrot.slane %v471, 1
        %v473 = vadd.f32 %v471, %v472
        %v474 = vmul.f32 %v438, %v438
        %v475 = vmul.f32 %v440, %v440
        %v476 = vmul.f32 %v442, %v442
        %v477 = vmul.f32 %v444, %v444
        %v478 = vadd.f32 %v474, %v476
        %v479 = vrot.slane %v478, 4
        %v480 = vadd.f32 %v478, %v479
        %v481 = vrot.slane %v480, 2
        %v482 = vadd.f32 %v480, %v481
        %v483 = vrot.slane %v482, 1
        %v484 = vadd.f32 %v482, %v483
        %v485 = vadd.f32 %v475, %v477
        %v486 = vrot.slane %v485, 4
        %v487 = vadd.f32 %v485, %v486
        %v488 = vrot.slane %v487, 2
        %v489 = vadd.f32 %v487, %v488
        %v490 = vrot.slane %v489, 1
        %v491 = vadd.f32 %v489, %v490
        %492 = vst [vmem:[%s286] sm:$0xff] %v466
        %493 = vst [vmem:[%s286 + $0x8] sm:$0xff] %v473
        %494 = vst [vmem:[%s296] sm:$0xff] %v484
        %495 = vst [vmem:[%s296 + $0x8] sm:$0xff] %v491
        %s496 = sand.u32 %s93, 1
        %s497 = sand.u32 %s93, 1
        %s498 = smul.addr %s497, 16
        %s499 = scalar_lea.vmem [#allocation4], %s498
        %s500 = smul.u32 2, %s24
        %p501 = scmp.lt.s32.totalorder %s23, 0
        %s502 = scalar_select %p501, %s23, 0
        %p503 = scmp.lt.s32.totalorder %s500, 25
        %s504 = scalar_select %p503, %s500, 25
        %s505 = smul.addr %s502, 26
        %s506 = sadd.s32 %s504, %s505
        %s507 = smul.addr %s506, 8
        %s508 = scalar_lea.vmem %s3, %s507
        %s509 = smul.u32 2, %s24
        %p510 = scmp.lt.s32.totalorder %s23, 0
        %s511 = scalar_select %p510, %s23, 0
        %p512 = scmp.lt.s32.totalorder %s509, 25
        %s513 = scalar_select %p512, %s509, 25
        %s514 = smul.addr %s511, 26
        %s515 = sadd.s32 %s513, %s514
        %s516 = smul.addr %s515, 8
        %s517 = scalar_lea.vmem %s4, %s516
        // Predicated region
        $region33: #{generator_forward.5} parent=27 // pred_check
          %p518 = pneg %p103
        $region34: #{generator_forward.5} parent=27 // pred_check_branch
          %520 = sbr.rel (%p518) target = $region36
        $region35: #{generator_forward.5} parent=27 // pred_region
          %s521 = smul.u32 2, %s23
          %s522 = smul.u32 2, %s24
          %s523 = smul.addr %s521, 26
          %s524 = sadd.s32 %s522, %s523
          %s525 = smul.addr %s524, 4
          %s526 = scalar_lea.vmem %s2, %s525
          // Predicated region
          $region37: #{generator_forward.5} parent=35 // pred_check
            _
          $region38: #{generator_forward.5} parent=35 // pred_check_branch
            %528 = sbr.rel (0) target = $region40
          $region39: #{generator_forward.5} parent=35 // pred_region
            // Predicated region
            $region41: #{generator_forward.5} parent=39 // pred_check
              _
            $region42: #{generator_forward.5} parent=39 // pred_check_branch
              %530 = sbr.rel (0) target = $region44
            $region43: #{generator_forward.5} parent=39 // pred_region
              // Predicated region
              $region56: #{generator_forward.5} parent=43 // pred_check
                _
              $region57: #{generator_forward.5} parent=43 // pred_check_branch
                %547 = sbr.rel (0) target = $region59
              $region58: #{generator_forward.5} parent=43 // pred_region
                loop: start=0, step=1, limit=1
                $region60: #{generator_forward.5} parent=58 // loop_pre_header
                  _
                $region61: #{generator_forward.5} parent=58 // loop_header
                  %s549 = sphi 0, %s553
                  %p550 = scmp.ge.s32.totalorder %s549, 1
                  %s554 = sphi %s499, %s499
                  %s555 = sphi %s526, %s526
                $region62: #{generator_forward.5} parent=58 // loop_header_branch
                  %552 = sbr.rel (%p550) target = $region66
                $region63: #{generator_forward.5} parent=58 // loop_body
                  %v556 = vld [vmem:[%s554] sm:$0xff]
                  %557 = vst [vmem:[%s555] sm:$0xff] %v556
                  %v558 = vld [vmem:[%s554 + $0x8] sm:$0xff]
                  %559 = vst [vmem:[%s555 + $0x68] sm:$0xff] %v558
                $region64: #{generator_forward.5} parent=58 // loop_footer
                  %s553 = sadd.s32 1, %s549
                $region65: #{generator_forward.5} parent=58 // loop_footer_branch
                  %548 = sbr.rel target = $region61
                $region66: #{generator_forward.5} parent=58 // loop_exit
                  _
              $region59: #{generator_forward.5} parent=43 // pred_fallthru
                _
              // Predicated region
              $region67: #{generator_forward.5} parent=43 // pred_check
                _
              $region68: #{generator_forward.5} parent=43 // pred_check_branch
                %561 = sbr.rel target = $region70
              $region69: #{generator_forward.5} parent=43 // pred_region
                _
              $region70: #{generator_forward.5} parent=43 // pred_fallthru
                _
            $region44: #{generator_forward.5} parent=39 // pred_fallthru
              _
            // Predicated region
            $region45: #{generator_forward.5} parent=39 // pred_check
              _
            $region46: #{generator_forward.5} parent=39 // pred_check_branch
              %532 = sbr.rel target = $region48
            $region47: #{generator_forward.5} parent=39 // pred_region
              loop: start=0, step=1, limit=1
              $region49: #{generator_forward.5} parent=47 // loop_pre_header
                _
              $region50: #{generator_forward.5} parent=47 // loop_header
                %s535 = sphi 0, %s539
                %p536 = scmp.ge.s32.totalorder %s535, 1
                %s540 = sphi %s499, %s499
                %s541 = sphi %s526, %s526
              $region51: #{generator_forward.5} parent=47 // loop_header_branch
                %538 = sbr.rel (%p536) target = $region55
              $region52: #{generator_forward.5} parent=47 // loop_body
                %v542 = vld [vmem:[%s540] sm:$0xff]
                %543 = vst [vmem:[%s541] sm:$0xff] %v542
                %v544 = vld [vmem:[%s540 + $0x8] sm:$0xff]
                %545 = vst [vmem:[%s541 + $0x68] sm:$0xff] %v544
              $region53: #{generator_forward.5} parent=47 // loop_footer
                %s539 = sadd.s32 1, %s535
              $region54: #{generator_forward.5} parent=47 // loop_footer_branch
                %534 = sbr.rel target = $region50
              $region55: #{generator_forward.5} parent=47 // loop_exit
                _
            $region48: #{generator_forward.5} parent=39 // pred_fallthru
              _
          $region40: #{generator_forward.5} parent=35 // pred_fallthru
            _
          %562 = vnop
        $region36: #{generator_forward.5} parent=27 // pred_fallthru
          _
        // Predicated region
        $region71: #{generator_forward.5} parent=27 // pred_check
          %p563 = pneg %p131
        $region72: #{generator_forward.5} parent=27 // pred_check_branch
          %565 = sbr.rel (%p563) target = $region74
        $region73: #{generator_forward.5} parent=27 // pred_region
          %s566 = smul.u32 2, %s24
        $region74: #{generator_forward.5} parent=27 // pred_fallthru
          _
        // Predicated region
        $region75: #{generator_forward.5} parent=27 // pred_check
          %p567 = pneg %p159
        $region76: #{generator_forward.5} parent=27 // pred_check_branch
          %569 = sbr.rel (%p567) target = $region78
        $region77: #{generator_forward.5} parent=27 // pred_region
          %s570 = smul.u32 2, %s24
        $region78: #{generator_forward.5} parent=27 // pred_fallthru
          _
      $region28: #{generator_forward.5} parent=5 // pred_fallthru
        _
      %p571 = scmp.le.s32.totalorder 2, %s14
      // Predicated region
      $region79: #{generator_forward.5} parent=5 // pred_check
        %p572 = pneg %p571
      $region80: #{generator_forward.5} parent=5 // pred_check_branch
        %574 = sbr.rel (%p572) target = $region82
      $region81: #{generator_forward.5} parent=5 // pred_region
        %s575 = ssub.s32 %s14, 2
        // Predicated region
        $region83: #{generator_forward.5} parent=81 // pred_check
          %p576 = pneg %p109
        $region84: #{generator_forward.5} parent=81 // pred_check_branch
          %578 = sbr.rel (%p576) target = $region86
        $region85: #{generator_forward.5} parent=81 // pred_region
          %s579 = sand.u32 %s94, 1
          %s580 = sand.u32 %s94, 1
          %s581 = smul.addr %s580, 16
          %s582 = scalar_lea.vmem [#allocation4], %s581
        $region86: #{generator_forward.5} parent=81 // pred_fallthru
          _
        // Predicated region
        $region87: #{generator_forward.5} parent=81 // pred_check
          %p583 = pneg %p137
        $region88: #{generator_forward.5} parent=81 // pred_check_branch
          %585 = sbr.rel (%p583) target = $region90
        $region89: #{generator_forward.5} parent=81 // pred_region
          %s586 = smul.u32 2, %s26
          %p587 = scmp.lt.s32.totalorder %s25, 0
          %s588 = scalar_select %p587, %s25, 0
          %p589 = scmp.lt.s32.totalorder %s586, 25
          %s590 = scalar_select %p589, %s586, 25
          %s591 = smul.addr %s588, 26
          %s592 = sadd.s32 %s590, %s591
          %s593 = smul.addr %s592, 8
          %s594 = scalar_lea.vmem %s3, %s593
        $region90: #{generator_forward.5} parent=81 // pred_fallthru
          _
        // Predicated region
        $region91: #{generator_forward.5} parent=81 // pred_check
          %p595 = pneg %p165
        $region92: #{generator_forward.5} parent=81 // pred_check_branch
          %597 = sbr.rel (%p595) target = $region94
        $region93: #{generator_forward.5} parent=81 // pred_region
          %s598 = smul.u32 2, %s26
          %p599 = scmp.lt.s32.totalorder %s25, 0
          %s600 = scalar_select %p599, %s25, 0
          %p601 = scmp.lt.s32.totalorder %s598, 25
          %s602 = scalar_select %p601, %s598, 25
          %s603 = smul.addr %s600, 26
          %s604 = sadd.s32 %s602, %s603
          %s605 = smul.addr %s604, 8
          %s606 = scalar_lea.vmem %s4, %s605
        $region94: #{generator_forward.5} parent=81 // pred_fallthru
          _
      $region82: #{generator_forward.5} parent=5 // pred_fallthru
        _
    $region6: #{generator_forward.5} parent=1 // loop_footer
      %s18 = sadd.s32 1, %s14
    $region7: #{generator_forward.5} parent=1 // loop_footer_branch
      %13 = sbr.rel target = $region3
    $region8: #{generator_forward.5} parent=1 // loop_exit
      _
    %607 = vsyncpa [#allocation3], 1
    %s608 = scalar_lea.sflag [#allocation3], 1
    %609 = vsyncpa %s608, 1

// kernel: generator_forward.6
$region0: #{generator_forward.6}
  #allocation0 [shape = 'u32[]', space=smem, size = 0x4, offset = 0x4, fixed_abs, tag = 'smem constant byte address 0x4 - core index']
  #allocation1 [shape = 'u32[144,128]{1,0:T(1,128)}', space=vmem, size = 0x12000, scoped, tag = 'internal scratch']
  %s0 = inlined_call_operand.vmem [shape: bf16[112,640], index: 0, kind: input, shape index: {}]
  %s1 = inlined_call_operand.hbm [shape: bf16[640,128], index: 1, kind: input, shape index: {}]
  %s2 = inlined_call_operand.vmem [shape: bf16[112,128], index: 2, kind: output, shape index: {0}]
  %s3 = inlined_call_operand.vmem [shape: f32[8,128], index: 3, kind: output, shape index: {1}]
  %s4 = inlined_call_operand.vmem [shape: f32[8,128], index: 4, kind: output, shape index: {2}]
  %5 = xla_tuple %s2, %s3, %s4
  %s6 = sld [smem:[#allocation0]]
  $region38: #{generator_forward.6} parent=0
    _
  %s8 = ssub.s32 1, %s6
  %s9 = scalar_select 0, %s8, %s6
  $region1: #{generator_forward.6} parent=0
    #allocation2 [shape = 'u8[163840]{0}', space=vmem, size = 0x28000, scoped, tag = 'input window, operand 1, single buffered']
    #allocation3 [shape = 's32[1]{0}', space=sflag, size = 0x4, scoped, tag = 'scoped memory for generator_forward.6']
    %10 = vsyncpa [#allocation3], 0
    // Predicated region
    $region2: #{generator_forward.6} parent=1 // pred_check
      _
    $region3: #{generator_forward.6} parent=1 // pred_check_branch
      %12 = sbr.rel (0) target = $region5
    $region4: #{generator_forward.6} parent=1 // pred_region
      _
    $region5: #{generator_forward.6} parent=1 // pred_fallthru
      _
    // Predicated region
    $region6: #{generator_forward.6} parent=1 // pred_check
      _
    $region7: #{generator_forward.6} parent=1 // pred_check_branch
      %14 = sbr.rel (0) target = $region9
    $region8: #{generator_forward.6} parent=1 // pred_region
      %s16 = ssub.s32 5120, 5120
      %17 = vsyncadd [#allocation3], %s16
      %s18 = sshll.u32 [#allocation2], 4
      %s19 = int_to_ptr.vmem [resolvable:$true] %s18
      %24 = dma.hbm_to_vmem [thread:$0]  %s1, 5120, %s19, [#allocation3], 64, 64, 4
    $region9: #{generator_forward.6} parent=1 // pred_fallthru
      _
    // Predicated region
    $region10: #{generator_forward.6} parent=1 // pred_check
      _
    $region11: #{generator_forward.6} parent=1 // pred_check_branch
      %26 = sbr.rel (0) target = $region13
    $region12: #{generator_forward.6} parent=1 // pred_region
      %27 = dma.done [#allocation3], 5120
    $region13: #{generator_forward.6} parent=1 // pred_fallthru
      _
    %v29 = vld [vmem:[%s0] sm:$0xff]
    %v30 = vld [vmem:[%s0 + $0x8] sm:$0xff]
    %v31 = vld [vmem:[%s0 + $0x10] sm:$0xf]
    %v32 = vld [vmem:[%s0 + $0x14] sm:$0xff]
    %v33 = vld [vmem:[%s0 + $0x1c] sm:$0xff]
    %v34 = vld [vmem:[%s0 + $0x24] sm:$0xf]
    %v35 = vld [vmem:[%s0 + $0x28] sm:$0xff]
    %v36 = vld [vmem:[%s0 + $0x30] sm:$0xff]
    %v37 = vld [vmem:[%s0 + $0x38] sm:$0xf]
    %v38 = vld [vmem:[%s0 + $0x3c] sm:$0xff]
    %v39 = vld [vmem:[%s0 + $0x44] sm:$0xff]
    %v40 = vld [vmem:[%s0 + $0x4c] sm:$0xf]
    %v41 = vld [vmem:[%s0 + $0x50] sm:$0xff]
    %v42 = vld [vmem:[%s0 + $0x58] sm:$0xff]
    %v43 = vld [vmem:[%s0 + $0x60] sm:$0xf]
    %v44 = vld [vmem:[%s0 + $0x64] sm:$0xff]
    %v45 = vld [vmem:[%s0 + $0x6c] sm:$0xff]
    %v46 = vld [vmem:[%s0 + $0x74] sm:$0xf]
    %v47 = vld [vmem:[%s0 + $0x78] sm:$0xff]
    %v48 = vld [vmem:[%s0 + $0x80] sm:$0xff]
    %v49 = vld [vmem:[%s0 + $0x88] sm:$0xf]
    %v50 = vld [vmem:[%s0 + $0x8c] sm:$0xff]
    %v51 = vld [vmem:[%s0 + $0x94] sm:$0xff]
    %v52 = vld [vmem:[%s0 + $0x9c] sm:$0xf]
    %v53 = vld [vmem:[%s0 + $0xa0] sm:$0xff]
    %v54 = vld [vmem:[%s0 + $0xa8] sm:$0xff]
    %v55 = vld [vmem:[%s0 + $0xb0] sm:$0xf]
    %v56 = vld [vmem:[%s0 + $0xb4] sm:$0xff]
    %v57 = vld [vmem:[%s0 + $0xbc] sm:$0xff]
    %v58 = vld [vmem:[%s0 + $0xc4] sm:$0xf]
    %v59 = vld [vmem:[%s0 + $0xc8] sm:$0xff]
    %v60 = vld [vmem:[%s0 + $0xd0] sm:$0xff]
    %v61 = vld [vmem:[%s0 + $0xd8] sm:$0xf]
    %v62 = vld [vmem:[%s0 + $0xdc] sm:$0xff]
    %v63 = vld [vmem:[%s0 + $0xe4] sm:$0xff]
    %v64 = vld [vmem:[%s0 + $0xec] sm:$0xf]
    %v65 = vld [vmem:[%s0 + $0xf0] sm:$0xff]
    %v66 = vld [vmem:[%s0 + $0xf8] sm:$0xff]
    %v67 = vld [vmem:[%s0 + $0x100] sm:$0xf]
    %v68 = vld [vmem:[%s0 + $0x104] sm:$0xff]
    %v69 = vld [vmem:[%s0 + $0x10c] sm:$0xff]
    %v70 = vld [vmem:[%s0 + $0x114] sm:$0xf]
    %v71 = vld [vmem:[#allocation2] sm:$0xf]
    %v72 = vld [vmem:[#allocation2 + $0x4] sm:$0xf]
    %v73 = vld [vmem:[#allocation2 + $0x8] sm:$0xf]
    %v74 = vld [vmem:[#allocation2 + $0xc] sm:$0xf]
    %v75 = vld [vmem:[#allocation2 + $0x10] sm:$0xf]
    %v76 = vld [vmem:[#allocation2 + $0x14] sm:$0xf]
    %v77 = vld [vmem:[#allocation2 + $0x18] sm:$0xf]
    %v78 = vld [vmem:[#allocation2 + $0x1c] sm:$0xf]
    %v79 = vld [vmem:[#allocation2 + $0x20] sm:$0xf]
    %v80 = vld [vmem:[#allocation2 + $0x24] sm:$0xf]
    %v81 = vld [vmem:[#allocation2 + $0x28] sm:$0xf]
    %v82 = vld [vmem:[#allocation2 + $0x2c] sm:$0xf]
    %v83 = vld [vmem:[#allocation2 + $0x30] sm:$0xf]
    %v84 = vld [vmem:[#allocation2 + $0x34] sm:$0xf]
    %v85 = vld [vmem:[#allocation2 + $0x38] sm:$0xf]
    %v86 = vld [vmem:[#allocation2 + $0x3c] sm:$0xf]
    %v87 = vld [vmem:[#allocation2 + $0x40] sm:$0xf]
    %v88 = vld [vmem:[#allocation2 + $0x44] sm:$0xf]
    %v89 = vld [vmem:[#allocation2 + $0x48] sm:$0xf]
    %v90 = vld [vmem:[#allocation2 + $0x4c] sm:$0xf]
    %v91 = vld [vmem:[#allocation2 + $0x50] sm:$0xf]
    %v92 = vld [vmem:[#allocation2 + $0x54] sm:$0xf]
    %v93 = vld [vmem:[#allocation2 + $0x58] sm:$0xf]
    %v94 = vld [vmem:[#allocation2 + $0x5c] sm:$0xf]
    %v95 = vld [vmem:[#allocation2 + $0x60] sm:$0xf]
    %v96 = vld [vmem:[#allocation2 + $0x64] sm:$0xf]
    %v97 = vld [vmem:[#allocation2 + $0x68] sm:$0xf]
    %v98 = vld [vmem:[#allocation2 + $0x6c] sm:$0xf]
    %v99 = vld [vmem:[#allocation2 + $0x70] sm:$0xf]
    %v100 = vld [vmem:[#allocation2 + $0x74] sm:$0xf]
    %v101 = vld [vmem:[#allocation2 + $0x78] sm:$0xf]
    %v102 = vld [vmem:[#allocation2 + $0x7c] sm:$0xf]
    %v103 = vld [vmem:[#allocation2 + $0x80] sm:$0xf]
    %v104 = vld [vmem:[#allocation2 + $0x84] sm:$0xf]
    %v105 = vld [vmem:[#allocation2 + $0x88] sm:$0xf]
    %v106 = vld [vmem:[#allocation2 + $0x8c] sm:$0xf]
    %v107 = vld [vmem:[#allocation2 + $0x90] sm:$0xf]
    %v108 = vld [vmem:[#allocation2 + $0x94] sm:$0xf]
    %v109 = vld [vmem:[#allocation2 + $0x98] sm:$0xf]
    %v110 = vld [vmem:[#allocation2 + $0x9c] sm:$0xf]
    %v111 = vld [vmem:[#allocation2 + $0xa0] sm:$0xf]
    %v112 = vld [vmem:[#allocation2 + $0xa4] sm:$0xf]
    %v113 = vld [vmem:[#allocation2 + $0xa8] sm:$0xf]
    %v114 = vld [vmem:[#allocation2 + $0xac] sm:$0xf]
    %v115 = vld [vmem:[#allocation2 + $0xb0] sm:$0xf]
    %v116 = vld [vmem:[#allocation2 + $0xb4] sm:$0xf]
    %v117 = vld [vmem:[#allocation2 + $0xb8] sm:$0xf]
    %v118 = vld [vmem:[#allocation2 + $0xbc] sm:$0xf]
    %v119 = vld [vmem:[#allocation2 + $0xc0] sm:$0xf]
    %v120 = vld [vmem:[#allocation2 + $0xc4] sm:$0xf]
    %v121 = vld [vmem:[#allocation2 + $0xc8] sm:$0xf]
    %v122 = vld [vmem:[#allocation2 + $0xcc] sm:$0xf]
    %v123 = vld [vmem:[#allocation2 + $0xd0] sm:$0xf]
    %v124 = vld [vmem:[#allocation2 + $0xd4] sm:$0xf]
    %v125 = vld [vmem:[#allocation2 + $0xd8] sm:$0xf]
    %v126 = vld [vmem:[#allocation2 + $0xdc] sm:$0xf]
    %v127 = vld [vmem:[#allocation2 + $0xe0] sm:$0xf]
    %v128 = vld [vmem:[#allocation2 + $0xe4] sm:$0xf]
    %v129 = vld [vmem:[#allocation2 + $0xe8] sm:$0xf]
    %v130 = vld [vmem:[#allocation2 + $0xec] sm:$0xf]
    %v131 = vld [vmem:[#allocation2 + $0xf0] sm:$0xf]
    %v132 = vld [vmem:[#allocation2 + $0xf4] sm:$0xf]
    %v133 = vld [vmem:[#allocation2 + $0xf8] sm:$0xf]
    %v134 = vld [vmem:[#allocation2 + $0xfc] sm:$0xf]
    %v135 = vld [vmem:[#allocation2 + $0x100] sm:$0xf]
    %v136 = vld [vmem:[#allocation2 + $0x104] sm:$0xf]
    %v137 = vld [vmem:[#allocation2 + $0x108] sm:$0xf]
    %v138 = vld [vmem:[#allocation2 + $0x10c] sm:$0xf]
    %v139 = vld [vmem:[#allocation2 + $0x110] sm:$0xf]
    %v140 = vld [vmem:[#allocation2 + $0x114] sm:$0xf]
    %v141 = vld [vmem:[#allocation2 + $0x118] sm:$0xf]
    %v142 = vld [vmem:[#allocation2 + $0x11c] sm:$0xf]
    %v143 = vld [vmem:[#allocation2 + $0x120] sm:$0xf]
    %v144 = vld [vmem:[#allocation2 + $0x124] sm:$0xf]
    %v145 = vld [vmem:[#allocation2 + $0x128] sm:$0xf]
    %v146 = vld [vmem:[#allocation2 + $0x12c] sm:$0xf]
    %v147 = vld [vmem:[#allocation2 + $0x130] sm:$0xf]
    %v148 = vld [vmem:[#allocation2 + $0x134] sm:$0xf]
    %v149 = vld [vmem:[#allocation2 + $0x138] sm:$0xf]
    %v150 = vld [vmem:[#allocation2 + $0x13c] sm:$0xf]
    %v193 = vunpack.c.l.b16 %v29
    %v194 = vunpack.c.h.b16 %v29
    %v195 = vunpack.c.l.b16 %v30
    %v196 = vunpack.c.h.b16 %v30
    %v197 = vunpack.c.l.b16 %v31
    %v198 = vunpack.c.l.b16 %v32
    %v199 = vunpack.c.h.b16 %v32
    %v200 = vunpack.c.l.b16 %v33
    %v201 = vunpack.c.h.b16 %v33
    %v202 = vunpack.c.l.b16 %v34
    %v203 = vunpack.c.l.b16 %v35
    %v204 = vunpack.c.h.b16 %v35
    %v205 = vunpack.c.l.b16 %v36
    %v206 = vunpack.c.h.b16 %v36
    %v207 = vunpack.c.l.b16 %v37
    %v208 = vunpack.c.l.b16 %v38
    %v209 = vunpack.c.h.b16 %v38
    %v210 = vunpack.c.l.b16 %v39
    %v211 = vunpack.c.h.b16 %v39
    %v212 = vunpack.c.l.b16 %v40
    %v213 = vunpack.c.l.b16 %v41
    %v214 = vunpack.c.h.b16 %v41
    %v215 = vunpack.c.l.b16 %v42
    %v216 = vunpack.c.h.b16 %v42
    %v217 = vunpack.c.l.b16 %v43
    %v218 = vunpack.c.l.b16 %v44
    %v219 = vunpack.c.h.b16 %v44
    %v220 = vunpack.c.l.b16 %v45
    %v221 = vunpack.c.h.b16 %v45
    %v222 = vunpack.c.l.b16 %v46
    %v223 = vunpack.c.l.b16 %v47
    %v224 = vunpack.c.h.b16 %v47
    %v225 = vunpack.c.l.b16 %v48
    %v226 = vunpack.c.h.b16 %v48
    %v227 = vunpack.c.l.b16 %v49
    %v228 = vunpack.c.l.b16 %v50
    %v229 = vunpack.c.h.b16 %v50
    %v230 = vunpack.c.l.b16 %v51
    %v231 = vunpack.c.h.b16 %v51
    %v232 = vunpack.c.l.b16 %v52
    %v233 = vunpack.c.l.b16 %v53
    %v234 = vunpack.c.h.b16 %v53
    %v235 = vunpack.c.l.b16 %v54
    %v236 = vunpack.c.h.b16 %v54
    %v237 = vunpack.c.l.b16 %v55
    %v238 = vunpack.c.l.b16 %v56
    %v239 = vunpack.c.h.b16 %v56
    %v240 = vunpack.c.l.b16 %v57
    %v241 = vunpack.c.h.b16 %v57
    %v242 = vunpack.c.l.b16 %v58
    %v243 = vunpack.c.l.b16 %v59
    %v244 = vunpack.c.h.b16 %v59
    %v245 = vunpack.c.l.b16 %v60
    %v246 = vunpack.c.h.b16 %v60
    %v247 = vunpack.c.l.b16 %v61
    %v248 = vunpack.c.l.b16 %v62
    %v249 = vunpack.c.h.b16 %v62
    %v250 = vunpack.c.l.b16 %v63
    %v251 = vunpack.c.h.b16 %v63
    %v252 = vunpack.c.l.b16 %v64
    %v253 = vunpack.c.l.b16 %v65
    %v254 = vunpack.c.h.b16 %v65
    %v255 = vunpack.c.l.b16 %v66
    %v256 = vunpack.c.h.b16 %v66
    %v257 = vunpack.c.l.b16 %v67
    %v258 = vunpack.c.l.b16 %v68
    %v259 = vunpack.c.h.b16 %v68
    %v260 = vunpack.c.l.b16 %v69
    %v261 = vunpack.c.h.b16 %v69
    %v262 = vunpack.c.l.b16 %v70
    %v263 = vpack.c.b16 %v198, %v193
    %v264 = vpack.c.b16 %v199, %v194
    %v265 = vpack.c.b16 %v200, %v195
    %v266 = vpack.c.b16 %v201, %v196
    %v267 = vpack.c.b16 %v202, %v197
    %v268 = vpack.c.b16 %v208, %v203
    %v269 = vpack.c.b16 %v209, %v204
    %v270 = vpack.c.b16 %v210, %v205
    %v271 = vpack.c.b16 %v211, %v206
    %v272 = vpack.c.b16 %v212, %v207
    %v273 = vpack.c.b16 %v218, %v213
    %v274 = vpack.c.b16 %v219, %v214
    %v275 = vpack.c.b16 %v220, %v215
    %v276 = vpack.c.b16 %v221, %v216
    %v277 = vpack.c.b16 %v222, %v217
    %v278 = vpack.c.b16 %v228, %v223
    %v279 = vpack.c.b16 %v229, %v224
    %v280 = vpack.c.b16 %v230, %v225
    %v281 = vpack.c.b16 %v231, %v226
    %v282 = vpack.c.b16 %v232, %v227
    %v283 = vpack.c.b16 %v238, %v233
    %v284 = vpack.c.b16 %v239, %v234
    %v285 = vpack.c.b16 %v240, %v235
    %v286 = vpack.c.b16 %v241, %v236
    %v287 = vpack.c.b16 %v242, %v237
    %v288 = vpack.c.b16 %v248, %v243
    %v289 = vpack.c.b16 %v249, %v244
    %v290 = vpack.c.b16 %v250, %v245
    %v291 = vpack.c.b16 %v251, %v246
    %v292 = vpack.c.b16 %v252, %v247
    %v293 = vpack.c.b16 %v258, %v253
    %v294 = vpack.c.b16 %v259, %v254
    %v295 = vpack.c.b16 %v260, %v255
    %v296 = vpack.c.b16 %v261, %v256
    %v297 = vpack.c.b16 %v262, %v257
    %v413 = vunpack.c.l.b16 %v71
    %v414 = vunpack.c.l.b16 %v72
    %v415 = vunpack.c.l.b16 %v73
    %v416 = vunpack.c.l.b16 %v74
    %v417 = vunpack.c.l.b16 %v75
    %v418 = vunpack.c.l.b16 %v76
    %v419 = vunpack.c.l.b16 %v77
    %v420 = vunpack.c.l.b16 %v78
    %v421 = vunpack.c.l.b16 %v79
    %v422 = vunpack.c.l.b16 %v80
    %v423 = vunpack.c.l.b16 %v81
    %v424 = vunpack.c.l.b16 %v82
    %v425 = vunpack.c.l.b16 %v83
    %v426 = vunpack.c.l.b16 %v84
    %v427 = vunpack.c.l.b16 %v85
    %v428 = vunpack.c.l.b16 %v86
    %v429 = vunpack.c.l.b16 %v87
    %v430 = vunpack.c.l.b16 %v88
    %v431 = vunpack.c.l.b16 %v89
    %v432 = vunpack.c.l.b16 %v90
    %v433 = vunpack.c.l.b16 %v91
    %v434 = vunpack.c.l.b16 %v92
    %v435 = vunpack.c.l.b16 %v93
    %v436 = vunpack.c.l.b16 %v94
    %v437 = vunpack.c.l.b16 %v95
    %v438 = vunpack.c.l.b16 %v96
    %v439 = vunpack.c.l.b16 %v97
    %v440 = vunpack.c.l.b16 %v98
    %v441 = vunpack.c.l.b16 %v99
    %v442 = vunpack.c.l.b16 %v100
    %v443 = vunpack.c.l.b16 %v101
    %v444 = vunpack.c.l.b16 %v102
    %v445 = vunpack.c.l.b16 %v103
    %v446 = vunpack.c.l.b16 %v104
    %v447 = vunpack.c.l.b16 %v105
    %v448 = vunpack.c.l.b16 %v106
    %v449 = vunpack.c.l.b16 %v107
    %v450 = vunpack.c.l.b16 %v108
    %v451 = vunpack.c.l.b16 %v109
    %v452 = vunpack.c.l.b16 %v110
    %v453 = vunpack.c.l.b16 %v111
    %v454 = vunpack.c.l.b16 %v112
    %v455 = vunpack.c.l.b16 %v113
    %v456 = vunpack.c.l.b16 %v114
    %v457 = vunpack.c.l.b16 %v115
    %v458 = vunpack.c.l.b16 %v116
    %v459 = vunpack.c.l.b16 %v117
    %v460 = vunpack.c.l.b16 %v118
    %v461 = vunpack.c.l.b16 %v119
    %v462 = vunpack.c.l.b16 %v120
    %v463 = vunpack.c.l.b16 %v121
    %v464 = vunpack.c.l.b16 %v122
    %v465 = vunpack.c.l.b16 %v123
    %v466 = vunpack.c.l.b16 %v124
    %v467 = vunpack.c.l.b16 %v125
    %v468 = vunpack.c.l.b16 %v126
    %v469 = vunpack.c.l.b16 %v127
    %v470 = vunpack.c.l.b16 %v128
    %v471 = vunpack.c.l.b16 %v129
    %v472 = vunpack.c.l.b16 %v130
    %v473 = vunpack.c.l.b16 %v131
    %v474 = vunpack.c.l.b16 %v132
    %v475 = vunpack.c.l.b16 %v133
    %v476 = vunpack.c.l.b16 %v134
    %v477 = vunpack.c.l.b16 %v135
    %v478 = vunpack.c.l.b16 %v136
    %v479 = vunpack.c.l.b16 %v137
    %v480 = vunpack.c.l.b16 %v138
    %v481 = vunpack.c.l.b16 %v139
    %v482 = vunpack.c.l.b16 %v140
    %v483 = vunpack.c.l.b16 %v141
    %v484 = vunpack.c.l.b16 %v142
    %v485 = vunpack.c.l.b16 %v143
    %v486 = vunpack.c.l.b16 %v144
    %v487 = vunpack.c.l.b16 %v145
    %v488 = vunpack.c.l.b16 %v146
    %v489 = vunpack.c.l.b16 %v147
    %v490 = vunpack.c.l.b16 %v148
    %v491 = vunpack.c.l.b16 %v149
    %v492 = vunpack.c.l.b16 %v150
    %v493 = vpack.c.b16 %v414, %v413
    %v494 = vpack.c.b16 %v416, %v415
    %v495 = vpack.c.b16 %v418, %v417
    %v496 = vpack.c.b16 %v420, %v419
    %v497 = vpack.c.b16 %v422, %v421
    %v498 = vpack.c.b16 %v424, %v423
    %v499 = vpack.c.b16 %v426, %v425
    %v500 = vpack.c.b16 %v428, %v427
    %v501 = vpack.c.b16 %v430, %v429
    %v502 = vpack.c.b16 %v432, %v431
    %v503 = vpack.c.b16 %v434, %v433
    %v504 = vpack.c.b16 %v436, %v435
    %v505 = vpack.c.b16 %v438, %v437
    %v506 = vpack.c.b16 %v440, %v439
    %v507 = vpack.c.b16 %v442, %v441
    %v508 = vpack.c.b16 %v444, %v443
    %v509 = vpack.c.b16 %v446, %v445
    %v510 = vpack.c.b16 %v448, %v447
    %v511 = vpack.c.b16 %v450, %v449
    %v512 = vpack.c.b16 %v452, %v451
    %v513 = vpack.c.b16 %v454, %v453
    %v514 = vpack.c.b16 %v456, %v455
    %v515 = vpack.c.b16 %v458, %v457
    %v516 = vpack.c.b16 %v460, %v459
    %v517 = vpack.c.b16 %v462, %v461
    %v518 = vpack.c.b16 %v464, %v463
    %v519 = vpack.c.b16 %v466, %v465
    %v520 = vpack.c.b16 %v468, %v467
    %v521 = vpack.c.b16 %v470, %v469
    %v522 = vpack.c.b16 %v472, %v471
    %v523 = vpack.c.b16 %v474, %v473
    %v524 = vpack.c.b16 %v476, %v475
    %v525 = vpack.c.b16 %v478, %v477
    %v526 = vpack.c.b16 %v480, %v479
    %v527 = vpack.c.b16 %v482, %v481
    %v528 = vpack.c.b16 %v484, %v483
    %v529 = vpack.c.b16 %v486, %v485
    %v530 = vpack.c.b16 %v488, %v487
    %v531 = vpack.c.b16 %v490, %v489
    %v532 = vpack.c.b16 %v492, %v491
    %573 = vmatprep.subr.bf16.mxu0 0
    %574 = vmatpush1.bf16.msra.mxu0 %v493
    %575 = vmatprep.subr.bf16.mxu0 0
    %576 = vmatpush1.bf16.msra.mxu0 %v494
    %577 = vmatprep.subr.bf16.mxu0 0
    %578 = vmatpush1.bf16.msra.mxu0 %v495
    %579 = vmatprep.subr.bf16.mxu0 0
    %580 = vmatpush1.bf16.msra.mxu0 %v496
    %581 = vmatprep.subr.bf16.mxu0 0
    %582 = vmatpush1.bf16.msra.mxu0 %v497
    %583 = vmatprep.subr.bf16.mxu0 0
    %584 = vmatpush1.bf16.msra.mxu0 %v498
    %585 = vmatprep.subr.bf16.mxu0 0
    %586 = vmatpush1.bf16.msra.mxu0 %v499
    %587 = vmatprep.subr.bf16.mxu0 0
    %588 = vmatpush1.bf16.msra.mxu0 %v500
    %589 = vmatprep.subr.bf16.mxu0 0
    %590 = vmatpush1.bf16.msra.mxu0 %v501
    %591 = vmatprep.subr.bf16.mxu0 0
    %592 = vmatpush1.bf16.msra.mxu0 %v502
    %593 = vmatprep.subr.bf16.mxu0 0
    %594 = vmatpush1.bf16.msra.mxu0 %v503
    %595 = vmatprep.subr.bf16.mxu0 0
    %596 = vmatpush1.bf16.msra.mxu0 %v504
    %597 = vmatprep.subr.bf16.mxu0 0
    %598 = vmatpush1.bf16.msra.mxu0 %v505
    %599 = vmatprep.subr.bf16.mxu0 0
    %600 = vmatpush1.bf16.msra.mxu0 %v506
    %601 = vmatprep.subr.bf16.mxu0 0
    %602 = vmatpush1.bf16.msra.mxu0 %v507
    %603 = vmatprep.subr.bf16.mxu0 0
    %604 = vmatpush1.bf16.msra.mxu0 %v508
    %605 = vmatprep.mubr.bf16.mxu0 %v264
    %606 = vmatmul.mubr.bf16.gmra.mrb[0].mxu0 %v263
    %v607 = vpop.f32.mrb[0].mxu0
    %v608 = vadd.f32 0.0, %v607
    %v609 = vpop.f32.mrb[0].mxu0
    %v610 = vpop.f32.mrb[0].mxu0
    %v611 = vadd.f32 0.0, %v610
    %v612 = vpop.f32.mrb[0].mxu0
    %613 = vmatprep.mubr.bf16.mxu0 %v269
    %614 = vmatmul.mubr.bf16.gmra.mrb[0].mxu0 %v268
    %v615 = vpop.f32.mrb[0].mxu0
    %v616 = vadd.f32 0.0, %v615
    %v617 = vpop.f32.mrb[0].mxu0
    %v618 = vpop.f32.mrb[0].mxu0
    %v619 = vadd.f32 0.0, %v618
    %v620 = vpop.f32.mrb[0].mxu0
    %621 = vmatprep.mubr.bf16.mxu0 %v274
    %622 = vmatmul.mubr.bf16.gmra.mrb[0].mxu0 %v273
    %v623 = vpop.f32.mrb[0].mxu0
    %v624 = vadd.f32 0.0, %v623
    %v625 = vpop.f32.mrb[0].mxu0
    %v626 = vpop.f32.mrb[0].mxu0
    %v627 = vadd.f32 0.0, %v626
    %v628 = vpop.f32.mrb[0].mxu0
    %629 = vmatprep.mubr.bf16.mxu0 %v279
    %630 = vmatmul.mubr.bf16.gmra.mrb[0].mxu0 %v278
    %v631 = vpop.f32.mrb[0].mxu0
    %v632 = vadd.f32 0.0, %v631
    %v633 = vpop.f32.mrb[0].mxu0
    %v634 = vpop.f32.mrb[0].mxu0
    %v635 = vadd.f32 0.0, %v634
    %v636 = vpop.f32.mrb[0].mxu0
    %637 = vmatprep.mubr.bf16.mxu0 %v284
    %638 = vmatmul.mubr.bf16.gmra.mrb[0].mxu0 %v283
    %v639 = vpop.f32.mrb[0].mxu0
    %v640 = vadd.f32 0.0, %v639
    %v641 = vpop.f32.mrb[0].mxu0
    %v642 = vpop.f32.mrb[0].mxu0
    %v643 = vadd.f32 0.0, %v642
    %v644 = vpop.f32.mrb[0].mxu0
    %645 = vmatprep.mubr.bf16.mxu0 %v289
    %646 = vmatmul.mubr.bf16.gmra.mrb[0].mxu0 %v288
    %v647 = vpop.f32.mrb[0].mxu0
    %v648 = vadd.f32 0.0, %v647
    %v649 = vpop.f32.mrb[0].mxu0
    %v650 = vpop.f32.mrb[0].mxu0
    %v651 = vadd.f32 0.0, %v650
    %v652 = vpop.f32.mrb[0].mxu0
    %653 = vmatprep.mubr.bf16.mxu0 %v294
    %654 = vmatmul.mubr.bf16.gmra.mrb[0].mxu0 %v293
    %v655 = vpop.f32.mrb[0].mxu0
    %v656 = vadd.f32 0.0, %v655
    %v657 = vpop.f32.mrb[0].mxu0
    %v658 = vpop.f32.mrb[0].mxu0
    %v659 = vadd.f32 0.0, %v658
    %v660 = vpop.f32.mrb[0].mxu0
    %661 = vdwg.mxu0
    %662 = vmatprep.subr.bf16.mxu0 0
    %663 = vmatpush1.bf16.msra.mxu0 %v509
    %664 = vmatprep.subr.bf16.mxu0 0
    %665 = vmatpush1.bf16.msra.mxu0 %v510
    %666 = vmatprep.subr.bf16.mxu0 0
    %667 = vmatpush1.bf16.msra.mxu0 %v511
    %668 = vmatprep.subr.bf16.mxu0 0
    %669 = vmatpush1.bf16.msra.mxu0 %v512
    %670 = vmatprep.subr.bf16.mxu0 0
    %671 = vmatpush1.bf16.msra.mxu0 %v513
    %672 = vmatprep.subr.bf16.mxu0 0
    %673 = vmatpush1.bf16.msra.mxu0 %v514
    %674 = vmatprep.subr.bf16.mxu0 0
    %675 = vmatpush1.bf16.msra.mxu0 %v515
    %676 = vmatprep.subr.bf16.mxu0 0
    %677 = vmatpush1.bf16.msra.mxu0 %v516
    %678 = vmatprep.subr.bf16.mxu0 0
    %679 = vmatpush1.bf16.msra.mxu0 %v517
    %680 = vmatprep.subr.bf16.mxu0 0
    %681 = vmatpush1.bf16.msra.mxu0 %v518
    %682 = vmatprep.subr.bf16.mxu0 0
    %683 = vmatpush1.bf16.msra.mxu0 %v519
    %684 = vmatprep.subr.bf16.mxu0 0
    %685 = vmatpush1.bf16.msra.mxu0 %v520
    %686 = vmatprep.subr.bf16.mxu0 0
    %687 = vmatpush1.bf16.msra.mxu0 %v521
    %688 = vmatprep.subr.bf16.mxu0 0
    %689 = vmatpush1.bf16.msra.mxu0 %v522
    %690 = vmatprep.subr.bf16.mxu0 0
    %691 = vmatpush1.bf16.msra.mxu0 %v523
    %692 = vmatprep.subr.bf16.mxu0 0
    %693 = vmatpush1.bf16.msra.mxu0 %v524
    %694 = vmatprep.mubr.bf16.mxu0 %v266
    %695 = vmatmul.mubr.bf16.gmra.mrb[0].mxu0 %v265
    %v696 = vpop.f32.mrb[0].mxu0
    %v697 = vadd.f32 %v608, %v696
    %v698 = vpop.f32.mrb[0].mxu0
    %v699 = vpop.f32.mrb[0].mxu0
    %v700 = vadd.f32 %v611, %v699
    %v701 = vpop.f32.mrb[0].mxu0
    %702 = vmatprep.mubr.bf16.mxu0 %v271
    %703 = vmatmul.mubr.bf16.gmra.mrb[0].mxu0 %v270
    %v704 = vpop.f32.mrb[0].mxu0
    %v705 = vadd.f32 %v616, %v704
    %v706 = vpop.f32.mrb[0].mxu0
    %v707 = vpop.f32.mrb[0].mxu0
    %v708 = vadd.f32 %v619, %v707
    %v709 = vpop.f32.mrb[0].mxu0
    %710 = vmatprep.mubr.bf16.mxu0 %v276
    %711 = vmatmul.mubr.bf16.gmra.mrb[0].mxu0 %v275
    %v712 = vpop.f32.mrb[0].mxu0
    %v713 = vadd.f32 %v624, %v712
    %v714 = vpop.f32.mrb[0].mxu0
    %v715 = vpop.f32.mrb[0].mxu0
    %v716 = vadd.f32 %v627, %v715
    %v717 = vpop.f32.mrb[0].mxu0
    %718 = vmatprep.mubr.bf16.mxu0 %v281
    %719 = vmatmul.mubr.bf16.gmra.mrb[0].mxu0 %v280
    %v720 = vpop.f32.mrb[0].mxu0
    %v721 = vadd.f32 %v632, %v720
    %v722 = vpop.f32.mrb[0].mxu0
    %v723 = vpop.f32.mrb[0].mxu0
    %v724 = vadd.f32 %v635, %v723
    %v725 = vpop.f32.mrb[0].mxu0
    %726 = vmatprep.mubr.bf16.mxu0 %v286
    %727 = vmatmul.mubr.bf16.gmra.mrb[0].mxu0 %v285
    %v728 = vpop.f32.mrb[0].mxu0
    %v729 = vadd.f32 %v640, %v728
    %v730 = vpop.f32.mrb[0].mxu0
    %v731 = vpop.f32.mrb[0].mxu0
    %v732 = vadd.f32 %v643, %v731
    %v733 = vpop.f32.mrb[0].mxu0
    %734 = vmatprep.mubr.bf16.mxu0 %v291
    %735 = vmatmul.mubr.bf16.gmra.mrb[0].mxu0 %v290
    %v736 = vpop.f32.mrb[0].mxu0
    %v737 = vadd.f32 %v648, %v736
    %v738 = vpop.f32.mrb[0].mxu0
    %v739 = vpop.f32.mrb[0].mxu0
    %v740 = vadd.f32 %v651, %v739
    %v741 = vpop.f32.mrb[0].mxu0
    %742 = vmatprep.mubr.bf16.mxu0 %v296
    %743 = vmatmul.mubr.bf16.gmra.mrb[0].mxu0 %v295
    %v744 = vpop.f32.mrb[0].mxu0
    %v745 = vadd.f32 %v656, %v744
    %v746 = vpop.f32.mrb[0].mxu0
    %v747 = vpop.f32.mrb[0].mxu0
    %v748 = vadd.f32 %v659, %v747
    %v749 = vpop.f32.mrb[0].mxu0
    %750 = vdwg.mxu0
    %751 = vmatprep.subr.bf16.mxu0 0
    %752 = vmatpush1.bf16.msra.mxu0 %v525
    %753 = vmatprep.subr.bf16.mxu0 0
    %754 = vmatpush1.bf16.msra.mxu0 %v526
    %755 = vmatprep.subr.bf16.mxu0 0
    %756 = vmatpush1.bf16.msra.mxu0 %v527
    %757 = vmatprep.subr.bf16.mxu0 0
    %758 = vmatpush1.bf16.msra.mxu0 %v528
    %759 = vmatprep.subr.bf16.mxu0 0
    %760 = vmatpush1.bf16.msra.mxu0 %v529
    %761 = vmatprep.subr.bf16.mxu0 0
    %762 = vmatpush1.bf16.msra.mxu0 %v530
    %763 = vmatprep.subr.bf16.mxu0 0
    %764 = vmatpush1.bf16.msra.mxu0 %v531
    %765 = vmatprep.subr.bf16.mxu0 0
    %766 = vmatpush1.bf16.msra.mxu0 %v532
    %767 = vmatprep.subr.bf16.mxu0 0
    %768 = vmatpush1.bf16.msra.mxu0 0
    %769 = vmatprep.subr.bf16.mxu0 0
    %770 = vmatpush1.bf16.msra.mxu0 0
    %771 = vmatprep.subr.bf16.mxu0 0
    %772 = vmatpush1.bf16.msra.mxu0 0
    %773 = vmatprep.subr.bf16.mxu0 0
    %774 = vmatpush1.bf16.msra.mxu0 0
    %775 = vmatprep.subr.bf16.mxu0 0
    %776 = vmatpush1.bf16.msra.mxu0 0
    %777 = vmatprep.subr.bf16.mxu0 0
    %778 = vmatpush1.bf16.msra.mxu0 0
    %779 = vmatprep.subr.bf16.mxu0 0
    %780 = vmatpush1.bf16.msra.mxu0 0
    %781 = vmatprep.subr.bf16.mxu0 0
    %782 = vmatpush1.bf16.msra.mxu0 0
    %783 = vmatprep.mubr.bf16.mxu0 0
    %784 = vmatmul.mubr.bf16.gmra.mrb[0].mxu0 %v267
    %v785 = vpop.f32.mrb[0].mxu0
    %v786 = vadd.f32 %v697, %v785
    %v787 = vpop.f32.mrb[0].mxu0
    %v788 = vpop.f32.mrb[0].mxu0
    %v789 = vadd.f32 %v700, %v788
    %v790 = vpop.f32.mrb[0].mxu0
    %791 = vmatprep.mubr.bf16.mxu0 0
    %792 = vmatmul.mubr.bf16.gmra.mrb[0].mxu0 %v272
    %v793 = vpop.f32.mrb[0].mxu0
    %v794 = vadd.f32 %v705, %v793
    %v795 = vpop.f32.mrb[0].mxu0
    %v796 = vpop.f32.mrb[0].mxu0
    %v797 = vadd.f32 %v708, %v796
    %v798 = vpop.f32.mrb[0].mxu0
    %799 = vmatprep.mubr.bf16.mxu0 0
    %800 = vmatmul.mubr.bf16.gmra.mrb[0].mxu0 %v277
    %v801 = vpop.f32.mrb[0].mxu0
    %v802 = vadd.f32 %v713, %v801
    %v803 = vpop.f32.mrb[0].mxu0
    %v804 = vpop.f32.mrb[0].mxu0
    %v805 = vadd.f32 %v716, %v804
    %v806 = vpop.f32.mrb[0].mxu0
    %807 = vmatprep.mubr.bf16.mxu0 0
    %808 = vmatmul.mubr.bf16.gmra.mrb[0].mxu0 %v282
    %v809 = vpop.f32.mrb[0].mxu0
    %v810 = vadd.f32 %v721, %v809
    %v811 = vpop.f32.mrb[0].mxu0
    %v812 = vpop.f32.mrb[0].mxu0
    %v813 = vadd.f32 %v724, %v812
    %v814 = vpop.f32.mrb[0].mxu0
    %815 = vmatprep.mubr.bf16.mxu0 0
    %816 = vmatmul.mubr.bf16.gmra.mrb[0].mxu0 %v287
    %v817 = vpop.f32.mrb[0].mxu0
    %v818 = vadd.f32 %v729, %v817
    %v819 = vpop.f32.mrb[0].mxu0
    %v820 = vpop.f32.mrb[0].mxu0
    %v821 = vadd.f32 %v732, %v820
    %v822 = vpop.f32.mrb[0].mxu0
    %823 = vmatprep.mubr.bf16.mxu0 0
    %824 = vmatmul.mubr.bf16.gmra.mrb[0].mxu0 %v292
    %v825 = vpop.f32.mrb[0].mxu0
    %v826 = vadd.f32 %v737, %v825
    %v827 = vpop.f32.mrb[0].mxu0
    %v828 = vpop.f32.mrb[0].mxu0
    %v829 = vadd.f32 %v740, %v828
    %v830 = vpop.f32.mrb[0].mxu0
    %831 = vmatprep.mubr.bf16.mxu0 0
    %832 = vmatmul.mubr.bf16.gmra.mrb[0].mxu0 %v297
    %v833 = vpop.f32.mrb[0].mxu0
    %v834 = vadd.f32 %v745, %v833
    %v835 = vpop.f32.mrb[0].mxu0
    %v836 = vpop.f32.mrb[0].mxu0
    %v837 = vadd.f32 %v748, %v836
    %v838 = vpop.f32.mrb[0].mxu0
    %839 = vdwg.mxu0
    %v840 = vpack.c.bf16 %v789, %v786
    %v841 = vpack.c.bf16 %v797, %v794
    %v842 = vpack.c.bf16 %v805, %v802
    %v843 = vpack.c.bf16 %v813, %v810
    %v844 = vpack.c.bf16 %v821, %v818
    %v845 = vpack.c.bf16 %v829, %v826
    %v846 = vpack.c.bf16 %v837, %v834
    %v854 = vunpack.c.l.b16 %v840
    %v855 = vunpack.c.h.b16 %v840
    %v856 = vunpack.c.l.b16 %v841
    %v857 = vunpack.c.h.b16 %v841
    %v858 = vunpack.c.l.b16 %v842
    %v859 = vunpack.c.h.b16 %v842
    %v860 = vunpack.c.l.b16 %v843
    %v861 = vunpack.c.h.b16 %v843
    %v862 = vunpack.c.l.b16 %v844
    %v863 = vunpack.c.h.b16 %v844
    %v864 = vunpack.c.l.b16 %v845
    %v865 = vunpack.c.h.b16 %v845
    %v866 = vunpack.c.l.b16 %v846
    %v867 = vunpack.c.h.b16 %v846
    %v868 = vpack.c.b16 %v854, %v854
    %v869 = vpack.c.b16 %v855, %v855
    %v870 = vpack.c.b16 %v856, %v856
    %v871 = vpack.c.b16 %v857, %v857
    %v872 = vpack.c.b16 %v858, %v858
    %v873 = vpack.c.b16 %v859, %v859
    %v874 = vpack.c.b16 %v860, %v860
    %v875 = vpack.c.b16 %v861, %v861
    %v876 = vpack.c.b16 %v862, %v862
    %v877 = vpack.c.b16 %v863, %v863
    %v878 = vpack.c.b16 %v864, %v864
    %v879 = vpack.c.b16 %v865, %v865
    %v880 = vpack.c.b16 %v866, %v866
    %v881 = vpack.c.b16 %v867, %v867
    %896 = vst [vmem:[%s2] sm:$0xf] %v868
    %897 = vst [vmem:[%s2 + $0x4] sm:$0xf] %v869
    %898 = vst [vmem:[%s2 + $0x8] sm:$0xf] %v870
    %899 = vst [vmem:[%s2 + $0xc] sm:$0xf] %v871
    %900 = vst [vmem:[%s2 + $0x10] sm:$0xf] %v872
    %901 = vst [vmem:[%s2 + $0x14] sm:$0xf] %v873
    %902 = vst [vmem:[%s2 + $0x18] sm:$0xf] %v874
    %903 = vst [vmem:[%s2 + $0x1c] sm:$0xf] %v875
    %904 = vst [vmem:[%s2 + $0x20] sm:$0xf] %v876
    %905 = vst [vmem:[%s2 + $0x24] sm:$0xf] %v877
    %906 = vst [vmem:[%s2 + $0x28] sm:$0xf] %v878
    %907 = vst [vmem:[%s2 + $0x2c] sm:$0xf] %v879
    %908 = vst [vmem:[%s2 + $0x30] sm:$0xf] %v880
    %909 = vst [vmem:[%s2 + $0x34] sm:$0xf] %v881
    %v910 = vadd.f32 %v786, %v789
    %v911 = vadd.f32 %v910, %v794
    %v912 = vadd.f32 %v911, %v797
    %v913 = vadd.f32 %v912, %v802
    %v914 = vadd.f32 %v913, %v805
    %v915 = vadd.f32 %v914, %v810
    %v916 = vadd.f32 %v915, %v813
    %v917 = vadd.f32 %v916, %v818
    %v918 = vadd.f32 %v917, %v821
    %v919 = vadd.f32 %v918, %v826
    %v920 = vadd.f32 %v919, %v829
    %v921 = vadd.f32 %v920, %v834
    %v922 = vadd.f32 %v921, %v837
    %v923 = vrot.slane %v922, 4
    %v924 = vadd.f32 %v922, %v923
    %v925 = vrot.slane %v924, 2
    %v926 = vadd.f32 %v924, %v925
    %v927 = vrot.slane %v926, 1
    %v928 = vadd.f32 %v926, %v927
    %v929 = vmul.f32 %v786, %v786
    %v930 = vmul.f32 %v789, %v789
    %v931 = vmul.f32 %v794, %v794
    %v932 = vmul.f32 %v797, %v797
    %v933 = vmul.f32 %v802, %v802
    %v934 = vmul.f32 %v805, %v805
    %v935 = vmul.f32 %v810, %v810
    %v936 = vmul.f32 %v813, %v813
    %v937 = vmul.f32 %v818, %v818
    %v938 = vmul.f32 %v821, %v821
    %v939 = vmul.f32 %v826, %v826
    %v940 = vmul.f32 %v829, %v829
    %v941 = vmul.f32 %v834, %v834
    %v942 = vmul.f32 %v837, %v837
    %v943 = vadd.f32 %v929, %v930
    %v944 = vadd.f32 %v943, %v931
    %v945 = vadd.f32 %v944, %v932
    %v946 = vadd.f32 %v945, %v933
    %v947 = vadd.f32 %v946, %v934
    %v948 = vadd.f32 %v947, %v935
    %v949 = vadd.f32 %v948, %v936
    %v950 = vadd.f32 %v949, %v937
    %v951 = vadd.f32 %v950, %v938
    %v952 = vadd.f32 %v951, %v939
    %v953 = vadd.f32 %v952, %v940
    %v954 = vadd.f32 %v953, %v941
    %v955 = vadd.f32 %v954, %v942
    %v956 = vrot.slane %v955, 4
    %v957 = vadd.f32 %v955, %v956
    %v958 = vrot.slane %v957, 2
    %v959 = vadd.f32 %v957, %v958
    %v960 = vrot.slane %v959, 1
    %v961 = vadd.f32 %v959, %v960
    %962 = vst [vmem:[%s3] sm:$0xff] %v928
    %963 = vst [vmem:[%s4] sm:$0xff] %v961
    // Predicated region
    $region14: #{generator_forward.6} parent=1 // pred_check
      _
    $region15: #{generator_forward.6} parent=1 // pred_check_branch
      %965 = sbr.rel (0) target = $region17
    $region16: #{generator_forward.6} parent=1 // pred_region
      _
    $region17: #{generator_forward.6} parent=1 // pred_fallthru
      _
    // Predicated region
    $region18: #{generator_forward.6} parent=1 // pred_check
      _
    $region19: #{generator_forward.6} parent=1 // pred_check_branch
      %967 = sbr.rel (0) target = $region21
    $region20: #{generator_forward.6} parent=1 // pred_region
      _
    $region21: #{generator_forward.6} parent=1 // pred_fallthru
      _
    // Predicated region
    $region22: #{generator_forward.6} parent=1 // pred_check
      _
    $region23: #{generator_forward.6} parent=1 // pred_check_branch
      %969 = sbr.rel (0) target = $region25
    $region24: #{generator_forward.6} parent=1 // pred_region
      _
    $region25: #{generator_forward.6} parent=1 // pred_fallthru
      _
    // Predicated region
    $region26: #{generator_forward.6} parent=1 // pred_check
      _
    $region27: #{generator_forward.6} parent=1 // pred_check_branch
      %971 = sbr.rel (0) target = $region29
    $region28: #{generator_forward.6} parent=1 // pred_region
      _
    $region29: #{generator_forward.6} parent=1 // pred_fallthru
      _
    // Predicated region
    $region30: #{generator_forward.6} parent=1 // pred_check
      _
    $region31: #{generator_forward.6} parent=1 // pred_check_branch
      %973 = sbr.rel (0) target = $region33
    $region32: #{generator_forward.6} parent=1 // pred_region
      _
    $region33: #{generator_forward.6} parent=1 // pred_fallthru
      _
    // Predicated region
    $region34: #{generator_forward.6} parent=1 // pred_check
      _
    $region35: #{generator_forward.6} parent=1 // pred_check_branch
      %975 = sbr.rel (0) target = $region37
    $region36: #{generator_forward.6} parent=1 // pred_region
      _
    $region37: #{generator_forward.6} parent=1 // pred_fallthru
      _
    %976 = vsyncpa [#allocation3], 1

// kernel: generator_forward.7
$region0: #{generator_forward.7}
  #allocation0 [shape = 'u32[]', space=smem, size = 0x4, offset = 0x4, fixed_abs, tag = 'smem constant byte address 0x4 - core index']
  #allocation1 [shape = 'u32[144,128]{1,0:T(1,128)}', space=vmem, size = 0x12000, scoped, tag = 'internal scratch']
  %s0 = inlined_call_operand.vmem [shape: bf16[400,384], index: 0, kind: input, shape index: {}]
  %s1 = inlined_call_operand.vmem [shape: bf16[384,128], index: 1, kind: input, shape index: {}]
  %s2 = inlined_call_operand.vmem [shape: bf16[400,128], index: 2, kind: output, shape index: {0}]
  %s3 = inlined_call_operand.vmem [shape: f32[8,128], index: 3, kind: output, shape index: {1}]
  %s4 = inlined_call_operand.vmem [shape: f32[8,128], index: 4, kind: output, shape index: {2}]
  %5 = xla_tuple %s2, %s3, %s4
  %s6 = sld [smem:[#allocation0]]
  $region34: #{generator_forward.7} parent=0
    _
  %s8 = ssub.s32 1, %s6
  %s9 = scalar_select 0, %s8, %s6
  // Predicated region
  $region2: #{generator_forward.7} parent=0 // pred_check
    _
  $region3: #{generator_forward.7} parent=0 // pred_check_branch
    %11 = sbr.rel (0) target = $region5
  $region4: #{generator_forward.7} parent=0 // pred_region
    _
  $region5: #{generator_forward.7} parent=0 // pred_fallthru
    _
  // Predicated region
  $region6: #{generator_forward.7} parent=0 // pred_check
    _
  $region7: #{generator_forward.7} parent=0 // pred_check_branch
    %13 = sbr.rel (0) target = $region9
  $region8: #{generator_forward.7} parent=0 // pred_region
    _
  $region9: #{generator_forward.7} parent=0 // pred_fallthru
    _
  %v15 = vld [vmem:[%s0] sm:$0xff]
  %v16 = vld [vmem:[%s0 + $0x8] sm:$0xf]
  %v17 = vld [vmem:[%s0 + $0xc] sm:$0xff]
  %v18 = vld [vmem:[%s0 + $0x14] sm:$0xf]
  %v19 = vld [vmem:[%s0 + $0x18] sm:$0xff]
  %v20 = vld [vmem:[%s0 + $0x20] sm:$0xf]
  %v21 = vld [vmem:[%s0 + $0x24] sm:$0xff]
  %v22 = vld [vmem:[%s0 + $0x2c] sm:$0xf]
  %v23 = vld [vmem:[%s0 + $0x30] sm:$0xff]
  %v24 = vld [vmem:[%s0 + $0x38] sm:$0xf]
  %v25 = vld [vmem:[%s0 + $0x3c] sm:$0xff]
  %v26 = vld [vmem:[%s0 + $0x44] sm:$0xf]
  %v27 = vld [vmem:[%s0 + $0x48] sm:$0xff]
  %v28 = vld [vmem:[%s0 + $0x50] sm:$0xf]
  %v29 = vld [vmem:[%s0 + $0x54] sm:$0xff]
  %v30 = vld [vmem:[%s0 + $0x5c] sm:$0xf]
  %v31 = vld [vmem:[%s0 + $0x60] sm:$0xff]
  %v32 = vld [vmem:[%s0 + $0x68] sm:$0xf]
  %v33 = vld [vmem:[%s0 + $0x6c] sm:$0xff]
  %v34 = vld [vmem:[%s0 + $0x74] sm:$0xf]
  %v35 = vld [vmem:[%s0 + $0x78] sm:$0xff]
  %v36 = vld [vmem:[%s0 + $0x80] sm:$0xf]
  %v37 = vld [vmem:[%s0 + $0x84] sm:$0xff]
  %v38 = vld [vmem:[%s0 + $0x8c] sm:$0xf]
  %v39 = vld [vmem:[%s0 + $0x90] sm:$0xff]
  %v40 = vld [vmem:[%s0 + $0x98] sm:$0xf]
  %v41 = vld [vmem:[%s0 + $0x9c] sm:$0xff]
  %v42 = vld [vmem:[%s0 + $0xa4] sm:$0xf]
  %v43 = vld [vmem:[%s0 + $0xa8] sm:$0xff]
  %v44 = vld [vmem:[%s0 + $0xb0] sm:$0xf]
  %v45 = vld [vmem:[%s0 + $0xb4] sm:$0xff]
  %v46 = vld [vmem:[%s0 + $0xbc] sm:$0xf]
  %v47 = vld [vmem:[%s0 + $0xc0] sm:$0xff]
  %v48 = vld [vmem:[%s0 + $0xc8] sm:$0xf]
  %v49 = vld [vmem:[%s0 + $0xcc] sm:$0xff]
  %v50 = vld [vmem:[%s0 + $0xd4] sm:$0xf]
  %v51 = vld [vmem:[%s0 + $0xd8] sm:$0xff]
  %v52 = vld [vmem:[%s0 + $0xe0] sm:$0xf]
  %v53 = vld [vmem:[%s0 + $0xe4] sm:$0xff]
  %v54 = vld [vmem:[%s0 + $0xec] sm:$0xf]
  %v55 = vld [vmem:[%s0 + $0xf0] sm:$0xff]
  %v56 = vld [vmem:[%s0 + $0xf8] sm:$0xf]
  %v57 = vld [vmem:[%s0 + $0xfc] sm:$0xff]
  %v58 = vld [vmem:[%s0 + $0x104] sm:$0xf]
  %v59 = vld [vmem:[%s0 + $0x108] sm:$0xff]
  %v60 = vld [vmem:[%s0 + $0x110] sm:$0xf]
  %v61 = vld [vmem:[%s0 + $0x114] sm:$0xff]
  %v62 = vld [vmem:[%s0 + $0x11c] sm:$0xf]
  %v63 = vld [vmem:[%s0 + $0x120] sm:$0xff]
  %v64 = vld [vmem:[%s0 + $0x128] sm:$0xf]
  %v65 = vld [vmem:[%s0 + $0x12c] sm:$0xff]
  %v66 = vld [vmem:[%s0 + $0x134] sm:$0xf]
  %v67 = vld [vmem:[%s0 + $0x138] sm:$0xff]
  %v68 = vld [vmem:[%s0 + $0x140] sm:$0xf]
  %v69 = vld [vmem:[%s0 + $0x144] sm:$0xff]
  %v70 = vld [vmem:[%s0 + $0x14c] sm:$0xf]
  %v71 = vld [vmem:[%s0 + $0x150] sm:$0xff]
  %v72 = vld [vmem:[%s0 + $0x158] sm:$0xf]
  %v73 = vld [vmem:[%s0 + $0x15c] sm:$0xff]
  %v74 = vld [vmem:[%s0 + $0x164] sm:$0xf]
  %v75 = vld [vmem:[%s0 + $0x168] sm:$0xff]
  %v76 = vld [vmem:[%s0 + $0x170] sm:$0xf]
  %v77 = vld [vmem:[%s0 + $0x174] sm:$0xff]
  %v78 = vld [vmem:[%s0 + $0x17c] sm:$0xf]
  %v79 = vld [vmem:[%s0 + $0x180] sm:$0xff]
  %v80 = vld [vmem:[%s0 + $0x188] sm:$0xf]
  %v81 = vld [vmem:[%s0 + $0x18c] sm:$0xff]
  %v82 = vld [vmem:[%s0 + $0x194] sm:$0xf]
  %v83 = vld [vmem:[%s0 + $0x198] sm:$0xff]
  %v84 = vld [vmem:[%s0 + $0x1a0] sm:$0xf]
  %v85 = vld [vmem:[%s0 + $0x1a4] sm:$0xff]
  %v86 = vld [vmem:[%s0 + $0x1ac] sm:$0xf]
  %v87 = vld [vmem:[%s0 + $0x1b0] sm:$0xff]
  %v88 = vld [vmem:[%s0 + $0x1b8] sm:$0xf]
  %v89 = vld [vmem:[%s0 + $0x1bc] sm:$0xff]
  %v90 = vld [vmem:[%s0 + $0x1c4] sm:$0xf]
  %v91 = vld [vmem:[%s0 + $0x1c8] sm:$0xff]
  %v92 = vld [vmem:[%s0 + $0x1d0] sm:$0xf]
  %v93 = vld [vmem:[%s0 + $0x1d4] sm:$0xff]
  %v94 = vld [vmem:[%s0 + $0x1dc] sm:$0xf]
  %v95 = vld [vmem:[%s0 + $0x1e0] sm:$0xff]
  %v96 = vld [vmem:[%s0 + $0x1e8] sm:$0xf]
  %v97 = vld [vmem:[%s0 + $0x1ec] sm:$0xff]
  %v98 = vld [vmem:[%s0 + $0x1f4] sm:$0xf]
  %v99 = vld [vmem:[%s0 + $0x1f8] sm:$0xff]
  %v100 = vld [vmem:[%s0 + $0x200] sm:$0xf]
  %v101 = vld [vmem:[%s0 + $0x204] sm:$0xff]
  %v102 = vld [vmem:[%s0 + $0x20c] sm:$0xf]
  %v103 = vld [vmem:[%s0 + $0x210] sm:$0xff]
  %v104 = vld [vmem:[%s0 + $0x218] sm:$0xf]
  %v105 = vld [vmem:[%s0 + $0x21c] sm:$0xff]
  %v106 = vld [vmem:[%s0 + $0x224] sm:$0xf]
  %v107 = vld [vmem:[%s0 + $0x228] sm:$0xff]
  %v108 = vld [vmem:[%s0 + $0x230] sm:$0xf]
  %v109 = vld [vmem:[%s0 + $0x234] sm:$0xff]
  %v110 = vld [vmem:[%s0 + $0x23c] sm:$0xf]
  %v111 = vld [vmem:[%s0 + $0x240] sm:$0xff]
  %v112 = vld [vmem:[%s0 + $0x248] sm:$0xf]
  %v113 = vld [vmem:[%s0 + $0x24c] sm:$0xff]
  %v114 = vld [vmem:[%s0 + $0x254] sm:$0xf]
  %v115 = vld [vmem:[%s1] sm:$0xf]
  %v116 = vld [vmem:[%s1 + $0x4] sm:$0xf]
  %v117 = vld [vmem:[%s1 + $0x8] sm:$0xf]
  %v118 = vld [vmem:[%s1 + $0xc] sm:$0xf]
  %v119 = vld [vmem:[%s1 + $0x10] sm:$0xf]
  %v120 = vld [vmem:[%s1 + $0x14] sm:$0xf]
  %v121 = vld [vmem:[%s1 + $0x18] sm:$0xf]
  %v122 = vld [vmem:[%s1 + $0x1c] sm:$0xf]
  %v123 = vld [vmem:[%s1 + $0x20] sm:$0xf]
  %v124 = vld [vmem:[%s1 + $0x24] sm:$0xf]
  %v125 = vld [vmem:[%s1 + $0x28] sm:$0xf]
  %v126 = vld [vmem:[%s1 + $0x2c] sm:$0xf]
  %v127 = vld [vmem:[%s1 + $0x30] sm:$0xf]
  %v128 = vld [vmem:[%s1 + $0x34] sm:$0xf]
  %v129 = vld [vmem:[%s1 + $0x38] sm:$0xf]
  %v130 = vld [vmem:[%s1 + $0x3c] sm:$0xf]
  %v131 = vld [vmem:[%s1 + $0x40] sm:$0xf]
  %v132 = vld [vmem:[%s1 + $0x44] sm:$0xf]
  %v133 = vld [vmem:[%s1 + $0x48] sm:$0xf]
  %v134 = vld [vmem:[%s1 + $0x4c] sm:$0xf]
  %v135 = vld [vmem:[%s1 + $0x50] sm:$0xf]
  %v136 = vld [vmem:[%s1 + $0x54] sm:$0xf]
  %v137 = vld [vmem:[%s1 + $0x58] sm:$0xf]
  %v138 = vld [vmem:[%s1 + $0x5c] sm:$0xf]
  %v139 = vld [vmem:[%s1 + $0x60] sm:$0xf]
  %v140 = vld [vmem:[%s1 + $0x64] sm:$0xf]
  %v141 = vld [vmem:[%s1 + $0x68] sm:$0xf]
  %v142 = vld [vmem:[%s1 + $0x6c] sm:$0xf]
  %v143 = vld [vmem:[%s1 + $0x70] sm:$0xf]
  %v144 = vld [vmem:[%s1 + $0x74] sm:$0xf]
  %v145 = vld [vmem:[%s1 + $0x78] sm:$0xf]
  %v146 = vld [vmem:[%s1 + $0x7c] sm:$0xf]
  %v147 = vld [vmem:[%s1 + $0x80] sm:$0xf]
  %v148 = vld [vmem:[%s1 + $0x84] sm:$0xf]
  %v149 = vld [vmem:[%s1 + $0x88] sm:$0xf]
  %v150 = vld [vmem:[%s1 + $0x8c] sm:$0xf]
  %v151 = vld [vmem:[%s1 + $0x90] sm:$0xf]
  %v152 = vld [vmem:[%s1 + $0x94] sm:$0xf]
  %v153 = vld [vmem:[%s1 + $0x98] sm:$0xf]
  %v154 = vld [vmem:[%s1 + $0x9c] sm:$0xf]
  %v155 = vld [vmem:[%s1 + $0xa0] sm:$0xf]
  %v156 = vld [vmem:[%s1 + $0xa4] sm:$0xf]
  %v157 = vld [vmem:[%s1 + $0xa8] sm:$0xf]
  %v158 = vld [vmem:[%s1 + $0xac] sm:$0xf]
  %v159 = vld [vmem:[%s1 + $0xb0] sm:$0xf]
  %v160 = vld [vmem:[%s1 + $0xb4] sm:$0xf]
  %v161 = vld [vmem:[%s1 + $0xb8] sm:$0xf]
  %v162 = vld [vmem:[%s1 + $0xbc] sm:$0xf]
  %v263 = vunpack.c.l.b16 %v15
  %v264 = vunpack.c.h.b16 %v15
  %v265 = vunpack.c.l.b16 %v16
  %v266 = vunpack.c.l.b16 %v17
  %v267 = vunpack.c.h.b16 %v17
  %v268 = vunpack.c.l.b16 %v18
  %v269 = vunpack.c.l.b16 %v19
  %v270 = vunpack.c.h.b16 %v19
  %v271 = vunpack.c.l.b16 %v20
  %v272 = vunpack.c.l.b16 %v21
  %v273 = vunpack.c.h.b16 %v21
  %v274 = vunpack.c.l.b16 %v22
  %v275 = vunpack.c.l.b16 %v23
  %v276 = vunpack.c.h.b16 %v23
  %v277 = vunpack.c.l.b16 %v24
  %v278 = vunpack.c.l.b16 %v25
  %v279 = vunpack.c.h.b16 %v25
  %v280 = vunpack.c.l.b16 %v26
  %v281 = vunpack.c.l.b16 %v27
  %v282 = vunpack.c.h.b16 %v27
  %v283 = vunpack.c.l.b16 %v28
  %v284 = vunpack.c.l.b16 %v29
  %v285 = vunpack.c.h.b16 %v29
  %v286 = vunpack.c.l.b16 %v30
  %v287 = vunpack.c.l.b16 %v31
  %v288 = vunpack.c.h.b16 %v31
  %v289 = vunpack.c.l.b16 %v32
  %v290 = vunpack.c.l.b16 %v33
  %v291 = vunpack.c.h.b16 %v33
  %v292 = vunpack.c.l.b16 %v34
  %v293 = vunpack.c.l.b16 %v35
  %v294 = vunpack.c.h.b16 %v35
  %v295 = vunpack.c.l.b16 %v36
  %v296 = vunpack.c.l.b16 %v37
  %v297 = vunpack.c.h.b16 %v37
  %v298 = vunpack.c.l.b16 %v38
  %v299 = vunpack.c.l.b16 %v39
  %v300 = vunpack.c.h.b16 %v39
  %v301 = vunpack.c.l.b16 %v40
  %v302 = vunpack.c.l.b16 %v41
  %v303 = vunpack.c.h.b16 %v41
  %v304 = vunpack.c.l.b16 %v42
  %v305 = vunpack.c.l.b16 %v43
  %v306 = vunpack.c.h.b16 %v43
  %v307 = vunpack.c.l.b16 %v44
  %v308 = vunpack.c.l.b16 %v45
  %v309 = vunpack.c.h.b16 %v45
  %v310 = vunpack.c.l.b16 %v46
  %v311 = vunpack.c.l.b16 %v47
  %v312 = vunpack.c.h.b16 %v47
  %v313 = vunpack.c.l.b16 %v48
  %v314 = vunpack.c.l.b16 %v49
  %v315 = vunpack.c.h.b16 %v49
  %v316 = vunpack.c.l.b16 %v50
  %v317 = vunpack.c.l.b16 %v51
  %v318 = vunpack.c.h.b16 %v51
  %v319 = vunpack.c.l.b16 %v52
  %v320 = vunpack.c.l.b16 %v53
  %v321 = vunpack.c.h.b16 %v53
  %v322 = vunpack.c.l.b16 %v54
  %v323 = vunpack.c.l.b16 %v55
  %v324 = vunpack.c.h.b16 %v55
  %v325 = vunpack.c.l.b16 %v56
  %v326 = vunpack.c.l.b16 %v57
  %v327 = vunpack.c.h.b16 %v57
  %v328 = vunpack.c.l.b16 %v58
  %v329 = vunpack.c.l.b16 %v59
  %v330 = vunpack.c.h.b16 %v59
  %v331 = vunpack.c.l.b16 %v60
  %v332 = vunpack.c.l.b16 %v61
  %v333 = vunpack.c.h.b16 %v61
  %v334 = vunpack.c.l.b16 %v62
  %v335 = vunpack.c.l.b16 %v63
  %v336 = vunpack.c.h.b16 %v63
  %v337 = vunpack.c.l.b16 %v64
  %v338 = vunpack.c.l.b16 %v65
  %v339 = vunpack.c.h.b16 %v65
  %v340 = vunpack.c.l.b16 %v66
  %v341 = vunpack.c.l.b16 %v67
  %v342 = vunpack.c.h.b16 %v67
  %v343 = vunpack.c.l.b16 %v68
  %v344 = vunpack.c.l.b16 %v69
  %v345 = vunpack.c.h.b16 %v69
  %v346 = vunpack.c.l.b16 %v70
  %v347 = vunpack.c.l.b16 %v71
  %v348 = vunpack.c.h.b16 %v71
  %v349 = vunpack.c.l.b16 %v72
  %v350 = vunpack.c.l.b16 %v73
  %v351 = vunpack.c.h.b16 %v73
  %v352 = vunpack.c.l.b16 %v74
  %v353 = vunpack.c.l.b16 %v75
  %v354 = vunpack.c.h.b16 %v75
  %v355 = vunpack.c.l.b16 %v76
  %v356 = vunpack.c.l.b16 %v77
  %v357 = vunpack.c.h.b16 %v77
  %v358 = vunpack.c.l.b16 %v78
  %v359 = vunpack.c.l.b16 %v79
  %v360 = vunpack.c.h.b16 %v79
  %v361 = vunpack.c.l.b16 %v80
  %v362 = vunpack.c.l.b16 %v81
  %v363 = vunpack.c.h.b16 %v81
  %v364 = vunpack.c.l.b16 %v82
  %v365 = vunpack.c.l.b16 %v83
  %v366 = vunpack.c.h.b16 %v83
  %v367 = vunpack.c.l.b16 %v84
  %v368 = vunpack.c.l.b16 %v85
  %v369 = vunpack.c.h.b16 %v85
  %v370 = vunpack.c.l.b16 %v86
  %v371 = vunpack.c.l.b16 %v87
  %v372 = vunpack.c.h.b16 %v87
  %v373 = vunpack.c.l.b16 %v88
  %v374 = vunpack.c.l.b16 %v89
  %v375 = vunpack.c.h.b16 %v89
  %v376 = vunpack.c.l.b16 %v90
  %v377 = vunpack.c.l.b16 %v91
  %v378 = vunpack.c.h.b16 %v91
  %v379 = vunpack.c.l.b16 %v92
  %v380 = vunpack.c.l.b16 %v93
  %v381 = vunpack.c.h.b16 %v93
  %v382 = vunpack.c.l.b16 %v94
  %v383 = vunpack.c.l.b16 %v95
  %v384 = vunpack.c.h.b16 %v95
  %v385 = vunpack.c.l.b16 %v96
  %v386 = vunpack.c.l.b16 %v97
  %v387 = vunpack.c.h.b16 %v97
  %v388 = vunpack.c.l.b16 %v98
  %v389 = vunpack.c.l.b16 %v99
  %v390 = vunpack.c.h.b16 %v99
  %v391 = vunpack.c.l.b16 %v100
  %v392 = vunpack.c.l.b16 %v101
  %v393 = vunpack.c.h.b16 %v101
  %v394 = vunpack.c.l.b16 %v102
  %v395 = vunpack.c.l.b16 %v103
  %v396 = vunpack.c.h.b16 %v103
  %v397 = vunpack.c.l.b16 %v104
  %v398 = vunpack.c.l.b16 %v105
  %v399 = vunpack.c.h.b16 %v105
  %v400 = vunpack.c.l.b16 %v106
  %v401 = vunpack.c.l.b16 %v107
  %v402 = vunpack.c.h.b16 %v107
  %v403 = vunpack.c.l.b16 %v108
  %v404 = vunpack.c.l.b16 %v109
  %v405 = vunpack.c.h.b16 %v109
  %v406 = vunpack.c.l.b16 %v110
  %v407 = vunpack.c.l.b16 %v111
  %v408 = vunpack.c.h.b16 %v111
  %v409 = vunpack.c.l.b16 %v112
  %v410 = vunpack.c.l.b16 %v113
  %v411 = vunpack.c.h.b16 %v113
  %v412 = vunpack.c.l.b16 %v114
  %v413 = vpack.c.b16 %v266, %v263
  %v414 = vpack.c.b16 %v267, %v264
  %v415 = vpack.c.b16 %v268, %v265
  %v416 = vpack.c.b16 %v272, %v269
  %v417 = vpack.c.b16 %v273, %v270
  %v418 = vpack.c.b16 %v274, %v271
  %v419 = vpack.c.b16 %v278, %v275
  %v420 = vpack.c.b16 %v279, %v276
  %v421 = vpack.c.b16 %v280, %v277
  %v422 = vpack.c.b16 %v284, %v281
  %v423 = vpack.c.b16 %v285, %v282
  %v424 = vpack.c.b16 %v286, %v283
  %v425 = vpack.c.b16 %v290, %v287
  %v426 = vpack.c.b16 %v291, %v288
  %v427 = vpack.c.b16 %v292, %v289
  %v428 = vpack.c.b16 %v296, %v293
  %v429 = vpack.c.b16 %v297, %v294
  %v430 = vpack.c.b16 %v298, %v295
  %v431 = vpack.c.b16 %v302, %v299
  %v432 = vpack.c.b16 %v303, %v300
  %v433 = vpack.c.b16 %v304, %v301
  %v434 = vpack.c.b16 %v308, %v305
  %v435 = vpack.c.b16 %v309, %v306
  %v436 = vpack.c.b16 %v310, %v307
  %v437 = vpack.c.b16 %v314, %v311
  %v438 = vpack.c.b16 %v315, %v312
  %v439 = vpack.c.b16 %v316, %v313
  %v440 = vpack.c.b16 %v320, %v317
  %v441 = vpack.c.b16 %v321, %v318
  %v442 = vpack.c.b16 %v322, %v319
  %v443 = vpack.c.b16 %v326, %v323
  %v444 = vpack.c.b16 %v327, %v324
  %v445 = vpack.c.b16 %v328, %v325
  %v446 = vpack.c.b16 %v332, %v329
  %v447 = vpack.c.b16 %v333, %v330
  %v448 = vpack.c.b16 %v334, %v331
  %v449 = vpack.c.b16 %v338, %v335
  %v450 = vpack.c.b16 %v339, %v336
  %v451 = vpack.c.b16 %v340, %v337
  %v452 = vpack.c.b16 %v344, %v341
  %v453 = vpack.c.b16 %v345, %v342
  %v454 = vpack.c.b16 %v346, %v343
  %v455 = vpack.c.b16 %v350, %v347
  %v456 = vpack.c.b16 %v351, %v348
  %v457 = vpack.c.b16 %v352, %v349
  %v458 = vpack.c.b16 %v356, %v353
  %v459 = vpack.c.b16 %v357, %v354
  %v460 = vpack.c.b16 %v358, %v355
  %v461 = vpack.c.b16 %v362, %v359
  %v462 = vpack.c.b16 %v363, %v360
  %v463 = vpack.c.b16 %v364, %v361
  %v464 = vpack.c.b16 %v368, %v365
  %v465 = vpack.c.b16 %v369, %v366
  %v466 = vpack.c.b16 %v370, %v367
  %v467 = vpack.c.b16 %v374, %v371
  %v468 = vpack.c.b16 %v375, %v372
  %v469 = vpack.c.b16 %v376, %v373
  %v470 = vpack.c.b16 %v380, %v377
  %v471 = vpack.c.b16 %v381, %v378
  %v472 = vpack.c.b16 %v382, %v379
  %v473 = vpack.c.b16 %v386, %v383
  %v474 = vpack.c.b16 %v387, %v384
  %v475 = vpack.c.b16 %v388, %v385
  %v476 = vpack.c.b16 %v392, %v389
  %v477 = vpack.c.b16 %v393, %v390
  %v478 = vpack.c.b16 %v394, %v391
  %v479 = vpack.c.b16 %v398, %v395
  %v480 = vpack.c.b16 %v399, %v396
  %v481 = vpack.c.b16 %v400, %v397
  %v482 = vpack.c.b16 %v404, %v401
  %v483 = vpack.c.b16 %v405, %v402
  %v484 = vpack.c.b16 %v406, %v403
  %v485 = vpack.c.b16 %v410, %v407
  %v486 = vpack.c.b16 %v411, %v408
  %v487 = vpack.c.b16 %v412, %v409
  %v611 = vunpack.c.l.b16 %v115
  %v612 = vunpack.c.l.b16 %v116
  %v613 = vunpack.c.l.b16 %v117
  %v614 = vunpack.c.l.b16 %v118
  %v615 = vunpack.c.l.b16 %v119
  %v616 = vunpack.c.l.b16 %v120
  %v617 = vunpack.c.l.b16 %v121
  %v618 = vunpack.c.l.b16 %v122
  %v619 = vunpack.c.l.b16 %v123
  %v620 = vunpack.c.l.b16 %v124
  %v621 = vunpack.c.l.b16 %v125
  %v622 = vunpack.c.l.b16 %v126
  %v623 = vunpack.c.l.b16 %v127
  %v624 = vunpack.c.l.b16 %v128
  %v625 = vunpack.c.l.b16 %v129
  %v626 = vunpack.c.l.b16 %v130
  %v627 = vunpack.c.l.b16 %v131
  %v628 = vunpack.c.l.b16 %v132
  %v629 = vunpack.c.l.b16 %v133
  %v630 = vunpack.c.l.b16 %v134
  %v631 = vunpack.c.l.b16 %v135
  %v632 = vunpack.c.l.b16 %v136
  %v633 = vunpack.c.l.b16 %v137
  %v634 = vunpack.c.l.b16 %v138
  %v635 = vunpack.c.l.b16 %v139
  %v636 = vunpack.c.l.b16 %v140
  %v637 = vunpack.c.l.b16 %v141
  %v638 = vunpack.c.l.b16 %v142
  %v639 = vunpack.c.l.b16 %v143
  %v640 = vunpack.c.l.b16 %v144
  %v641 = vunpack.c.l.b16 %v145
  %v642 = vunpack.c.l.b16 %v146
  %v643 = vunpack.c.l.b16 %v147
  %v644 = vunpack.c.l.b16 %v148
  %v645 = vunpack.c.l.b16 %v149
  %v646 = vunpack.c.l.b16 %v150
  %v647 = vunpack.c.l.b16 %v151
  %v648 = vunpack.c.l.b16 %v152
  %v649 = vunpack.c.l.b16 %v153
  %v650 = vunpack.c.l.b16 %v154
  %v651 = vunpack.c.l.b16 %v155
  %v652 = vunpack.c.l.b16 %v156
  %v653 = vunpack.c.l.b16 %v157
  %v654 = vunpack.c.l.b16 %v158
  %v655 = vunpack.c.l.b16 %v159
  %v656 = vunpack.c.l.b16 %v160
  %v657 = vunpack.c.l.b16 %v161
  %v658 = vunpack.c.l.b16 %v162
  %v659 = vpack.c.b16 %v612, %v611
  %v660 = vpack.c.b16 %v614, %v613
  %v661 = vpack.c.b16 %v616, %v615
  %v662 = vpack.c.b16 %v618, %v617
  %v663 = vpack.c.b16 %v620, %v619
  %v664 = vpack.c.b16 %v622, %v621
  %v665 = vpack.c.b16 %v624, %v623
  %v666 = vpack.c.b16 %v626, %v625
  %v667 = vpack.c.b16 %v628, %v627
  %v668 = vpack.c.b16 %v630, %v629
  %v669 = vpack.c.b16 %v632, %v631
  %v670 = vpack.c.b16 %v634, %v633
  %v671 = vpack.c.b16 %v636, %v635
  %v672 = vpack.c.b16 %v638, %v637
  %v673 = vpack.c.b16 %v640, %v639
  %v674 = vpack.c.b16 %v642, %v641
  %v675 = vpack.c.b16 %v644, %v643
  %v676 = vpack.c.b16 %v646, %v645
  %v677 = vpack.c.b16 %v648, %v647
  %v678 = vpack.c.b16 %v650, %v649
  %v679 = vpack.c.b16 %v652, %v651
  %v680 = vpack.c.b16 %v654, %v653
  %v681 = vpack.c.b16 %v656, %v655
  %v682 = vpack.c.b16 %v658, %v657
  %707 = vmatprep.subr.bf16.mxu0 0
  %708 = vmatpush1.bf16.msra.mxu0 %v659
  %709 = vmatprep.subr.bf16.mxu0 0
  %710 = vmatpush1.bf16.msra.mxu0 %v660
  %711 = vmatprep.subr.bf16.mxu0 0
  %712 = vmatpush1.bf16.msra.mxu0 %v661
  %713 = vmatprep.subr.bf16.mxu0 0
  %714 = vmatpush1.bf16.msra.mxu0 %v662
  %715 = vmatprep.subr.bf16.mxu0 0
  %716 = vmatpush1.bf16.msra.mxu0 %v663
  %717 = vmatprep.subr.bf16.mxu0 0
  %718 = vmatpush1.bf16.msra.mxu0 %v664
  %719 = vmatprep.subr.bf16.mxu0 0
  %720 = vmatpush1.bf16.msra.mxu0 %v665
  %721 = vmatprep.subr.bf16.mxu0 0
  %722 = vmatpush1.bf16.msra.mxu0 %v666
  %723 = vmatprep.subr.bf16.mxu0 0
  %724 = vmatpush1.bf16.msra.mxu0 %v667
  %725 = vmatprep.subr.bf16.mxu0 0
  %726 = vmatpush1.bf16.msra.mxu0 %v668
  %727 = vmatprep.subr.bf16.mxu0 0
  %728 = vmatpush1.bf16.msra.mxu0 %v669
  %729 = vmatprep.subr.bf16.mxu0 0
  %730 = vmatpush1.bf16.msra.mxu0 %v670
  %731 = vmatprep.subr.bf16.mxu0 0
  %732 = vmatpush1.bf16.msra.mxu0 %v671
  %733 = vmatprep.subr.bf16.mxu0 0
  %734 = vmatpush1.bf16.msra.mxu0 %v672
  %735 = vmatprep.subr.bf16.mxu0 0
  %736 = vmatpush1.bf16.msra.mxu0 %v673
  %737 = vmatprep.subr.bf16.mxu0 0
  %738 = vmatpush1.bf16.msra.mxu0 %v674
  %739 = vmatprep.mubr.bf16.mxu0 %v414
  %740 = vmatmul.mubr.bf16.gmra.mrb[0].mxu0 %v413
  %v741 = vpop.f32.mrb[0].mxu0
  %v742 = vadd.f32 0.0, %v741
  %v743 = vpop.f32.mrb[0].mxu0
  %v744 = vpop.f32.mrb[0].mxu0
  %v745 = vadd.f32 0.0, %v744
  %v746 = vpop.f32.mrb[0].mxu0
  %747 = vmatprep.mubr.bf16.mxu0 %v417
  %748 = vmatmul.mubr.bf16.gmra.mrb[0].mxu0 %v416
  %v749 = vpop.f32.mrb[0].mxu0
  %v750 = vadd.f32 0.0, %v749
  %v751 = vpop.f32.mrb[0].mxu0
  %v752 = vpop.f32.mrb[0].mxu0
  %v753 = vadd.f32 0.0, %v752
  %v754 = vpop.f32.mrb[0].mxu0
  %755 = vmatprep.mubr.bf16.mxu0 %v420
  %756 = vmatmul.mubr.bf16.gmra.mrb[0].mxu0 %v419
  %v757 = vpop.f32.mrb[0].mxu0
  %v758 = vadd.f32 0.0, %v757
  %v759 = vpop.f32.mrb[0].mxu0
  %v760 = vpop.f32.mrb[0].mxu0
  %v761 = vadd.f32 0.0, %v760
  %v762 = vpop.f32.mrb[0].mxu0
  %763 = vmatprep.mubr.bf16.mxu0 %v423
  %764 = vmatmul.mubr.bf16.gmra.mrb[0].mxu0 %v422
  %v765 = vpop.f32.mrb[0].mxu0
  %v766 = vadd.f32 0.0, %v765
  %v767 = vpop.f32.mrb[0].mxu0
  %v768 = vpop.f32.mrb[0].mxu0
  %v769 = vadd.f32 0.0, %v768
  %v770 = vpop.f32.mrb[0].mxu0
  %771 = vmatprep.mubr.bf16.mxu0 %v426
  %772 = vmatmul.mubr.bf16.gmra.mrb[0].mxu0 %v425
  %v773 = vpop.f32.mrb[0].mxu0
  %v774 = vadd.f32 0.0, %v773
  %v775 = vpop.f32.mrb[0].mxu0
  %v776 = vpop.f32.mrb[0].mxu0
  %v777 = vadd.f32 0.0, %v776
  %v778 = vpop.f32.mrb[0].mxu0
  %779 = vmatprep.mubr.bf16.mxu0 %v429
  %780 = vmatmul.mubr.bf16.gmra.mrb[0].mxu0 %v428
  %v781 = vpop.f32.mrb[0].mxu0
  %v782 = vadd.f32 0.0, %v781
  %v783 = vpop.f32.mrb[0].mxu0
  %v784 = vpop.f32.mrb[0].mxu0
  %v785 = vadd.f32 0.0, %v784
  %v786 = vpop.f32.mrb[0].mxu0
  %787 = vmatprep.mubr.bf16.mxu0 %v432
  %788 = vmatmul.mubr.bf16.gmra.mrb[0].mxu0 %v431
  %v789 = vpop.f32.mrb[0].mxu0
  %v790 = vadd.f32 0.0, %v789
  %v791 = vpop.f32.mrb[0].mxu0
  %v792 = vpop.f32.mrb[0].mxu0
  %v793 = vadd.f32 0.0, %v792
  %v794 = vpop.f32.mrb[0].mxu0
  %795 = vmatprep.mubr.bf16.mxu0 %v435
  %796 = vmatmul.mubr.bf16.gmra.mrb[0].mxu0 %v434
  %v797 = vpop.f32.mrb[0].mxu0
  %v798 = vadd.f32 0.0, %v797
  %v799 = vpop.f32.mrb[0].mxu0
  %v800 = vpop.f32.mrb[0].mxu0
  %v801 = vadd.f32 0.0, %v800
  %v802 = vpop.f32.mrb[0].mxu0
  %803 = vmatprep.mubr.bf16.mxu0 %v438
  %804 = vmatmul.mubr.bf16.gmra.mrb[0].mxu0 %v437
  %v805 = vpop.f32.mrb[0].mxu0
  %v806 = vadd.f32 0.0, %v805
  %v807 = vpop.f32.mrb[0].mxu0
  %v808 = vpop.f32.mrb[0].mxu0
  %v809 = vadd.f32 0.0, %v808
  %v810 = vpop.f32.mrb[0].mxu0
  %811 = vmatprep.mubr.bf16.mxu0 %v441
  %812 = vmatmul.mubr.bf16.gmra.mrb[0].mxu0 %v440
  %v813 = vpop.f32.mrb[0].mxu0
  %v814 = vadd.f32 0.0, %v813
  %v815 = vpop.f32.mrb[0].mxu0
  %v816 = vpop.f32.mrb[0].mxu0
  %v817 = vadd.f32 0.0, %v816
  %v818 = vpop.f32.mrb[0].mxu0
  %819 = vmatprep.mubr.bf16.mxu0 %v444
  %820 = vmatmul.mubr.bf16.gmra.mrb[0].mxu0 %v443
  %v821 = vpop.f32.mrb[0].mxu0
  %v822 = vadd.f32 0.0, %v821
  %v823 = vpop.f32.mrb[0].mxu0
  %v824 = vpop.f32.mrb[0].mxu0
  %v825 = vadd.f32 0.0, %v824
  %v826 = vpop.f32.mrb[0].mxu0
  %827 = vmatprep.mubr.bf16.mxu0 %v447
  %828 = vmatmul.mubr.bf16.gmra.mrb[0].mxu0 %v446
  %v829 = vpop.f32.mrb[0].mxu0
  %v830 = vadd.f32 0.0, %v829
  %v831 = vpop.f32.mrb[0].mxu0
  %v832 = vpop.f32.mrb[0].mxu0
  %v833 = vadd.f32 0.0, %v832
  %v834 = vpop.f32.mrb[0].mxu0
  %835 = vmatprep.mubr.bf16.mxu0 %v450
  %836 = vmatmul.mubr.bf16.gmra.mrb[0].mxu0 %v449
  %v837 = vpop.f32.mrb[0].mxu0
  %v838 = vadd.f32 0.0, %v837
  %v839 = vpop.f32.mrb[0].mxu0
  %v840 = vpop.f32.mrb[0].mxu0
  %v841 = vadd.f32 0.0, %v840
  %v842 = vpop.f32.mrb[0].mxu0
  %843 = vmatprep.mubr.bf16.mxu0 %v453
  %844 = vmatmul.mubr.bf16.gmra.mrb[0].mxu0 %v452
  %v845 = vpop.f32.mrb[0].mxu0
  %v846 = vadd.f32 0.0, %v845
  %v847 = vpop.f32.mrb[0].mxu0
  %v848 = vpop.f32.mrb[0].mxu0
  %v849 = vadd.f32 0.0, %v848
  %v850 = vpop.f32.mrb[0].mxu0
  %851 = vmatprep.mubr.bf16.mxu0 %v456
  %852 = vmatmul.mubr.bf16.gmra.mrb[0].mxu0 %v455
  %v853 = vpop.f32.mrb[0].mxu0
  %v854 = vadd.f32 0.0, %v853
  %v855 = vpop.f32.mrb[0].mxu0
  %v856 = vpop.f32.mrb[0].mxu0
  %v857 = vadd.f32 0.0, %v856
  %v858 = vpop.f32.mrb[0].mxu0
  %859 = vmatprep.mubr.bf16.mxu0 %v459
  %860 = vmatmul.mubr.bf16.gmra.mrb[0].mxu0 %v458
  %v861 = vpop.f32.mrb[0].mxu0
  %v862 = vadd.f32 0.0, %v861
  %v863 = vpop.f32.mrb[0].mxu0
  %v864 = vpop.f32.mrb[0].mxu0
  %v865 = vadd.f32 0.0, %v864
  %v866 = vpop.f32.mrb[0].mxu0
  %867 = vmatprep.mubr.bf16.mxu0 %v462
  %868 = vmatmul.mubr.bf16.gmra.mrb[0].mxu0 %v461
  %v869 = vpop.f32.mrb[0].mxu0
  %v870 = vadd.f32 0.0, %v869
  %v871 = vpop.f32.mrb[0].mxu0
  %v872 = vpop.f32.mrb[0].mxu0
  %v873 = vadd.f32 0.0, %v872
  %v874 = vpop.f32.mrb[0].mxu0
  %875 = vmatprep.mubr.bf16.mxu0 %v465
  %876 = vmatmul.mubr.bf16.gmra.mrb[0].mxu0 %v464
  %v877 = vpop.f32.mrb[0].mxu0
  %v878 = vadd.f32 0.0, %v877
  %v879 = vpop.f32.mrb[0].mxu0
  %v880 = vpop.f32.mrb[0].mxu0
  %v881 = vadd.f32 0.0, %v880
  %v882 = vpop.f32.mrb[0].mxu0
  %883 = vmatprep.mubr.bf16.mxu0 %v468
  %884 = vmatmul.mubr.bf16.gmra.mrb[0].mxu0 %v467
  %v885 = vpop.f32.mrb[0].mxu0
  %v886 = vadd.f32 0.0, %v885
  %v887 = vpop.f32.mrb[0].mxu0
  %v888 = vpop.f32.mrb[0].mxu0
  %v889 = vadd.f32 0.0, %v888
  %v890 = vpop.f32.mrb[0].mxu0
  %891 = vmatprep.mubr.bf16.mxu0 %v471
  %892 = vmatmul.mubr.bf16.gmra.mrb[0].mxu0 %v470
  %v893 = vpop.f32.mrb[0].mxu0
  %v894 = vadd.f32 0.0, %v893
  %v895 = vpop.f32.mrb[0].mxu0
  %v896 = vpop.f32.mrb[0].mxu0
  %v897 = vadd.f32 0.0, %v896
  %v898 = vpop.f32.mrb[0].mxu0
  %899 = vmatprep.mubr.bf16.mxu0 %v474
  %900 = vmatmul.mubr.bf16.gmra.mrb[0].mxu0 %v473
  %v901 = vpop.f32.mrb[0].mxu0
  %v902 = vadd.f32 0.0, %v901
  %v903 = vpop.f32.mrb[0].mxu0
  %v904 = vpop.f32.mrb[0].mxu0
  %v905 = vadd.f32 0.0, %v904
  %v906 = vpop.f32.mrb[0].mxu0
  %907 = vmatprep.mubr.bf16.mxu0 %v477
  %908 = vmatmul.mubr.bf16.gmra.mrb[0].mxu0 %v476
  %v909 = vpop.f32.mrb[0].mxu0
  %v910 = vadd.f32 0.0, %v909
  %v911 = vpop.f32.mrb[0].mxu0
  %v912 = vpop.f32.mrb[0].mxu0
  %v913 = vadd.f32 0.0, %v912
  %v914 = vpop.f32.mrb[0].mxu0
  %915 = vmatprep.mubr.bf16.mxu0 %v480
  %916 = vmatmul.mubr.bf16.gmra.mrb[0].mxu0 %v479
  %v917 = vpop.f32.mrb[0].mxu0
  %v918 = vadd.f32 0.0, %v917
  %v919 = vpop.f32.mrb[0].mxu0
  %v920 = vpop.f32.mrb[0].mxu0
  %v921 = vadd.f32 0.0, %v920
  %v922 = vpop.f32.mrb[0].mxu0
  %923 = vmatprep.mubr.bf16.mxu0 %v483
  %924 = vmatmul.mubr.bf16.gmra.mrb[0].mxu0 %v482
  %v925 = vpop.f32.mrb[0].mxu0
  %v926 = vadd.f32 0.0, %v925
  %v927 = vpop.f32.mrb[0].mxu0
  %v928 = vpop.f32.mrb[0].mxu0
  %v929 = vadd.f32 0.0, %v928
  %v930 = vpop.f32.mrb[0].mxu0
  %931 = vmatprep.mubr.bf16.mxu0 %v486
  %932 = vmatmul.mubr.bf16.gmra.mrb[0].mxu0 %v485
  %v933 = vpop.f32.mrb[0].mxu0
  %v934 = vadd.f32 0.0, %v933
  %v935 = vpop.f32.mrb[0].mxu0
  %v936 = vpop.f32.mrb[0].mxu0
  %v937 = vadd.f32 0.0, %v936
  %v938 = vpop.f32.mrb[0].mxu0
  %939 = vdwg.mxu0
  %940 = vmatprep.subr.bf16.mxu0 0
  %941 = vmatpush1.bf16.msra.mxu0 %v675
  %942 = vmatprep.subr.bf16.mxu0 0
  %943 = vmatpush1.bf16.msra.mxu0 %v676
  %944 = vmatprep.subr.bf16.mxu0 0
  %945 = vmatpush1.bf16.msra.mxu0 %v677
  %946 = vmatprep.subr.bf16.mxu0 0
  %947 = vmatpush1.bf16.msra.mxu0 %v678
  %948 = vmatprep.subr.bf16.mxu0 0
  %949 = vmatpush1.bf16.msra.mxu0 %v679
  %950 = vmatprep.subr.bf16.mxu0 0
  %951 = vmatpush1.bf16.msra.mxu0 %v680
  %952 = vmatprep.subr.bf16.mxu0 0
  %953 = vmatpush1.bf16.msra.mxu0 %v681
  %954 = vmatprep.subr.bf16.mxu0 0
  %955 = vmatpush1.bf16.msra.mxu0 %v682
  %956 = vmatprep.subr.bf16.mxu0 0
  %957 = vmatpush1.bf16.msra.mxu0 0
  %958 = vmatprep.subr.bf16.mxu0 0
  %959 = vmatpush1.bf16.msra.mxu0 0
  %960 = vmatprep.subr.bf16.mxu0 0
  %961 = vmatpush1.bf16.msra.mxu0 0
  %962 = vmatprep.subr.bf16.mxu0 0
  %963 = vmatpush1.bf16.msra.mxu0 0
  %964 = vmatprep.subr.bf16.mxu0 0
  %965 = vmatpush1.bf16.msra.mxu0 0
  %966 = vmatprep.subr.bf16.mxu0 0
  %967 = vmatpush1.bf16.msra.mxu0 0
  %968 = vmatprep.subr.bf16.mxu0 0
  %969 = vmatpush1.bf16.msra.mxu0 0
  %970 = vmatprep.subr.bf16.mxu0 0
  %971 = vmatpush1.bf16.msra.mxu0 0
  %972 = vmatprep.mubr.bf16.mxu0 0
  %973 = vmatmul.mubr.bf16.gmra.mrb[0].mxu0 %v415
  %v974 = vpop.f32.mrb[0].mxu0
  %v975 = vadd.f32 %v742, %v974
  %v976 = vpop.f32.mrb[0].mxu0
  %v977 = vpop.f32.mrb[0].mxu0
  %v978 = vadd.f32 %v745, %v977
  %v979 = vpop.f32.mrb[0].mxu0
  %980 = vmatprep.mubr.bf16.mxu0 0
  %981 = vmatmul.mubr.bf16.gmra.mrb[0].mxu0 %v418
  %v982 = vpop.f32.mrb[0].mxu0
  %v983 = vadd.f32 %v750, %v982
  %v984 = vpop.f32.mrb[0].mxu0
  %v985 = vpop.f32.mrb[0].mxu0
  %v986 = vadd.f32 %v753, %v985
  %v987 = vpop.f32.mrb[0].mxu0
  %988 = vmatprep.mubr.bf16.mxu0 0
  %989 = vmatmul.mubr.bf16.gmra.mrb[0].mxu0 %v421
  %v990 = vpop.f32.mrb[0].mxu0
  %v991 = vadd.f32 %v758, %v990
  %v992 = vpop.f32.mrb[0].mxu0
  %v993 = vpop.f32.mrb[0].mxu0
  %v994 = vadd.f32 %v761, %v993
  %v995 = vpop.f32.mrb[0].mxu0
  %996 = vmatprep.mubr.bf16.mxu0 0
  %997 = vmatmul.mubr.bf16.gmra.mrb[0].mxu0 %v424
  %v998 = vpop.f32.mrb[0].mxu0
  %v999 = vadd.f32 %v766, %v998
  %v1000 = vpop.f32.mrb[0].mxu0
  %v1001 = vpop.f32.mrb[0].mxu0
  %v1002 = vadd.f32 %v769, %v1001
  %v1003 = vpop.f32.mrb[0].mxu0
  %1004 = vmatprep.mubr.bf16.mxu0 0
  %1005 = vmatmul.mubr.bf16.gmra.mrb[0].mxu0 %v427
  %v1006 = vpop.f32.mrb[0].mxu0
  %v1007 = vadd.f32 %v774, %v1006
  %v1008 = vpop.f32.mrb[0].mxu0
  %v1009 = vpop.f32.mrb[0].mxu0
  %v1010 = vadd.f32 %v777, %v1009
  %v1011 = vpop.f32.mrb[0].mxu0
  %1012 = vmatprep.mubr.bf16.mxu0 0
  %1013 = vmatmul.mubr.bf16.gmra.mrb[0].mxu0 %v430
  %v1014 = vpop.f32.mrb[0].mxu0
  %v1015 = vadd.f32 %v782, %v1014
  %v1016 = vpop.f32.mrb[0].mxu0
  %v1017 = vpop.f32.mrb[0].mxu0
  %v1018 = vadd.f32 %v785, %v1017
  %v1019 = vpop.f32.mrb[0].mxu0
  %1020 = vmatprep.mubr.bf16.mxu0 0
  %1021 = vmatmul.mubr.bf16.gmra.mrb[0].mxu0 %v433
  %v1022 = vpop.f32.mrb[0].mxu0
  %v1023 = vadd.f32 %v790, %v1022
  %v1024 = vpop.f32.mrb[0].mxu0
  %v1025 = vpop.f32.mrb[0].mxu0
  %v1026 = vadd.f32 %v793, %v1025
  %v1027 = vpop.f32.mrb[0].mxu0
  %1028 = vmatprep.mubr.bf16.mxu0 0
  %1029 = vmatmul.mubr.bf16.gmra.mrb[0].mxu0 %v436
  %v1030 = vpop.f32.mrb[0].mxu0
  %v1031 = vadd.f32 %v798, %v1030
  %v1032 = vpop.f32.mrb[0].mxu0
  %v1033 = vpop.f32.mrb[0].mxu0
  %v1034 = vadd.f32 %v801, %v1033
  %v1035 = vpop.f32.mrb[0].mxu0
  %1036 = vmatprep.mubr.bf16.mxu0 0
  %1037 = vmatmul.mubr.bf16.gmra.mrb[0].mxu0 %v439
  %v1038 = vpop.f32.mrb[0].mxu0
  %v1039 = vadd.f32 %v806, %v1038
  %v1040 = vpop.f32.mrb[0].mxu0
  %v1041 = vpop.f32.mrb[0].mxu0
  %v1042 = vadd.f32 %v809, %v1041
  %v1043 = vpop.f32.mrb[0].mxu0
  %1044 = vmatprep.mubr.bf16.mxu0 0
  %1045 = vmatmul.mubr.bf16.gmra.mrb[0].mxu0 %v442
  %v1046 = vpop.f32.mrb[0].mxu0
  %v1047 = vadd.f32 %v814, %v1046
  %v1048 = vpop.f32.mrb[0].mxu0
  %v1049 = vpop.f32.mrb[0].mxu0
  %v1050 = vadd.f32 %v817, %v1049
  %v1051 = vpop.f32.mrb[0].mxu0
  %1052 = vmatprep.mubr.bf16.mxu0 0
  %1053 = vmatmul.mubr.bf16.gmra.mrb[0].mxu0 %v445
  %v1054 = vpop.f32.mrb[0].mxu0
  %v1055 = vadd.f32 %v822, %v1054
  %v1056 = vpop.f32.mrb[0].mxu0
  %v1057 = vpop.f32.mrb[0].mxu0
  %v1058 = vadd.f32 %v825, %v1057
  %v1059 = vpop.f32.mrb[0].mxu0
  %1060 = vmatprep.mubr.bf16.mxu0 0
  %1061 = vmatmul.mubr.bf16.gmra.mrb[0].mxu0 %v448
  %v1062 = vpop.f32.mrb[0].mxu0
  %v1063 = vadd.f32 %v830, %v1062
  %v1064 = vpop.f32.mrb[0].mxu0
  %v1065 = vpop.f32.mrb[0].mxu0
  %v1066 = vadd.f32 %v833, %v1065
  %v1067 = vpop.f32.mrb[0].mxu0
  %1068 = vmatprep.mubr.bf16.mxu0 0
  %1069 = vmatmul.mubr.bf16.gmra.mrb[0].mxu0 %v451
  %v1070 = vpop.f32.mrb[0].mxu0
  %v1071 = vadd.f32 %v838, %v1070
  %v1072 = vpop.f32.mrb[0].mxu0
  %v1073 = vpop.f32.mrb[0].mxu0
  %v1074 = vadd.f32 %v841, %v1073
  %v1075 = vpop.f32.mrb[0].mxu0
  %1076 = vmatprep.mubr.bf16.mxu0 0
  %1077 = vmatmul.mubr.bf16.gmra.mrb[0].mxu0 %v454
  %v1078 = vpop.f32.mrb[0].mxu0
  %v1079 = vadd.f32 %v846, %v1078
  %v1080 = vpop.f32.mrb[0].mxu0
  %v1081 = vpop.f32.mrb[0].mxu0
  %v1082 = vadd.f32 %v849, %v1081
  %v1083 = vpop.f32.mrb[0].mxu0
  %1084 = vmatprep.mubr.bf16.mxu0 0
  %1085 = vmatmul.mubr.bf16.gmra.mrb[0].mxu0 %v457
  %v1086 = vpop.f32.mrb[0].mxu0
  %v1087 = vadd.f32 %v854, %v1086
  %v1088 = vpop.f32.mrb[0].mxu0
  %v1089 = vpop.f32.mrb[0].mxu0
  %v1090 = vadd.f32 %v857, %v1089
  %v1091 = vpop.f32.mrb[0].mxu0
  %1092 = vmatprep.mubr.bf16.mxu0 0
  %1093 = vmatmul.mubr.bf16.gmra.mrb[0].mxu0 %v460
  %v1094 = vpop.f32.mrb[0].mxu0
  %v1095 = vadd.f32 %v862, %v1094
  %v1096 = vpop.f32.mrb[0].mxu0
  %v1097 = vpop.f32.mrb[0].mxu0
  %v1098 = vadd.f32 %v865, %v1097
  %v1099 = vpop.f32.mrb[0].mxu0
  %1100 = vmatprep.mubr.bf16.mxu0 0
  %1101 = vmatmul.mubr.bf16.gmra.mrb[0].mxu0 %v463
  %v1102 = vpop.f32.mrb[0].mxu0
  %v1103 = vadd.f32 %v870, %v1102
  %v1104 = vpop.f32.mrb[0].mxu0
  %v1105 = vpop.f32.mrb[0].mxu0
  %v1106 = vadd.f32 %v873, %v1105
  %v1107 = vpop.f32.mrb[0].mxu0
  %1108 = vmatprep.mubr.bf16.mxu0 0
  %1109 = vmatmul.mubr.bf16.gmra.mrb[0].mxu0 %v466
  %v1110 = vpop.f32.mrb[0].mxu0
  %v1111 = vadd.f32 %v878, %v1110
  %v1112 = vpop.f32.mrb[0].mxu0
  %v1113 = vpop.f32.mrb[0].mxu0
  %v1114 = vadd.f32 %v881, %v1113
  %v1115 = vpop.f32.mrb[0].mxu0
  %1116 = vmatprep.mubr.bf16.mxu0 0
  %1117 = vmatmul.mubr.bf16.gmra.mrb[0].mxu0 %v469
  %v1118 = vpop.f32.mrb[0].mxu0
  %v1119 = vadd.f32 %v886, %v1118
  %v1120 = vpop.f32.mrb[0].mxu0
  %v1121 = vpop.f32.mrb[0].mxu0
  %v1122 = vadd.f32 %v889, %v1121
  %v1123 = vpop.f32.mrb[0].mxu0
  %1124 = vmatprep.mubr.bf16.mxu0 0
  %1125 = vmatmul.mubr.bf16.gmra.mrb[0].mxu0 %v472
  %v1126 = vpop.f32.mrb[0].mxu0
  %v1127 = vadd.f32 %v894, %v1126
  %v1128 = vpop.f32.mrb[0].mxu0
  %v1129 = vpop.f32.mrb[0].mxu0
  %v1130 = vadd.f32 %v897, %v1129
  %v1131 = vpop.f32.mrb[0].mxu0
  %1132 = vmatprep.mubr.bf16.mxu0 0
  %1133 = vmatmul.mubr.bf16.gmra.mrb[0].mxu0 %v475
  %v1134 = vpop.f32.mrb[0].mxu0
  %v1135 = vadd.f32 %v902, %v1134
  %v1136 = vpop.f32.mrb[0].mxu0
  %v1137 = vpop.f32.mrb[0].mxu0
  %v1138 = vadd.f32 %v905, %v1137
  %v1139 = vpop.f32.mrb[0].mxu0
  %1140 = vmatprep.mubr.bf16.mxu0 0
  %1141 = vmatmul.mubr.bf16.gmra.mrb[0].mxu0 %v478
  %v1142 = vpop.f32.mrb[0].mxu0
  %v1143 = vadd.f32 %v910, %v1142
  %v1144 = vpop.f32.mrb[0].mxu0
  %v1145 = vpop.f32.mrb[0].mxu0
  %v1146 = vadd.f32 %v913, %v1145
  %v1147 = vpop.f32.mrb[0].mxu0
  %1148 = vmatprep.mubr.bf16.mxu0 0
  %1149 = vmatmul.mubr.bf16.gmra.mrb[0].mxu0 %v481
  %v1150 = vpop.f32.mrb[0].mxu0
  %v1151 = vadd.f32 %v918, %v1150
  %v1152 = vpop.f32.mrb[0].mxu0
  %v1153 = vpop.f32.mrb[0].mxu0
  %v1154 = vadd.f32 %v921, %v1153
  %v1155 = vpop.f32.mrb[0].mxu0
  %1156 = vmatprep.mubr.bf16.mxu0 0
  %1157 = vmatmul.mubr.bf16.gmra.mrb[0].mxu0 %v484
  %v1158 = vpop.f32.mrb[0].mxu0
  %v1159 = vadd.f32 %v926, %v1158
  %v1160 = vpop.f32.mrb[0].mxu0
  %v1161 = vpop.f32.mrb[0].mxu0
  %v1162 = vadd.f32 %v929, %v1161
  %v1163 = vpop.f32.mrb[0].mxu0
  %1164 = vmatprep.mubr.bf16.mxu0 0
  %1165 = vmatmul.mubr.bf16.gmra.mrb[0].mxu0 %v487
  %v1166 = vpop.f32.mrb[0].mxu0
  %v1167 = vadd.f32 %v934, %v1166
  %v1168 = vpop.f32.mrb[0].mxu0
  %v1169 = vpop.f32.mrb[0].mxu0
  %v1170 = vadd.f32 %v937, %v1169
  %v1171 = vpop.f32.mrb[0].mxu0
  %1172 = vdwg.mxu0
  %v1173 = vpack.c.bf16 %v978, %v975
  %v1174 = vpack.c.bf16 %v986, %v983
  %v1175 = vpack.c.bf16 %v994, %v991
  %v1176 = vpack.c.bf16 %v1002, %v999
  %v1177 = vpack.c.bf16 %v1010, %v1007
  %v1178 = vpack.c.bf16 %v1018, %v1015
  %v1179 = vpack.c.bf16 %v1026, %v1023
  %v1180 = vpack.c.bf16 %v1034, %v1031
  %v1181 = vpack.c.bf16 %v1042, %v1039
  %v1182 = vpack.c.bf16 %v1050, %v1047
  %v1183 = vpack.c.bf16 %v1058, %v1055
  %v1184 = vpack.c.bf16 %v1066, %v1063
  %v1185 = vpack.c.bf16 %v1074, %v1071
  %v1186 = vpack.c.bf16 %v1082, %v1079
  %v1187 = vpack.c.bf16 %v1090, %v1087
  %v1188 = vpack.c.bf16 %v1098, %v1095
  %v1189 = vpack.c.bf16 %v1106, %v1103
  %v1190 = vpack.c.bf16 %v1114, %v1111
  %v1191 = vpack.c.bf16 %v1122, %v1119
  %v1192 = vpack.c.bf16 %v1130, %v1127
  %v1193 = vpack.c.bf16 %v1138, %v1135
  %v1194 = vpack.c.bf16 %v1146, %v1143
  %v1195 = vpack.c.bf16 %v1154, %v1151
  %v1196 = vpack.c.bf16 %v1162, %v1159
  %v1197 = vpack.c.bf16 %v1170, %v1167
  %v1223 = vunpack.c.l.b16 %v1173
  %v1224 = vunpack.c.h.b16 %v1173
  %v1225 = vunpack.c.l.b16 %v1174
  %v1226 = vunpack.c.h.b16 %v1174
  %v1227 = vunpack.c.l.b16 %v1175
  %v1228 = vunpack.c.h.b16 %v1175
  %v1229 = vunpack.c.l.b16 %v1176
  %v1230 = vunpack.c.h.b16 %v1176
  %v1231 = vunpack.c.l.b16 %v1177
  %v1232 = vunpack.c.h.b16 %v1177
  %v1233 = vunpack.c.l.b16 %v1178
  %v1234 = vunpack.c.h.b16 %v1178
  %v1235 = vunpack.c.l.b16 %v1179
  %v1236 = vunpack.c.h.b16 %v1179
  %v1237 = vunpack.c.l.b16 %v1180
  %v1238 = vunpack.c.h.b16 %v1180
  %v1239 = vunpack.c.l.b16 %v1181
  %v1240 = vunpack.c.h.b16 %v1181
  %v1241 = vunpack.c.l.b16 %v1182
  %v1242 = vunpack.c.h.b16 %v1182
  %v1243 = vunpack.c.l.b16 %v1183
  %v1244 = vunpack.c.h.b16 %v1183
  %v1245 = vunpack.c.l.b16 %v1184
  %v1246 = vunpack.c.h.b16 %v1184
  %v1247 = vunpack.c.l.b16 %v1185
  %v1248 = vunpack.c.h.b16 %v1185
  %v1249 = vunpack.c.l.b16 %v1186
  %v1250 = vunpack.c.h.b16 %v1186
  %v1251 = vunpack.c.l.b16 %v1187
  %v1252 = vunpack.c.h.b16 %v1187
  %v1253 = vunpack.c.l.b16 %v1188
  %v1254 = vunpack.c.h.b16 %v1188
  %v1255 = vunpack.c.l.b16 %v1189
  %v1256 = vunpack.c.h.b16 %v1189
  %v1257 = vunpack.c.l.b16 %v1190
  %v1258 = vunpack.c.h.b16 %v1190
  %v1259 = vunpack.c.l.b16 %v1191
  %v1260 = vunpack.c.h.b16 %v1191
  %v1261 = vunpack.c.l.b16 %v1192
  %v1262 = vunpack.c.h.b16 %v1192
  %v1263 = vunpack.c.l.b16 %v1193
  %v1264 = vunpack.c.h.b16 %v1193
  %v1265 = vunpack.c.l.b16 %v1194
  %v1266 = vunpack.c.h.b16 %v1194
  %v1267 = vunpack.c.l.b16 %v1195
  %v1268 = vunpack.c.h.b16 %v1195
  %v1269 = vunpack.c.l.b16 %v1196
  %v1270 = vunpack.c.h.b16 %v1196
  %v1271 = vunpack.c.l.b16 %v1197
  %v1272 = vunpack.c.h.b16 %v1197
  %v1273 = vpack.c.b16 %v1223, %v1223
  %v1274 = vpack.c.b16 %v1224, %v1224
  %v1275 = vpack.c.b16 %v1225, %v1225
  %v1276 = vpack.c.b16 %v1226, %v1226
  %v1277 = vpack.c.b16 %v1227, %v1227
  %v1278 = vpack.c.b16 %v1228, %v1228
  %v1279 = vpack.c.b16 %v1229, %v1229
  %v1280 = vpack.c.b16 %v1230, %v1230
  %v1281 = vpack.c.b16 %v1231, %v1231
  %v1282 = vpack.c.b16 %v1232, %v1232
  %v1283 = vpack.c.b16 %v1233, %v1233
  %v1284 = vpack.c.b16 %v1234, %v1234
  %v1285 = vpack.c.b16 %v1235, %v1235
  %v1286 = vpack.c.b16 %v1236, %v1236
  %v1287 = vpack.c.b16 %v1237, %v1237
  %v1288 = vpack.c.b16 %v1238, %v1238
  %v1289 = vpack.c.b16 %v1239, %v1239
  %v1290 = vpack.c.b16 %v1240, %v1240
  %v1291 = vpack.c.b16 %v1241, %v1241
  %v1292 = vpack.c.b16 %v1242, %v1242
  %v1293 = vpack.c.b16 %v1243, %v1243
  %v1294 = vpack.c.b16 %v1244, %v1244
  %v1295 = vpack.c.b16 %v1245, %v1245
  %v1296 = vpack.c.b16 %v1246, %v1246
  %v1297 = vpack.c.b16 %v1247, %v1247
  %v1298 = vpack.c.b16 %v1248, %v1248
  %v1299 = vpack.c.b16 %v1249, %v1249
  %v1300 = vpack.c.b16 %v1250, %v1250
  %v1301 = vpack.c.b16 %v1251, %v1251
  %v1302 = vpack.c.b16 %v1252, %v1252
  %v1303 = vpack.c.b16 %v1253, %v1253
  %v1304 = vpack.c.b16 %v1254, %v1254
  %v1305 = vpack.c.b16 %v1255, %v1255
  %v1306 = vpack.c.b16 %v1256, %v1256
  %v1307 = vpack.c.b16 %v1257, %v1257
  %v1308 = vpack.c.b16 %v1258, %v1258
  %v1309 = vpack.c.b16 %v1259, %v1259
  %v1310 = vpack.c.b16 %v1260, %v1260
  %v1311 = vpack.c.b16 %v1261, %v1261
  %v1312 = vpack.c.b16 %v1262, %v1262
  %v1313 = vpack.c.b16 %v1263, %v1263
  %v1314 = vpack.c.b16 %v1264, %v1264
  %v1315 = vpack.c.b16 %v1265, %v1265
  %v1316 = vpack.c.b16 %v1266, %v1266
  %v1317 = vpack.c.b16 %v1267, %v1267
  %v1318 = vpack.c.b16 %v1268, %v1268
  %v1319 = vpack.c.b16 %v1269, %v1269
  %v1320 = vpack.c.b16 %v1270, %v1270
  %v1321 = vpack.c.b16 %v1271, %v1271
  %v1322 = vpack.c.b16 %v1272, %v1272
  %1373 = vst [vmem:[%s2] sm:$0xf] %v1273
  %1374 = vst [vmem:[%s2 + $0x4] sm:$0xf] %v1274
  %1375 = vst [vmem:[%s2 + $0x8] sm:$0xf] %v1275
  %1376 = vst [vmem:[%s2 + $0xc] sm:$0xf] %v1276
  %1377 = vst [vmem:[%s2 + $0x10] sm:$0xf] %v1277
  %1378 = vst [vmem:[%s2 + $0x14] sm:$0xf] %v1278
  %1379 = vst [vmem:[%s2 + $0x18] sm:$0xf] %v1279
  %1380 = vst [vmem:[%s2 + $0x1c] sm:$0xf] %v1280
  %1381 = vst [vmem:[%s2 + $0x20] sm:$0xf] %v1281
  %1382 = vst [vmem:[%s2 + $0x24] sm:$0xf] %v1282
  %1383 = vst [vmem:[%s2 + $0x28] sm:$0xf] %v1283
  %1384 = vst [vmem:[%s2 + $0x2c] sm:$0xf] %v1284
  %1385 = vst [vmem:[%s2 + $0x30] sm:$0xf] %v1285
  %1386 = vst [vmem:[%s2 + $0x34] sm:$0xf] %v1286
  %1387 = vst [vmem:[%s2 + $0x38] sm:$0xf] %v1287
  %1388 = vst [vmem:[%s2 + $0x3c] sm:$0xf] %v1288
  %1389 = vst [vmem:[%s2 + $0x40] sm:$0xf] %v1289
  %1390 = vst [vmem:[%s2 + $0x44] sm:$0xf] %v1290
  %1391 = vst [vmem:[%s2 + $0x48] sm:$0xf] %v1291
  %1392 = vst [vmem:[%s2 + $0x4c] sm:$0xf] %v1292
  %1393 = vst [vmem:[%s2 + $0x50] sm:$0xf] %v1293
  %1394 = vst [vmem:[%s2 + $0x54] sm:$0xf] %v1294
  %1395 = vst [vmem:[%s2 + $0x58] sm:$0xf] %v1295
  %1396 = vst [vmem:[%s2 + $0x5c] sm:$0xf] %v1296
  %1397 = vst [vmem:[%s2 + $0x60] sm:$0xf] %v1297
  %1398 = vst [vmem:[%s2 + $0x64] sm:$0xf] %v1298
  %1399 = vst [vmem:[%s2 + $0x68] sm:$0xf] %v1299
  %1400 = vst [vmem:[%s2 + $0x6c] sm:$0xf] %v1300
  %1401 = vst [vmem:[%s2 + $0x70] sm:$0xf] %v1301
  %1402 = vst [vmem:[%s2 + $0x74] sm:$0xf] %v1302
  %1403 = vst [vmem:[%s2 + $0x78] sm:$0xf] %v1303
  %1404 = vst [vmem:[%s2 + $0x7c] sm:$0xf] %v1304
  %1405 = vst [vmem:[%s2 + $0x80] sm:$0xf] %v1305
  %1406 = vst [vmem:[%s2 + $0x84] sm:$0xf] %v1306
  %1407 = vst [vmem:[%s2 + $0x88] sm:$0xf] %v1307
  %1408 = vst [vmem:[%s2 + $0x8c] sm:$0xf] %v1308
  %1409 = vst [vmem:[%s2 + $0x90] sm:$0xf] %v1309
  %1410 = vst [vmem:[%s2 + $0x94] sm:$0xf] %v1310
  %1411 = vst [vmem:[%s2 + $0x98] sm:$0xf] %v1311
  %1412 = vst [vmem:[%s2 + $0x9c] sm:$0xf] %v1312
  %1413 = vst [vmem:[%s2 + $0xa0] sm:$0xf] %v1313
  %1414 = vst [vmem:[%s2 + $0xa4] sm:$0xf] %v1314
  %1415 = vst [vmem:[%s2 + $0xa8] sm:$0xf] %v1315
  %1416 = vst [vmem:[%s2 + $0xac] sm:$0xf] %v1316
  %1417 = vst [vmem:[%s2 + $0xb0] sm:$0xf] %v1317
  %1418 = vst [vmem:[%s2 + $0xb4] sm:$0xf] %v1318
  %1419 = vst [vmem:[%s2 + $0xb8] sm:$0xf] %v1319
  %1420 = vst [vmem:[%s2 + $0xbc] sm:$0xf] %v1320
  %1421 = vst [vmem:[%s2 + $0xc0] sm:$0xf] %v1321
  %1422 = vst [vmem:[%s2 + $0xc4] sm:$0xf] %v1322
  %v1423 = vadd.f32 %v975, %v978
  %v1424 = vadd.f32 %v1423, %v983
  %v1425 = vadd.f32 %v1424, %v986
  %v1426 = vadd.f32 %v1425, %v991
  %v1427 = vadd.f32 %v1426, %v994
  %v1428 = vadd.f32 %v1427, %v999
  %v1429 = vadd.f32 %v1428, %v1002
  %v1430 = vadd.f32 %v1429, %v1007
  %v1431 = vadd.f32 %v1430, %v1010
  %v1432 = vadd.f32 %v1431, %v1015
  %v1433 = vadd.f32 %v1432, %v1018
  %v1434 = vadd.f32 %v1433, %v1023
  %v1435 = vadd.f32 %v1434, %v1026
  %v1436 = vadd.f32 %v1435, %v1031
  %v1437 = vadd.f32 %v1436, %v1034
  %v1438 = vadd.f32 %v1437, %v1039
  %v1439 = vadd.f32 %v1438, %v1042
  %v1440 = vadd.f32 %v1439, %v1047
  %v1441 = vadd.f32 %v1440, %v1050
  %v1442 = vadd.f32 %v1441, %v1055
  %v1443 = vadd.f32 %v1442, %v1058
  %v1444 = vadd.f32 %v1443, %v1063
  %v1445 = vadd.f32 %v1444, %v1066
  %v1446 = vadd.f32 %v1445, %v1071
  %v1447 = vadd.f32 %v1446, %v1074
  %v1448 = vadd.f32 %v1447, %v1079
  %v1449 = vadd.f32 %v1448, %v1082
  %v1450 = vadd.f32 %v1449, %v1087
  %v1451 = vadd.f32 %v1450, %v1090
  %v1452 = vadd.f32 %v1451, %v1095
  %v1453 = vadd.f32 %v1452, %v1098
  %v1454 = vadd.f32 %v1453, %v1103
  %v1455 = vadd.f32 %v1454, %v1106
  %v1456 = vadd.f32 %v1455, %v1111
  %v1457 = vadd.f32 %v1456, %v1114
  %v1458 = vadd.f32 %v1457, %v1119
  %v1459 = vadd.f32 %v1458, %v1122
  %v1460 = vadd.f32 %v1459, %v1127
  %v1461 = vadd.f32 %v1460, %v1130
  %v1462 = vadd.f32 %v1461, %v1135
  %v1463 = vadd.f32 %v1462, %v1138
  %v1464 = vadd.f32 %v1463, %v1143
  %v1465 = vadd.f32 %v1464, %v1146
  %v1466 = vadd.f32 %v1465, %v1151
  %v1467 = vadd.f32 %v1466, %v1154
  %v1468 = vadd.f32 %v1467, %v1159
  %v1469 = vadd.f32 %v1468, %v1162
  %v1470 = vadd.f32 %v1469, %v1167
  %v1471 = vadd.f32 %v1470, %v1170
  %v1472 = vrot.slane %v1471, 4
  %v1473 = vadd.f32 %v1471, %v1472
  %v1474 = vrot.slane %v1473, 2
  %v1475 = vadd.f32 %v1473, %v1474
  %v1476 = vrot.slane %v1475, 1
  %v1477 = vadd.f32 %v1475, %v1476
  %v1478 = vmul.f32 %v975, %v975
  %v1479 = vmul.f32 %v978, %v978
  %v1480 = vmul.f32 %v983, %v983
  %v1481 = vmul.f32 %v986, %v986
  %v1482 = vmul.f32 %v991, %v991
  %v1483 = vmul.f32 %v994, %v994
  %v1484 = vmul.f32 %v999, %v999
  %v1485 = vmul.f32 %v1002, %v1002
  %v1486 = vmul.f32 %v1007, %v1007
  %v1487 = vmul.f32 %v1010, %v1010
  %v1488 = vmul.f32 %v1015, %v1015
  %v1489 = vmul.f32 %v1018, %v1018
  %v1490 = vmul.f32 %v1023, %v1023
  %v1491 = vmul.f32 %v1026, %v1026
  %v1492 = vmul.f32 %v1031, %v1031
  %v1493 = vmul.f32 %v1034, %v1034
  %v1494 = vmul.f32 %v1039, %v1039
  %v1495 = vmul.f32 %v1042, %v1042
  %v1496 = vmul.f32 %v1047, %v1047
  %v1497 = vmul.f32 %v1050, %v1050
  %v1498 = vmul.f32 %v1055, %v1055
  %v1499 = vmul.f32 %v1058, %v1058
  %v1500 = vmul.f32 %v1063, %v1063
  %v1501 = vmul.f32 %v1066, %v1066
  %v1502 = vmul.f32 %v1071, %v1071
  %v1503 = vmul.f32 %v1074, %v1074
  %v1504 = vmul.f32 %v1079, %v1079
  %v1505 = vmul.f32 %v1082, %v1082
  %v1506 = vmul.f32 %v1087, %v1087
  %v1507 = vmul.f32 %v1090, %v1090
  %v1508 = vmul.f32 %v1095, %v1095
  %v1509 = vmul.f32 %v1098, %v1098
  %v1510 = vmul.f32 %v1103, %v1103
  %v1511 = vmul.f32 %v1106, %v1106
  %v1512 = vmul.f32 %v1111, %v1111
  %v1513 = vmul.f32 %v1114, %v1114
  %v1514 = vmul.f32 %v1119, %v1119
  %v1515 = vmul.f32 %v1122, %v1122
  %v1516 = vmul.f32 %v1127, %v1127
  %v1517 = vmul.f32 %v1130, %v1130
  %v1518 = vmul.f32 %v1135, %v1135
  %v1519 = vmul.f32 %v1138, %v1138
  %v1520 = vmul.f32 %v1143, %v1143
  %v1521 = vmul.f32 %v1146, %v1146
  %v1522 = vmul.f32 %v1151, %v1151
  %v1523 = vmul.f32 %v1154, %v1154
  %v1524 = vmul.f32 %v1159, %v1159
  %v1525 = vmul.f32 %v1162, %v1162
  %v1526 = vmul.f32 %v1167, %v1167
  %v1527 = vmul.f32 %v1170, %v1170
  %v1528 = vadd.f32 %v1478, %v1479
  %v1529 = vadd.f32 %v1528, %v1480
  %v1530 = vadd.f32 %v1529, %v1481
  %v1531 = vadd.f32 %v1530, %v1482
  %v1532 = vadd.f32 %v1531, %v1483
  %v1533 = vadd.f32 %v1532, %v1484
  %v1534 = vadd.f32 %v1533, %v1485
  %v1535 = vadd.f32 %v1534, %v1486
  %v1536 = vadd.f32 %v1535, %v1487
  %v1537 = vadd.f32 %v1536, %v1488
  %v1538 = vadd.f32 %v1537, %v1489
  %v1539 = vadd.f32 %v1538, %v1490
  %v1540 = vadd.f32 %v1539, %v1491
  %v1541 = vadd.f32 %v1540, %v1492
  %v1542 = vadd.f32 %v1541, %v1493
  %v1543 = vadd.f32 %v1542, %v1494
  %v1544 = vadd.f32 %v1543, %v1495
  %v1545 = vadd.f32 %v1544, %v1496
  %v1546 = vadd.f32 %v1545, %v1497
  %v1547 = vadd.f32 %v1546, %v1498
  %v1548 = vadd.f32 %v1547, %v1499
  %v1549 = vadd.f32 %v1548, %v1500
  %v1550 = vadd.f32 %v1549, %v1501
  %v1551 = vadd.f32 %v1550, %v1502
  %v1552 = vadd.f32 %v1551, %v1503
  %v1553 = vadd.f32 %v1552, %v1504
  %v1554 = vadd.f32 %v1553, %v1505
  %v1555 = vadd.f32 %v1554, %v1506
  %v1556 = vadd.f32 %v1555, %v1507
  %v1557 = vadd.f32 %v1556, %v1508
  %v1558 = vadd.f32 %v1557, %v1509
  %v1559 = vadd.f32 %v1558, %v1510
  %v1560 = vadd.f32 %v1559, %v1511
  %v1561 = vadd.f32 %v1560, %v1512
  %v1562 = vadd.f32 %v1561, %v1513
  %v1563 = vadd.f32 %v1562, %v1514
  %v1564 = vadd.f32 %v1563, %v1515
  %v1565 = vadd.f32 %v1564, %v1516
  %v1566 = vadd.f32 %v1565, %v1517
  %v1567 = vadd.f32 %v1566, %v1518
  %v1568 = vadd.f32 %v1567, %v1519
  %v1569 = vadd.f32 %v1568, %v1520
  %v1570 = vadd.f32 %v1569, %v1521
  %v1571 = vadd.f32 %v1570, %v1522
  %v1572 = vadd.f32 %v1571, %v1523
  %v1573 = vadd.f32 %v1572, %v1524
  %v1574 = vadd.f32 %v1573, %v1525
  %v1575 = vadd.f32 %v1574, %v1526
  %v1576 = vadd.f32 %v1575, %v1527
  %v1577 = vrot.slane %v1576, 4
  %v1578 = vadd.f32 %v1576, %v1577
  %v1579 = vrot.slane %v1578, 2
  %v1580 = vadd.f32 %v1578, %v1579
  %v1581 = vrot.slane %v1580, 1
  %v1582 = vadd.f32 %v1580, %v1581
  %1583 = vst [vmem:[%s3] sm:$0xff] %v1477
  %1584 = vst [vmem:[%s4] sm:$0xff] %v1582
  // Predicated region
  $region10: #{generator_forward.7} parent=0 // pred_check
    _
  $region11: #{generator_forward.7} parent=0 // pred_check_branch
    %1586 = sbr.rel (0) target = $region13
  $region12: #{generator_forward.7} parent=0 // pred_region
    _
  $region13: #{generator_forward.7} parent=0 // pred_fallthru
    _
  // Predicated region
  $region14: #{generator_forward.7} parent=0 // pred_check
    _
  $region15: #{generator_forward.7} parent=0 // pred_check_branch
    %1588 = sbr.rel (0) target = $region17
  $region16: #{generator_forward.7} parent=0 // pred_region
    _
  $region17: #{generator_forward.7} parent=0 // pred_fallthru
    _
  // Predicated region
  $region18: #{generator_forward.7} parent=0 // pred_check
    _
  $region19: #{generator_forward.7} parent=0 // pred_check_branch
    %1590 = sbr.rel (0) target = $region21
  $region20: #{generator_forward.7} parent=0 // pred_region
    _
  $region21: #{generator_forward.7} parent=0 // pred_fallthru
    _
  // Predicated region
  $region22: #{generator_forward.7} parent=0 // pred_check
    _
  $region23: #{generator_forward.7} parent=0 // pred_check_branch
    %1592 = sbr.rel (0) target = $region25
  $region24: #{generator_forward.7} parent=0 // pred_region
    _
  $region25: #{generator_forward.7} parent=0 // pred_fallthru
    _
  // Predicated region
  $region26: #{generator_forward.7} parent=0 // pred_check
    _
  $region27: #{generator_forward.7} parent=0 // pred_check_branch
    %1594 = sbr.rel (0) target = $region29
  $region28: #{generator_forward.7} parent=0 // pred_region
    _
  $region29: #{generator_forward.7} parent=0 // pred_fallthru
    _
  // Predicated region
  $region30: #{generator_forward.7} parent=0 // pred_check
    _
  $region31: #{generator_forward.7} parent=0 // pred_check_branch
    %1596 = sbr.rel (0) target = $region33
  $region32: #{generator_forward.7} parent=0 // pred_region
    _
  $region33: #{generator_forward.7} parent=0 // pred_fallthru
    _

// kernel: generator_forward.8
$region0: #{generator_forward.8}
  #allocation0 [shape = 'u32[]', space=smem, size = 0x4, offset = 0x4, fixed_abs, tag = 'smem constant byte address 0x4 - core index']
  #allocation1 [shape = 'u32[144,128]{1,0:T(1,128)}', space=vmem, size = 0x12000, scoped, tag = 'internal scratch']
  %s0 = inlined_call_operand.vmem [shape: bf16[1568,128], index: 0, kind: input, shape index: {}]
  %s1 = inlined_call_operand.vmem [shape: bf16[128,128], index: 1, kind: input, shape index: {}]
  %s2 = inlined_call_operand.vmem [shape: bf16[1568,128], index: 2, kind: output, shape index: {0}]
  %s3 = inlined_call_operand.vmem [shape: f32[8,128], index: 3, kind: output, shape index: {1}]
  %s4 = inlined_call_operand.vmem [shape: f32[8,128], index: 4, kind: output, shape index: {2}]
  %5 = xla_tuple %s2, %s3, %s4
  %s6 = sld [smem:[#allocation0]]
  $region34: #{generator_forward.8} parent=0
    _
  %s8 = ssub.s32 1, %s6
  %s9 = scalar_select 0, %s8, %s6
  // Predicated region
  $region2: #{generator_forward.8} parent=0 // pred_check
    _
  $region3: #{generator_forward.8} parent=0 // pred_check_branch
    %11 = sbr.rel (0) target = $region5
  $region4: #{generator_forward.8} parent=0 // pred_region
    _
  $region5: #{generator_forward.8} parent=0 // pred_fallthru
    _
  // Predicated region
  $region6: #{generator_forward.8} parent=0 // pred_check
    _
  $region7: #{generator_forward.8} parent=0 // pred_check_branch
    %13 = sbr.rel (0) target = $region9
  $region8: #{generator_forward.8} parent=0 // pred_region
    _
  $region9: #{generator_forward.8} parent=0 // pred_fallthru
    _
  %v15 = vld [vmem:[%s0] sm:$0xf]
  %v16 = vld [vmem:[%s0 + $0x4] sm:$0xf]
  %v17 = vld [vmem:[%s0 + $0x8] sm:$0xf]
  %v18 = vld [vmem:[%s0 + $0xc] sm:$0xf]
  %v19 = vld [vmem:[%s0 + $0x10] sm:$0xf]
  %v20 = vld [vmem:[%s0 + $0x14] sm:$0xf]
  %v21 = vld [vmem:[%s0 + $0x18] sm:$0xf]
  %v22 = vld [vmem:[%s0 + $0x1c] sm:$0xf]
  %v23 = vld [vmem:[%s0 + $0x20] sm:$0xf]
  %v24 = vld [vmem:[%s0 + $0x24] sm:$0xf]
  %v25 = vld [vmem:[%s0 + $0x28] sm:$0xf]
  %v26 = vld [vmem:[%s0 + $0x2c] sm:$0xf]
  %v27 = vld [vmem:[%s0 + $0x30] sm:$0xf]
  %v28 = vld [vmem:[%s0 + $0x34] sm:$0xf]
  %v29 = vld [vmem:[%s0 + $0x38] sm:$0xf]
  %v30 = vld [vmem:[%s0 + $0x3c] sm:$0xf]
  %v31 = vld [vmem:[%s0 + $0x40] sm:$0xf]
  %v32 = vld [vmem:[%s0 + $0x44] sm:$0xf]
  %v33 = vld [vmem:[%s0 + $0x48] sm:$0xf]
  %v34 = vld [vmem:[%s0 + $0x4c] sm:$0xf]
  %v35 = vld [vmem:[%s0 + $0x50] sm:$0xf]
  %v36 = vld [vmem:[%s0 + $0x54] sm:$0xf]
  %v37 = vld [vmem:[%s0 + $0x58] sm:$0xf]
  %v38 = vld [vmem:[%s0 + $0x5c] sm:$0xf]
  %v39 = vld [vmem:[%s0 + $0x60] sm:$0xf]
  %v40 = vld [vmem:[%s0 + $0x64] sm:$0xf]
  %v41 = vld [vmem:[%s0 + $0x68] sm:$0xf]
  %v42 = vld [vmem:[%s0 + $0x6c] sm:$0xf]
  %v43 = vld [vmem:[%s0 + $0x70] sm:$0xf]
  %v44 = vld [vmem:[%s0 + $0x74] sm:$0xf]
  %v45 = vld [vmem:[%s0 + $0x78] sm:$0xf]
  %v46 = vld [vmem:[%s0 + $0x7c] sm:$0xf]
  %v47 = vld [vmem:[%s0 + $0x80] sm:$0xf]
  %v48 = vld [vmem:[%s0 + $0x84] sm:$0xf]
  %v49 = vld [vmem:[%s0 + $0x88] sm:$0xf]
  %v50 = vld [vmem:[%s0 + $0x8c] sm:$0xf]
  %v51 = vld [vmem:[%s0 + $0x90] sm:$0xf]
  %v52 = vld [vmem:[%s0 + $0x94] sm:$0xf]
  %v53 = vld [vmem:[%s0 + $0x98] sm:$0xf]
  %v54 = vld [vmem:[%s0 + $0x9c] sm:$0xf]
  %v55 = vld [vmem:[%s0 + $0xa0] sm:$0xf]
  %v56 = vld [vmem:[%s0 + $0xa4] sm:$0xf]
  %v57 = vld [vmem:[%s0 + $0xa8] sm:$0xf]
  %v58 = vld [vmem:[%s0 + $0xac] sm:$0xf]
  %v59 = vld [vmem:[%s0 + $0xb0] sm:$0xf]
  %v60 = vld [vmem:[%s0 + $0xb4] sm:$0xf]
  %v61 = vld [vmem:[%s0 + $0xb8] sm:$0xf]
  %v62 = vld [vmem:[%s0 + $0xbc] sm:$0xf]
  %v63 = vld [vmem:[%s0 + $0xc0] sm:$0xf]
  %v64 = vld [vmem:[%s0 + $0xc4] sm:$0xf]
  %v65 = vld [vmem:[%s0 + $0xc8] sm:$0xf]
  %v66 = vld [vmem:[%s0 + $0xcc] sm:$0xf]
  %v67 = vld [vmem:[%s0 + $0xd0] sm:$0xf]
  %v68 = vld [vmem:[%s0 + $0xd4] sm:$0xf]
  %v69 = vld [vmem:[%s0 + $0xd8] sm:$0xf]
  %v70 = vld [vmem:[%s0 + $0xdc] sm:$0xf]
  %v71 = vld [vmem:[%s0 + $0xe0] sm:$0xf]
  %v72 = vld [vmem:[%s0 + $0xe4] sm:$0xf]
  %v73 = vld [vmem:[%s0 + $0xe8] sm:$0xf]
  %v74 = vld [vmem:[%s0 + $0xec] sm:$0xf]
  %v75 = vld [vmem:[%s0 + $0xf0] sm:$0xf]
  %v76 = vld [vmem:[%s0 + $0xf4] sm:$0xf]
  %v77 = vld [vmem:[%s0 + $0xf8] sm:$0xf]
  %v78 = vld [vmem:[%s0 + $0xfc] sm:$0xf]
  %v79 = vld [vmem:[%s0 + $0x100] sm:$0xf]
  %v80 = vld [vmem:[%s0 + $0x104] sm:$0xf]
  %v81 = vld [vmem:[%s0 + $0x108] sm:$0xf]
  %v82 = vld [vmem:[%s0 + $0x10c] sm:$0xf]
  %v83 = vld [vmem:[%s0 + $0x110] sm:$0xf]
  %v84 = vld [vmem:[%s0 + $0x114] sm:$0xf]
  %v85 = vld [vmem:[%s0 + $0x118] sm:$0xf]
  %v86 = vld [vmem:[%s0 + $0x11c] sm:$0xf]
  %v87 = vld [vmem:[%s0 + $0x120] sm:$0xf]
  %v88 = vld [vmem:[%s0 + $0x124] sm:$0xf]
  %v89 = vld [vmem:[%s0 + $0x128] sm:$0xf]
  %v90 = vld [vmem:[%s0 + $0x12c] sm:$0xf]
  %v91 = vld [vmem:[%s0 + $0x130] sm:$0xf]
  %v92 = vld [vmem:[%s0 + $0x134] sm:$0xf]
  %v93 = vld [vmem:[%s0 + $0x138] sm:$0xf]
  %v94 = vld [vmem:[%s0 + $0x13c] sm:$0xf]
  %v95 = vld [vmem:[%s0 + $0x140] sm:$0xf]
  %v96 = vld [vmem:[%s0 + $0x144] sm:$0xf]
  %v97 = vld [vmem:[%s0 + $0x148] sm:$0xf]
  %v98 = vld [vmem:[%s0 + $0x14c] sm:$0xf]
  %v99 = vld [vmem:[%s0 + $0x150] sm:$0xf]
  %v100 = vld [vmem:[%s0 + $0x154] sm:$0xf]
  %v101 = vld [vmem:[%s0 + $0x158] sm:$0xf]
  %v102 = vld [vmem:[%s0 + $0x15c] sm:$0xf]
  %v103 = vld [vmem:[%s0 + $0x160] sm:$0xf]
  %v104 = vld [vmem:[%s0 + $0x164] sm:$0xf]
  %v105 = vld [vmem:[%s0 + $0x168] sm:$0xf]
  %v106 = vld [vmem:[%s0 + $0x16c] sm:$0xf]
  %v107 = vld [vmem:[%s0 + $0x170] sm:$0xf]
  %v108 = vld [vmem:[%s0 + $0x174] sm:$0xf]
  %v109 = vld [vmem:[%s0 + $0x178] sm:$0xf]
  %v110 = vld [vmem:[%s0 + $0x17c] sm:$0xf]
  %v111 = vld [vmem:[%s0 + $0x180] sm:$0xf]
  %v112 = vld [vmem:[%s0 + $0x184] sm:$0xf]
  %v113 = vld [vmem:[%s0 + $0x188] sm:$0xf]
  %v114 = vld [vmem:[%s0 + $0x18c] sm:$0xf]
  %v115 = vld [vmem:[%s0 + $0x190] sm:$0xf]
  %v116 = vld [vmem:[%s0 + $0x194] sm:$0xf]
  %v117 = vld [vmem:[%s0 + $0x198] sm:$0xf]
  %v118 = vld [vmem:[%s0 + $0x19c] sm:$0xf]
  %v119 = vld [vmem:[%s0 + $0x1a0] sm:$0xf]
  %v120 = vld [vmem:[%s0 + $0x1a4] sm:$0xf]
  %v121 = vld [vmem:[%s0 + $0x1a8] sm:$0xf]
  %v122 = vld [vmem:[%s0 + $0x1ac] sm:$0xf]
  %v123 = vld [vmem:[%s0 + $0x1b0] sm:$0xf]
  %v124 = vld [vmem:[%s0 + $0x1b4] sm:$0xf]
  %v125 = vld [vmem:[%s0 + $0x1b8] sm:$0xf]
  %v126 = vld [vmem:[%s0 + $0x1bc] sm:$0xf]
  %v127 = vld [vmem:[%s0 + $0x1c0] sm:$0xf]
  %v128 = vld [vmem:[%s0 + $0x1c4] sm:$0xf]
  %v129 = vld [vmem:[%s0 + $0x1c8] sm:$0xf]
  %v130 = vld [vmem:[%s0 + $0x1cc] sm:$0xf]
  %v131 = vld [vmem:[%s0 + $0x1d0] sm:$0xf]
  %v132 = vld [vmem:[%s0 + $0x1d4] sm:$0xf]
  %v133 = vld [vmem:[%s0 + $0x1d8] sm:$0xf]
  %v134 = vld [vmem:[%s0 + $0x1dc] sm:$0xf]
  %v135 = vld [vmem:[%s0 + $0x1e0] sm:$0xf]
  %v136 = vld [vmem:[%s0 + $0x1e4] sm:$0xf]
  %v137 = vld [vmem:[%s0 + $0x1e8] sm:$0xf]
  %v138 = vld [vmem:[%s0 + $0x1ec] sm:$0xf]
  %v139 = vld [vmem:[%s0 + $0x1f0] sm:$0xf]
  %v140 = vld [vmem:[%s0 + $0x1f4] sm:$0xf]
  %v141 = vld [vmem:[%s0 + $0x1f8] sm:$0xf]
  %v142 = vld [vmem:[%s0 + $0x1fc] sm:$0xf]
  %v143 = vld [vmem:[%s0 + $0x200] sm:$0xf]
  %v144 = vld [vmem:[%s0 + $0x204] sm:$0xf]
  %v145 = vld [vmem:[%s0 + $0x208] sm:$0xf]
  %v146 = vld [vmem:[%s0 + $0x20c] sm:$0xf]
  %v147 = vld [vmem:[%s0 + $0x210] sm:$0xf]
  %v148 = vld [vmem:[%s0 + $0x214] sm:$0xf]
  %v149 = vld [vmem:[%s0 + $0x218] sm:$0xf]
  %v150 = vld [vmem:[%s0 + $0x21c] sm:$0xf]
  %v151 = vld [vmem:[%s0 + $0x220] sm:$0xf]
  %v152 = vld [vmem:[%s0 + $0x224] sm:$0xf]
  %v153 = vld [vmem:[%s0 + $0x228] sm:$0xf]
  %v154 = vld [vmem:[%s0 + $0x22c] sm:$0xf]
  %v155 = vld [vmem:[%s0 + $0x230] sm:$0xf]
  %v156 = vld [vmem:[%s0 + $0x234] sm:$0xf]
  %v157 = vld [vmem:[%s0 + $0x238] sm:$0xf]
  %v158 = vld [vmem:[%s0 + $0x23c] sm:$0xf]
  %v159 = vld [vmem:[%s0 + $0x240] sm:$0xf]
  %v160 = vld [vmem:[%s0 + $0x244] sm:$0xf]
  %v161 = vld [vmem:[%s0 + $0x248] sm:$0xf]
  %v162 = vld [vmem:[%s0 + $0x24c] sm:$0xf]
  %v163 = vld [vmem:[%s0 + $0x250] sm:$0xf]
  %v164 = vld [vmem:[%s0 + $0x254] sm:$0xf]
  %v165 = vld [vmem:[%s0 + $0x258] sm:$0xf]
  %v166 = vld [vmem:[%s0 + $0x25c] sm:$0xf]
  %v167 = vld [vmem:[%s0 + $0x260] sm:$0xf]
  %v168 = vld [vmem:[%s0 + $0x264] sm:$0xf]
  %v169 = vld [vmem:[%s0 + $0x268] sm:$0xf]
  %v170 = vld [vmem:[%s0 + $0x26c] sm:$0xf]
  %v171 = vld [vmem:[%s0 + $0x270] sm:$0xf]
  %v172 = vld [vmem:[%s0 + $0x274] sm:$0xf]
  %v173 = vld [vmem:[%s0 + $0x278] sm:$0xf]
  %v174 = vld [vmem:[%s0 + $0x27c] sm:$0xf]
  %v175 = vld [vmem:[%s0 + $0x280] sm:$0xf]
  %v176 = vld [vmem:[%s0 + $0x284] sm:$0xf]
  %v177 = vld [vmem:[%s0 + $0x288] sm:$0xf]
  %v178 = vld [vmem:[%s0 + $0x28c] sm:$0xf]
  %v179 = vld [vmem:[%s0 + $0x290] sm:$0xf]
  %v180 = vld [vmem:[%s0 + $0x294] sm:$0xf]
  %v181 = vld [vmem:[%s0 + $0x298] sm:$0xf]
  %v182 = vld [vmem:[%s0 + $0x29c] sm:$0xf]
  %v183 = vld [vmem:[%s0 + $0x2a0] sm:$0xf]
  %v184 = vld [vmem:[%s0 + $0x2a4] sm:$0xf]
  %v185 = vld [vmem:[%s0 + $0x2a8] sm:$0xf]
  %v186 = vld [vmem:[%s0 + $0x2ac] sm:$0xf]
  %v187 = vld [vmem:[%s0 + $0x2b0] sm:$0xf]
  %v188 = vld [vmem:[%s0 + $0x2b4] sm:$0xf]
  %v189 = vld [vmem:[%s0 + $0x2b8] sm:$0xf]
  %v190 = vld [vmem:[%s0 + $0x2bc] sm:$0xf]
  %v191 = vld [vmem:[%s0 + $0x2c0] sm:$0xf]
  %v192 = vld [vmem:[%s0 + $0x2c4] sm:$0xf]
  %v193 = vld [vmem:[%s0 + $0x2c8] sm:$0xf]
  %v194 = vld [vmem:[%s0 + $0x2cc] sm:$0xf]
  %v195 = vld [vmem:[%s0 + $0x2d0] sm:$0xf]
  %v196 = vld [vmem:[%s0 + $0x2d4] sm:$0xf]
  %v197 = vld [vmem:[%s0 + $0x2d8] sm:$0xf]
  %v198 = vld [vmem:[%s0 + $0x2dc] sm:$0xf]
  %v199 = vld [vmem:[%s0 + $0x2e0] sm:$0xf]
  %v200 = vld [vmem:[%s0 + $0x2e4] sm:$0xf]
  %v201 = vld [vmem:[%s0 + $0x2e8] sm:$0xf]
  %v202 = vld [vmem:[%s0 + $0x2ec] sm:$0xf]
  %v203 = vld [vmem:[%s0 + $0x2f0] sm:$0xf]
  %v204 = vld [vmem:[%s0 + $0x2f4] sm:$0xf]
  %v205 = vld [vmem:[%s0 + $0x2f8] sm:$0xf]
  %v206 = vld [vmem:[%s0 + $0x2fc] sm:$0xf]
  %v207 = vld [vmem:[%s0 + $0x300] sm:$0xf]
  %v208 = vld [vmem:[%s0 + $0x304] sm:$0xf]
  %v209 = vld [vmem:[%s0 + $0x308] sm:$0xf]
  %v210 = vld [vmem:[%s0 + $0x30c] sm:$0xf]
  %v211 = vld [vmem:[%s1] sm:$0xf]
  %v212 = vld [vmem:[%s1 + $0x4] sm:$0xf]
  %v213 = vld [vmem:[%s1 + $0x8] sm:$0xf]
  %v214 = vld [vmem:[%s1 + $0xc] sm:$0xf]
  %v215 = vld [vmem:[%s1 + $0x10] sm:$0xf]
  %v216 = vld [vmem:[%s1 + $0x14] sm:$0xf]
  %v217 = vld [vmem:[%s1 + $0x18] sm:$0xf]
  %v218 = vld [vmem:[%s1 + $0x1c] sm:$0xf]
  %v219 = vld [vmem:[%s1 + $0x20] sm:$0xf]
  %v220 = vld [vmem:[%s1 + $0x24] sm:$0xf]
  %v221 = vld [vmem:[%s1 + $0x28] sm:$0xf]
  %v222 = vld [vmem:[%s1 + $0x2c] sm:$0xf]
  %v223 = vld [vmem:[%s1 + $0x30] sm:$0xf]
  %v224 = vld [vmem:[%s1 + $0x34] sm:$0xf]
  %v225 = vld [vmem:[%s1 + $0x38] sm:$0xf]
  %v226 = vld [vmem:[%s1 + $0x3c] sm:$0xf]
  %v423 = vunpack.c.l.b16 %v15
  %v424 = vunpack.c.l.b16 %v16
  %v425 = vunpack.c.l.b16 %v17
  %v426 = vunpack.c.l.b16 %v18
  %v427 = vunpack.c.l.b16 %v19
  %v428 = vunpack.c.l.b16 %v20
  %v429 = vunpack.c.l.b16 %v21
  %v430 = vunpack.c.l.b16 %v22
  %v431 = vunpack.c.l.b16 %v23
  %v432 = vunpack.c.l.b16 %v24
  %v433 = vunpack.c.l.b16 %v25
  %v434 = vunpack.c.l.b16 %v26
  %v435 = vunpack.c.l.b16 %v27
  %v436 = vunpack.c.l.b16 %v28
  %v437 = vunpack.c.l.b16 %v29
  %v438 = vunpack.c.l.b16 %v30
  %v439 = vunpack.c.l.b16 %v31
  %v440 = vunpack.c.l.b16 %v32
  %v441 = vunpack.c.l.b16 %v33
  %v442 = vunpack.c.l.b16 %v34
  %v443 = vunpack.c.l.b16 %v35
  %v444 = vunpack.c.l.b16 %v36
  %v445 = vunpack.c.l.b16 %v37
  %v446 = vunpack.c.l.b16 %v38
  %v447 = vunpack.c.l.b16 %v39
  %v448 = vunpack.c.l.b16 %v40
  %v449 = vunpack.c.l.b16 %v41
  %v450 = vunpack.c.l.b16 %v42
  %v451 = vunpack.c.l.b16 %v43
  %v452 = vunpack.c.l.b16 %v44
  %v453 = vunpack.c.l.b16 %v45
  %v454 = vunpack.c.l.b16 %v46
  %v455 = vunpack.c.l.b16 %v47
  %v456 = vunpack.c.l.b16 %v48
  %v457 = vunpack.c.l.b16 %v49
  %v458 = vunpack.c.l.b16 %v50
  %v459 = vunpack.c.l.b16 %v51
  %v460 = vunpack.c.l.b16 %v52
  %v461 = vunpack.c.l.b16 %v53
  %v462 = vunpack.c.l.b16 %v54
  %v463 = vunpack.c.l.b16 %v55
  %v464 = vunpack.c.l.b16 %v56
  %v465 = vunpack.c.l.b16 %v57
  %v466 = vunpack.c.l.b16 %v58
  %v467 = vunpack.c.l.b16 %v59
  %v468 = vunpack.c.l.b16 %v60
  %v469 = vunpack.c.l.b16 %v61
  %v470 = vunpack.c.l.b16 %v62
  %v471 = vunpack.c.l.b16 %v63
  %v472 = vunpack.c.l.b16 %v64
  %v473 = vunpack.c.l.b16 %v65
  %v474 = vunpack.c.l.b16 %v66
  %v475 = vunpack.c.l.b16 %v67
  %v476 = vunpack.c.l.b16 %v68
  %v477 = vunpack.c.l.b16 %v69
  %v478 = vunpack.c.l.b16 %v70
  %v479 = vunpack.c.l.b16 %v71
  %v480 = vunpack.c.l.b16 %v72
  %v481 = vunpack.c.l.b16 %v73
  %v482 = vunpack.c.l.b16 %v74
  %v483 = vunpack.c.l.b16 %v75
  %v484 = vunpack.c.l.b16 %v76
  %v485 = vunpack.c.l.b16 %v77
  %v486 = vunpack.c.l.b16 %v78
  %v487 = vunpack.c.l.b16 %v79
  %v488 = vunpack.c.l.b16 %v80
  %v489 = vunpack.c.l.b16 %v81
  %v490 = vunpack.c.l.b16 %v82
  %v491 = vunpack.c.l.b16 %v83
  %v492 = vunpack.c.l.b16 %v84
  %v493 = vunpack.c.l.b16 %v85
  %v494 = vunpack.c.l.b16 %v86
  %v495 = vunpack.c.l.b16 %v87
  %v496 = vunpack.c.l.b16 %v88
  %v497 = vunpack.c.l.b16 %v89
  %v498 = vunpack.c.l.b16 %v90
  %v499 = vunpack.c.l.b16 %v91
  %v500 = vunpack.c.l.b16 %v92
  %v501 = vunpack.c.l.b16 %v93
  %v502 = vunpack.c.l.b16 %v94
  %v503 = vunpack.c.l.b16 %v95
  %v504 = vunpack.c.l.b16 %v96
  %v505 = vunpack.c.l.b16 %v97
  %v506 = vunpack.c.l.b16 %v98
  %v507 = vunpack.c.l.b16 %v99
  %v508 = vunpack.c.l.b16 %v100
  %v509 = vunpack.c.l.b16 %v101
  %v510 = vunpack.c.l.b16 %v102
  %v511 = vunpack.c.l.b16 %v103
  %v512 = vunpack.c.l.b16 %v104
  %v513 = vunpack.c.l.b16 %v105
  %v514 = vunpack.c.l.b16 %v106
  %v515 = vunpack.c.l.b16 %v107
  %v516 = vunpack.c.l.b16 %v108
  %v517 = vunpack.c.l.b16 %v109
  %v518 = vunpack.c.l.b16 %v110
  %v519 = vunpack.c.l.b16 %v111
  %v520 = vunpack.c.l.b16 %v112
  %v521 = vunpack.c.l.b16 %v113
  %v522 = vunpack.c.l.b16 %v114
  %v523 = vunpack.c.l.b16 %v115
  %v524 = vunpack.c.l.b16 %v116
  %v525 = vunpack.c.l.b16 %v117
  %v526 = vunpack.c.l.b16 %v118
  %v527 = vunpack.c.l.b16 %v119
  %v528 = vunpack.c.l.b16 %v120
  %v529 = vunpack.c.l.b16 %v121
  %v530 = vunpack.c.l.b16 %v122
  %v531 = vunpack.c.l.b16 %v123
  %v532 = vunpack.c.l.b16 %v124
  %v533 = vunpack.c.l.b16 %v125
  %v534 = vunpack.c.l.b16 %v126
  %v535 = vunpack.c.l.b16 %v127
  %v536 = vunpack.c.l.b16 %v128
  %v537 = vunpack.c.l.b16 %v129
  %v538 = vunpack.c.l.b16 %v130
  %v539 = vunpack.c.l.b16 %v131
  %v540 = vunpack.c.l.b16 %v132
  %v541 = vunpack.c.l.b16 %v133
  %v542 = vunpack.c.l.b16 %v134
  %v543 = vunpack.c.l.b16 %v135
  %v544 = vunpack.c.l.b16 %v136
  %v545 = vunpack.c.l.b16 %v137
  %v546 = vunpack.c.l.b16 %v138
  %v547 = vunpack.c.l.b16 %v139
  %v548 = vunpack.c.l.b16 %v140
  %v549 = vunpack.c.l.b16 %v141
  %v550 = vunpack.c.l.b16 %v142
  %v551 = vunpack.c.l.b16 %v143
  %v552 = vunpack.c.l.b16 %v144
  %v553 = vunpack.c.l.b16 %v145
  %v554 = vunpack.c.l.b16 %v146
  %v555 = vunpack.c.l.b16 %v147
  %v556 = vunpack.c.l.b16 %v148
  %v557 = vunpack.c.l.b16 %v149
  %v558 = vunpack.c.l.b16 %v150
  %v559 = vunpack.c.l.b16 %v151
  %v560 = vunpack.c.l.b16 %v152
  %v561 = vunpack.c.l.b16 %v153
  %v562 = vunpack.c.l.b16 %v154
  %v563 = vunpack.c.l.b16 %v155
  %v564 = vunpack.c.l.b16 %v156
  %v565 = vunpack.c.l.b16 %v157
  %v566 = vunpack.c.l.b16 %v158
  %v567 = vunpack.c.l.b16 %v159
  %v568 = vunpack.c.l.b16 %v160
  %v569 = vunpack.c.l.b16 %v161
  %v570 = vunpack.c.l.b16 %v162
  %v571 = vunpack.c.l.b16 %v163
  %v572 = vunpack.c.l.b16 %v164
  %v573 = vunpack.c.l.b16 %v165
  %v574 = vunpack.c.l.b16 %v166
  %v575 = vunpack.c.l.b16 %v167
  %v576 = vunpack.c.l.b16 %v168
  %v577 = vunpack.c.l.b16 %v169
  %v578 = vunpack.c.l.b16 %v170
  %v579 = vunpack.c.l.b16 %v171
  %v580 = vunpack.c.l.b16 %v172
  %v581 = vunpack.c.l.b16 %v173
  %v582 = vunpack.c.l.b16 %v174
  %v583 = vunpack.c.l.b16 %v175
  %v584 = vunpack.c.l.b16 %v176
  %v585 = vunpack.c.l.b16 %v177
  %v586 = vunpack.c.l.b16 %v178
  %v587 = vunpack.c.l.b16 %v179
  %v588 = vunpack.c.l.b16 %v180
  %v589 = vunpack.c.l.b16 %v181
  %v590 = vunpack.c.l.b16 %v182
  %v591 = vunpack.c.l.b16 %v183
  %v592 = vunpack.c.l.b16 %v184
  %v593 = vunpack.c.l.b16 %v185
  %v594 = vunpack.c.l.b16 %v186
  %v595 = vunpack.c.l.b16 %v187
  %v596 = vunpack.c.l.b16 %v188
  %v597 = vunpack.c.l.b16 %v189
  %v598 = vunpack.c.l.b16 %v190
  %v599 = vunpack.c.l.b16 %v191
  %v600 = vunpack.c.l.b16 %v192
  %v601 = vunpack.c.l.b16 %v193
  %v602 = vunpack.c.l.b16 %v194
  %v603 = vunpack.c.l.b16 %v195
  %v604 = vunpack.c.l.b16 %v196
  %v605 = vunpack.c.l.b16 %v197
  %v606 = vunpack.c.l.b16 %v198
  %v607 = vunpack.c.l.b16 %v199
  %v608 = vunpack.c.l.b16 %v200
  %v609 = vunpack.c.l.b16 %v201
  %v610 = vunpack.c.l.b16 %v202
  %v611 = vunpack.c.l.b16 %v203
  %v612 = vunpack.c.l.b16 %v204
  %v613 = vunpack.c.l.b16 %v205
  %v614 = vunpack.c.l.b16 %v206
  %v615 = vunpack.c.l.b16 %v207
  %v616 = vunpack.c.l.b16 %v208
  %v617 = vunpack.c.l.b16 %v209
  %v618 = vunpack.c.l.b16 %v210
  %v619 = vpack.c.b16 %v424, %v423
  %v620 = vpack.c.b16 %v426, %v425
  %v621 = vpack.c.b16 %v428, %v427
  %v622 = vpack.c.b16 %v430, %v429
  %v623 = vpack.c.b16 %v432, %v431
  %v624 = vpack.c.b16 %v434, %v433
  %v625 = vpack.c.b16 %v436, %v435
  %v626 = vpack.c.b16 %v438, %v437
  %v627 = vpack.c.b16 %v440, %v439
  %v628 = vpack.c.b16 %v442, %v441
  %v629 = vpack.c.b16 %v444, %v443
  %v630 = vpack.c.b16 %v446, %v445
  %v631 = vpack.c.b16 %v448, %v447
  %v632 = vpack.c.b16 %v450, %v449
  %v633 = vpack.c.b16 %v452, %v451
  %v634 = vpack.c.b16 %v454, %v453
  %v635 = vpack.c.b16 %v456, %v455
  %v636 = vpack.c.b16 %v458, %v457
  %v637 = vpack.c.b16 %v460, %v459
  %v638 = vpack.c.b16 %v462, %v461
  %v639 = vpack.c.b16 %v464, %v463
  %v640 = vpack.c.b16 %v466, %v465
  %v641 = vpack.c.b16 %v468, %v467
  %v642 = vpack.c.b16 %v470, %v469
  %v643 = vpack.c.b16 %v472, %v471
  %v644 = vpack.c.b16 %v474, %v473
  %v645 = vpack.c.b16 %v476, %v475
  %v646 = vpack.c.b16 %v478, %v477
  %v647 = vpack.c.b16 %v480, %v479
  %v648 = vpack.c.b16 %v482, %v481
  %v649 = vpack.c.b16 %v484, %v483
  %v650 = vpack.c.b16 %v486, %v485
  %v651 = vpack.c.b16 %v488, %v487
  %v652 = vpack.c.b16 %v490, %v489
  %v653 = vpack.c.b16 %v492, %v491
  %v654 = vpack.c.b16 %v494, %v493
  %v655 = vpack.c.b16 %v496, %v495
  %v656 = vpack.c.b16 %v498, %v497
  %v657 = vpack.c.b16 %v500, %v499
  %v658 = vpack.c.b16 %v502, %v501
  %v659 = vpack.c.b16 %v504, %v503
  %v660 = vpack.c.b16 %v506, %v505
  %v661 = vpack.c.b16 %v508, %v507
  %v662 = vpack.c.b16 %v510, %v509
  %v663 = vpack.c.b16 %v512, %v511
  %v664 = vpack.c.b16 %v514, %v513
  %v665 = vpack.c.b16 %v516, %v515
  %v666 = vpack.c.b16 %v518, %v517
  %v667 = vpack.c.b16 %v520, %v519
  %v668 = vpack.c.b16 %v522, %v521
  %v669 = vpack.c.b16 %v524, %v523
  %v670 = vpack.c.b16 %v526, %v525
  %v671 = vpack.c.b16 %v528, %v527
  %v672 = vpack.c.b16 %v530, %v529
  %v673 = vpack.c.b16 %v532, %v531
  %v674 = vpack.c.b16 %v534, %v533
  %v675 = vpack.c.b16 %v536, %v535
  %v676 = vpack.c.b16 %v538, %v537
  %v677 = vpack.c.b16 %v540, %v539
  %v678 = vpack.c.b16 %v542, %v541
  %v679 = vpack.c.b16 %v544, %v543
  %v680 = vpack.c.b16 %v546, %v545
  %v681 = vpack.c.b16 %v548, %v547
  %v682 = vpack.c.b16 %v550, %v549
  %v683 = vpack.c.b16 %v552, %v551
  %v684 = vpack.c.b16 %v554, %v553
  %v685 = vpack.c.b16 %v556, %v555
  %v686 = vpack.c.b16 %v558, %v557
  %v687 = vpack.c.b16 %v560, %v559
  %v688 = vpack.c.b16 %v562, %v561
  %v689 = vpack.c.b16 %v564, %v563
  %v690 = vpack.c.b16 %v566, %v565
  %v691 = vpack.c.b16 %v568, %v567
  %v692 = vpack.c.b16 %v570, %v569
  %v693 = vpack.c.b16 %v572, %v571
  %v694 = vpack.c.b16 %v574, %v573
  %v695 = vpack.c.b16 %v576, %v575
  %v696 = vpack.c.b16 %v578, %v577
  %v697 = vpack.c.b16 %v580, %v579
  %v698 = vpack.c.b16 %v582, %v581
  %v699 = vpack.c.b16 %v584, %v583
  %v700 = vpack.c.b16 %v586, %v585
  %v701 = vpack.c.b16 %v588, %v587
  %v702 = vpack.c.b16 %v590, %v589
  %v703 = vpack.c.b16 %v592, %v591
  %v704 = vpack.c.b16 %v594, %v593
  %v705 = vpack.c.b16 %v596, %v595
  %v706 = vpack.c.b16 %v598, %v597
  %v707 = vpack.c.b16 %v600, %v599
  %v708 = vpack.c.b16 %v602, %v601
  %v709 = vpack.c.b16 %v604, %v603
  %v710 = vpack.c.b16 %v606, %v605
  %v711 = vpack.c.b16 %v608, %v607
  %v712 = vpack.c.b16 %v610, %v609
  %v713 = vpack.c.b16 %v612, %v611
  %v714 = vpack.c.b16 %v614, %v613
  %v715 = vpack.c.b16 %v616, %v615
  %v716 = vpack.c.b16 %v618, %v617
  %v831 = vunpack.c.l.b16 %v211
  %v832 = vunpack.c.l.b16 %v212
  %v833 = vunpack.c.l.b16 %v213
  %v834 = vunpack.c.l.b16 %v214
  %v835 = vunpack.c.l.b16 %v215
  %v836 = vunpack.c.l.b16 %v216
  %v837 = vunpack.c.l.b16 %v217
  %v838 = vunpack.c.l.b16 %v218
  %v839 = vunpack.c.l.b16 %v219
  %v840 = vunpack.c.l.b16 %v220
  %v841 = vunpack.c.l.b16 %v221
  %v842 = vunpack.c.l.b16 %v222
  %v843 = vunpack.c.l.b16 %v223
  %v844 = vunpack.c.l.b16 %v224
  %v845 = vunpack.c.l.b16 %v225
  %v846 = vunpack.c.l.b16 %v226
  %v847 = vpack.c.b16 %v832, %v831
  %v848 = vpack.c.b16 %v834, %v833
  %v849 = vpack.c.b16 %v836, %v835
  %v850 = vpack.c.b16 %v838, %v837
  %v851 = vpack.c.b16 %v840, %v839
  %v852 = vpack.c.b16 %v842, %v841
  %v853 = vpack.c.b16 %v844, %v843
  %v854 = vpack.c.b16 %v846, %v845
  %863 = vmatprep.subr.bf16.mxu0 0
  %864 = vmatpush1.bf16.msra.mxu0 %v847
  %865 = vmatprep.subr.bf16.mxu0 0
  %866 = vmatpush1.bf16.msra.mxu0 %v848
  %867 = vmatprep.subr.bf16.mxu0 0
  %868 = vmatpush1.bf16.msra.mxu0 %v849
  %869 = vmatprep.subr.bf16.mxu0 0
  %870 = vmatpush1.bf16.msra.mxu0 %v850
  %871 = vmatprep.subr.bf16.mxu0 0
  %872 = vmatpush1.bf16.msra.mxu0 %v851
  %873 = vmatprep.subr.bf16.mxu0 0
  %874 = vmatpush1.bf16.msra.mxu0 %v852
  %875 = vmatprep.subr.bf16.mxu0 0
  %876 = vmatpush1.bf16.msra.mxu0 %v853
  %877 = vmatprep.subr.bf16.mxu0 0
  %878 = vmatpush1.bf16.msra.mxu0 %v854
  %879 = vmatprep.subr.bf16.mxu0 0
  %880 = vmatpush1.bf16.msra.mxu0 0
  %881 = vmatprep.subr.bf16.mxu0 0
  %882 = vmatpush1.bf16.msra.mxu0 0
  %883 = vmatprep.subr.bf16.mxu0 0
  %884 = vmatpush1.bf16.msra.mxu0 0
  %885 = vmatprep.subr.bf16.mxu0 0
  %886 = vmatpush1.bf16.msra.mxu0 0
  %887 = vmatprep.subr.bf16.mxu0 0
  %888 = vmatpush1.bf16.msra.mxu0 0
  %889 = vmatprep.subr.bf16.mxu0 0
  %890 = vmatpush1.bf16.msra.mxu0 0
  %891 = vmatprep.subr.bf16.mxu0 0
  %892 = vmatpush1.bf16.msra.mxu0 0
  %893 = vmatprep.subr.bf16.mxu0 0
  %894 = vmatpush1.bf16.msra.mxu0 0
  %895 = vmatprep.mubr.bf16.mxu0 0
  %896 = vmatmul.mubr.bf16.gmra.mrb[0].mxu0 %v619
  %v897 = vpop.f32.mrb[0].mxu0
  %v898 = vadd.f32 0.0, %v897
  %v899 = vpop.f32.mrb[0].mxu0
  %v900 = vpop.f32.mrb[0].mxu0
  %v901 = vadd.f32 0.0, %v900
  %v902 = vpop.f32.mrb[0].mxu0
  %903 = vmatprep.mubr.bf16.mxu0 0
  %904 = vmatmul.mubr.bf16.gmra.mrb[0].mxu0 %v620
  %v905 = vpop.f32.mrb[0].mxu0
  %v906 = vadd.f32 0.0, %v905
  %v907 = vpop.f32.mrb[0].mxu0
  %v908 = vpop.f32.mrb[0].mxu0
  %v909 = vadd.f32 0.0, %v908
  %v910 = vpop.f32.mrb[0].mxu0
  %911 = vmatprep.mubr.bf16.mxu0 0
  %912 = vmatmul.mubr.bf16.gmra.mrb[0].mxu0 %v621
  %v913 = vpop.f32.mrb[0].mxu0
  %v914 = vadd.f32 0.0, %v913
  %v915 = vpop.f32.mrb[0].mxu0
  %v916 = vpop.f32.mrb[0].mxu0
  %v917 = vadd.f32 0.0, %v916
  %v918 = vpop.f32.mrb[0].mxu0
  %919 = vmatprep.mubr.bf16.mxu0 0
  %920 = vmatmul.mubr.bf16.gmra.mrb[0].mxu0 %v622
  %v921 = vpop.f32.mrb[0].mxu0
  %v922 = vadd.f32 0.0, %v921
  %v923 = vpop.f32.mrb[0].mxu0
  %v924 = vpop.f32.mrb[0].mxu0
  %v925 = vadd.f32 0.0, %v924
  %v926 = vpop.f32.mrb[0].mxu0
  %927 = vmatprep.mubr.bf16.mxu0 0
  %928 = vmatmul.mubr.bf16.gmra.mrb[0].mxu0 %v623
  %v929 = vpop.f32.mrb[0].mxu0
  %v930 = vadd.f32 0.0, %v929
  %v931 = vpop.f32.mrb[0].mxu0
  %v932 = vpop.f32.mrb[0].mxu0
  %v933 = vadd.f32 0.0, %v932
  %v934 = vpop.f32.mrb[0].mxu0
  %935 = vmatprep.mubr.bf16.mxu0 0
  %936 = vmatmul.mubr.bf16.gmra.mrb[0].mxu0 %v624
  %v937 = vpop.f32.mrb[0].mxu0
  %v938 = vadd.f32 0.0, %v937
  %v939 = vpop.f32.mrb[0].mxu0
  %v940 = vpop.f32.mrb[0].mxu0
  %v941 = vadd.f32 0.0, %v940
  %v942 = vpop.f32.mrb[0].mxu0
  %943 = vmatprep.mubr.bf16.mxu0 0
  %944 = vmatmul.mubr.bf16.gmra.mrb[0].mxu0 %v625
  %v945 = vpop.f32.mrb[0].mxu0
  %v946 = vadd.f32 0.0, %v945
  %v947 = vpop.f32.mrb[0].mxu0
  %v948 = vpop.f32.mrb[0].mxu0
  %v949 = vadd.f32 0.0, %v948
  %v950 = vpop.f32.mrb[0].mxu0
  %951 = vmatprep.mubr.bf16.mxu0 0
  %952 = vmatmul.mubr.bf16.gmra.mrb[0].mxu0 %v626
  %v953 = vpop.f32.mrb[0].mxu0
  %v954 = vadd.f32 0.0, %v953
  %v955 = vpop.f32.mrb[0].mxu0
  %v956 = vpop.f32.mrb[0].mxu0
  %v957 = vadd.f32 0.0, %v956
  %v958 = vpop.f32.mrb[0].mxu0
  %959 = vmatprep.mubr.bf16.mxu0 0
  %960 = vmatmul.mubr.bf16.gmra.mrb[0].mxu0 %v627
  %v961 = vpop.f32.mrb[0].mxu0
  %v962 = vadd.f32 0.0, %v961
  %v963 = vpop.f32.mrb[0].mxu0
  %v964 = vpop.f32.mrb[0].mxu0
  %v965 = vadd.f32 0.0, %v964
  %v966 = vpop.f32.mrb[0].mxu0
  %967 = vmatprep.mubr.bf16.mxu0 0
  %968 = vmatmul.mubr.bf16.gmra.mrb[0].mxu0 %v628
  %v969 = vpop.f32.mrb[0].mxu0
  %v970 = vadd.f32 0.0, %v969
  %v971 = vpop.f32.mrb[0].mxu0
  %v972 = vpop.f32.mrb[0].mxu0
  %v973 = vadd.f32 0.0, %v972
  %v974 = vpop.f32.mrb[0].mxu0
  %975 = vmatprep.mubr.bf16.mxu0 0
  %976 = vmatmul.mubr.bf16.gmra.mrb[0].mxu0 %v629
  %v977 = vpop.f32.mrb[0].mxu0
  %v978 = vadd.f32 0.0, %v977
  %v979 = vpop.f32.mrb[0].mxu0
  %v980 = vpop.f32.mrb[0].mxu0
  %v981 = vadd.f32 0.0, %v980
  %v982 = vpop.f32.mrb[0].mxu0
  %983 = vmatprep.mubr.bf16.mxu0 0
  %984 = vmatmul.mubr.bf16.gmra.mrb[0].mxu0 %v630
  %v985 = vpop.f32.mrb[0].mxu0
  %v986 = vadd.f32 0.0, %v985
  %v987 = vpop.f32.mrb[0].mxu0
  %v988 = vpop.f32.mrb[0].mxu0
  %v989 = vadd.f32 0.0, %v988
  %v990 = vpop.f32.mrb[0].mxu0
  %991 = vmatprep.mubr.bf16.mxu0 0
  %992 = vmatmul.mubr.bf16.gmra.mrb[0].mxu0 %v631
  %v993 = vpop.f32.mrb[0].mxu0
  %v994 = vadd.f32 0.0, %v993
  %v995 = vpop.f32.mrb[0].mxu0
  %v996 = vpop.f32.mrb[0].mxu0
  %v997 = vadd.f32 0.0, %v996
  %v998 = vpop.f32.mrb[0].mxu0
  %999 = vmatprep.mubr.bf16.mxu0 0
  %1000 = vmatmul.mubr.bf16.gmra.mrb[0].mxu0 %v632
  %v1001 = vpop.f32.mrb[0].mxu0
  %v1002 = vadd.f32 0.0, %v1001
  %v1003 = vpop.f32.mrb[0].mxu0
  %v1004 = vpop.f32.mrb[0].mxu0
  %v1005 = vadd.f32 0.0, %v1004
  %v1006 = vpop.f32.mrb[0].mxu0
  %1007 = vmatprep.mubr.bf16.mxu0 0
  %1008 = vmatmul.mubr.bf16.gmra.mrb[0].mxu0 %v633
  %v1009 = vpop.f32.mrb[0].mxu0
  %v1010 = vadd.f32 0.0, %v1009
  %v1011 = vpop.f32.mrb[0].mxu0
  %v1012 = vpop.f32.mrb[0].mxu0
  %v1013 = vadd.f32 0.0, %v1012
  %v1014 = vpop.f32.mrb[0].mxu0
  %1015 = vmatprep.mubr.bf16.mxu0 0
  %1016 = vmatmul.mubr.bf16.gmra.mrb[0].mxu0 %v634
  %v1017 = vpop.f32.mrb[0].mxu0
  %v1018 = vadd.f32 0.0, %v1017
  %v1019 = vpop.f32.mrb[0].mxu0
  %v1020 = vpop.f32.mrb[0].mxu0
  %v1021 = vadd.f32 0.0, %v1020
  %v1022 = vpop.f32.mrb[0].mxu0
  %1023 = vmatprep.mubr.bf16.mxu0 0
  %1024 = vmatmul.mubr.bf16.gmra.mrb[0].mxu0 %v635
  %v1025 = vpop.f32.mrb[0].mxu0
  %v1026 = vadd.f32 0.0, %v1025
  %v1027 = vpop.f32.mrb[0].mxu0
  %v1028 = vpop.f32.mrb[0].mxu0
  %v1029 = vadd.f32 0.0, %v1028
  %v1030 = vpop.f32.mrb[0].mxu0
  %1031 = vmatprep.mubr.bf16.mxu0 0
  %1032 = vmatmul.mubr.bf16.gmra.mrb[0].mxu0 %v636
  %v1033 = vpop.f32.mrb[0].mxu0
  %v1034 = vadd.f32 0.0, %v1033
  %v1035 = vpop.f32.mrb[0].mxu0
  %v1036 = vpop.f32.mrb[0].mxu0
  %v1037 = vadd.f32 0.0, %v1036
  %v1038 = vpop.f32.mrb[0].mxu0
  %1039 = vmatprep.mubr.bf16.mxu0 0
  %1040 = vmatmul.mubr.bf16.gmra.mrb[0].mxu0 %v637
  %v1041 = vpop.f32.mrb[0].mxu0
  %v1042 = vadd.f32 0.0, %v1041
  %v1043 = vpop.f32.mrb[0].mxu0
  %v1044 = vpop.f32.mrb[0].mxu0
  %v1045 = vadd.f32 0.0, %v1044
  %v1046 = vpop.f32.mrb[0].mxu0
  %1047 = vmatprep.mubr.bf16.mxu0 0
  %1048 = vmatmul.mubr.bf16.gmra.mrb[0].mxu0 %v638
  %v1049 = vpop.f32.mrb[0].mxu0
  %v1050 = vadd.f32 0.0, %v1049
  %v1051 = vpop.f32.mrb[0].mxu0
  %v1052 = vpop.f32.mrb[0].mxu0
  %v1053 = vadd.f32 0.0, %v1052
  %v1054 = vpop.f32.mrb[0].mxu0
  %1055 = vmatprep.mubr.bf16.mxu0 0
  %1056 = vmatmul.mubr.bf16.gmra.mrb[0].mxu0 %v639
  %v1057 = vpop.f32.mrb[0].mxu0
  %v1058 = vadd.f32 0.0, %v1057
  %v1059 = vpop.f32.mrb[0].mxu0
  %v1060 = vpop.f32.mrb[0].mxu0
  %v1061 = vadd.f32 0.0, %v1060
  %v1062 = vpop.f32.mrb[0].mxu0
  %1063 = vmatprep.mubr.bf16.mxu0 0
  %1064 = vmatmul.mubr.bf16.gmra.mrb[0].mxu0 %v640
  %v1065 = vpop.f32.mrb[0].mxu0
  %v1066 = vadd.f32 0.0, %v1065
  %v1067 = vpop.f32.mrb[0].mxu0
  %v1068 = vpop.f32.mrb[0].mxu0
  %v1069 = vadd.f32 0.0, %v1068
  %v1070 = vpop.f32.mrb[0].mxu0
  %1071 = vmatprep.mubr.bf16.mxu0 0
  %1072 = vmatmul.mubr.bf16.gmra.mrb[0].mxu0 %v641
  %v1073 = vpop.f32.mrb[0].mxu0
  %v1074 = vadd.f32 0.0, %v1073
  %v1075 = vpop.f32.mrb[0].mxu0
  %v1076 = vpop.f32.mrb[0].mxu0
  %v1077 = vadd.f32 0.0, %v1076
  %v1078 = vpop.f32.mrb[0].mxu0
  %1079 = vmatprep.mubr.bf16.mxu0 0
  %1080 = vmatmul.mubr.bf16.gmra.mrb[0].mxu0 %v642
  %v1081 = vpop.f32.mrb[0].mxu0
  %v1082 = vadd.f32 0.0, %v1081
  %v1083 = vpop.f32.mrb[0].mxu0
  %v1084 = vpop.f32.mrb[0].mxu0
  %v1085 = vadd.f32 0.0, %v1084
  %v1086 = vpop.f32.mrb[0].mxu0
  %1087 = vmatprep.mubr.bf16.mxu0 0
  %1088 = vmatmul.mubr.bf16.gmra.mrb[0].mxu0 %v643
  %v1089 = vpop.f32.mrb[0].mxu0
  %v1090 = vadd.f32 0.0, %v1089
  %v1091 = vpop.f32.mrb[0].mxu0
  %v1092 = vpop.f32.mrb[0].mxu0
  %v1093 = vadd.f32 0.0, %v1092
  %v1094 = vpop.f32.mrb[0].mxu0
  %1095 = vmatprep.mubr.bf16.mxu0 0
  %1096 = vmatmul.mubr.bf16.gmra.mrb[0].mxu0 %v644
  %v1097 = vpop.f32.mrb[0].mxu0
  %v1098 = vadd.f32 0.0, %v1097
  %v1099 = vpop.f32.mrb[0].mxu0
  %v1100 = vpop.f32.mrb[0].mxu0
  %v1101 = vadd.f32 0.0, %v1100
  %v1102 = vpop.f32.mrb[0].mxu0
  %1103 = vmatprep.mubr.bf16.mxu0 0
  %1104 = vmatmul.mubr.bf16.gmra.mrb[0].mxu0 %v645
  %v1105 = vpop.f32.mrb[0].mxu0
  %v1106 = vadd.f32 0.0, %v1105
  %v1107 = vpop.f32.mrb[0].mxu0
  %v1108 = vpop.f32.mrb[0].mxu0
  %v1109 = vadd.f32 0.0, %v1108
  %v1110 = vpop.f32.mrb[0].mxu0
  %1111 = vmatprep.mubr.bf16.mxu0 0
  %1112 = vmatmul.mubr.bf16.gmra.mrb[0].mxu0 %v646
  %v1113 = vpop.f32.mrb[0].mxu0
  %v1114 = vadd.f32 0.0, %v1113
  %v1115 = vpop.f32.mrb[0].mxu0
  %v1116 = vpop.f32.mrb[0].mxu0
  %v1117 = vadd.f32 0.0, %v1116
  %v1118 = vpop.f32.mrb[0].mxu0
  %1119 = vmatprep.mubr.bf16.mxu0 0
  %1120 = vmatmul.mubr.bf16.gmra.mrb[0].mxu0 %v647
  %v1121 = vpop.f32.mrb[0].mxu0
  %v1122 = vadd.f32 0.0, %v1121
  %v1123 = vpop.f32.mrb[0].mxu0
  %v1124 = vpop.f32.mrb[0].mxu0
  %v1125 = vadd.f32 0.0, %v1124
  %v1126 = vpop.f32.mrb[0].mxu0
  %1127 = vmatprep.mubr.bf16.mxu0 0
  %1128 = vmatmul.mubr.bf16.gmra.mrb[0].mxu0 %v648
  %v1129 = vpop.f32.mrb[0].mxu0
  %v1130 = vadd.f32 0.0, %v1129
  %v1131 = vpop.f32.mrb[0].mxu0
  %v1132 = vpop.f32.mrb[0].mxu0
  %v1133 = vadd.f32 0.0, %v1132
  %v1134 = vpop.f32.mrb[0].mxu0
  %1135 = vmatprep.mubr.bf16.mxu0 0
  %1136 = vmatmul.mubr.bf16.gmra.mrb[0].mxu0 %v649
  %v1137 = vpop.f32.mrb[0].mxu0
  %v1138 = vadd.f32 0.0, %v1137
  %v1139 = vpop.f32.mrb[0].mxu0
  %v1140 = vpop.f32.mrb[0].mxu0
  %v1141 = vadd.f32 0.0, %v1140
  %v1142 = vpop.f32.mrb[0].mxu0
  %1143 = vmatprep.mubr.bf16.mxu0 0
  %1144 = vmatmul.mubr.bf16.gmra.mrb[0].mxu0 %v650
  %v1145 = vpop.f32.mrb[0].mxu0
  %v1146 = vadd.f32 0.0, %v1145
  %v1147 = vpop.f32.mrb[0].mxu0
  %v1148 = vpop.f32.mrb[0].mxu0
  %v1149 = vadd.f32 0.0, %v1148
  %v1150 = vpop.f32.mrb[0].mxu0
  %1151 = vmatprep.mubr.bf16.mxu0 0
  %1152 = vmatmul.mubr.bf16.gmra.mrb[0].mxu0 %v651
  %v1153 = vpop.f32.mrb[0].mxu0
  %v1154 = vadd.f32 0.0, %v1153
  %v1155 = vpop.f32.mrb[0].mxu0
  %v1156 = vpop.f32.mrb[0].mxu0
  %v1157 = vadd.f32 0.0, %v1156
  %v1158 = vpop.f32.mrb[0].mxu0
  %1159 = vmatprep.mubr.bf16.mxu0 0
  %1160 = vmatmul.mubr.bf16.gmra.mrb[0].mxu0 %v652
  %v1161 = vpop.f32.mrb[0].mxu0
  %v1162 = vadd.f32 0.0, %v1161
  %v1163 = vpop.f32.mrb[0].mxu0
  %v1164 = vpop.f32.mrb[0].mxu0
  %v1165 = vadd.f32 0.0, %v1164
  %v1166 = vpop.f32.mrb[0].mxu0
  %1167 = vmatprep.mubr.bf16.mxu0 0
  %1168 = vmatmul.mubr.bf16.gmra.mrb[0].mxu0 %v653
  %v1169 = vpop.f32.mrb[0].mxu0
  %v1170 = vadd.f32 0.0, %v1169
  %v1171 = vpop.f32.mrb[0].mxu0
  %v1172 = vpop.f32.mrb[0].mxu0
  %v1173 = vadd.f32 0.0, %v1172
  %v1174 = vpop.f32.mrb[0].mxu0
  %1175 = vmatprep.mubr.bf16.mxu0 0
  %1176 = vmatmul.mubr.bf16.gmra.mrb[0].mxu0 %v654
  %v1177 = vpop.f32.mrb[0].mxu0
  %v1178 = vadd.f32 0.0, %v1177
  %v1179 = vpop.f32.mrb[0].mxu0
  %v1180 = vpop.f32.mrb[0].mxu0
  %v1181 = vadd.f32 0.0, %v1180
  %v1182 = vpop.f32.mrb[0].mxu0
  %1183 = vmatprep.mubr.bf16.mxu0 0
  %1184 = vmatmul.mubr.bf16.gmra.mrb[0].mxu0 %v655
  %v1185 = vpop.f32.mrb[0].mxu0
  %v1186 = vadd.f32 0.0, %v1185
  %v1187 = vpop.f32.mrb[0].mxu0
  %v1188 = vpop.f32.mrb[0].mxu0
  %v1189 = vadd.f32 0.0, %v1188
  %v1190 = vpop.f32.mrb[0].mxu0
  %1191 = vmatprep.mubr.bf16.mxu0 0
  %1192 = vmatmul.mubr.bf16.gmra.mrb[0].mxu0 %v656
  %v1193 = vpop.f32.mrb[0].mxu0
  %v1194 = vadd.f32 0.0, %v1193
  %v1195 = vpop.f32.mrb[0].mxu0
  %v1196 = vpop.f32.mrb[0].mxu0
  %v1197 = vadd.f32 0.0, %v1196
  %v1198 = vpop.f32.mrb[0].mxu0
  %1199 = vmatprep.mubr.bf16.mxu0 0
  %1200 = vmatmul.mubr.bf16.gmra.mrb[0].mxu0 %v657
  %v1201 = vpop.f32.mrb[0].mxu0
  %v1202 = vadd.f32 0.0, %v1201
  %v1203 = vpop.f32.mrb[0].mxu0
  %v1204 = vpop.f32.mrb[0].mxu0
  %v1205 = vadd.f32 0.0, %v1204
  %v1206 = vpop.f32.mrb[0].mxu0
  %1207 = vmatprep.mubr.bf16.mxu0 0
  %1208 = vmatmul.mubr.bf16.gmra.mrb[0].mxu0 %v658
  %v1209 = vpop.f32.mrb[0].mxu0
  %v1210 = vadd.f32 0.0, %v1209
  %v1211 = vpop.f32.mrb[0].mxu0
  %v1212 = vpop.f32.mrb[0].mxu0
  %v1213 = vadd.f32 0.0, %v1212
  %v1214 = vpop.f32.mrb[0].mxu0
  %1215 = vmatprep.mubr.bf16.mxu0 0
  %1216 = vmatmul.mubr.bf16.gmra.mrb[0].mxu0 %v659
  %v1217 = vpop.f32.mrb[0].mxu0
  %v1218 = vadd.f32 0.0, %v1217
  %v1219 = vpop.f32.mrb[0].mxu0
  %v1220 = vpop.f32.mrb[0].mxu0
  %v1221 = vadd.f32 0.0, %v1220
  %v1222 = vpop.f32.mrb[0].mxu0
  %1223 = vmatprep.mubr.bf16.mxu0 0
  %1224 = vmatmul.mubr.bf16.gmra.mrb[0].mxu0 %v660
  %v1225 = vpop.f32.mrb[0].mxu0
  %v1226 = vadd.f32 0.0, %v1225
  %v1227 = vpop.f32.mrb[0].mxu0
  %v1228 = vpop.f32.mrb[0].mxu0
  %v1229 = vadd.f32 0.0, %v1228
  %v1230 = vpop.f32.mrb[0].mxu0
  %1231 = vmatprep.mubr.bf16.mxu0 0
  %1232 = vmatmul.mubr.bf16.gmra.mrb[0].mxu0 %v661
  %v1233 = vpop.f32.mrb[0].mxu0
  %v1234 = vadd.f32 0.0, %v1233
  %v1235 = vpop.f32.mrb[0].mxu0
  %v1236 = vpop.f32.mrb[0].mxu0
  %v1237 = vadd.f32 0.0, %v1236
  %v1238 = vpop.f32.mrb[0].mxu0
  %1239 = vmatprep.mubr.bf16.mxu0 0
  %1240 = vmatmul.mubr.bf16.gmra.mrb[0].mxu0 %v662
  %v1241 = vpop.f32.mrb[0].mxu0
  %v1242 = vadd.f32 0.0, %v1241
  %v1243 = vpop.f32.mrb[0].mxu0
  %v1244 = vpop.f32.mrb[0].mxu0
  %v1245 = vadd.f32 0.0, %v1244
  %v1246 = vpop.f32.mrb[0].mxu0
  %1247 = vmatprep.mubr.bf16.mxu0 0
  %1248 = vmatmul.mubr.bf16.gmra.mrb[0].mxu0 %v663
  %v1249 = vpop.f32.mrb[0].mxu0
  %v1250 = vadd.f32 0.0, %v1249
  %v1251 = vpop.f32.mrb[0].mxu0
  %v1252 = vpop.f32.mrb[0].mxu0
  %v1253 = vadd.f32 0.0, %v1252
  %v1254 = vpop.f32.mrb[0].mxu0
  %1255 = vmatprep.mubr.bf16.mxu0 0
  %1256 = vmatmul.mubr.bf16.gmra.mrb[0].mxu0 %v664
  %v1257 = vpop.f32.mrb[0].mxu0
  %v1258 = vadd.f32 0.0, %v1257
  %v1259 = vpop.f32.mrb[0].mxu0
  %v1260 = vpop.f32.mrb[0].mxu0
  %v1261 = vadd.f32 0.0, %v1260
  %v1262 = vpop.f32.mrb[0].mxu0
  %1263 = vmatprep.mubr.bf16.mxu0 0
  %1264 = vmatmul.mubr.bf16.gmra.mrb[0].mxu0 %v665
  %v1265 = vpop.f32.mrb[0].mxu0
  %v1266 = vadd.f32 0.0, %v1265
  %v1267 = vpop.f32.mrb[0].mxu0
  %v1268 = vpop.f32.mrb[0].mxu0
  %v1269 = vadd.f32 0.0, %v1268
  %v1270 = vpop.f32.mrb[0].mxu0
  %1271 = vmatprep.mubr.bf16.mxu0 0
  %1272 = vmatmul.mubr.bf16.gmra.mrb[0].mxu0 %v666
  %v1273 = vpop.f32.mrb[0].mxu0
  %v1274 = vadd.f32 0.0, %v1273
  %v1275 = vpop.f32.mrb[0].mxu0
  %v1276 = vpop.f32.mrb[0].mxu0
  %v1277 = vadd.f32 0.0, %v1276
  %v1278 = vpop.f32.mrb[0].mxu0
  %1279 = vmatprep.mubr.bf16.mxu0 0
  %1280 = vmatmul.mubr.bf16.gmra.mrb[0].mxu0 %v667
  %v1281 = vpop.f32.mrb[0].mxu0
  %v1282 = vadd.f32 0.0, %v1281
  %v1283 = vpop.f32.mrb[0].mxu0
  %v1284 = vpop.f32.mrb[0].mxu0
  %v1285 = vadd.f32 0.0, %v1284
  %v1286 = vpop.f32.mrb[0].mxu0
  %1287 = vmatprep.mubr.bf16.mxu0 0
  %1288 = vmatmul.mubr.bf16.gmra.mrb[0].mxu0 %v668
  %v1289 = vpop.f32.mrb[0].mxu0
  %v1290 = vadd.f32 0.0, %v1289
  %v1291 = vpop.f32.mrb[0].mxu0
  %v1292 = vpop.f32.mrb[0].mxu0
  %v1293 = vadd.f32 0.0, %v1292
  %v1294 = vpop.f32.mrb[0].mxu0
  %1295 = vmatprep.mubr.bf16.mxu0 0
  %1296 = vmatmul.mubr.bf16.gmra.mrb[0].mxu0 %v669
  %v1297 = vpop.f32.mrb[0].mxu0
  %v1298 = vadd.f32 0.0, %v1297
  %v1299 = vpop.f32.mrb[0].mxu0
  %v1300 = vpop.f32.mrb[0].mxu0
  %v1301 = vadd.f32 0.0, %v1300
  %v1302 = vpop.f32.mrb[0].mxu0
  %1303 = vmatprep.mubr.bf16.mxu0 0
  %1304 = vmatmul.mubr.bf16.gmra.mrb[0].mxu0 %v670
  %v1305 = vpop.f32.mrb[0].mxu0
  %v1306 = vadd.f32 0.0, %v1305
  %v1307 = vpop.f32.mrb[0].mxu0
  %v1308 = vpop.f32.mrb[0].mxu0
  %v1309 = vadd.f32 0.0, %v1308
  %v1310 = vpop.f32.mrb[0].mxu0
  %1311 = vmatprep.mubr.bf16.mxu0 0
  %1312 = vmatmul.mubr.bf16.gmra.mrb[0].mxu0 %v671
  %v1313 = vpop.f32.mrb[0].mxu0
  %v1314 = vadd.f32 0.0, %v1313
  %v1315 = vpop.f32.mrb[0].mxu0
  %v1316 = vpop.f32.mrb[0].mxu0
  %v1317 = vadd.f32 0.0, %v1316
  %v1318 = vpop.f32.mrb[0].mxu0
  %1319 = vmatprep.mubr.bf16.mxu0 0
  %1320 = vmatmul.mubr.bf16.gmra.mrb[0].mxu0 %v672
  %v1321 = vpop.f32.mrb[0].mxu0
  %v1322 = vadd.f32 0.0, %v1321
  %v1323 = vpop.f32.mrb[0].mxu0
  %v1324 = vpop.f32.mrb[0].mxu0
  %v1325 = vadd.f32 0.0, %v1324
  %v1326 = vpop.f32.mrb[0].mxu0
  %1327 = vmatprep.mubr.bf16.mxu0 0
  %1328 = vmatmul.mubr.bf16.gmra.mrb[0].mxu0 %v673
  %v1329 = vpop.f32.mrb[0].mxu0
  %v1330 = vadd.f32 0.0, %v1329
  %v1331 = vpop.f32.mrb[0].mxu0
  %v1332 = vpop.f32.mrb[0].mxu0
  %v1333 = vadd.f32 0.0, %v1332
  %v1334 = vpop.f32.mrb[0].mxu0
  %1335 = vmatprep.mubr.bf16.mxu0 0
  %1336 = vmatmul.mubr.bf16.gmra.mrb[0].mxu0 %v674
  %v1337 = vpop.f32.mrb[0].mxu0
  %v1338 = vadd.f32 0.0, %v1337
  %v1339 = vpop.f32.mrb[0].mxu0
  %v1340 = vpop.f32.mrb[0].mxu0
  %v1341 = vadd.f32 0.0, %v1340
  %v1342 = vpop.f32.mrb[0].mxu0
  %1343 = vmatprep.mubr.bf16.mxu0 0
  %1344 = vmatmul.mubr.bf16.gmra.mrb[0].mxu0 %v675
  %v1345 = vpop.f32.mrb[0].mxu0
  %v1346 = vadd.f32 0.0, %v1345
  %v1347 = vpop.f32.mrb[0].mxu0
  %v1348 = vpop.f32.mrb[0].mxu0
  %v1349 = vadd.f32 0.0, %v1348
  %v1350 = vpop.f32.mrb[0].mxu0
  %1351 = vmatprep.mubr.bf16.mxu0 0
  %1352 = vmatmul.mubr.bf16.gmra.mrb[0].mxu0 %v676
  %v1353 = vpop.f32.mrb[0].mxu0
  %v1354 = vadd.f32 0.0, %v1353
  %v1355 = vpop.f32.mrb[0].mxu0
  %v1356 = vpop.f32.mrb[0].mxu0
  %v1357 = vadd.f32 0.0, %v1356
  %v1358 = vpop.f32.mrb[0].mxu0
  %1359 = vmatprep.mubr.bf16.mxu0 0
  %1360 = vmatmul.mubr.bf16.gmra.mrb[0].mxu0 %v677
  %v1361 = vpop.f32.mrb[0].mxu0
  %v1362 = vadd.f32 0.0, %v1361
  %v1363 = vpop.f32.mrb[0].mxu0
  %v1364 = vpop.f32.mrb[0].mxu0
  %v1365 = vadd.f32 0.0, %v1364
  %v1366 = vpop.f32.mrb[0].mxu0
  %1367 = vmatprep.mubr.bf16.mxu0 0
  %1368 = vmatmul.mubr.bf16.gmra.mrb[0].mxu0 %v678
  %v1369 = vpop.f32.mrb[0].mxu0
  %v1370 = vadd.f32 0.0, %v1369
  %v1371 = vpop.f32.mrb[0].mxu0
  %v1372 = vpop.f32.mrb[0].mxu0
  %v1373 = vadd.f32 0.0, %v1372
  %v1374 = vpop.f32.mrb[0].mxu0
  %1375 = vmatprep.mubr.bf16.mxu0 0
  %1376 = vmatmul.mubr.bf16.gmra.mrb[0].mxu0 %v679
  %v1377 = vpop.f32.mrb[0].mxu0
  %v1378 = vadd.f32 0.0, %v1377
  %v1379 = vpop.f32.mrb[0].mxu0
  %v1380 = vpop.f32.mrb[0].mxu0
  %v1381 = vadd.f32 0.0, %v1380
  %v1382 = vpop.f32.mrb[0].mxu0
  %1383 = vmatprep.mubr.bf16.mxu0 0
  %1384 = vmatmul.mubr.bf16.gmra.mrb[0].mxu0 %v680
  %v1385 = vpop.f32.mrb[0].mxu0
  %v1386 = vadd.f32 0.0, %v1385
  %v1387 = vpop.f32.mrb[0].mxu0
  %v1388 = vpop.f32.mrb[0].mxu0
  %v1389 = vadd.f32 0.0, %v1388
  %v1390 = vpop.f32.mrb[0].mxu0
  %1391 = vmatprep.mubr.bf16.mxu0 0
  %1392 = vmatmul.mubr.bf16.gmra.mrb[0].mxu0 %v681
  %v1393 = vpop.f32.mrb[0].mxu0
  %v1394 = vadd.f32 0.0, %v1393
  %v1395 = vpop.f32.mrb[0].mxu0
  %v1396 = vpop.f32.mrb[0].mxu0
  %v1397 = vadd.f32 0.0, %v1396
  %v1398 = vpop.f32.mrb[0].mxu0
  %1399 = vmatprep.mubr.bf16.mxu0 0
  %1400 = vmatmul.mubr.bf16.gmra.mrb[0].mxu0 %v682
  %v1401 = vpop.f32.mrb[0].mxu0
  %v1402 = vadd.f32 0.0, %v1401
  %v1403 = vpop.f32.mrb[0].mxu0
  %v1404 = vpop.f32.mrb[0].mxu0
  %v1405 = vadd.f32 0.0, %v1404
  %v1406 = vpop.f32.mrb[0].mxu0
  %1407 = vmatprep.mubr.bf16.mxu0 0
  %1408 = vmatmul.mubr.bf16.gmra.mrb[0].mxu0 %v683
  %v1409 = vpop.f32.mrb[0].mxu0
  %v1410 = vadd.f32 0.0, %v1409
  %v1411 = vpop.f32.mrb[0].mxu0
  %v1412 = vpop.f32.mrb[0].mxu0
  %v1413 = vadd.f32 0.0, %v1412
  %v1414 = vpop.f32.mrb[0].mxu0
  %1415 = vmatprep.mubr.bf16.mxu0 0
  %1416 = vmatmul.mubr.bf16.gmra.mrb[0].mxu0 %v684
  %v1417 = vpop.f32.mrb[0].mxu0
  %v1418 = vadd.f32 0.0, %v1417
  %v1419 = vpop.f32.mrb[0].mxu0
  %v1420 = vpop.f32.mrb[0].mxu0
  %v1421 = vadd.f32 0.0, %v1420
  %v1422 = vpop.f32.mrb[0].mxu0
  %1423 = vmatprep.mubr.bf16.mxu0 0
  %1424 = vmatmul.mubr.bf16.gmra.mrb[0].mxu0 %v685
  %v1425 = vpop.f32.mrb[0].mxu0
  %v1426 = vadd.f32 0.0, %v1425
  %v1427 = vpop.f32.mrb[0].mxu0
  %v1428 = vpop.f32.mrb[0].mxu0
  %v1429 = vadd.f32 0.0, %v1428
  %v1430 = vpop.f32.mrb[0].mxu0
  %1431 = vmatprep.mubr.bf16.mxu0 0
  %1432 = vmatmul.mubr.bf16.gmra.mrb[0].mxu0 %v686
  %v1433 = vpop.f32.mrb[0].mxu0
  %v1434 = vadd.f32 0.0, %v1433
  %v1435 = vpop.f32.mrb[0].mxu0
  %v1436 = vpop.f32.mrb[0].mxu0
  %v1437 = vadd.f32 0.0, %v1436
  %v1438 = vpop.f32.mrb[0].mxu0
  %1439 = vmatprep.mubr.bf16.mxu0 0
  %1440 = vmatmul.mubr.bf16.gmra.mrb[0].mxu0 %v687
  %v1441 = vpop.f32.mrb[0].mxu0
  %v1442 = vadd.f32 0.0, %v1441
  %v1443 = vpop.f32.mrb[0].mxu0
  %v1444 = vpop.f32.mrb[0].mxu0
  %v1445 = vadd.f32 0.0, %v1444
  %v1446 = vpop.f32.mrb[0].mxu0
  %1447 = vmatprep.mubr.bf16.mxu0 0
  %1448 = vmatmul.mubr.bf16.gmra.mrb[0].mxu0 %v688
  %v1449 = vpop.f32.mrb[0].mxu0
  %v1450 = vadd.f32 0.0, %v1449
  %v1451 = vpop.f32.mrb[0].mxu0
  %v1452 = vpop.f32.mrb[0].mxu0
  %v1453 = vadd.f32 0.0, %v1452
  %v1454 = vpop.f32.mrb[0].mxu0
  %1455 = vmatprep.mubr.bf16.mxu0 0
  %1456 = vmatmul.mubr.bf16.gmra.mrb[0].mxu0 %v689
  %v1457 = vpop.f32.mrb[0].mxu0
  %v1458 = vadd.f32 0.0, %v1457
  %v1459 = vpop.f32.mrb[0].mxu0
  %v1460 = vpop.f32.mrb[0].mxu0
  %v1461 = vadd.f32 0.0, %v1460
  %v1462 = vpop.f32.mrb[0].mxu0
  %1463 = vmatprep.mubr.bf16.mxu0 0
  %1464 = vmatmul.mubr.bf16.gmra.mrb[0].mxu0 %v690
  %v1465 = vpop.f32.mrb[0].mxu0
  %v1466 = vadd.f32 0.0, %v1465
  %v1467 = vpop.f32.mrb[0].mxu0
  %v1468 = vpop.f32.mrb[0].mxu0
  %v1469 = vadd.f32 0.0, %v1468
  %v1470 = vpop.f32.mrb[0].mxu0
  %1471 = vmatprep.mubr.bf16.mxu0 0
  %1472 = vmatmul.mubr.bf16.gmra.mrb[0].mxu0 %v691
  %v1473 = vpop.f32.mrb[0].mxu0
  %v1474 = vadd.f32 0.0, %v1473
  %v1475 = vpop.f32.mrb[0].mxu0
  %v1476 = vpop.f32.mrb[0].mxu0
  %v1477 = vadd.f32 0.0, %v1476
  %v1478 = vpop.f32.mrb[0].mxu0
  %1479 = vmatprep.mubr.bf16.mxu0 0
  %1480 = vmatmul.mubr.bf16.gmra.mrb[0].mxu0 %v692
  %v1481 = vpop.f32.mrb[0].mxu0
  %v1482 = vadd.f32 0.0, %v1481
  %v1483 = vpop.f32.mrb[0].mxu0
  %v1484 = vpop.f32.mrb[0].mxu0
  %v1485 = vadd.f32 0.0, %v1484
  %v1486 = vpop.f32.mrb[0].mxu0
  %1487 = vmatprep.mubr.bf16.mxu0 0
  %1488 = vmatmul.mubr.bf16.gmra.mrb[0].mxu0 %v693
  %v1489 = vpop.f32.mrb[0].mxu0
  %v1490 = vadd.f32 0.0, %v1489
  %v1491 = vpop.f32.mrb[0].mxu0
  %v1492 = vpop.f32.mrb[0].mxu0
  %v1493 = vadd.f32 0.0, %v1492
  %v1494 = vpop.f32.mrb[0].mxu0
  %1495 = vmatprep.mubr.bf16.mxu0 0
  %1496 = vmatmul.mubr.bf16.gmra.mrb[0].mxu0 %v694
  %v1497 = vpop.f32.mrb[0].mxu0
  %v1498 = vadd.f32 0.0, %v1497
  %v1499 = vpop.f32.mrb[0].mxu0
  %v1500 = vpop.f32.mrb[0].mxu0
  %v1501 = vadd.f32 0.0, %v1500
  %v1502 = vpop.f32.mrb[0].mxu0
  %1503 = vmatprep.mubr.bf16.mxu0 0
  %1504 = vmatmul.mubr.bf16.gmra.mrb[0].mxu0 %v695
  %v1505 = vpop.f32.mrb[0].mxu0
  %v1506 = vadd.f32 0.0, %v1505
  %v1507 = vpop.f32.mrb[0].mxu0
  %v1508 = vpop.f32.mrb[0].mxu0
  %v1509 = vadd.f32 0.0, %v1508
  %v1510 = vpop.f32.mrb[0].mxu0
  %1511 = vmatprep.mubr.bf16.mxu0 0
  %1512 = vmatmul.mubr.bf16.gmra.mrb[0].mxu0 %v696
  %v1513 = vpop.f32.mrb[0].mxu0
  %v1514 = vadd.f32 0.0, %v1513
  %v1515 = vpop.f32.mrb[0].mxu0
  %v1516 = vpop.f32.mrb[0].mxu0
  %v1517 = vadd.f32 0.0, %v1516
  %v1518 = vpop.f32.mrb[0].mxu0
  %1519 = vmatprep.mubr.bf16.mxu0 0
  %1520 = vmatmul.mubr.bf16.gmra.mrb[0].mxu0 %v697
  %v1521 = vpop.f32.mrb[0].mxu0
  %v1522 = vadd.f32 0.0, %v1521
  %v1523 = vpop.f32.mrb[0].mxu0
  %v1524 = vpop.f32.mrb[0].mxu0
  %v1525 = vadd.f32 0.0, %v1524
  %v1526 = vpop.f32.mrb[0].mxu0
  %1527 = vmatprep.mubr.bf16.mxu0 0
  %1528 = vmatmul.mubr.bf16.gmra.mrb[0].mxu0 %v698
  %v1529 = vpop.f32.mrb[0].mxu0
  %v1530 = vadd.f32 0.0, %v1529
  %v1531 = vpop.f32.mrb[0].mxu0
  %v1532 = vpop.f32.mrb[0].mxu0
  %v1533 = vadd.f32 0.0, %v1532
  %v1534 = vpop.f32.mrb[0].mxu0
  %1535 = vmatprep.mubr.bf16.mxu0 0
  %1536 = vmatmul.mubr.bf16.gmra.mrb[0].mxu0 %v699
  %v1537 = vpop.f32.mrb[0].mxu0
  %v1538 = vadd.f32 0.0, %v1537
  %v1539 = vpop.f32.mrb[0].mxu0
  %v1540 = vpop.f32.mrb[0].mxu0
  %v1541 = vadd.f32 0.0, %v1540
  %v1542 = vpop.f32.mrb[0].mxu0
  %1543 = vmatprep.mubr.bf16.mxu0 0
  %1544 = vmatmul.mubr.bf16.gmra.mrb[0].mxu0 %v700
  %v1545 = vpop.f32.mrb[0].mxu0
  %v1546 = vadd.f32 0.0, %v1545
  %v1547 = vpop.f32.mrb[0].mxu0
  %v1548 = vpop.f32.mrb[0].mxu0
  %v1549 = vadd.f32 0.0, %v1548
  %v1550 = vpop.f32.mrb[0].mxu0
  %1551 = vmatprep.mubr.bf16.mxu0 0
  %1552 = vmatmul.mubr.bf16.gmra.mrb[0].mxu0 %v701
  %v1553 = vpop.f32.mrb[0].mxu0
  %v1554 = vadd.f32 0.0, %v1553
  %v1555 = vpop.f32.mrb[0].mxu0
  %v1556 = vpop.f32.mrb[0].mxu0
  %v1557 = vadd.f32 0.0, %v1556
  %v1558 = vpop.f32.mrb[0].mxu0
  %1559 = vmatprep.mubr.bf16.mxu0 0
  %1560 = vmatmul.mubr.bf16.gmra.mrb[0].mxu0 %v702
  %v1561 = vpop.f32.mrb[0].mxu0
  %v1562 = vadd.f32 0.0, %v1561
  %v1563 = vpop.f32.mrb[0].mxu0
  %v1564 = vpop.f32.mrb[0].mxu0
  %v1565 = vadd.f32 0.0, %v1564
  %v1566 = vpop.f32.mrb[0].mxu0
  %1567 = vmatprep.mubr.bf16.mxu0 0
  %1568 = vmatmul.mubr.bf16.gmra.mrb[0].mxu0 %v703
  %v1569 = vpop.f32.mrb[0].mxu0
  %v1570 = vadd.f32 0.0, %v1569
  %v1571 = vpop.f32.mrb[0].mxu0
  %v1572 = vpop.f32.mrb[0].mxu0
  %v1573 = vadd.f32 0.0, %v1572
  %v1574 = vpop.f32.mrb[0].mxu0
  %1575 = vmatprep.mubr.bf16.mxu0 0
  %1576 = vmatmul.mubr.bf16.gmra.mrb[0].mxu0 %v704
  %v1577 = vpop.f32.mrb[0].mxu0
  %v1578 = vadd.f32 0.0, %v1577
  %v1579 = vpop.f32.mrb[0].mxu0
  %v1580 = vpop.f32.mrb[0].mxu0
  %v1581 = vadd.f32 0.0, %v1580
  %v1582 = vpop.f32.mrb[0].mxu0
  %1583 = vmatprep.mubr.bf16.mxu0 0
  %1584 = vmatmul.mubr.bf16.gmra.mrb[0].mxu0 %v705
  %v1585 = vpop.f32.mrb[0].mxu0
  %v1586 = vadd.f32 0.0, %v1585
  %v1587 = vpop.f32.mrb[0].mxu0
  %v1588 = vpop.f32.mrb[0].mxu0
  %v1589 = vadd.f32 0.0, %v1588
  %v1590 = vpop.f32.mrb[0].mxu0
  %1591 = vmatprep.mubr.bf16.mxu0 0
  %1592 = vmatmul.mubr.bf16.gmra.mrb[0].mxu0 %v706
  %v1593 = vpop.f32.mrb[0].mxu0
  %v1594 = vadd.f32 0.0, %v1593
  %v1595 = vpop.f32.mrb[0].mxu0
  %v1596 = vpop.f32.mrb[0].mxu0
  %v1597 = vadd.f32 0.0, %v1596
  %v1598 = vpop.f32.mrb[0].mxu0
  %1599 = vmatprep.mubr.bf16.mxu0 0
  %1600 = vmatmul.mubr.bf16.gmra.mrb[0].mxu0 %v707
  %v1601 = vpop.f32.mrb[0].mxu0
  %v1602 = vadd.f32 0.0, %v1601
  %v1603 = vpop.f32.mrb[0].mxu0
  %v1604 = vpop.f32.mrb[0].mxu0
  %v1605 = vadd.f32 0.0, %v1604
  %v1606 = vpop.f32.mrb[0].mxu0
  %1607 = vmatprep.mubr.bf16.mxu0 0
  %1608 = vmatmul.mubr.bf16.gmra.mrb[0].mxu0 %v708
  %v1609 = vpop.f32.mrb[0].mxu0
  %v1610 = vadd.f32 0.0, %v1609
  %v1611 = vpop.f32.mrb[0].mxu0
  %v1612 = vpop.f32.mrb[0].mxu0
  %v1613 = vadd.f32 0.0, %v1612
  %v1614 = vpop.f32.mrb[0].mxu0
  %1615 = vmatprep.mubr.bf16.mxu0 0
  %1616 = vmatmul.mubr.bf16.gmra.mrb[0].mxu0 %v709
  %v1617 = vpop.f32.mrb[0].mxu0
  %v1618 = vadd.f32 0.0, %v1617
  %v1619 = vpop.f32.mrb[0].mxu0
  %v1620 = vpop.f32.mrb[0].mxu0
  %v1621 = vadd.f32 0.0, %v1620
  %v1622 = vpop.f32.mrb[0].mxu0
  %1623 = vmatprep.mubr.bf16.mxu0 0
  %1624 = vmatmul.mubr.bf16.gmra.mrb[0].mxu0 %v710
  %v1625 = vpop.f32.mrb[0].mxu0
  %v1626 = vadd.f32 0.0, %v1625
  %v1627 = vpop.f32.mrb[0].mxu0
  %v1628 = vpop.f32.mrb[0].mxu0
  %v1629 = vadd.f32 0.0, %v1628
  %v1630 = vpop.f32.mrb[0].mxu0
  %1631 = vmatprep.mubr.bf16.mxu0 0
  %1632 = vmatmul.mubr.bf16.gmra.mrb[0].mxu0 %v711
  %v1633 = vpop.f32.mrb[0].mxu0
  %v1634 = vadd.f32 0.0, %v1633
  %v1635 = vpop.f32.mrb[0].mxu0
  %v1636 = vpop.f32.mrb[0].mxu0
  %v1637 = vadd.f32 0.0, %v1636
  %v1638 = vpop.f32.mrb[0].mxu0
  %1639 = vmatprep.mubr.bf16.mxu0 0
  %1640 = vmatmul.mubr.bf16.gmra.mrb[0].mxu0 %v712
  %v1641 = vpop.f32.mrb[0].mxu0
  %v1642 = vadd.f32 0.0, %v1641
  %v1643 = vpop.f32.mrb[0].mxu0
  %v1644 = vpop.f32.mrb[0].mxu0
  %v1645 = vadd.f32 0.0, %v1644
  %v1646 = vpop.f32.mrb[0].mxu0
  %1647 = vmatprep.mubr.bf16.mxu0 0
  %1648 = vmatmul.mubr.bf16.gmra.mrb[0].mxu0 %v713
  %v1649 = vpop.f32.mrb[0].mxu0
  %v1650 = vadd.f32 0.0, %v1649
  %v1651 = vpop.f32.mrb[0].mxu0
  %v1652 = vpop.f32.mrb[0].mxu0
  %v1653 = vadd.f32 0.0, %v1652
  %v1654 = vpop.f32.mrb[0].mxu0
  %1655 = vmatprep.mubr.bf16.mxu0 0
  %1656 = vmatmul.mubr.bf16.gmra.mrb[0].mxu0 %v714
  %v1657 = vpop.f32.mrb[0].mxu0
  %v1658 = vadd.f32 0.0, %v1657
  %v1659 = vpop.f32.mrb[0].mxu0
  %v1660 = vpop.f32.mrb[0].mxu0
  %v1661 = vadd.f32 0.0, %v1660
  %v1662 = vpop.f32.mrb[0].mxu0
  %1663 = vmatprep.mubr.bf16.mxu0 0
  %1664 = vmatmul.mubr.bf16.gmra.mrb[0].mxu0 %v715
  %v1665 = vpop.f32.mrb[0].mxu0
  %v1666 = vadd.f32 0.0, %v1665
  %v1667 = vpop.f32.mrb[0].mxu0
  %v1668 = vpop.f32.mrb[0].mxu0
  %v1669 = vadd.f32 0.0, %v1668
  %v1670 = vpop.f32.mrb[0].mxu0
  %1671 = vmatprep.mubr.bf16.mxu0 0
  %1672 = vmatmul.mubr.bf16.gmra.mrb[0].mxu0 %v716
  %v1673 = vpop.f32.mrb[0].mxu0
  %v1674 = vadd.f32 0.0, %v1673
  %v1675 = vpop.f32.mrb[0].mxu0
  %v1676 = vpop.f32.mrb[0].mxu0
  %v1677 = vadd.f32 0.0, %v1676
  %v1678 = vpop.f32.mrb[0].mxu0
  %1679 = vdwg.mxu0
  %v1680 = vpack.c.bf16 %v901, %v898
  %v1681 = vpack.c.bf16 %v909, %v906
  %v1682 = vpack.c.bf16 %v917, %v914
  %v1683 = vpack.c.bf16 %v925, %v922
  %v1684 = vpack.c.bf16 %v933, %v930
  %v1685 = vpack.c.bf16 %v941, %v938
  %v1686 = vpack.c.bf16 %v949, %v946
  %v1687 = vpack.c.bf16 %v957, %v954
  %v1688 = vpack.c.bf16 %v965, %v962
  %v1689 = vpack.c.bf16 %v973, %v970
  %v1690 = vpack.c.bf16 %v981, %v978
  %v1691 = vpack.c.bf16 %v989, %v986
  %v1692 = vpack.c.bf16 %v997, %v994
  %v1693 = vpack.c.bf16 %v1005, %v1002
  %v1694 = vpack.c.bf16 %v1013, %v1010
  %v1695 = vpack.c.bf16 %v1021, %v1018
  %v1696 = vpack.c.bf16 %v1029, %v1026
  %v1697 = vpack.c.bf16 %v1037, %v1034
  %v1698 = vpack.c.bf16 %v1045, %v1042
  %v1699 = vpack.c.bf16 %v1053, %v1050
  %v1700 = vpack.c.bf16 %v1061, %v1058
  %v1701 = vpack.c.bf16 %v1069, %v1066
  %v1702 = vpack.c.bf16 %v1077, %v1074
  %v1703 = vpack.c.bf16 %v1085, %v1082
  %v1704 = vpack.c.bf16 %v1093, %v1090
  %v1705 = vpack.c.bf16 %v1101, %v1098
  %v1706 = vpack.c.bf16 %v1109, %v1106
  %v1707 = vpack.c.bf16 %v1117, %v1114
  %v1708 = vpack.c.bf16 %v1125, %v1122
  %v1709 = vpack.c.bf16 %v1133, %v1130
  %v1710 = vpack.c.bf16 %v1141, %v1138
  %v1711 = vpack.c.bf16 %v1149, %v1146
  %v1712 = vpack.c.bf16 %v1157, %v1154
  %v1713 = vpack.c.bf16 %v1165, %v1162
  %v1714 = vpack.c.bf16 %v1173, %v1170
  %v1715 = vpack.c.bf16 %v1181, %v1178
  %v1716 = vpack.c.bf16 %v1189, %v1186
  %v1717 = vpack.c.bf16 %v1197, %v1194
  %v1718 = vpack.c.bf16 %v1205, %v1202
  %v1719 = vpack.c.bf16 %v1213, %v1210
  %v1720 = vpack.c.bf16 %v1221, %v1218
  %v1721 = vpack.c.bf16 %v1229, %v1226
  %v1722 = vpack.c.bf16 %v1237, %v1234
  %v1723 = vpack.c.bf16 %v1245, %v1242
  %v1724 = vpack.c.bf16 %v1253, %v1250
  %v1725 = vpack.c.bf16 %v1261, %v1258
  %v1726 = vpack.c.bf16 %v1269, %v1266
  %v1727 = vpack.c.bf16 %v1277, %v1274
  %v1728 = vpack.c.bf16 %v1285, %v1282
  %v1729 = vpack.c.bf16 %v1293, %v1290
  %v1730 = vpack.c.bf16 %v1301, %v1298
  %v1731 = vpack.c.bf16 %v1309, %v1306
  %v1732 = vpack.c.bf16 %v1317, %v1314
  %v1733 = vpack.c.bf16 %v1325, %v1322
  %v1734 = vpack.c.bf16 %v1333, %v1330
  %v1735 = vpack.c.bf16 %v1341, %v1338
  %v1736 = vpack.c.bf16 %v1349, %v1346
  %v1737 = vpack.c.bf16 %v1357, %v1354
  %v1738 = vpack.c.bf16 %v1365, %v1362
  %v1739 = vpack.c.bf16 %v1373, %v1370
  %v1740 = vpack.c.bf16 %v1381, %v1378
  %v1741 = vpack.c.bf16 %v1389, %v1386
  %v1742 = vpack.c.bf16 %v1397, %v1394
  %v1743 = vpack.c.bf16 %v1405, %v1402
  %v1744 = vpack.c.bf16 %v1413, %v1410
  %v1745 = vpack.c.bf16 %v1421, %v1418
  %v1746 = vpack.c.bf16 %v1429, %v1426
  %v1747 = vpack.c.bf16 %v1437, %v1434
  %v1748 = vpack.c.bf16 %v1445, %v1442
  %v1749 = vpack.c.bf16 %v1453, %v1450
  %v1750 = vpack.c.bf16 %v1461, %v1458
  %v1751 = vpack.c.bf16 %v1469, %v1466
  %v1752 = vpack.c.bf16 %v1477, %v1474
  %v1753 = vpack.c.bf16 %v1485, %v1482
  %v1754 = vpack.c.bf16 %v1493, %v1490
  %v1755 = vpack.c.bf16 %v1501, %v1498
  %v1756 = vpack.c.bf16 %v1509, %v1506
  %v1757 = vpack.c.bf16 %v1517, %v1514
  %v1758 = vpack.c.bf16 %v1525, %v1522
  %v1759 = vpack.c.bf16 %v1533, %v1530
  %v1760 = vpack.c.bf16 %v1541, %v1538
  %v1761 = vpack.c.bf16 %v1549, %v1546
  %v1762 = vpack.c.bf16 %v1557, %v1554
  %v1763 = vpack.c.bf16 %v1565, %v1562
  %v1764 = vpack.c.bf16 %v1573, %v1570
  %v1765 = vpack.c.bf16 %v1581, %v1578
  %v1766 = vpack.c.bf16 %v1589, %v1586
  %v1767 = vpack.c.bf16 %v1597, %v1594
  %v1768 = vpack.c.bf16 %v1605, %v1602
  %v1769 = vpack.c.bf16 %v1613, %v1610
  %v1770 = vpack.c.bf16 %v1621, %v1618
  %v1771 = vpack.c.bf16 %v1629, %v1626
  %v1772 = vpack.c.bf16 %v1637, %v1634
  %v1773 = vpack.c.bf16 %v1645, %v1642
  %v1774 = vpack.c.bf16 %v1653, %v1650
  %v1775 = vpack.c.bf16 %v1661, %v1658
  %v1776 = vpack.c.bf16 %v1669, %v1666
  %v1777 = vpack.c.bf16 %v1677, %v1674
  %v1876 = vunpack.c.l.b16 %v1680
  %v1877 = vunpack.c.h.b16 %v1680
  %v1878 = vunpack.c.l.b16 %v1681
  %v1879 = vunpack.c.h.b16 %v1681
  %v1880 = vunpack.c.l.b16 %v1682
  %v1881 = vunpack.c.h.b16 %v1682
  %v1882 = vunpack.c.l.b16 %v1683
  %v1883 = vunpack.c.h.b16 %v1683
  %v1884 = vunpack.c.l.b16 %v1684
  %v1885 = vunpack.c.h.b16 %v1684
  %v1886 = vunpack.c.l.b16 %v1685
  %v1887 = vunpack.c.h.b16 %v1685
  %v1888 = vunpack.c.l.b16 %v1686
  %v1889 = vunpack.c.h.b16 %v1686
  %v1890 = vunpack.c.l.b16 %v1687
  %v1891 = vunpack.c.h.b16 %v1687
  %v1892 = vunpack.c.l.b16 %v1688
  %v1893 = vunpack.c.h.b16 %v1688
  %v1894 = vunpack.c.l.b16 %v1689
  %v1895 = vunpack.c.h.b16 %v1689
  %v1896 = vunpack.c.l.b16 %v1690
  %v1897 = vunpack.c.h.b16 %v1690
  %v1898 = vunpack.c.l.b16 %v1691
  %v1899 = vunpack.c.h.b16 %v1691
  %v1900 = vunpack.c.l.b16 %v1692
  %v1901 = vunpack.c.h.b16 %v1692
  %v1902 = vunpack.c.l.b16 %v1693
  %v1903 = vunpack.c.h.b16 %v1693
  %v1904 = vunpack.c.l.b16 %v1694
  %v1905 = vunpack.c.h.b16 %v1694
  %v1906 = vunpack.c.l.b16 %v1695
  %v1907 = vunpack.c.h.b16 %v1695
  %v1908 = vunpack.c.l.b16 %v1696
  %v1909 = vunpack.c.h.b16 %v1696
  %v1910 = vunpack.c.l.b16 %v1697
  %v1911 = vunpack.c.h.b16 %v1697
  %v1912 = vunpack.c.l.b16 %v1698
  %v1913 = vunpack.c.h.b16 %v1698
  %v1914 = vunpack.c.l.b16 %v1699
  %v1915 = vunpack.c.h.b16 %v1699
  %v1916 = vunpack.c.l.b16 %v1700
  %v1917 = vunpack.c.h.b16 %v1700
  %v1918 = vunpack.c.l.b16 %v1701
  %v1919 = vunpack.c.h.b16 %v1701
  %v1920 = vunpack.c.l.b16 %v1702
  %v1921 = vunpack.c.h.b16 %v1702
  %v1922 = vunpack.c.l.b16 %v1703
  %v1923 = vunpack.c.h.b16 %v1703
  %v1924 = vunpack.c.l.b16 %v1704
  %v1925 = vunpack.c.h.b16 %v1704
  %v1926 = vunpack.c.l.b16 %v1705
  %v1927 = vunpack.c.h.b16 %v1705
  %v1928 = vunpack.c.l.b16 %v1706
  %v1929 = vunpack.c.h.b16 %v1706
  %v1930 = vunpack.c.l.b16 %v1707
  %v1931 = vunpack.c.h.b16 %v1707
  %v1932 = vunpack.c.l.b16 %v1708
  %v1933 = vunpack.c.h.b16 %v1708
  %v1934 = vunpack.c.l.b16 %v1709
  %v1935 = vunpack.c.h.b16 %v1709
  %v1936 = vunpack.c.l.b16 %v1710
  %v1937 = vunpack.c.h.b16 %v1710
  %v1938 = vunpack.c.l.b16 %v1711
  %v1939 = vunpack.c.h.b16 %v1711
  %v1940 = vunpack.c.l.b16 %v1712
  %v1941 = vunpack.c.h.b16 %v1712
  %v1942 = vunpack.c.l.b16 %v1713
  %v1943 = vunpack.c.h.b16 %v1713
  %v1944 = vunpack.c.l.b16 %v1714
  %v1945 = vunpack.c.h.b16 %v1714
  %v1946 = vunpack.c.l.b16 %v1715
  %v1947 = vunpack.c.h.b16 %v1715
  %v1948 = vunpack.c.l.b16 %v1716
  %v1949 = vunpack.c.h.b16 %v1716
  %v1950 = vunpack.c.l.b16 %v1717
  %v1951 = vunpack.c.h.b16 %v1717
  %v1952 = vunpack.c.l.b16 %v1718
  %v1953 = vunpack.c.h.b16 %v1718
  %v1954 = vunpack.c.l.b16 %v1719
  %v1955 = vunpack.c.h.b16 %v1719
  %v1956 = vunpack.c.l.b16 %v1720
  %v1957 = vunpack.c.h.b16 %v1720
  %v1958 = vunpack.c.l.b16 %v1721
  %v1959 = vunpack.c.h.b16 %v1721
  %v1960 = vunpack.c.l.b16 %v1722
  %v1961 = vunpack.c.h.b16 %v1722
  %v1962 = vunpack.c.l.b16 %v1723
  %v1963 = vunpack.c.h.b16 %v1723
  %v1964 = vunpack.c.l.b16 %v1724
  %v1965 = vunpack.c.h.b16 %v1724
  %v1966 = vunpack.c.l.b16 %v1725
  %v1967 = vunpack.c.h.b16 %v1725
  %v1968 = vunpack.c.l.b16 %v1726
  %v1969 = vunpack.c.h.b16 %v1726
  %v1970 = vunpack.c.l.b16 %v1727
  %v1971 = vunpack.c.h.b16 %v1727
  %v1972 = vunpack.c.l.b16 %v1728
  %v1973 = vunpack.c.h.b16 %v1728
  %v1974 = vunpack.c.l.b16 %v1729
  %v1975 = vunpack.c.h.b16 %v1729
  %v1976 = vunpack.c.l.b16 %v1730
  %v1977 = vunpack.c.h.b16 %v1730
  %v1978 = vunpack.c.l.b16 %v1731
  %v1979 = vunpack.c.h.b16 %v1731
  %v1980 = vunpack.c.l.b16 %v1732
  %v1981 = vunpack.c.h.b16 %v1732
  %v1982 = vunpack.c.l.b16 %v1733
  %v1983 = vunpack.c.h.b16 %v1733
  %v1984 = vunpack.c.l.b16 %v1734
  %v1985 = vunpack.c.h.b16 %v1734
  %v1986 = vunpack.c.l.b16 %v1735
  %v1987 = vunpack.c.h.b16 %v1735
  %v1988 = vunpack.c.l.b16 %v1736
  %v1989 = vunpack.c.h.b16 %v1736
  %v1990 = vunpack.c.l.b16 %v1737
  %v1991 = vunpack.c.h.b16 %v1737
  %v1992 = vunpack.c.l.b16 %v1738
  %v1993 = vunpack.c.h.b16 %v1738
  %v1994 = vunpack.c.l.b16 %v1739
  %v1995 = vunpack.c.h.b16 %v1739
  %v1996 = vunpack.c.l.b16 %v1740
  %v1997 = vunpack.c.h.b16 %v1740
  %v1998 = vunpack.c.l.b16 %v1741
  %v1999 = vunpack.c.h.b16 %v1741
  %v2000 = vunpack.c.l.b16 %v1742
  %v2001 = vunpack.c.h.b16 %v1742
  %v2002 = vunpack.c.l.b16 %v1743
  %v2003 = vunpack.c.h.b16 %v1743
  %v2004 = vunpack.c.l.b16 %v1744
  %v2005 = vunpack.c.h.b16 %v1744
  %v2006 = vunpack.c.l.b16 %v1745
  %v2007 = vunpack.c.h.b16 %v1745
  %v2008 = vunpack.c.l.b16 %v1746
  %v2009 = vunpack.c.h.b16 %v1746
  %v2010 = vunpack.c.l.b16 %v1747
  %v2011 = vunpack.c.h.b16 %v1747
  %v2012 = vunpack.c.l.b16 %v1748
  %v2013 = vunpack.c.h.b16 %v1748
  %v2014 = vunpack.c.l.b16 %v1749
  %v2015 = vunpack.c.h.b16 %v1749
  %v2016 = vunpack.c.l.b16 %v1750
  %v2017 = vunpack.c.h.b16 %v1750
  %v2018 = vunpack.c.l.b16 %v1751
  %v2019 = vunpack.c.h.b16 %v1751
  %v2020 = vunpack.c.l.b16 %v1752
  %v2021 = vunpack.c.h.b16 %v1752
  %v2022 = vunpack.c.l.b16 %v1753
  %v2023 = vunpack.c.h.b16 %v1753
  %v2024 = vunpack.c.l.b16 %v1754
  %v2025 = vunpack.c.h.b16 %v1754
  %v2026 = vunpack.c.l.b16 %v1755
  %v2027 = vunpack.c.h.b16 %v1755
  %v2028 = vunpack.c.l.b16 %v1756
  %v2029 = vunpack.c.h.b16 %v1756
  %v2030 = vunpack.c.l.b16 %v1757
  %v2031 = vunpack.c.h.b16 %v1757
  %v2032 = vunpack.c.l.b16 %v1758
  %v2033 = vunpack.c.h.b16 %v1758
  %v2034 = vunpack.c.l.b16 %v1759
  %v2035 = vunpack.c.h.b16 %v1759
  %v2036 = vunpack.c.l.b16 %v1760
  %v2037 = vunpack.c.h.b16 %v1760
  %v2038 = vunpack.c.l.b16 %v1761
  %v2039 = vunpack.c.h.b16 %v1761
  %v2040 = vunpack.c.l.b16 %v1762
  %v2041 = vunpack.c.h.b16 %v1762
  %v2042 = vunpack.c.l.b16 %v1763
  %v2043 = vunpack.c.h.b16 %v1763
  %v2044 = vunpack.c.l.b16 %v1764
  %v2045 = vunpack.c.h.b16 %v1764
  %v2046 = vunpack.c.l.b16 %v1765
  %v2047 = vunpack.c.h.b16 %v1765
  %v2048 = vunpack.c.l.b16 %v1766
  %v2049 = vunpack.c.h.b16 %v1766
  %v2050 = vunpack.c.l.b16 %v1767
  %v2051 = vunpack.c.h.b16 %v1767
  %v2052 = vunpack.c.l.b16 %v1768
  %v2053 = vunpack.c.h.b16 %v1768
  %v2054 = vunpack.c.l.b16 %v1769
  %v2055 = vunpack.c.h.b16 %v1769
  %v2056 = vunpack.c.l.b16 %v1770
  %v2057 = vunpack.c.h.b16 %v1770
  %v2058 = vunpack.c.l.b16 %v1771
  %v2059 = vunpack.c.h.b16 %v1771
  %v2060 = vunpack.c.l.b16 %v1772
  %v2061 = vunpack.c.h.b16 %v1772
  %v2062 = vunpack.c.l.b16 %v1773
  %v2063 = vunpack.c.h.b16 %v1773
  %v2064 = vunpack.c.l.b16 %v1774
  %v2065 = vunpack.c.h.b16 %v1774
  %v2066 = vunpack.c.l.b16 %v1775
  %v2067 = vunpack.c.h.b16 %v1775
  %v2068 = vunpack.c.l.b16 %v1776
  %v2069 = vunpack.c.h.b16 %v1776
  %v2070 = vunpack.c.l.b16 %v1777
  %v2071 = vunpack.c.h.b16 %v1777
  %v2072 = vpack.c.b16 %v1876, %v1876
  %v2073 = vpack.c.b16 %v1877, %v1877
  %v2074 = vpack.c.b16 %v1878, %v1878
  %v2075 = vpack.c.b16 %v1879, %v1879
  %v2076 = vpack.c.b16 %v1880, %v1880
  %v2077 = vpack.c.b16 %v1881, %v1881
  %v2078 = vpack.c.b16 %v1882, %v1882
  %v2079 = vpack.c.b16 %v1883, %v1883
  %v2080 = vpack.c.b16 %v1884, %v1884
  %v2081 = vpack.c.b16 %v1885, %v1885
  %v2082 = vpack.c.b16 %v1886, %v1886
  %v2083 = vpack.c.b16 %v1887, %v1887
  %v2084 = vpack.c.b16 %v1888, %v1888
  %v2085 = vpack.c.b16 %v1889, %v1889
  %v2086 = vpack.c.b16 %v1890, %v1890
  %v2087 = vpack.c.b16 %v1891, %v1891
  %v2088 = vpack.c.b16 %v1892, %v1892
  %v2089 = vpack.c.b16 %v1893, %v1893
  %v2090 = vpack.c.b16 %v1894, %v1894
  %v2091 = vpack.c.b16 %v1895, %v1895
  %v2092 = vpack.c.b16 %v1896, %v1896
  %v2093 = vpack.c.b16 %v1897, %v1897
  %v2094 = vpack.c.b16 %v1898, %v1898
  %v2095 = vpack.c.b16 %v1899, %v1899
  %v2096 = vpack.c.b16 %v1900, %v1900
  %v2097 = vpack.c.b16 %v1901, %v1901
  %v2098 = vpack.c.b16 %v1902, %v1902
  %v2099 = vpack.c.b16 %v1903, %v1903
  %v2100 = vpack.c.b16 %v1904, %v1904
  %v2101 = vpack.c.b16 %v1905, %v1905
  %v2102 = vpack.c.b16 %v1906, %v1906
  %v2103 = vpack.c.b16 %v1907, %v1907
  %v2104 = vpack.c.b16 %v1908, %v1908
  %v2105 = vpack.c.b16 %v1909, %v1909
  %v2106 = vpack.c.b16 %v1910, %v1910
  %v2107 = vpack.c.b16 %v1911, %v1911
  %v2108 = vpack.c.b16 %v1912, %v1912
  %v2109 = vpack.c.b16 %v1913, %v1913
  %v2110 = vpack.c.b16 %v1914, %v1914
  %v2111 = vpack.c.b16 %v1915, %v1915
  %v2112 = vpack.c.b16 %v1916, %v1916
  %v2113 = vpack.c.b16 %v1917, %v1917
  %v2114 = vpack.c.b16 %v1918, %v1918
  %v2115 = vpack.c.b16 %v1919, %v1919
  %v2116 = vpack.c.b16 %v1920, %v1920
  %v2117 = vpack.c.b16 %v1921, %v1921
  %v2118 = vpack.c.b16 %v1922, %v1922
  %v2119 = vpack.c.b16 %v1923, %v1923
  %v2120 = vpack.c.b16 %v1924, %v1924
  %v2121 = vpack.c.b16 %v1925, %v1925
  %v2122 = vpack.c.b16 %v1926, %v1926
  %v2123 = vpack.c.b16 %v1927, %v1927
  %v2124 = vpack.c.b16 %v1928, %v1928
  %v2125 = vpack.c.b16 %v1929, %v1929
  %v2126 = vpack.c.b16 %v1930, %v1930
  %v2127 = vpack.c.b16 %v1931, %v1931
  %v2128 = vpack.c.b16 %v1932, %v1932
  %v2129 = vpack.c.b16 %v1933, %v1933
  %v2130 = vpack.c.b16 %v1934, %v1934
  %v2131 = vpack.c.b16 %v1935, %v1935
  %v2132 = vpack.c.b16 %v1936, %v1936
  %v2133 = vpack.c.b16 %v1937, %v1937
  %v2134 = vpack.c.b16 %v1938, %v1938
  %v2135 = vpack.c.b16 %v1939, %v1939
  %v2136 = vpack.c.b16 %v1940, %v1940
  %v2137 = vpack.c.b16 %v1941, %v1941
  %v2138 = vpack.c.b16 %v1942, %v1942
  %v2139 = vpack.c.b16 %v1943, %v1943
  %v2140 = vpack.c.b16 %v1944, %v1944
  %v2141 = vpack.c.b16 %v1945, %v1945
  %v2142 = vpack.c.b16 %v1946, %v1946
  %v2143 = vpack.c.b16 %v1947, %v1947
  %v2144 = vpack.c.b16 %v1948, %v1948
  %v2145 = vpack.c.b16 %v1949, %v1949
  %v2146 = vpack.c.b16 %v1950, %v1950
  %v2147 = vpack.c.b16 %v1951, %v1951
  %v2148 = vpack.c.b16 %v1952, %v1952
  %v2149 = vpack.c.b16 %v1953, %v1953
  %v2150 = vpack.c.b16 %v1954, %v1954
  %v2151 = vpack.c.b16 %v1955, %v1955
  %v2152 = vpack.c.b16 %v1956, %v1956
  %v2153 = vpack.c.b16 %v1957, %v1957
  %v2154 = vpack.c.b16 %v1958, %v1958
  %v2155 = vpack.c.b16 %v1959, %v1959
  %v2156 = vpack.c.b16 %v1960, %v1960
  %v2157 = vpack.c.b16 %v1961, %v1961
  %v2158 = vpack.c.b16 %v1962, %v1962
  %v2159 = vpack.c.b16 %v1963, %v1963
  %v2160 = vpack.c.b16 %v1964, %v1964
  %v2161 = vpack.c.b16 %v1965, %v1965
  %v2162 = vpack.c.b16 %v1966, %v1966
  %v2163 = vpack.c.b16 %v1967, %v1967
  %v2164 = vpack.c.b16 %v1968, %v1968
  %v2165 = vpack.c.b16 %v1969, %v1969
  %v2166 = vpack.c.b16 %v1970, %v1970
  %v2167 = vpack.c.b16 %v1971, %v1971
  %v2168 = vpack.c.b16 %v1972, %v1972
  %v2169 = vpack.c.b16 %v1973, %v1973
  %v2170 = vpack.c.b16 %v1974, %v1974
  %v2171 = vpack.c.b16 %v1975, %v1975
  %v2172 = vpack.c.b16 %v1976, %v1976
  %v2173 = vpack.c.b16 %v1977, %v1977
  %v2174 = vpack.c.b16 %v1978, %v1978
  %v2175 = vpack.c.b16 %v1979, %v1979
  %v2176 = vpack.c.b16 %v1980, %v1980
  %v2177 = vpack.c.b16 %v1981, %v1981
  %v2178 = vpack.c.b16 %v1982, %v1982
  %v2179 = vpack.c.b16 %v1983, %v1983
  %v2180 = vpack.c.b16 %v1984, %v1984
  %v2181 = vpack.c.b16 %v1985, %v1985
  %v2182 = vpack.c.b16 %v1986, %v1986
  %v2183 = vpack.c.b16 %v1987, %v1987
  %v2184 = vpack.c.b16 %v1988, %v1988
  %v2185 = vpack.c.b16 %v1989, %v1989
  %v2186 = vpack.c.b16 %v1990, %v1990
  %v2187 = vpack.c.b16 %v1991, %v1991
  %v2188 = vpack.c.b16 %v1992, %v1992
  %v2189 = vpack.c.b16 %v1993, %v1993
  %v2190 = vpack.c.b16 %v1994, %v1994
  %v2191 = vpack.c.b16 %v1995, %v1995
  %v2192 = vpack.c.b16 %v1996, %v1996
  %v2193 = vpack.c.b16 %v1997, %v1997
  %v2194 = vpack.c.b16 %v1998, %v1998
  %v2195 = vpack.c.b16 %v1999, %v1999
  %v2196 = vpack.c.b16 %v2000, %v2000
  %v2197 = vpack.c.b16 %v2001, %v2001
  %v2198 = vpack.c.b16 %v2002, %v2002
  %v2199 = vpack.c.b16 %v2003, %v2003
  %v2200 = vpack.c.b16 %v2004, %v2004
  %v2201 = vpack.c.b16 %v2005, %v2005
  %v2202 = vpack.c.b16 %v2006, %v2006
  %v2203 = vpack.c.b16 %v2007, %v2007
  %v2204 = vpack.c.b16 %v2008, %v2008
  %v2205 = vpack.c.b16 %v2009, %v2009
  %v2206 = vpack.c.b16 %v2010, %v2010
  %v2207 = vpack.c.b16 %v2011, %v2011
  %v2208 = vpack.c.b16 %v2012, %v2012
  %v2209 = vpack.c.b16 %v2013, %v2013
  %v2210 = vpack.c.b16 %v2014, %v2014
  %v2211 = vpack.c.b16 %v2015, %v2015
  %v2212 = vpack.c.b16 %v2016, %v2016
  %v2213 = vpack.c.b16 %v2017, %v2017
  %v2214 = vpack.c.b16 %v2018, %v2018
  %v2215 = vpack.c.b16 %v2019, %v2019
  %v2216 = vpack.c.b16 %v2020, %v2020
  %v2217 = vpack.c.b16 %v2021, %v2021
  %v2218 = vpack.c.b16 %v2022, %v2022
  %v2219 = vpack.c.b16 %v2023, %v2023
  %v2220 = vpack.c.b16 %v2024, %v2024
  %v2221 = vpack.c.b16 %v2025, %v2025
  %v2222 = vpack.c.b16 %v2026, %v2026
  %v2223 = vpack.c.b16 %v2027, %v2027
  %v2224 = vpack.c.b16 %v2028, %v2028
  %v2225 = vpack.c.b16 %v2029, %v2029
  %v2226 = vpack.c.b16 %v2030, %v2030
  %v2227 = vpack.c.b16 %v2031, %v2031
  %v2228 = vpack.c.b16 %v2032, %v2032
  %v2229 = vpack.c.b16 %v2033, %v2033
  %v2230 = vpack.c.b16 %v2034, %v2034
  %v2231 = vpack.c.b16 %v2035, %v2035
  %v2232 = vpack.c.b16 %v2036, %v2036
  %v2233 = vpack.c.b16 %v2037, %v2037
  %v2234 = vpack.c.b16 %v2038, %v2038
  %v2235 = vpack.c.b16 %v2039, %v2039
  %v2236 = vpack.c.b16 %v2040, %v2040
  %v2237 = vpack.c.b16 %v2041, %v2041
  %v2238 = vpack.c.b16 %v2042, %v2042
  %v2239 = vpack.c.b16 %v2043, %v2043
  %v2240 = vpack.c.b16 %v2044, %v2044
  %v2241 = vpack.c.b16 %v2045, %v2045
  %v2242 = vpack.c.b16 %v2046, %v2046
  %v2243 = vpack.c.b16 %v2047, %v2047
  %v2244 = vpack.c.b16 %v2048, %v2048
  %v2245 = vpack.c.b16 %v2049, %v2049
  %v2246 = vpack.c.b16 %v2050, %v2050
  %v2247 = vpack.c.b16 %v2051, %v2051
  %v2248 = vpack.c.b16 %v2052, %v2052
  %v2249 = vpack.c.b16 %v2053, %v2053
  %v2250 = vpack.c.b16 %v2054, %v2054
  %v2251 = vpack.c.b16 %v2055, %v2055
  %v2252 = vpack.c.b16 %v2056, %v2056
  %v2253 = vpack.c.b16 %v2057, %v2057
  %v2254 = vpack.c.b16 %v2058, %v2058
  %v2255 = vpack.c.b16 %v2059, %v2059
  %v2256 = vpack.c.b16 %v2060, %v2060
  %v2257 = vpack.c.b16 %v2061, %v2061
  %v2258 = vpack.c.b16 %v2062, %v2062
  %v2259 = vpack.c.b16 %v2063, %v2063
  %v2260 = vpack.c.b16 %v2064, %v2064
  %v2261 = vpack.c.b16 %v2065, %v2065
  %v2262 = vpack.c.b16 %v2066, %v2066
  %v2263 = vpack.c.b16 %v2067, %v2067
  %v2264 = vpack.c.b16 %v2068, %v2068
  %v2265 = vpack.c.b16 %v2069, %v2069
  %v2266 = vpack.c.b16 %v2070, %v2070
  %v2267 = vpack.c.b16 %v2071, %v2071
  %2464 = vst [vmem:[%s2] sm:$0xf] %v2072
  %2465 = vst [vmem:[%s2 + $0x4] sm:$0xf] %v2073
  %2466 = vst [vmem:[%s2 + $0x8] sm:$0xf] %v2074
  %2467 = vst [vmem:[%s2 + $0xc] sm:$0xf] %v2075
  %2468 = vst [vmem:[%s2 + $0x10] sm:$0xf] %v2076
  %2469 = vst [vmem:[%s2 + $0x14] sm:$0xf] %v2077
  %2470 = vst [vmem:[%s2 + $0x18] sm:$0xf] %v2078
  %2471 = vst [vmem:[%s2 + $0x1c] sm:$0xf] %v2079
  %2472 = vst [vmem:[%s2 + $0x20] sm:$0xf] %v2080
  %2473 = vst [vmem:[%s2 + $0x24] sm:$0xf] %v2081
  %2474 = vst [vmem:[%s2 + $0x28] sm:$0xf] %v2082
  %2475 = vst [vmem:[%s2 + $0x2c] sm:$0xf] %v2083
  %2476 = vst [vmem:[%s2 + $0x30] sm:$0xf] %v2084
  %2477 = vst [vmem:[%s2 + $0x34] sm:$0xf] %v2085
  %2478 = vst [vmem:[%s2 + $0x38] sm:$0xf] %v2086
  %2479 = vst [vmem:[%s2 + $0x3c] sm:$0xf] %v2087
  %2480 = vst [vmem:[%s2 + $0x40] sm:$0xf] %v2088
  %2481 = vst [vmem:[%s2 + $0x44] sm:$0xf] %v2089
  %2482 = vst [vmem:[%s2 + $0x48] sm:$0xf] %v2090
  %2483 = vst [vmem:[%s2 + $0x4c] sm:$0xf] %v2091
  %2484 = vst [vmem:[%s2 + $0x50] sm:$0xf] %v2092
  %2485 = vst [vmem:[%s2 + $0x54] sm:$0xf] %v2093
  %2486 = vst [vmem:[%s2 + $0x58] sm:$0xf] %v2094
  %2487 = vst [vmem:[%s2 + $0x5c] sm:$0xf] %v2095
  %2488 = vst [vmem:[%s2 + $0x60] sm:$0xf] %v2096
  %2489 = vst [vmem:[%s2 + $0x64] sm:$0xf] %v2097
  %2490 = vst [vmem:[%s2 + $0x68] sm:$0xf] %v2098
  %2491 = vst [vmem:[%s2 + $0x6c] sm:$0xf] %v2099
  %2492 = vst [vmem:[%s2 + $0x70] sm:$0xf] %v2100
  %2493 = vst [vmem:[%s2 + $0x74] sm:$0xf] %v2101
  %2494 = vst [vmem:[%s2 + $0x78] sm:$0xf] %v2102
  %2495 = vst [vmem:[%s2 + $0x7c] sm:$0xf] %v2103
  %2496 = vst [vmem:[%s2 + $0x80] sm:$0xf] %v2104
  %2497 = vst [vmem:[%s2 + $0x84] sm:$0xf] %v2105
  %2498 = vst [vmem:[%s2 + $0x88] sm:$0xf] %v2106
  %2499 = vst [vmem:[%s2 + $0x8c] sm:$0xf] %v2107
  %2500 = vst [vmem:[%s2 + $0x90] sm:$0xf] %v2108
  %2501 = vst [vmem:[%s2 + $0x94] sm:$0xf] %v2109
  %2502 = vst [vmem:[%s2 + $0x98] sm:$0xf] %v2110
  %2503 = vst [vmem:[%s2 + $0x9c] sm:$0xf] %v2111
  %2504 = vst [vmem:[%s2 + $0xa0] sm:$0xf] %v2112
  %2505 = vst [vmem:[%s2 + $0xa4] sm:$0xf] %v2113
  %2506 = vst [vmem:[%s2 + $0xa8] sm:$0xf] %v2114
  %2507 = vst [vmem:[%s2 + $0xac] sm:$0xf] %v2115
  %2508 = vst [vmem:[%s2 + $0xb0] sm:$0xf] %v2116
  %2509 = vst [vmem:[%s2 + $0xb4] sm:$0xf] %v2117
  %2510 = vst [vmem:[%s2 + $0xb8] sm:$0xf] %v2118
  %2511 = vst [vmem:[%s2 + $0xbc] sm:$0xf] %v2119
  %2512 = vst [vmem:[%s2 + $0xc0] sm:$0xf] %v2120
  %2513 = vst [vmem:[%s2 + $0xc4] sm:$0xf] %v2121
  %2514 = vst [vmem:[%s2 + $0xc8] sm:$0xf] %v2122
  %2515 = vst [vmem:[%s2 + $0xcc] sm:$0xf] %v2123
  %2516 = vst [vmem:[%s2 + $0xd0] sm:$0xf] %v2124
  %2517 = vst [vmem:[%s2 + $0xd4] sm:$0xf] %v2125
  %2518 = vst [vmem:[%s2 + $0xd8] sm:$0xf] %v2126
  %2519 = vst [vmem:[%s2 + $0xdc] sm:$0xf] %v2127
  %2520 = vst [vmem:[%s2 + $0xe0] sm:$0xf] %v2128
  %2521 = vst [vmem:[%s2 + $0xe4] sm:$0xf] %v2129
  %2522 = vst [vmem:[%s2 + $0xe8] sm:$0xf] %v2130
  %2523 = vst [vmem:[%s2 + $0xec] sm:$0xf] %v2131
  %2524 = vst [vmem:[%s2 + $0xf0] sm:$0xf] %v2132
  %2525 = vst [vmem:[%s2 + $0xf4] sm:$0xf] %v2133
  %2526 = vst [vmem:[%s2 + $0xf8] sm:$0xf] %v2134
  %2527 = vst [vmem:[%s2 + $0xfc] sm:$0xf] %v2135
  %2528 = vst [vmem:[%s2 + $0x100] sm:$0xf] %v2136
  %2529 = vst [vmem:[%s2 + $0x104] sm:$0xf] %v2137
  %2530 = vst [vmem:[%s2 + $0x108] sm:$0xf] %v2138
  %2531 = vst [vmem:[%s2 + $0x10c] sm:$0xf] %v2139
  %2532 = vst [vmem:[%s2 + $0x110] sm:$0xf] %v2140
  %2533 = vst [vmem:[%s2 + $0x114] sm:$0xf] %v2141
  %2534 = vst [vmem:[%s2 + $0x118] sm:$0xf] %v2142
  %2535 = vst [vmem:[%s2 + $0x11c] sm:$0xf] %v2143
  %2536 = vst [vmem:[%s2 + $0x120] sm:$0xf] %v2144
  %2537 = vst [vmem:[%s2 + $0x124] sm:$0xf] %v2145
  %2538 = vst [vmem:[%s2 + $0x128] sm:$0xf] %v2146
  %2539 = vst [vmem:[%s2 + $0x12c] sm:$0xf] %v2147
  %2540 = vst [vmem:[%s2 + $0x130] sm:$0xf] %v2148
  %2541 = vst [vmem:[%s2 + $0x134] sm:$0xf] %v2149
  %2542 = vst [vmem:[%s2 + $0x138] sm:$0xf] %v2150
  %2543 = vst [vmem:[%s2 + $0x13c] sm:$0xf] %v2151
  %2544 = vst [vmem:[%s2 + $0x140] sm:$0xf] %v2152
  %2545 = vst [vmem:[%s2 + $0x144] sm:$0xf] %v2153
  %2546 = vst [vmem:[%s2 + $0x148] sm:$0xf] %v2154
  %2547 = vst [vmem:[%s2 + $0x14c] sm:$0xf] %v2155
  %2548 = vst [vmem:[%s2 + $0x150] sm:$0xf] %v2156
  %2549 = vst [vmem:[%s2 + $0x154] sm:$0xf] %v2157
  %2550 = vst [vmem:[%s2 + $0x158] sm:$0xf] %v2158
  %2551 = vst [vmem:[%s2 + $0x15c] sm:$0xf] %v2159
  %2552 = vst [vmem:[%s2 + $0x160] sm:$0xf] %v2160
  %2553 = vst [vmem:[%s2 + $0x164] sm:$0xf] %v2161
  %2554 = vst [vmem:[%s2 + $0x168] sm:$0xf] %v2162
  %2555 = vst [vmem:[%s2 + $0x16c] sm:$0xf] %v2163
  %2556 = vst [vmem:[%s2 + $0x170] sm:$0xf] %v2164
  %2557 = vst [vmem:[%s2 + $0x174] sm:$0xf] %v2165
  %2558 = vst [vmem:[%s2 + $0x178] sm:$0xf] %v2166
  %2559 = vst [vmem:[%s2 + $0x17c] sm:$0xf] %v2167
  %2560 = vst [vmem:[%s2 + $0x180] sm:$0xf] %v2168
  %2561 = vst [vmem:[%s2 + $0x184] sm:$0xf] %v2169
  %2562 = vst [vmem:[%s2 + $0x188] sm:$0xf] %v2170
  %2563 = vst [vmem:[%s2 + $0x18c] sm:$0xf] %v2171
  %2564 = vst [vmem:[%s2 + $0x190] sm:$0xf] %v2172
  %2565 = vst [vmem:[%s2 + $0x194] sm:$0xf] %v2173
  %2566 = vst [vmem:[%s2 + $0x198] sm:$0xf] %v2174
  %2567 = vst [vmem:[%s2 + $0x19c] sm:$0xf] %v2175
  %2568 = vst [vmem:[%s2 + $0x1a0] sm:$0xf] %v2176
  %2569 = vst [vmem:[%s2 + $0x1a4] sm:$0xf] %v2177
  %2570 = vst [vmem:[%s2 + $0x1a8] sm:$0xf] %v2178
  %2571 = vst [vmem:[%s2 + $0x1ac] sm:$0xf] %v2179
  %2572 = vst [vmem:[%s2 + $0x1b0] sm:$0xf] %v2180
  %2573 = vst [vmem:[%s2 + $0x1b4] sm:$0xf] %v2181
  %2574 = vst [vmem:[%s2 + $0x1b8] sm:$0xf] %v2182
  %2575 = vst [vmem:[%s2 + $0x1bc] sm:$0xf] %v2183
  %2576 = vst [vmem:[%s2 + $0x1c0] sm:$0xf] %v2184
  %2577 = vst [vmem:[%s2 + $0x1c4] sm:$0xf] %v2185
  %2578 = vst [vmem:[%s2 + $0x1c8] sm:$0xf] %v2186
  %2579 = vst [vmem:[%s2 + $0x1cc] sm:$0xf] %v2187
  %2580 = vst [vmem:[%s2 + $0x1d0] sm:$0xf] %v2188
  %2581 = vst [vmem:[%s2 + $0x1d4] sm:$0xf] %v2189
  %2582 = vst [vmem:[%s2 + $0x1d8] sm:$0xf] %v2190
  %2583 = vst [vmem:[%s2 + $0x1dc] sm:$0xf] %v2191
  %2584 = vst [vmem:[%s2 + $0x1e0] sm:$0xf] %v2192
  %2585 = vst [vmem:[%s2 + $0x1e4] sm:$0xf] %v2193
  %2586 = vst [vmem:[%s2 + $0x1e8] sm:$0xf] %v2194
  %2587 = vst [vmem:[%s2 + $0x1ec] sm:$0xf] %v2195
  %2588 = vst [vmem:[%s2 + $0x1f0] sm:$0xf] %v2196
  %2589 = vst [vmem:[%s2 + $0x1f4] sm:$0xf] %v2197
  %2590 = vst [vmem:[%s2 + $0x1f8] sm:$0xf] %v2198
  %2591 = vst [vmem:[%s2 + $0x1fc] sm:$0xf] %v2199
  %2592 = vst [vmem:[%s2 + $0x200] sm:$0xf] %v2200
  %2593 = vst [vmem:[%s2 + $0x204] sm:$0xf] %v2201
  %2594 = vst [vmem:[%s2 + $0x208] sm:$0xf] %v2202
  %2595 = vst [vmem:[%s2 + $0x20c] sm:$0xf] %v2203
  %2596 = vst [vmem:[%s2 + $0x210] sm:$0xf] %v2204
  %2597 = vst [vmem:[%s2 + $0x214] sm:$0xf] %v2205
  %2598 = vst [vmem:[%s2 + $0x218] sm:$0xf] %v2206
  %2599 = vst [vmem:[%s2 + $0x21c] sm:$0xf] %v2207
  %2600 = vst [vmem:[%s2 + $0x220] sm:$0xf] %v2208
  %2601 = vst [vmem:[%s2 + $0x224] sm:$0xf] %v2209
  %2602 = vst [vmem:[%s2 + $0x228] sm:$0xf] %v2210
  %2603 = vst [vmem:[%s2 + $0x22c] sm:$0xf] %v2211
  %2604 = vst [vmem:[%s2 + $0x230] sm:$0xf] %v2212
  %2605 = vst [vmem:[%s2 + $0x234] sm:$0xf] %v2213
  %2606 = vst [vmem:[%s2 + $0x238] sm:$0xf] %v2214
  %2607 = vst [vmem:[%s2 + $0x23c] sm:$0xf] %v2215
  %2608 = vst [vmem:[%s2 + $0x240] sm:$0xf] %v2216
  %2609 = vst [vmem:[%s2 + $0x244] sm:$0xf] %v2217
  %2610 = vst [vmem:[%s2 + $0x248] sm:$0xf] %v2218
  %2611 = vst [vmem:[%s2 + $0x24c] sm:$0xf] %v2219
  %2612 = vst [vmem:[%s2 + $0x250] sm:$0xf] %v2220
  %2613 = vst [vmem:[%s2 + $0x254] sm:$0xf] %v2221
  %2614 = vst [vmem:[%s2 + $0x258] sm:$0xf] %v2222
  %2615 = vst [vmem:[%s2 + $0x25c] sm:$0xf] %v2223
  %2616 = vst [vmem:[%s2 + $0x260] sm:$0xf] %v2224
  %2617 = vst [vmem:[%s2 + $0x264] sm:$0xf] %v2225
  %2618 = vst [vmem:[%s2 + $0x268] sm:$0xf] %v2226
  %2619 = vst [vmem:[%s2 + $0x26c] sm:$0xf] %v2227
  %2620 = vst [vmem:[%s2 + $0x270] sm:$0xf] %v2228
  %2621 = vst [vmem:[%s2 + $0x274] sm:$0xf] %v2229
  %2622 = vst [vmem:[%s2 + $0x278] sm:$0xf] %v2230
  %2623 = vst [vmem:[%s2 + $0x27c] sm:$0xf] %v2231
  %2624 = vst [vmem:[%s2 + $0x280] sm:$0xf] %v2232
  %2625 = vst [vmem:[%s2 + $0x284] sm:$0xf] %v2233
  %2626 = vst [vmem:[%s2 + $0x288] sm:$0xf] %v2234
  %2627 = vst [vmem:[%s2 + $0x28c] sm:$0xf] %v2235
  %2628 = vst [vmem:[%s2 + $0x290] sm:$0xf] %v2236
  %2629 = vst [vmem:[%s2 + $0x294] sm:$0xf] %v2237
  %2630 = vst [vmem:[%s2 + $0x298] sm:$0xf] %v2238
  %2631 = vst [vmem:[%s2 + $0x29c] sm:$0xf] %v2239
  %2632 = vst [vmem:[%s2 + $0x2a0] sm:$0xf] %v2240
  %2633 = vst [vmem:[%s2 + $0x2a4] sm:$0xf] %v2241
  %2634 = vst [vmem:[%s2 + $0x2a8] sm:$0xf] %v2242
  %2635 = vst [vmem:[%s2 + $0x2ac] sm:$0xf] %v2243
  %2636 = vst [vmem:[%s2 + $0x2b0] sm:$0xf] %v2244
  %2637 = vst [vmem:[%s2 + $0x2b4] sm:$0xf] %v2245
  %2638 = vst [vmem:[%s2 + $0x2b8] sm:$0xf] %v2246
  %2639 = vst [vmem:[%s2 + $0x2bc] sm:$0xf] %v2247
  %2640 = vst [vmem:[%s2 + $0x2c0] sm:$0xf] %v2248
  %2641 = vst [vmem:[%s2 + $0x2c4] sm:$0xf] %v2249
  %2642 = vst [vmem:[%s2 + $0x2c8] sm:$0xf] %v2250
  %2643 = vst [vmem:[%s2 + $0x2cc] sm:$0xf] %v2251
  %2644 = vst [vmem:[%s2 + $0x2d0] sm:$0xf] %v2252
  %2645 = vst [vmem:[%s2 + $0x2d4] sm:$0xf] %v2253
  %2646 = vst [vmem:[%s2 + $0x2d8] sm:$0xf] %v2254
  %2647 = vst [vmem:[%s2 + $0x2dc] sm:$0xf] %v2255
  %2648 = vst [vmem:[%s2 + $0x2e0] sm:$0xf] %v2256
  %2649 = vst [vmem:[%s2 + $0x2e4] sm:$0xf] %v2257
  %2650 = vst [vmem:[%s2 + $0x2e8] sm:$0xf] %v2258
  %2651 = vst [vmem:[%s2 + $0x2ec] sm:$0xf] %v2259
  %2652 = vst [vmem:[%s2 + $0x2f0] sm:$0xf] %v2260
  %2653 = vst [vmem:[%s2 + $0x2f4] sm:$0xf] %v2261
  %2654 = vst [vmem:[%s2 + $0x2f8] sm:$0xf] %v2262
  %2655 = vst [vmem:[%s2 + $0x2fc] sm:$0xf] %v2263
  %2656 = vst [vmem:[%s2 + $0x300] sm:$0xf] %v2264
  %2657 = vst [vmem:[%s2 + $0x304] sm:$0xf] %v2265
  %2658 = vst [vmem:[%s2 + $0x308] sm:$0xf] %v2266
  %2659 = vst [vmem:[%s2 + $0x30c] sm:$0xf] %v2267
  %v2660 = vadd.f32 %v898, %v901
  %v2661 = vadd.f32 %v2660, %v906
  %v2662 = vadd.f32 %v2661, %v909
  %v2663 = vadd.f32 %v2662, %v914
  %v2664 = vadd.f32 %v2663, %v917
  %v2665 = vadd.f32 %v2664, %v922
  %v2666 = vadd.f32 %v2665, %v925
  %v2667 = vadd.f32 %v2666, %v930
  %v2668 = vadd.f32 %v2667, %v933
  %v2669 = vadd.f32 %v2668, %v938
  %v2670 = vadd.f32 %v2669, %v941
  %v2671 = vadd.f32 %v2670, %v946
  %v2672 = vadd.f32 %v2671, %v949
  %v2673 = vadd.f32 %v2672, %v954
  %v2674 = vadd.f32 %v2673, %v957
  %v2675 = vadd.f32 %v2674, %v962
  %v2676 = vadd.f32 %v2675, %v965
  %v2677 = vadd.f32 %v2676, %v970
  %v2678 = vadd.f32 %v2677, %v973
  %v2679 = vadd.f32 %v2678, %v978
  %v2680 = vadd.f32 %v2679, %v981
  %v2681 = vadd.f32 %v2680, %v986
  %v2682 = vadd.f32 %v2681, %v989
  %v2683 = vadd.f32 %v2682, %v994
  %v2684 = vadd.f32 %v2683, %v997
  %v2685 = vadd.f32 %v2684, %v1002
  %v2686 = vadd.f32 %v2685, %v1005
  %v2687 = vadd.f32 %v2686, %v1010
  %v2688 = vadd.f32 %v2687, %v1013
  %v2689 = vadd.f32 %v2688, %v1018
  %v2690 = vadd.f32 %v2689, %v1021
  %v2691 = vadd.f32 %v2690, %v1026
  %v2692 = vadd.f32 %v2691, %v1029
  %v2693 = vadd.f32 %v2692, %v1034
  %v2694 = vadd.f32 %v2693, %v1037
  %v2695 = vadd.f32 %v2694, %v1042
  %v2696 = vadd.f32 %v2695, %v1045
  %v2697 = vadd.f32 %v2696, %v1050
  %v2698 = vadd.f32 %v2697, %v1053
  %v2699 = vadd.f32 %v2698, %v1058
  %v2700 = vadd.f32 %v2699, %v1061
  %v2701 = vadd.f32 %v2700, %v1066
  %v2702 = vadd.f32 %v2701, %v1069
  %v2703 = vadd.f32 %v2702, %v1074
  %v2704 = vadd.f32 %v2703, %v1077
  %v2705 = vadd.f32 %v2704, %v1082
  %v2706 = vadd.f32 %v2705, %v1085
  %v2707 = vadd.f32 %v2706, %v1090
  %v2708 = vadd.f32 %v2707, %v1093
  %v2709 = vadd.f32 %v2708, %v1098
  %v2710 = vadd.f32 %v2709, %v1101
  %v2711 = vadd.f32 %v2710, %v1106
  %v2712 = vadd.f32 %v2711, %v1109
  %v2713 = vadd.f32 %v2712, %v1114
  %v2714 = vadd.f32 %v2713, %v1117
  %v2715 = vadd.f32 %v2714, %v1122
  %v2716 = vadd.f32 %v2715, %v1125
  %v2717 = vadd.f32 %v2716, %v1130
  %v2718 = vadd.f32 %v2717, %v1133
  %v2719 = vadd.f32 %v2718, %v1138
  %v2720 = vadd.f32 %v2719, %v1141
  %v2721 = vadd.f32 %v2720, %v1146
  %v2722 = vadd.f32 %v2721, %v1149
  %v2723 = vadd.f32 %v2722, %v1154
  %v2724 = vadd.f32 %v2723, %v1157
  %v2725 = vadd.f32 %v2724, %v1162
  %v2726 = vadd.f32 %v2725, %v1165
  %v2727 = vadd.f32 %v2726, %v1170
  %v2728 = vadd.f32 %v2727, %v1173
  %v2729 = vadd.f32 %v2728, %v1178
  %v2730 = vadd.f32 %v2729, %v1181
  %v2731 = vadd.f32 %v2730, %v1186
  %v2732 = vadd.f32 %v2731, %v1189
  %v2733 = vadd.f32 %v2732, %v1194
  %v2734 = vadd.f32 %v2733, %v1197
  %v2735 = vadd.f32 %v2734, %v1202
  %v2736 = vadd.f32 %v2735, %v1205
  %v2737 = vadd.f32 %v2736, %v1210
  %v2738 = vadd.f32 %v2737, %v1213
  %v2739 = vadd.f32 %v2738, %v1218
  %v2740 = vadd.f32 %v2739, %v1221
  %v2741 = vadd.f32 %v2740, %v1226
  %v2742 = vadd.f32 %v2741, %v1229
  %v2743 = vadd.f32 %v2742, %v1234
  %v2744 = vadd.f32 %v2743, %v1237
  %v2745 = vadd.f32 %v2744, %v1242
  %v2746 = vadd.f32 %v2745, %v1245
  %v2747 = vadd.f32 %v2746, %v1250
  %v2748 = vadd.f32 %v2747, %v1253
  %v2749 = vadd.f32 %v2748, %v1258
  %v2750 = vadd.f32 %v2749, %v1261
  %v2751 = vadd.f32 %v2750, %v1266
  %v2752 = vadd.f32 %v2751, %v1269
  %v2753 = vadd.f32 %v2752, %v1274
  %v2754 = vadd.f32 %v2753, %v1277
  %v2755 = vadd.f32 %v2754, %v1282
  %v2756 = vadd.f32 %v2755, %v1285
  %v2757 = vadd.f32 %v2756, %v1290
  %v2758 = vadd.f32 %v2757, %v1293
  %v2759 = vadd.f32 %v2758, %v1298
  %v2760 = vadd.f32 %v2759, %v1301
  %v2761 = vadd.f32 %v2760, %v1306
  %v2762 = vadd.f32 %v2761, %v1309
  %v2763 = vadd.f32 %v2762, %v1314
  %v2764 = vadd.f32 %v2763, %v1317
  %v2765 = vadd.f32 %v2764, %v1322
  %v2766 = vadd.f32 %v2765, %v1325
  %v2767 = vadd.f32 %v2766, %v1330
  %v2768 = vadd.f32 %v2767, %v1333
  %v2769 = vadd.f32 %v2768, %v1338
  %v2770 = vadd.f32 %v2769, %v1341
  %v2771 = vadd.f32 %v2770, %v1346
  %v2772 = vadd.f32 %v2771, %v1349
  %v2773 = vadd.f32 %v2772, %v1354
  %v2774 = vadd.f32 %v2773, %v1357
  %v2775 = vadd.f32 %v2774, %v1362
  %v2776 = vadd.f32 %v2775, %v1365
  %v2777 = vadd.f32 %v2776, %v1370
  %v2778 = vadd.f32 %v2777, %v1373
  %v2779 = vadd.f32 %v2778, %v1378
  %v2780 = vadd.f32 %v2779, %v1381
  %v2781 = vadd.f32 %v2780, %v1386
  %v2782 = vadd.f32 %v2781, %v1389
  %v2783 = vadd.f32 %v2782, %v1394
  %v2784 = vadd.f32 %v2783, %v1397
  %v2785 = vadd.f32 %v2784, %v1402
  %v2786 = vadd.f32 %v2785, %v1405
  %v2787 = vadd.f32 %v2786, %v1410
  %v2788 = vadd.f32 %v2787, %v1413
  %v2789 = vadd.f32 %v2788, %v1418
  %v2790 = vadd.f32 %v2789, %v1421
  %v2791 = vadd.f32 %v2790, %v1426
  %v2792 = vadd.f32 %v2791, %v1429
  %v2793 = vadd.f32 %v2792, %v1434
  %v2794 = vadd.f32 %v2793, %v1437
  %v2795 = vadd.f32 %v2794, %v1442
  %v2796 = vadd.f32 %v2795, %v1445
  %v2797 = vadd.f32 %v2796, %v1450
  %v2798 = vadd.f32 %v2797, %v1453
  %v2799 = vadd.f32 %v2798, %v1458
  %v2800 = vadd.f32 %v2799, %v1461
  %v2801 = vadd.f32 %v2800, %v1466
  %v2802 = vadd.f32 %v2801, %v1469
  %v2803 = vadd.f32 %v2802, %v1474
  %v2804 = vadd.f32 %v2803, %v1477
  %v2805 = vadd.f32 %v2804, %v1482
  %v2806 = vadd.f32 %v2805, %v1485
  %v2807 = vadd.f32 %v2806, %v1490
  %v2808 = vadd.f32 %v2807, %v1493
  %v2809 = vadd.f32 %v2808, %v1498
  %v2810 = vadd.f32 %v2809, %v1501
  %v2811 = vadd.f32 %v2810, %v1506
  %v2812 = vadd.f32 %v2811, %v1509
  %v2813 = vadd.f32 %v2812, %v1514
  %v2814 = vadd.f32 %v2813, %v1517
  %v2815 = vadd.f32 %v2814, %v1522
  %v2816 = vadd.f32 %v2815, %v1525
  %v2817 = vadd.f32 %v2816, %v1530
  %v2818 = vadd.f32 %v2817, %v1533
  %v2819 = vadd.f32 %v2818, %v1538
  %v2820 = vadd.f32 %v2819, %v1541
  %v2821 = vadd.f32 %v2820, %v1546
  %v2822 = vadd.f32 %v2821, %v1549
  %v2823 = vadd.f32 %v2822, %v1554
  %v2824 = vadd.f32 %v2823, %v1557
  %v2825 = vadd.f32 %v2824, %v1562
  %v2826 = vadd.f32 %v2825, %v1565
  %v2827 = vadd.f32 %v2826, %v1570
  %v2828 = vadd.f32 %v2827, %v1573
  %v2829 = vadd.f32 %v2828, %v1578
  %v2830 = vadd.f32 %v2829, %v1581
  %v2831 = vadd.f32 %v2830, %v1586
  %v2832 = vadd.f32 %v2831, %v1589
  %v2833 = vadd.f32 %v2832, %v1594
  %v2834 = vadd.f32 %v2833, %v1597
  %v2835 = vadd.f32 %v2834, %v1602
  %v2836 = vadd.f32 %v2835, %v1605
  %v2837 = vadd.f32 %v2836, %v1610
  %v2838 = vadd.f32 %v2837, %v1613
  %v2839 = vadd.f32 %v2838, %v1618
  %v2840 = vadd.f32 %v2839, %v1621
  %v2841 = vadd.f32 %v2840, %v1626
  %v2842 = vadd.f32 %v2841, %v1629
  %v2843 = vadd.f32 %v2842, %v1634
  %v2844 = vadd.f32 %v2843, %v1637
  %v2845 = vadd.f32 %v2844, %v1642
  %v2846 = vadd.f32 %v2845, %v1645
  %v2847 = vadd.f32 %v2846, %v1650
  %v2848 = vadd.f32 %v2847, %v1653
  %v2849 = vadd.f32 %v2848, %v1658
  %v2850 = vadd.f32 %v2849, %v1661
  %v2851 = vadd.f32 %v2850, %v1666
  %v2852 = vadd.f32 %v2851, %v1669
  %v2853 = vadd.f32 %v2852, %v1674
  %v2854 = vadd.f32 %v2853, %v1677
  %v2855 = vrot.slane %v2854, 4
  %v2856 = vadd.f32 %v2854, %v2855
  %v2857 = vrot.slane %v2856, 2
  %v2858 = vadd.f32 %v2856, %v2857
  %v2859 = vrot.slane %v2858, 1
  %v2860 = vadd.f32 %v2858, %v2859
  %v2861 = vmul.f32 %v898, %v898
  %v2862 = vmul.f32 %v901, %v901
  %v2863 = vmul.f32 %v906, %v906
  %v2864 = vmul.f32 %v909, %v909
  %v2865 = vmul.f32 %v914, %v914
  %v2866 = vmul.f32 %v917, %v917
  %v2867 = vmul.f32 %v922, %v922
  %v2868 = vmul.f32 %v925, %v925
  %v2869 = vmul.f32 %v930, %v930
  %v2870 = vmul.f32 %v933, %v933
  %v2871 = vmul.f32 %v938, %v938
  %v2872 = vmul.f32 %v941, %v941
  %v2873 = vmul.f32 %v946, %v946
  %v2874 = vmul.f32 %v949, %v949
  %v2875 = vmul.f32 %v954, %v954
  %v2876 = vmul.f32 %v957, %v957
  %v2877 = vmul.f32 %v962, %v962
  %v2878 = vmul.f32 %v965, %v965
  %v2879 = vmul.f32 %v970, %v970
  %v2880 = vmul.f32 %v973, %v973
  %v2881 = vmul.f32 %v978, %v978
  %v2882 = vmul.f32 %v981, %v981
  %v2883 = vmul.f32 %v986, %v986
  %v2884 = vmul.f32 %v989, %v989
  %v2885 = vmul.f32 %v994, %v994
  %v2886 = vmul.f32 %v997, %v997
  %v2887 = vmul.f32 %v1002, %v1002
  %v2888 = vmul.f32 %v1005, %v1005
  %v2889 = vmul.f32 %v1010, %v1010
  %v2890 = vmul.f32 %v1013, %v1013
  %v2891 = vmul.f32 %v1018, %v1018
  %v2892 = vmul.f32 %v1021, %v1021
  %v2893 = vmul.f32 %v1026, %v1026
  %v2894 = vmul.f32 %v1029, %v1029
  %v2895 = vmul.f32 %v1034, %v1034
  %v2896 = vmul.f32 %v1037, %v1037
  %v2897 = vmul.f32 %v1042, %v1042
  %v2898 = vmul.f32 %v1045, %v1045
  %v2899 = vmul.f32 %v1050, %v1050
  %v2900 = vmul.f32 %v1053, %v1053
  %v2901 = vmul.f32 %v1058, %v1058
  %v2902 = vmul.f32 %v1061, %v1061
  %v2903 = vmul.f32 %v1066, %v1066
  %v2904 = vmul.f32 %v1069, %v1069
  %v2905 = vmul.f32 %v1074, %v1074
  %v2906 = vmul.f32 %v1077, %v1077
  %v2907 = vmul.f32 %v1082, %v1082
  %v2908 = vmul.f32 %v1085, %v1085
  %v2909 = vmul.f32 %v1090, %v1090
  %v2910 = vmul.f32 %v1093, %v1093
  %v2911 = vmul.f32 %v1098, %v1098
  %v2912 = vmul.f32 %v1101, %v1101
  %v2913 = vmul.f32 %v1106, %v1106
  %v2914 = vmul.f32 %v1109, %v1109
  %v2915 = vmul.f32 %v1114, %v1114
  %v2916 = vmul.f32 %v1117, %v1117
  %v2917 = vmul.f32 %v1122, %v1122
  %v2918 = vmul.f32 %v1125, %v1125
  %v2919 = vmul.f32 %v1130, %v1130
  %v2920 = vmul.f32 %v1133, %v1133
  %v2921 = vmul.f32 %v1138, %v1138
  %v2922 = vmul.f32 %v1141, %v1141
  %v2923 = vmul.f32 %v1146, %v1146
  %v2924 = vmul.f32 %v1149, %v1149
  %v2925 = vmul.f32 %v1154, %v1154
  %v2926 = vmul.f32 %v1157, %v1157
  %v2927 = vmul.f32 %v1162, %v1162
  %v2928 = vmul.f32 %v1165, %v1165
  %v2929 = vmul.f32 %v1170, %v1170
  %v2930 = vmul.f32 %v1173, %v1173
  %v2931 = vmul.f32 %v1178, %v1178
  %v2932 = vmul.f32 %v1181, %v1181
  %v2933 = vmul.f32 %v1186, %v1186
  %v2934 = vmul.f32 %v1189, %v1189
  %v2935 = vmul.f32 %v1194, %v1194
  %v2936 = vmul.f32 %v1197, %v1197
  %v2937 = vmul.f32 %v1202, %v1202
  %v2938 = vmul.f32 %v1205, %v1205
  %v2939 = vmul.f32 %v1210, %v1210
  %v2940 = vmul.f32 %v1213, %v1213
  %v2941 = vmul.f32 %v1218, %v1218
  %v2942 = vmul.f32 %v1221, %v1221
  %v2943 = vmul.f32 %v1226, %v1226
  %v2944 = vmul.f32 %v1229, %v1229
  %v2945 = vmul.f32 %v1234, %v1234
  %v2946 = vmul.f32 %v1237, %v1237
  %v2947 = vmul.f32 %v1242, %v1242
  %v2948 = vmul.f32 %v1245, %v1245
  %v2949 = vmul.f32 %v1250, %v1250
  %v2950 = vmul.f32 %v1253, %v1253
  %v2951 = vmul.f32 %v1258, %v1258
  %v2952 = vmul.f32 %v1261, %v1261
  %v2953 = vmul.f32 %v1266, %v1266
  %v2954 = vmul.f32 %v1269, %v1269
  %v2955 = vmul.f32 %v1274, %v1274
  %v2956 = vmul.f32 %v1277, %v1277
  %v2957 = vmul.f32 %v1282, %v1282
  %v2958 = vmul.f32 %v1285, %v1285
  %v2959 = vmul.f32 %v1290, %v1290
  %v2960 = vmul.f32 %v1293, %v1293
  %v2961 = vmul.f32 %v1298, %v1298
  %v2962 = vmul.f32 %v1301, %v1301
  %v2963 = vmul.f32 %v1306, %v1306
  %v2964 = vmul.f32 %v1309, %v1309
  %v2965 = vmul.f32 %v1314, %v1314
  %v2966 = vmul.f32 %v1317, %v1317
  %v2967 = vmul.f32 %v1322, %v1322
  %v2968 = vmul.f32 %v1325, %v1325
  %v2969 = vmul.f32 %v1330, %v1330
  %v2970 = vmul.f32 %v1333, %v1333
  %v2971 = vmul.f32 %v1338, %v1338
  %v2972 = vmul.f32 %v1341, %v1341
  %v2973 = vmul.f32 %v1346, %v1346
  %v2974 = vmul.f32 %v1349, %v1349
  %v2975 = vmul.f32 %v1354, %v1354
  %v2976 = vmul.f32 %v1357, %v1357
  %v2977 = vmul.f32 %v1362, %v1362
  %v2978 = vmul.f32 %v1365, %v1365
  %v2979 = vmul.f32 %v1370, %v1370
  %v2980 = vmul.f32 %v1373, %v1373
  %v2981 = vmul.f32 %v1378, %v1378
  %v2982 = vmul.f32 %v1381, %v1381
  %v2983 = vmul.f32 %v1386, %v1386
  %v2984 = vmul.f32 %v1389, %v1389
  %v2985 = vmul.f32 %v1394, %v1394
  %v2986 = vmul.f32 %v1397, %v1397
  %v2987 = vmul.f32 %v1402, %v1402
  %v2988 = vmul.f32 %v1405, %v1405
  %v2989 = vmul.f32 %v1410, %v1410
  %v2990 = vmul.f32 %v1413, %v1413
  %v2991 = vmul.f32 %v1418, %v1418
  %v2992 = vmul.f32 %v1421, %v1421
  %v2993 = vmul.f32 %v1426, %v1426
  %v2994 = vmul.f32 %v1429, %v1429
  %v2995 = vmul.f32 %v1434, %v1434
  %v2996 = vmul.f32 %v1437, %v1437
  %v2997 = vmul.f32 %v1442, %v1442
  %v2998 = vmul.f32 %v1445, %v1445
  %v2999 = vmul.f32 %v1450, %v1450
  %v3000 = vmul.f32 %v1453, %v1453
  %v3001 = vmul.f32 %v1458, %v1458
  %v3002 = vmul.f32 %v1461, %v1461
  %v3003 = vmul.f32 %v1466, %v1466
  %v3004 = vmul.f32 %v1469, %v1469
  %v3005 = vmul.f32 %v1474, %v1474
  %v3006 = vmul.f32 %v1477, %v1477
  %v3007 = vmul.f32 %v1482, %v1482
  %v3008 = vmul.f32 %v1485, %v1485
  %v3009 = vmul.f32 %v1490, %v1490
  %v3010 = vmul.f32 %v1493, %v1493
  %v3011 = vmul.f32 %v1498, %v1498
  %v3012 = vmul.f32 %v1501, %v1501
  %v3013 = vmul.f32 %v1506, %v1506
  %v3014 = vmul.f32 %v1509, %v1509
  %v3015 = vmul.f32 %v1514, %v1514
  %v3016 = vmul.f32 %v1517, %v1517
  %v3017 = vmul.f32 %v1522, %v1522
  %v3018 = vmul.f32 %v1525, %v1525
  %v3019 = vmul.f32 %v1530, %v1530
  %v3020 = vmul.f32 %v1533, %v1533
  %v3021 = vmul.f32 %v1538, %v1538
  %v3022 = vmul.f32 %v1541, %v1541
  %v3023 = vmul.f32 %v1546, %v1546
  %v3024 = vmul.f32 %v1549, %v1549
  %v3025 = vmul.f32 %v1554, %v1554
  %v3026 = vmul.f32 %v1557, %v1557
  %v3027 = vmul.f32 %v1562, %v1562
  %v3028 = vmul.f32 %v1565, %v1565
  %v3029 = vmul.f32 %v1570, %v1570
  %v3030 = vmul.f32 %v1573, %v1573
  %v3031 = vmul.f32 %v1578, %v1578
  %v3032 = vmul.f32 %v1581, %v1581
  %v3033 = vmul.f32 %v1586, %v1586
  %v3034 = vmul.f32 %v1589, %v1589
  %v3035 = vmul.f32 %v1594, %v1594
  %v3036 = vmul.f32 %v1597, %v1597
  %v3037 = vmul.f32 %v1602, %v1602
  %v3038 = vmul.f32 %v1605, %v1605
  %v3039 = vmul.f32 %v1610, %v1610
  %v3040 = vmul.f32 %v1613, %v1613
  %v3041 = vmul.f32 %v1618, %v1618
  %v3042 = vmul.f32 %v1621, %v1621
  %v3043 = vmul.f32 %v1626, %v1626
  %v3044 = vmul.f32 %v1629, %v1629
  %v3045 = vmul.f32 %v1634, %v1634
  %v3046 = vmul.f32 %v1637, %v1637
  %v3047 = vmul.f32 %v1642, %v1642
  %v3048 = vmul.f32 %v1645, %v1645
  %v3049 = vmul.f32 %v1650, %v1650
  %v3050 = vmul.f32 %v1653, %v1653
  %v3051 = vmul.f32 %v1658, %v1658
  %v3052 = vmul.f32 %v1661, %v1661
  %v3053 = vmul.f32 %v1666, %v1666
  %v3054 = vmul.f32 %v1669, %v1669
  %v3055 = vmul.f32 %v1674, %v1674
  %v3056 = vmul.f32 %v1677, %v1677
  %v3057 = vadd.f32 %v2861, %v2862
  %v3058 = vadd.f32 %v3057, %v2863
  %v3059 = vadd.f32 %v3058, %v2864
  %v3060 = vadd.f32 %v3059, %v2865
  %v3061 = vadd.f32 %v3060, %v2866
  %v3062 = vadd.f32 %v3061, %v2867
  %v3063 = vadd.f32 %v3062, %v2868
  %v3064 = vadd.f32 %v3063, %v2869
  %v3065 = vadd.f32 %v3064, %v2870
  %v3066 = vadd.f32 %v3065, %v2871
  %v3067 = vadd.f32 %v3066, %v2872
  %v3068 = vadd.f32 %v3067, %v2873
  %v3069 = vadd.f32 %v3068, %v2874
  %v3070 = vadd.f32 %v3069, %v2875
  %v3071 = vadd.f32 %v3070, %v2876
  %v3072 = vadd.f32 %v3071, %v2877
  %v3073 = vadd.f32 %v3072, %v2878
  %v3074 = vadd.f32 %v3073, %v2879
  %v3075 = vadd.f32 %v3074, %v2880
  %v3076 = vadd.f32 %v3075, %v2881
  %v3077 = vadd.f32 %v3076, %v2882
  %v3078 = vadd.f32 %v3077, %v2883
  %v3079 = vadd.f32 %v3078, %v2884
  %v3080 = vadd.f32 %v3079, %v2885
  %v3081 = vadd.f32 %v3080, %v2886
  %v3082 = vadd.f32 %v3081, %v2887
  %v3083 = vadd.f32 %v3082, %v2888
  %v3084 = vadd.f32 %v3083, %v2889
  %v3085 = vadd.f32 %v3084, %v2890
  %v3086 = vadd.f32 %v3085, %v2891
  %v3087 = vadd.f32 %v3086, %v2892
  %v3088 = vadd.f32 %v3087, %v2893
  %v3089 = vadd.f32 %v3088, %v2894
  %v3090 = vadd.f32 %v3089, %v2895
  %v3091 = vadd.f32 %v3090, %v2896
  %v3092 = vadd.f32 %v3091, %v2897
  %v3093 = vadd.f32 %v3092, %v2898
  %v3094 = vadd.f32 %v3093, %v2899
  %v3095 = vadd.f32 %v3094, %v2900
  %v3096 = vadd.f32 %v3095, %v2901
  %v3097 = vadd.f32 %v3096, %v2902
  %v3098 = vadd.f32 %v3097, %v2903
  %v3099 = vadd.f32 %v3098, %v2904
  %v3100 = vadd.f32 %v3099, %v2905
  %v3101 = vadd.f32 %v3100, %v2906
  %v3102 = vadd.f32 %v3101, %v2907
  %v3103 = vadd.f32 %v3102, %v2908
  %v3104 = vadd.f32 %v3103, %v2909
  %v3105 = vadd.f32 %v3104, %v2910
  %v3106 = vadd.f32 %v3105, %v2911
  %v3107 = vadd.f32 %v3106, %v2912
  %v3108 = vadd.f32 %v3107, %v2913
  %v3109 = vadd.f32 %v3108, %v2914
  %v3110 = vadd.f32 %v3109, %v2915
  %v3111 = vadd.f32 %v3110, %v2916
  %v3112 = vadd.f32 %v3111, %v2917
  %v3113 = vadd.f32 %v3112, %v2918
  %v3114 = vadd.f32 %v3113, %v2919
  %v3115 = vadd.f32 %v3114, %v2920
  %v3116 = vadd.f32 %v3115, %v2921
  %v3117 = vadd.f32 %v3116, %v2922
  %v3118 = vadd.f32 %v3117, %v2923
  %v3119 = vadd.f32 %v3118, %v2924
  %v3120 = vadd.f32 %v3119, %v2925
  %v3121 = vadd.f32 %v3120, %v2926
  %v3122 = vadd.f32 %v3121, %v2927
  %v3123 = vadd.f32 %v3122, %v2928
  %v3124 = vadd.f32 %v3123, %v2929
  %v3125 = vadd.f32 %v3124, %v2930
  %v3126 = vadd.f32 %v3125, %v2931
  %v3127 = vadd.f32 %v3126, %v2932
  %v3128 = vadd.f32 %v3127, %v2933
  %v3129 = vadd.f32 %v3128, %v2934
  %v3130 = vadd.f32 %v3129, %v2935
  %v3131 = vadd.f32 %v3130, %v2936
  %v3132 = vadd.f32 %v3131, %v2937
  %v3133 = vadd.f32 %v3132, %v2938
  %v3134 = vadd.f32 %v3133, %v2939
  %v3135 = vadd.f32 %v3134, %v2940
  %v3136 = vadd.f32 %v3135, %v2941
  %v3137 = vadd.f32 %v3136, %v2942
  %v3138 = vadd.f32 %v3137, %v2943
  %v3139 = vadd.f32 %v3138, %v2944
  %v3140 = vadd.f32 %v3139, %v2945
  %v3141 = vadd.f32 %v3140, %v2946
  %v3142 = vadd.f32 %v3141, %v2947
  %v3143 = vadd.f32 %v3142, %v2948
  %v3144 = vadd.f32 %v3143, %v2949
  %v3145 = vadd.f32 %v3144, %v2950
  %v3146 = vadd.f32 %v3145, %v2951
  %v3147 = vadd.f32 %v3146, %v2952
  %v3148 = vadd.f32 %v3147, %v2953
  %v3149 = vadd.f32 %v3148, %v2954
  %v3150 = vadd.f32 %v3149, %v2955
  %v3151 = vadd.f32 %v3150, %v2956
  %v3152 = vadd.f32 %v3151, %v2957
  %v3153 = vadd.f32 %v3152, %v2958
  %v3154 = vadd.f32 %v3153, %v2959
  %v3155 = vadd.f32 %v3154, %v2960
  %v3156 = vadd.f32 %v3155, %v2961
  %v3157 = vadd.f32 %v3156, %v2962
  %v3158 = vadd.f32 %v3157, %v2963
  %v3159 = vadd.f32 %v3158, %v2964
  %v3160 = vadd.f32 %v3159, %v2965
  %v3161 = vadd.f32 %v3160, %v2966
  %v3162 = vadd.f32 %v3161, %v2967
  %v3163 = vadd.f32 %v3162, %v2968
  %v3164 = vadd.f32 %v3163, %v2969
  %v3165 = vadd.f32 %v3164, %v2970
  %v3166 = vadd.f32 %v3165, %v2971
  %v3167 = vadd.f32 %v3166, %v2972
  %v3168 = vadd.f32 %v3167, %v2973
  %v3169 = vadd.f32 %v3168, %v2974
  %v3170 = vadd.f32 %v3169, %v2975
  %v3171 = vadd.f32 %v3170, %v2976
  %v3172 = vadd.f32 %v3171, %v2977
  %v3173 = vadd.f32 %v3172, %v2978
  %v3174 = vadd.f32 %v3173, %v2979
  %v3175 = vadd.f32 %v3174, %v2980
  %v3176 = vadd.f32 %v3175, %v2981
  %v3177 = vadd.f32 %v3176, %v2982
  %v3178 = vadd.f32 %v3177, %v2983
  %v3179 = vadd.f32 %v3178, %v2984
  %v3180 = vadd.f32 %v3179, %v2985
  %v3181 = vadd.f32 %v3180, %v2986
  %v3182 = vadd.f32 %v3181, %v2987
  %v3183 = vadd.f32 %v3182, %v2988
  %v3184 = vadd.f32 %v3183, %v2989
  %v3185 = vadd.f32 %v3184, %v2990
  %v3186 = vadd.f32 %v3185, %v2991
  %v3187 = vadd.f32 %v3186, %v2992
  %v3188 = vadd.f32 %v3187, %v2993
  %v3189 = vadd.f32 %v3188, %v2994
  %v3190 = vadd.f32 %v3189, %v2995
  %v3191 = vadd.f32 %v3190, %v2996
  %v3192 = vadd.f32 %v3191, %v2997
  %v3193 = vadd.f32 %v3192, %v2998
  %v3194 = vadd.f32 %v3193, %v2999
  %v3195 = vadd.f32 %v3194, %v3000
  %v3196 = vadd.f32 %v3195, %v3001
  %v3197 = vadd.f32 %v3196, %v3002
  %v3198 = vadd.f32 %v3197, %v3003
  %v3199 = vadd.f32 %v3198, %v3004
  %v3200 = vadd.f32 %v3199, %v3005
  %v3201 = vadd.f32 %v3200, %v3006
  %v3202 = vadd.f32 %v3201, %v3007
  %v3203 = vadd.f32 %v3202, %v3008
  %v3204 = vadd.f32 %v3203, %v3009
  %v3205 = vadd.f32 %v3204, %v3010
  %v3206 = vadd.f32 %v3205, %v3011
  %v3207 = vadd.f32 %v3206, %v3012
  %v3208 = vadd.f32 %v3207, %v3013
  %v3209 = vadd.f32 %v3208, %v3014
  %v3210 = vadd.f32 %v3209, %v3015
  %v3211 = vadd.f32 %v3210, %v3016
  %v3212 = vadd.f32 %v3211, %v3017
  %v3213 = vadd.f32 %v3212, %v3018
  %v3214 = vadd.f32 %v3213, %v3019
  %v3215 = vadd.f32 %v3214, %v3020
  %v3216 = vadd.f32 %v3215, %v3021
  %v3217 = vadd.f32 %v3216, %v3022
  %v3218 = vadd.f32 %v3217, %v3023
  %v3219 = vadd.f32 %v3218, %v3024
  %v3220 = vadd.f32 %v3219, %v3025
  %v3221 = vadd.f32 %v3220, %v3026
  %v3222 = vadd.f32 %v3221, %v3027
  %v3223 = vadd.f32 %v3222, %v3028
  %v3224 = vadd.f32 %v3223, %v3029
  %v3225 = vadd.f32 %v3224, %v3030
  %v3226 = vadd.f32 %v3225, %v3031
  %v3227 = vadd.f32 %v3226, %v3032
  %v3228 = vadd.f32 %v3227, %v3033
  %v3229 = vadd.f32 %v3228, %v3034
  %v3230 = vadd.f32 %v3229, %v3035
  %v3231 = vadd.f32 %v3230, %v3036
  %v3232 = vadd.f32 %v3231, %v3037
  %v3233 = vadd.f32 %v3232, %v3038
  %v3234 = vadd.f32 %v3233, %v3039
  %v3235 = vadd.f32 %v3234, %v3040
  %v3236 = vadd.f32 %v3235, %v3041
  %v3237 = vadd.f32 %v3236, %v3042
  %v3238 = vadd.f32 %v3237, %v3043
  %v3239 = vadd.f32 %v3238, %v3044
  %v3240 = vadd.f32 %v3239, %v3045
  %v3241 = vadd.f32 %v3240, %v3046
  %v3242 = vadd.f32 %v3241, %v3047
  %v3243 = vadd.f32 %v3242, %v3048
  %v3244 = vadd.f32 %v3243, %v3049
  %v3245 = vadd.f32 %v3244, %v3050
  %v3246 = vadd.f32 %v3245, %v3051
  %v3247 = vadd.f32 %v3246, %v3052
  %v3248 = vadd.f32 %v3247, %v3053
  %v3249 = vadd.f32 %v3248, %v3054
  %v3250 = vadd.f32 %v3249, %v3055
  %v3251 = vadd.f32 %v3250, %v3056
  %v3252 = vrot.slane %v3251, 4
  %v3253 = vadd.f32 %v3251, %v3252
  %v3254 = vrot.slane %v3253, 2
  %v3255 = vadd.f32 %v3253, %v3254
  %v3256 = vrot.slane %v3255, 1
  %v3257 = vadd.f32 %v3255, %v3256
  %3258 = vst [vmem:[%s3] sm:$0xff] %v2860
  %3259 = vst [vmem:[%s4] sm:$0xff] %v3257
  // Predicated region
  $region10: #{generator_forward.8} parent=0 // pred_check
    _
  $region11: #{generator_forward.8} parent=0 // pred_check_branch
    %3261 = sbr.rel (0) target = $region13
  $region12: #{generator_forward.8} parent=0 // pred_region
    _
  $region13: #{generator_forward.8} parent=0 // pred_fallthru
    _
  // Predicated region
  $region14: #{generator_forward.8} parent=0 // pred_check
    _
  $region15: #{generator_forward.8} parent=0 // pred_check_branch
    %3263 = sbr.rel (0) target = $region17
  $region16: #{generator_forward.8} parent=0 // pred_region
    _
  $region17: #{generator_forward.8} parent=0 // pred_fallthru
    _
  // Predicated region
  $region18: #{generator_forward.8} parent=0 // pred_check
    _
  $region19: #{generator_forward.8} parent=0 // pred_check_branch
    %3265 = sbr.rel (0) target = $region21
  $region20: #{generator_forward.8} parent=0 // pred_region
    _
  $region21: #{generator_forward.8} parent=0 // pred_fallthru
    _
  // Predicated region
  $region22: #{generator_forward.8} parent=0 // pred_check
    _
  $region23: #{generator_forward.8} parent=0 // pred_check_branch
    %3267 = sbr.rel (0) target = $region25
  $region24: #{generator_forward.8} parent=0 // pred_region
    _
  $region25: #{generator_forward.8} parent=0 // pred_fallthru
    _
  // Predicated region
  $region26: #{generator_forward.8} parent=0 // pred_check
    _
  $region27: #{generator_forward.8} parent=0 // pred_check_branch
    %3269 = sbr.rel (0) target = $region29
  $region28: #{generator_forward.8} parent=0 // pred_region
    _
  $region29: #{generator_forward.8} parent=0 // pred_fallthru
    _
  // Predicated region
  $region30: #{generator_forward.8} parent=0 // pred_check
    _
  $region31: #{generator_forward.8} parent=0 // pred_check_branch
    %3271 = sbr.rel (0) target = $region33
  $region32: #{generator_forward.8} parent=0 // pred_region
    _
  $region33: #{generator_forward.8} parent=0 // pred_fallthru
    _

// kernel: generator_forward.9
$region0: #{generator_forward.9}
  #allocation0 [shape = 'u32[]', space=smem, size = 0x4, offset = 0x4, fixed_abs, tag = 'smem constant byte address 0x4 - core index']
  #allocation1 [shape = 'u32[144,128]{1,0:T(1,128)}', space=vmem, size = 0x12000, scoped, tag = 'internal scratch']
  %s0 = inlined_call_operand.vmem [shape: bf16[25088,128], index: 0, kind: input, shape index: {}]
  %s1 = inlined_call_operand.vmem [shape: bf16[128,128], index: 1, kind: input, shape index: {}]
  %s2 = inlined_call_operand.vmem [shape: bf16[25088,128], index: 2, kind: output, shape index: {}]
  %s3 = sld [smem:[#allocation0]]
  $region41: #{generator_forward.9} parent=0
    _
  %s5 = ssub.s32 1, %s3
  %s6 = scalar_select 0, %s5, %s3
  loop: start=0, step=1, limit=16
  $region2: #{generator_forward.9} parent=0 // loop_pre_header
    _
  $region3: #{generator_forward.9} parent=0 // loop_header
    %s8 = sphi 0, %s12
    %p9 = scmp.ge.s32.totalorder %s8, 16
    %s15 = sphi 0, %s27
    %s16 = sphi 0, %s23
    %s17 = sphi 0, %s15
    %s18 = sphi 0, %s16
    %s19 = sphi 0, %s17
    %s20 = sphi 0, %s18
    %s30 = sphi 0, %s32
    %s33 = sphi 0, %s30
    %s34 = sphi 0, %s33
    %s50 = sphi 0, %s34
    %s56 = sphi 0, %s58
    %s59 = sphi 0, %s56
    %s60 = sphi 0, %s59
    %s76 = sphi 0, %s60
    %s84 = sphi 0, %s86
    %s87 = sphi 0, %s84
    %s88 = sphi 0, %s87
    %s104 = sphi 0, %s88
  $region4: #{generator_forward.9} parent=0 // loop_header_branch
    %11 = sbr.rel (%p9) target = $region8
  $region5: #{generator_forward.9} parent=0 // loop_body
    %s13 = ssub.s32 %s8, 1
    %s14 = ssub.s32 %s8, 2
    %s21 = sadd.s32 1, %s16
    %p22 = scmp.ge.s32.totalorder %s21, 1
    %s23 = scalar_select %p22, 0, %s21
    %s24 = sadd.s32 1, %s15
    %s25 = scalar_select %p22, %s24, %s15
    %p26 = scmp.ge.s32.totalorder %s25, 14
    %s27 = scalar_select %p26, 0, %s25
    %s28 = ssub.s32 %s15, %s27
    %p29 = scmp.eq.s32.totalorder %s28, 0
    %s31 = sadd.s32 %s30, 1
    %s32 = scalar_select %p29, %s30, %s31
    %p35 = pneg %p29
    %p36 = scmp.eq.s32.totalorder %s8, 13
    %p37 = por %p35, %p36
    %p38 = scmp.ne.s32.totalorder %s30, %s33
    %p39 = scmp.eq.s32.totalorder %s8, 0
    %p40 = por %p38, %p39
    %p41 = scmp.ne.s32.totalorder %s30, %s33
    %p42 = scmp.eq.s32.totalorder %s13, 13
    %p43 = por %p41, %p42
    %p44 = scmp.ne.s32.totalorder %s33, %s34
    %p45 = scmp.eq.s32.totalorder %s13, 0
    %p46 = por %p44, %p45
    %p47 = scmp.ne.s32.totalorder %s33, %s34
    %p48 = scmp.eq.s32.totalorder %s14, 13
    %p49 = por %p47, %p48
    %p51 = scmp.ne.s32.totalorder %s34, %s50
    %p52 = scmp.eq.s32.totalorder %s14, 0
    %p53 = por %p51, %p52
    %s54 = ssub.s32 %s16, %s23
    %p55 = scmp.eq.s32.totalorder %s54, 0
    %s57 = sadd.s32 %s56, 1
    %s58 = scalar_select %p55, %s56, %s57
    %p61 = pneg %p55
    %p62 = scmp.eq.s32.totalorder %s8, 13
    %p63 = por %p61, %p62
    %p64 = scmp.ne.s32.totalorder %s56, %s59
    %p65 = scmp.eq.s32.totalorder %s8, 0
    %p66 = por %p64, %p65
    %p67 = scmp.ne.s32.totalorder %s56, %s59
    %p68 = scmp.eq.s32.totalorder %s13, 13
    %p69 = por %p67, %p68
    %p70 = scmp.ne.s32.totalorder %s59, %s60
    %p71 = scmp.eq.s32.totalorder %s13, 0
    %p72 = por %p70, %p71
    %p73 = scmp.ne.s32.totalorder %s59, %s60
    %p74 = scmp.eq.s32.totalorder %s14, 13
    %p75 = por %p73, %p74
    %p77 = scmp.ne.s32.totalorder %s60, %s76
    %p78 = scmp.eq.s32.totalorder %s14, 0
    %p79 = por %p77, %p78
    %s80 = ssub.s32 %s15, %s27
    %s81 = ssub.s32 %s16, %s23
    %s82 = sor.u32 %s80, %s81
    %p83 = scmp.eq.s32.totalorder %s82, 0
    %s85 = sadd.s32 %s84, 1
    %s86 = scalar_select %p83, %s84, %s85
    %p89 = pneg %p83
    %p90 = scmp.eq.s32.totalorder %s8, 13
    %p91 = por %p89, %p90
    %p92 = scmp.ne.s32.totalorder %s84, %s87
    %p93 = scmp.eq.s32.totalorder %s8, 0
    %p94 = por %p92, %p93
    %p95 = scmp.ne.s32.totalorder %s84, %s87
    %p96 = scmp.eq.s32.totalorder %s13, 13
    %p97 = por %p95, %p96
    %p98 = scmp.ne.s32.totalorder %s87, %s88
    %p99 = scmp.eq.s32.totalorder %s13, 0
    %p100 = por %p98, %p99
    %p101 = scmp.ne.s32.totalorder %s87, %s88
    %p102 = scmp.eq.s32.totalorder %s14, 13
    %p103 = por %p101, %p102
    %p105 = scmp.ne.s32.totalorder %s88, %s104
    %p106 = scmp.eq.s32.totalorder %s14, 0
    %p107 = por %p105, %p106
    %p108 = scmp.le.s32.totalorder 1, %s8
    %p109 = scmp.lt.s32.totalorder %s8, 15
    %p110 = pnand %p108, %p109
    %p111 = pneg %p110
    // Predicated region
    $region9: #{generator_forward.9} parent=5 // pred_check
      _
    $region10: #{generator_forward.9} parent=5 // pred_check_branch
      %113 = sbr.rel (%p110) target = $region12
    $region11: #{generator_forward.9} parent=5 // pred_region
      %s114 = ssub.s32 %s8, 1
      // Predicated region
      $region13: #{generator_forward.9} parent=11 // pred_check
        %p115 = pneg %p72
      $region14: #{generator_forward.9} parent=11 // pred_check_branch
        %117 = sbr.rel (%p115) target = $region16
      $region15: #{generator_forward.9} parent=11 // pred_region
        %p118 = scmp.lt.s32.totalorder %s18, 0
        %s119 = scalar_select %p118, %s18, 0
        %s120 = smul.addr %s119, 4
        %s121 = scalar_lea.vmem %s1, %s120
      $region16: #{generator_forward.9} parent=11 // pred_fallthru
        _
    $region12: #{generator_forward.9} parent=5 // pred_fallthru
      _
    %p122 = scmp.lt.s32.totalorder %s8, 14
    // Predicated region
    $region17: #{generator_forward.9} parent=5 // pred_check
      %p123 = pneg %p122
    $region18: #{generator_forward.9} parent=5 // pred_check_branch
      %125 = sbr.rel (%p123) target = $region20
    $region19: #{generator_forward.9} parent=5 // pred_region
      // Predicated region
      $region21: #{generator_forward.9} parent=19 // pred_check
        %p126 = pneg %p40
      $region22: #{generator_forward.9} parent=19 // pred_check_branch
        %128 = sbr.rel (%p126) target = $region24
      $region23: #{generator_forward.9} parent=19 // pred_region
        %s129 = smul.u32 224, %s15
        %p130 = scmp.lt.s32.totalorder %s129, 3135
        %s131 = scalar_select %p130, %s129, 3135
        %s132 = smul.addr %s131, 4
        %s133 = scalar_lea.vmem %s0, %s132
        %s134 = smul.u32 224, %s15
      $region24: #{generator_forward.9} parent=19 // pred_fallthru
        _
    $region20: #{generator_forward.9} parent=5 // pred_fallthru
      _
    %p135 = scmp.le.s32.totalorder 1, %s8
    %p136 = scmp.lt.s32.totalorder %s8, 15
    %p137 = pnand %p135, %p136
    %p138 = pneg %p137
    // Predicated region
    $region25: #{generator_forward.9} parent=5 // pred_check
      _
    $region26: #{generator_forward.9} parent=5 // pred_check_branch
      %140 = sbr.rel (%p137) target = $region28
    $region27: #{generator_forward.9} parent=5 // pred_region
      %s141 = ssub.s32 %s8, 1
      %s142 = smul.u32 224, %s17
      %p143 = scmp.lt.s32.totalorder %s142, 3135
      %s144 = scalar_select %p143, %s142, 3135
      %s145 = smul.addr %s144, 4
      %s146 = scalar_lea.vmem %s0, %s145
      %p147 = pneg %p46
      %p148 = pneg %p43
      %p149 = scmp.lt.s32.totalorder %s18, 0
      %s150 = scalar_select %p149, %s18, 0
      %s151 = smul.addr %s150, 4
      %s152 = scalar_lea.vmem %s1, %s151
      %p153 = pneg %p72
      %p154 = pneg %p69
      %p155 = pneg %p100
      %p156 = pneg %p97
      %s157 = smul.u32 224, %s17
      %p158 = scmp.lt.s32.totalorder %s157, 3135
      %s159 = scalar_select %p158, %s157, 3135
      %p160 = scmp.lt.s32.totalorder %s18, 0
      %s161 = scalar_select %p160, %s18, 0
      %s162 = sadd.s32 %s161, %s159
      %s163 = smul.addr %s162, 4
      %s164 = scalar_lea.vmem %s2, %s163
      %s165 = smul.u32 224, %s17
      %p166 = scmp.lt.s32.totalorder %s165, 3135
      %s167 = scalar_select %p166, %s165, 3135
      %s168 = smul.addr %s167, 4
      %s169 = scalar_lea.vmem %s0, %s168
      %s170 = smul.u32 224, %s17
      %p171 = scmp.lt.s32.totalorder %s18, 0
      %s172 = scalar_select %p171, %s18, 0
      %s173 = smul.addr %s172, 4
      %s174 = scalar_lea.vmem %s1, %s173
      %s175 = smul.u32 224, %s17
      %p176 = scmp.lt.s32.totalorder %s175, 3135
      %s177 = scalar_select %p176, %s175, 3135
      %p178 = scmp.lt.s32.totalorder %s18, 0
      %s179 = scalar_select %p178, %s18, 0
      %s180 = sadd.s32 %s179, %s177
      %s181 = smul.addr %s180, 4
      %s182 = scalar_lea.vmem %s2, %s181
      %s183 = smul.u32 224, %s17
      %v185 = vld [vmem:[%s169] sm:$0xf]
      %v186 = vld [vmem:[%s169 + $0x4] sm:$0xf]
      %v187 = vld [vmem:[%s169 + $0x8] sm:$0xf]
      %v188 = vld [vmem:[%s169 + $0xc] sm:$0xf]
      %v189 = vld [vmem:[%s169 + $0x10] sm:$0xf]
      %v190 = vld [vmem:[%s169 + $0x14] sm:$0xf]
      %v191 = vld [vmem:[%s169 + $0x18] sm:$0xf]
      %v192 = vld [vmem:[%s169 + $0x1c] sm:$0xf]
      %v193 = vld [vmem:[%s169 + $0x20] sm:$0xf]
      %v194 = vld [vmem:[%s169 + $0x24] sm:$0xf]
      %v195 = vld [vmem:[%s169 + $0x28] sm:$0xf]
      %v196 = vld [vmem:[%s169 + $0x2c] sm:$0xf]
      %v197 = vld [vmem:[%s169 + $0x30] sm:$0xf]
      %v198 = vld [vmem:[%s169 + $0x34] sm:$0xf]
      %v199 = vld [vmem:[%s169 + $0x38] sm:$0xf]
      %v200 = vld [vmem:[%s169 + $0x3c] sm:$0xf]
      %v201 = vld [vmem:[%s169 + $0x40] sm:$0xf]
      %v202 = vld [vmem:[%s169 + $0x44] sm:$0xf]
      %v203 = vld [vmem:[%s169 + $0x48] sm:$0xf]
      %v204 = vld [vmem:[%s169 + $0x4c] sm:$0xf]
      %v205 = vld [vmem:[%s169 + $0x50] sm:$0xf]
      %v206 = vld [vmem:[%s169 + $0x54] sm:$0xf]
      %v207 = vld [vmem:[%s169 + $0x58] sm:$0xf]
      %v208 = vld [vmem:[%s169 + $0x5c] sm:$0xf]
      %v209 = vld [vmem:[%s169 + $0x60] sm:$0xf]
      %v210 = vld [vmem:[%s169 + $0x64] sm:$0xf]
      %v211 = vld [vmem:[%s169 + $0x68] sm:$0xf]
      %v212 = vld [vmem:[%s169 + $0x6c] sm:$0xf]
      %v213 = vld [vmem:[%s169 + $0x70] sm:$0xf]
      %v214 = vld [vmem:[%s169 + $0x74] sm:$0xf]
      %v215 = vld [vmem:[%s169 + $0x78] sm:$0xf]
      %v216 = vld [vmem:[%s169 + $0x7c] sm:$0xf]
      %v217 = vld [vmem:[%s169 + $0x80] sm:$0xf]
      %v218 = vld [vmem:[%s169 + $0x84] sm:$0xf]
      %v219 = vld [vmem:[%s169 + $0x88] sm:$0xf]
      %v220 = vld [vmem:[%s169 + $0x8c] sm:$0xf]
      %v221 = vld [vmem:[%s169 + $0x90] sm:$0xf]
      %v222 = vld [vmem:[%s169 + $0x94] sm:$0xf]
      %v223 = vld [vmem:[%s169 + $0x98] sm:$0xf]
      %v224 = vld [vmem:[%s169 + $0x9c] sm:$0xf]
      %v225 = vld [vmem:[%s169 + $0xa0] sm:$0xf]
      %v226 = vld [vmem:[%s169 + $0xa4] sm:$0xf]
      %v227 = vld [vmem:[%s169 + $0xa8] sm:$0xf]
      %v228 = vld [vmem:[%s169 + $0xac] sm:$0xf]
      %v229 = vld [vmem:[%s169 + $0xb0] sm:$0xf]
      %v230 = vld [vmem:[%s169 + $0xb4] sm:$0xf]
      %v231 = vld [vmem:[%s169 + $0xb8] sm:$0xf]
      %v232 = vld [vmem:[%s169 + $0xbc] sm:$0xf]
      %v233 = vld [vmem:[%s169 + $0xc0] sm:$0xf]
      %v234 = vld [vmem:[%s169 + $0xc4] sm:$0xf]
      %v235 = vld [vmem:[%s169 + $0xc8] sm:$0xf]
      %v236 = vld [vmem:[%s169 + $0xcc] sm:$0xf]
      %v237 = vld [vmem:[%s169 + $0xd0] sm:$0xf]
      %v238 = vld [vmem:[%s169 + $0xd4] sm:$0xf]
      %v239 = vld [vmem:[%s169 + $0xd8] sm:$0xf]
      %v240 = vld [vmem:[%s169 + $0xdc] sm:$0xf]
      %v241 = vld [vmem:[%s169 + $0xe0] sm:$0xf]
      %v242 = vld [vmem:[%s169 + $0xe4] sm:$0xf]
      %v243 = vld [vmem:[%s169 + $0xe8] sm:$0xf]
      %v244 = vld [vmem:[%s169 + $0xec] sm:$0xf]
      %v245 = vld [vmem:[%s169 + $0xf0] sm:$0xf]
      %v246 = vld [vmem:[%s169 + $0xf4] sm:$0xf]
      %v247 = vld [vmem:[%s169 + $0xf8] sm:$0xf]
      %v248 = vld [vmem:[%s169 + $0xfc] sm:$0xf]
      %v249 = vld [vmem:[%s169 + $0x100] sm:$0xf]
      %v250 = vld [vmem:[%s169 + $0x104] sm:$0xf]
      %v251 = vld [vmem:[%s169 + $0x108] sm:$0xf]
      %v252 = vld [vmem:[%s169 + $0x10c] sm:$0xf]
      %v253 = vld [vmem:[%s169 + $0x110] sm:$0xf]
      %v254 = vld [vmem:[%s169 + $0x114] sm:$0xf]
      %v255 = vld [vmem:[%s169 + $0x118] sm:$0xf]
      %v256 = vld [vmem:[%s169 + $0x11c] sm:$0xf]
      %v257 = vld [vmem:[%s169 + $0x120] sm:$0xf]
      %v258 = vld [vmem:[%s169 + $0x124] sm:$0xf]
      %v259 = vld [vmem:[%s169 + $0x128] sm:$0xf]
      %v260 = vld [vmem:[%s169 + $0x12c] sm:$0xf]
      %v261 = vld [vmem:[%s169 + $0x130] sm:$0xf]
      %v262 = vld [vmem:[%s169 + $0x134] sm:$0xf]
      %v263 = vld [vmem:[%s169 + $0x138] sm:$0xf]
      %v264 = vld [vmem:[%s169 + $0x13c] sm:$0xf]
      %v265 = vld [vmem:[%s169 + $0x140] sm:$0xf]
      %v266 = vld [vmem:[%s169 + $0x144] sm:$0xf]
      %v267 = vld [vmem:[%s169 + $0x148] sm:$0xf]
      %v268 = vld [vmem:[%s169 + $0x14c] sm:$0xf]
      %v269 = vld [vmem:[%s169 + $0x150] sm:$0xf]
      %v270 = vld [vmem:[%s169 + $0x154] sm:$0xf]
      %v271 = vld [vmem:[%s169 + $0x158] sm:$0xf]
      %v272 = vld [vmem:[%s169 + $0x15c] sm:$0xf]
      %v273 = vld [vmem:[%s169 + $0x160] sm:$0xf]
      %v274 = vld [vmem:[%s169 + $0x164] sm:$0xf]
      %v275 = vld [vmem:[%s169 + $0x168] sm:$0xf]
      %v276 = vld [vmem:[%s169 + $0x16c] sm:$0xf]
      %v277 = vld [vmem:[%s169 + $0x170] sm:$0xf]
      %v278 = vld [vmem:[%s169 + $0x174] sm:$0xf]
      %v279 = vld [vmem:[%s169 + $0x178] sm:$0xf]
      %v280 = vld [vmem:[%s169 + $0x17c] sm:$0xf]
      %v281 = vld [vmem:[%s169 + $0x180] sm:$0xf]
      %v282 = vld [vmem:[%s169 + $0x184] sm:$0xf]
      %v283 = vld [vmem:[%s169 + $0x188] sm:$0xf]
      %v284 = vld [vmem:[%s169 + $0x18c] sm:$0xf]
      %v285 = vld [vmem:[%s169 + $0x190] sm:$0xf]
      %v286 = vld [vmem:[%s169 + $0x194] sm:$0xf]
      %v287 = vld [vmem:[%s169 + $0x198] sm:$0xf]
      %v288 = vld [vmem:[%s169 + $0x19c] sm:$0xf]
      %v289 = vld [vmem:[%s169 + $0x1a0] sm:$0xf]
      %v290 = vld [vmem:[%s169 + $0x1a4] sm:$0xf]
      %v291 = vld [vmem:[%s169 + $0x1a8] sm:$0xf]
      %v292 = vld [vmem:[%s169 + $0x1ac] sm:$0xf]
      %v293 = vld [vmem:[%s169 + $0x1b0] sm:$0xf]
      %v294 = vld [vmem:[%s169 + $0x1b4] sm:$0xf]
      %v295 = vld [vmem:[%s169 + $0x1b8] sm:$0xf]
      %v296 = vld [vmem:[%s169 + $0x1bc] sm:$0xf]
      %v297 = vld [vmem:[%s169 + $0x1c0] sm:$0xf]
      %v298 = vld [vmem:[%s169 + $0x1c4] sm:$0xf]
      %v299 = vld [vmem:[%s169 + $0x1c8] sm:$0xf]
      %v300 = vld [vmem:[%s169 + $0x1cc] sm:$0xf]
      %v301 = vld [vmem:[%s169 + $0x1d0] sm:$0xf]
      %v302 = vld [vmem:[%s169 + $0x1d4] sm:$0xf]
      %v303 = vld [vmem:[%s169 + $0x1d8] sm:$0xf]
      %v304 = vld [vmem:[%s169 + $0x1dc] sm:$0xf]
      %v305 = vld [vmem:[%s169 + $0x1e0] sm:$0xf]
      %v306 = vld [vmem:[%s169 + $0x1e4] sm:$0xf]
      %v307 = vld [vmem:[%s169 + $0x1e8] sm:$0xf]
      %v308 = vld [vmem:[%s169 + $0x1ec] sm:$0xf]
      %v309 = vld [vmem:[%s169 + $0x1f0] sm:$0xf]
      %v310 = vld [vmem:[%s169 + $0x1f4] sm:$0xf]
      %v311 = vld [vmem:[%s169 + $0x1f8] sm:$0xf]
      %v312 = vld [vmem:[%s169 + $0x1fc] sm:$0xf]
      %v313 = vld [vmem:[%s169 + $0x200] sm:$0xf]
      %v314 = vld [vmem:[%s169 + $0x204] sm:$0xf]
      %v315 = vld [vmem:[%s169 + $0x208] sm:$0xf]
      %v316 = vld [vmem:[%s169 + $0x20c] sm:$0xf]
      %v317 = vld [vmem:[%s169 + $0x210] sm:$0xf]
      %v318 = vld [vmem:[%s169 + $0x214] sm:$0xf]
      %v319 = vld [vmem:[%s169 + $0x218] sm:$0xf]
      %v320 = vld [vmem:[%s169 + $0x21c] sm:$0xf]
      %v321 = vld [vmem:[%s169 + $0x220] sm:$0xf]
      %v322 = vld [vmem:[%s169 + $0x224] sm:$0xf]
      %v323 = vld [vmem:[%s169 + $0x228] sm:$0xf]
      %v324 = vld [vmem:[%s169 + $0x22c] sm:$0xf]
      %v325 = vld [vmem:[%s169 + $0x230] sm:$0xf]
      %v326 = vld [vmem:[%s169 + $0x234] sm:$0xf]
      %v327 = vld [vmem:[%s169 + $0x238] sm:$0xf]
      %v328 = vld [vmem:[%s169 + $0x23c] sm:$0xf]
      %v329 = vld [vmem:[%s169 + $0x240] sm:$0xf]
      %v330 = vld [vmem:[%s169 + $0x244] sm:$0xf]
      %v331 = vld [vmem:[%s169 + $0x248] sm:$0xf]
      %v332 = vld [vmem:[%s169 + $0x24c] sm:$0xf]
      %v333 = vld [vmem:[%s169 + $0x250] sm:$0xf]
      %v334 = vld [vmem:[%s169 + $0x254] sm:$0xf]
      %v335 = vld [vmem:[%s169 + $0x258] sm:$0xf]
      %v336 = vld [vmem:[%s169 + $0x25c] sm:$0xf]
      %v337 = vld [vmem:[%s169 + $0x260] sm:$0xf]
      %v338 = vld [vmem:[%s169 + $0x264] sm:$0xf]
      %v339 = vld [vmem:[%s169 + $0x268] sm:$0xf]
      %v340 = vld [vmem:[%s169 + $0x26c] sm:$0xf]
      %v341 = vld [vmem:[%s169 + $0x270] sm:$0xf]
      %v342 = vld [vmem:[%s169 + $0x274] sm:$0xf]
      %v343 = vld [vmem:[%s169 + $0x278] sm:$0xf]
      %v344 = vld [vmem:[%s169 + $0x27c] sm:$0xf]
      %v345 = vld [vmem:[%s169 + $0x280] sm:$0xf]
      %v346 = vld [vmem:[%s169 + $0x284] sm:$0xf]
      %v347 = vld [vmem:[%s169 + $0x288] sm:$0xf]
      %v348 = vld [vmem:[%s169 + $0x28c] sm:$0xf]
      %v349 = vld [vmem:[%s169 + $0x290] sm:$0xf]
      %v350 = vld [vmem:[%s169 + $0x294] sm:$0xf]
      %v351 = vld [vmem:[%s169 + $0x298] sm:$0xf]
      %v352 = vld [vmem:[%s169 + $0x29c] sm:$0xf]
      %v353 = vld [vmem:[%s169 + $0x2a0] sm:$0xf]
      %v354 = vld [vmem:[%s169 + $0x2a4] sm:$0xf]
      %v355 = vld [vmem:[%s169 + $0x2a8] sm:$0xf]
      %v356 = vld [vmem:[%s169 + $0x2ac] sm:$0xf]
      %v357 = vld [vmem:[%s169 + $0x2b0] sm:$0xf]
      %v358 = vld [vmem:[%s169 + $0x2b4] sm:$0xf]
      %v359 = vld [vmem:[%s169 + $0x2b8] sm:$0xf]
      %v360 = vld [vmem:[%s169 + $0x2bc] sm:$0xf]
      %v361 = vld [vmem:[%s169 + $0x2c0] sm:$0xf]
      %v362 = vld [vmem:[%s169 + $0x2c4] sm:$0xf]
      %v363 = vld [vmem:[%s169 + $0x2c8] sm:$0xf]
      %v364 = vld [vmem:[%s169 + $0x2cc] sm:$0xf]
      %v365 = vld [vmem:[%s169 + $0x2d0] sm:$0xf]
      %v366 = vld [vmem:[%s169 + $0x2d4] sm:$0xf]
      %v367 = vld [vmem:[%s169 + $0x2d8] sm:$0xf]
      %v368 = vld [vmem:[%s169 + $0x2dc] sm:$0xf]
      %v369 = vld [vmem:[%s169 + $0x2e0] sm:$0xf]
      %v370 = vld [vmem:[%s169 + $0x2e4] sm:$0xf]
      %v371 = vld [vmem:[%s169 + $0x2e8] sm:$0xf]
      %v372 = vld [vmem:[%s169 + $0x2ec] sm:$0xf]
      %v373 = vld [vmem:[%s169 + $0x2f0] sm:$0xf]
      %v374 = vld [vmem:[%s169 + $0x2f4] sm:$0xf]
      %v375 = vld [vmem:[%s169 + $0x2f8] sm:$0xf]
      %v376 = vld [vmem:[%s169 + $0x2fc] sm:$0xf]
      %v377 = vld [vmem:[%s169 + $0x300] sm:$0xf]
      %v378 = vld [vmem:[%s169 + $0x304] sm:$0xf]
      %v379 = vld [vmem:[%s169 + $0x308] sm:$0xf]
      %v380 = vld [vmem:[%s169 + $0x30c] sm:$0xf]
      %v381 = vld [vmem:[%s169 + $0x310] sm:$0xf]
      %v382 = vld [vmem:[%s169 + $0x314] sm:$0xf]
      %v383 = vld [vmem:[%s169 + $0x318] sm:$0xf]
      %v384 = vld [vmem:[%s169 + $0x31c] sm:$0xf]
      %v385 = vld [vmem:[%s169 + $0x320] sm:$0xf]
      %v386 = vld [vmem:[%s169 + $0x324] sm:$0xf]
      %v387 = vld [vmem:[%s169 + $0x328] sm:$0xf]
      %v388 = vld [vmem:[%s169 + $0x32c] sm:$0xf]
      %v389 = vld [vmem:[%s169 + $0x330] sm:$0xf]
      %v390 = vld [vmem:[%s169 + $0x334] sm:$0xf]
      %v391 = vld [vmem:[%s169 + $0x338] sm:$0xf]
      %v392 = vld [vmem:[%s169 + $0x33c] sm:$0xf]
      %v393 = vld [vmem:[%s169 + $0x340] sm:$0xf]
      %v394 = vld [vmem:[%s169 + $0x344] sm:$0xf]
      %v395 = vld [vmem:[%s169 + $0x348] sm:$0xf]
      %v396 = vld [vmem:[%s169 + $0x34c] sm:$0xf]
      %v397 = vld [vmem:[%s169 + $0x350] sm:$0xf]
      %v398 = vld [vmem:[%s169 + $0x354] sm:$0xf]
      %v399 = vld [vmem:[%s169 + $0x358] sm:$0xf]
      %v400 = vld [vmem:[%s169 + $0x35c] sm:$0xf]
      %v401 = vld [vmem:[%s169 + $0x360] sm:$0xf]
      %v402 = vld [vmem:[%s169 + $0x364] sm:$0xf]
      %v403 = vld [vmem:[%s169 + $0x368] sm:$0xf]
      %v404 = vld [vmem:[%s169 + $0x36c] sm:$0xf]
      %v405 = vld [vmem:[%s169 + $0x370] sm:$0xf]
      %v406 = vld [vmem:[%s169 + $0x374] sm:$0xf]
      %v407 = vld [vmem:[%s169 + $0x378] sm:$0xf]
      %v408 = vld [vmem:[%s169 + $0x37c] sm:$0xf]
      %v409 = vld [vmem:[%s174] sm:$0xf]
      %v410 = vld [vmem:[%s174 + $0x4] sm:$0xf]
      %v411 = vld [vmem:[%s174 + $0x8] sm:$0xf]
      %v412 = vld [vmem:[%s174 + $0xc] sm:$0xf]
      %v413 = vld [vmem:[%s174 + $0x10] sm:$0xf]
      %v414 = vld [vmem:[%s174 + $0x14] sm:$0xf]
      %v415 = vld [vmem:[%s174 + $0x18] sm:$0xf]
      %v416 = vld [vmem:[%s174 + $0x1c] sm:$0xf]
      %v417 = vld [vmem:[%s174 + $0x20] sm:$0xf]
      %v418 = vld [vmem:[%s174 + $0x24] sm:$0xf]
      %v419 = vld [vmem:[%s174 + $0x28] sm:$0xf]
      %v420 = vld [vmem:[%s174 + $0x2c] sm:$0xf]
      %v421 = vld [vmem:[%s174 + $0x30] sm:$0xf]
      %v422 = vld [vmem:[%s174 + $0x34] sm:$0xf]
      %v423 = vld [vmem:[%s174 + $0x38] sm:$0xf]
      %v424 = vld [vmem:[%s174 + $0x3c] sm:$0xf]
      %v649 = vunpack.c.l.b16 %v185
      %v650 = vunpack.c.l.b16 %v186
      %v651 = vunpack.c.l.b16 %v187
      %v652 = vunpack.c.l.b16 %v188
      %v653 = vunpack.c.l.b16 %v189
      %v654 = vunpack.c.l.b16 %v190
      %v655 = vunpack.c.l.b16 %v191
      %v656 = vunpack.c.l.b16 %v192
      %v657 = vunpack.c.l.b16 %v193
      %v658 = vunpack.c.l.b16 %v194
      %v659 = vunpack.c.l.b16 %v195
      %v660 = vunpack.c.l.b16 %v196
      %v661 = vunpack.c.l.b16 %v197
      %v662 = vunpack.c.l.b16 %v198
      %v663 = vunpack.c.l.b16 %v199
      %v664 = vunpack.c.l.b16 %v200
      %v665 = vunpack.c.l.b16 %v201
      %v666 = vunpack.c.l.b16 %v202
      %v667 = vunpack.c.l.b16 %v203
      %v668 = vunpack.c.l.b16 %v204
      %v669 = vunpack.c.l.b16 %v205
      %v670 = vunpack.c.l.b16 %v206
      %v671 = vunpack.c.l.b16 %v207
      %v672 = vunpack.c.l.b16 %v208
      %v673 = vunpack.c.l.b16 %v209
      %v674 = vunpack.c.l.b16 %v210
      %v675 = vunpack.c.l.b16 %v211
      %v676 = vunpack.c.l.b16 %v212
      %v677 = vunpack.c.l.b16 %v213
      %v678 = vunpack.c.l.b16 %v214
      %v679 = vunpack.c.l.b16 %v215
      %v680 = vunpack.c.l.b16 %v216
      %v681 = vunpack.c.l.b16 %v217
      %v682 = vunpack.c.l.b16 %v218
      %v683 = vunpack.c.l.b16 %v219
      %v684 = vunpack.c.l.b16 %v220
      %v685 = vunpack.c.l.b16 %v221
      %v686 = vunpack.c.l.b16 %v222
      %v687 = vunpack.c.l.b16 %v223
      %v688 = vunpack.c.l.b16 %v224
      %v689 = vunpack.c.l.b16 %v225
      %v690 = vunpack.c.l.b16 %v226
      %v691 = vunpack.c.l.b16 %v227
      %v692 = vunpack.c.l.b16 %v228
      %v693 = vunpack.c.l.b16 %v229
      %v694 = vunpack.c.l.b16 %v230
      %v695 = vunpack.c.l.b16 %v231
      %v696 = vunpack.c.l.b16 %v232
      %v697 = vunpack.c.l.b16 %v233
      %v698 = vunpack.c.l.b16 %v234
      %v699 = vunpack.c.l.b16 %v235
      %v700 = vunpack.c.l.b16 %v236
      %v701 = vunpack.c.l.b16 %v237
      %v702 = vunpack.c.l.b16 %v238
      %v703 = vunpack.c.l.b16 %v239
      %v704 = vunpack.c.l.b16 %v240
      %v705 = vunpack.c.l.b16 %v241
      %v706 = vunpack.c.l.b16 %v242
      %v707 = vunpack.c.l.b16 %v243
      %v708 = vunpack.c.l.b16 %v244
      %v709 = vunpack.c.l.b16 %v245
      %v710 = vunpack.c.l.b16 %v246
      %v711 = vunpack.c.l.b16 %v247
      %v712 = vunpack.c.l.b16 %v248
      %v713 = vunpack.c.l.b16 %v249
      %v714 = vunpack.c.l.b16 %v250
      %v715 = vunpack.c.l.b16 %v251
      %v716 = vunpack.c.l.b16 %v252
      %v717 = vunpack.c.l.b16 %v253
      %v718 = vunpack.c.l.b16 %v254
      %v719 = vunpack.c.l.b16 %v255
      %v720 = vunpack.c.l.b16 %v256
      %v721 = vunpack.c.l.b16 %v257
      %v722 = vunpack.c.l.b16 %v258
      %v723 = vunpack.c.l.b16 %v259
      %v724 = vunpack.c.l.b16 %v260
      %v725 = vunpack.c.l.b16 %v261
      %v726 = vunpack.c.l.b16 %v262
      %v727 = vunpack.c.l.b16 %v263
      %v728 = vunpack.c.l.b16 %v264
      %v729 = vunpack.c.l.b16 %v265
      %v730 = vunpack.c.l.b16 %v266
      %v731 = vunpack.c.l.b16 %v267
      %v732 = vunpack.c.l.b16 %v268
      %v733 = vunpack.c.l.b16 %v269
      %v734 = vunpack.c.l.b16 %v270
      %v735 = vunpack.c.l.b16 %v271
      %v736 = vunpack.c.l.b16 %v272
      %v737 = vunpack.c.l.b16 %v273
      %v738 = vunpack.c.l.b16 %v274
      %v739 = vunpack.c.l.b16 %v275
      %v740 = vunpack.c.l.b16 %v276
      %v741 = vunpack.c.l.b16 %v277
      %v742 = vunpack.c.l.b16 %v278
      %v743 = vunpack.c.l.b16 %v279
      %v744 = vunpack.c.l.b16 %v280
      %v745 = vunpack.c.l.b16 %v281
      %v746 = vunpack.c.l.b16 %v282
      %v747 = vunpack.c.l.b16 %v283
      %v748 = vunpack.c.l.b16 %v284
      %v749 = vunpack.c.l.b16 %v285
      %v750 = vunpack.c.l.b16 %v286
      %v751 = vunpack.c.l.b16 %v287
      %v752 = vunpack.c.l.b16 %v288
      %v753 = vunpack.c.l.b16 %v289
      %v754 = vunpack.c.l.b16 %v290
      %v755 = vunpack.c.l.b16 %v291
      %v756 = vunpack.c.l.b16 %v292
      %v757 = vunpack.c.l.b16 %v293
      %v758 = vunpack.c.l.b16 %v294
      %v759 = vunpack.c.l.b16 %v295
      %v760 = vunpack.c.l.b16 %v296
      %v761 = vunpack.c.l.b16 %v297
      %v762 = vunpack.c.l.b16 %v298
      %v763 = vunpack.c.l.b16 %v299
      %v764 = vunpack.c.l.b16 %v300
      %v765 = vunpack.c.l.b16 %v301
      %v766 = vunpack.c.l.b16 %v302
      %v767 = vunpack.c.l.b16 %v303
      %v768 = vunpack.c.l.b16 %v304
      %v769 = vunpack.c.l.b16 %v305
      %v770 = vunpack.c.l.b16 %v306
      %v771 = vunpack.c.l.b16 %v307
      %v772 = vunpack.c.l.b16 %v308
      %v773 = vunpack.c.l.b16 %v309
      %v774 = vunpack.c.l.b16 %v310
      %v775 = vunpack.c.l.b16 %v311
      %v776 = vunpack.c.l.b16 %v312
      %v777 = vunpack.c.l.b16 %v313
      %v778 = vunpack.c.l.b16 %v314
      %v779 = vunpack.c.l.b16 %v315
      %v780 = vunpack.c.l.b16 %v316
      %v781 = vunpack.c.l.b16 %v317
      %v782 = vunpack.c.l.b16 %v318
      %v783 = vunpack.c.l.b16 %v319
      %v784 = vunpack.c.l.b16 %v320
      %v785 = vunpack.c.l.b16 %v321
      %v786 = vunpack.c.l.b16 %v322
      %v787 = vunpack.c.l.b16 %v323
      %v788 = vunpack.c.l.b16 %v324
      %v789 = vunpack.c.l.b16 %v325
      %v790 = vunpack.c.l.b16 %v326
      %v791 = vunpack.c.l.b16 %v327
      %v792 = vunpack.c.l.b16 %v328
      %v793 = vunpack.c.l.b16 %v329
      %v794 = vunpack.c.l.b16 %v330
      %v795 = vunpack.c.l.b16 %v331
      %v796 = vunpack.c.l.b16 %v332
      %v797 = vunpack.c.l.b16 %v333
      %v798 = vunpack.c.l.b16 %v334
      %v799 = vunpack.c.l.b16 %v335
      %v800 = vunpack.c.l.b16 %v336
      %v801 = vunpack.c.l.b16 %v337
      %v802 = vunpack.c.l.b16 %v338
      %v803 = vunpack.c.l.b16 %v339
      %v804 = vunpack.c.l.b16 %v340
      %v805 = vunpack.c.l.b16 %v341
      %v806 = vunpack.c.l.b16 %v342
      %v807 = vunpack.c.l.b16 %v343
      %v808 = vunpack.c.l.b16 %v344
      %v809 = vunpack.c.l.b16 %v345
      %v810 = vunpack.c.l.b16 %v346
      %v811 = vunpack.c.l.b16 %v347
      %v812 = vunpack.c.l.b16 %v348
      %v813 = vunpack.c.l.b16 %v349
      %v814 = vunpack.c.l.b16 %v350
      %v815 = vunpack.c.l.b16 %v351
      %v816 = vunpack.c.l.b16 %v352
      %v817 = vunpack.c.l.b16 %v353
      %v818 = vunpack.c.l.b16 %v354
      %v819 = vunpack.c.l.b16 %v355
      %v820 = vunpack.c.l.b16 %v356
      %v821 = vunpack.c.l.b16 %v357
      %v822 = vunpack.c.l.b16 %v358
      %v823 = vunpack.c.l.b16 %v359
      %v824 = vunpack.c.l.b16 %v360
      %v825 = vunpack.c.l.b16 %v361
      %v826 = vunpack.c.l.b16 %v362
      %v827 = vunpack.c.l.b16 %v363
      %v828 = vunpack.c.l.b16 %v364
      %v829 = vunpack.c.l.b16 %v365
      %v830 = vunpack.c.l.b16 %v366
      %v831 = vunpack.c.l.b16 %v367
      %v832 = vunpack.c.l.b16 %v368
      %v833 = vunpack.c.l.b16 %v369
      %v834 = vunpack.c.l.b16 %v370
      %v835 = vunpack.c.l.b16 %v371
      %v836 = vunpack.c.l.b16 %v372
      %v837 = vunpack.c.l.b16 %v373
      %v838 = vunpack.c.l.b16 %v374
      %v839 = vunpack.c.l.b16 %v375
      %v840 = vunpack.c.l.b16 %v376
      %v841 = vunpack.c.l.b16 %v377
      %v842 = vunpack.c.l.b16 %v378
      %v843 = vunpack.c.l.b16 %v379
      %v844 = vunpack.c.l.b16 %v380
      %v845 = vunpack.c.l.b16 %v381
      %v846 = vunpack.c.l.b16 %v382
      %v847 = vunpack.c.l.b16 %v383
      %v848 = vunpack.c.l.b16 %v384
      %v849 = vunpack.c.l.b16 %v385
      %v850 = vunpack.c.l.b16 %v386
      %v851 = vunpack.c.l.b16 %v387
      %v852 = vunpack.c.l.b16 %v388
      %v853 = vunpack.c.l.b16 %v389
      %v854 = vunpack.c.l.b16 %v390
      %v855 = vunpack.c.l.b16 %v391
      %v856 = vunpack.c.l.b16 %v392
      %v857 = vunpack.c.l.b16 %v393
      %v858 = vunpack.c.l.b16 %v394
      %v859 = vunpack.c.l.b16 %v395
      %v860 = vunpack.c.l.b16 %v396
      %v861 = vunpack.c.l.b16 %v397
      %v862 = vunpack.c.l.b16 %v398
      %v863 = vunpack.c.l.b16 %v399
      %v864 = vunpack.c.l.b16 %v400
      %v865 = vunpack.c.l.b16 %v401
      %v866 = vunpack.c.l.b16 %v402
      %v867 = vunpack.c.l.b16 %v403
      %v868 = vunpack.c.l.b16 %v404
      %v869 = vunpack.c.l.b16 %v405
      %v870 = vunpack.c.l.b16 %v406
      %v871 = vunpack.c.l.b16 %v407
      %v872 = vunpack.c.l.b16 %v408
      %v873 = vpack.c.b16 %v650, %v649
      %v874 = vpack.c.b16 %v652, %v651
      %v875 = vpack.c.b16 %v654, %v653
      %v876 = vpack.c.b16 %v656, %v655
      %v877 = vpack.c.b16 %v658, %v657
      %v878 = vpack.c.b16 %v660, %v659
      %v879 = vpack.c.b16 %v662, %v661
      %v880 = vpack.c.b16 %v664, %v663
      %v881 = vpack.c.b16 %v666, %v665
      %v882 = vpack.c.b16 %v668, %v667
      %v883 = vpack.c.b16 %v670, %v669
      %v884 = vpack.c.b16 %v672, %v671
      %v885 = vpack.c.b16 %v674, %v673
      %v886 = vpack.c.b16 %v676, %v675
      %v887 = vpack.c.b16 %v678, %v677
      %v888 = vpack.c.b16 %v680, %v679
      %v889 = vpack.c.b16 %v682, %v681
      %v890 = vpack.c.b16 %v684, %v683
      %v891 = vpack.c.b16 %v686, %v685
      %v892 = vpack.c.b16 %v688, %v687
      %v893 = vpack.c.b16 %v690, %v689
      %v894 = vpack.c.b16 %v692, %v691
      %v895 = vpack.c.b16 %v694, %v693
      %v896 = vpack.c.b16 %v696, %v695
      %v897 = vpack.c.b16 %v698, %v697
      %v898 = vpack.c.b16 %v700, %v699
      %v899 = vpack.c.b16 %v702, %v701
      %v900 = vpack.c.b16 %v704, %v703
      %v901 = vpack.c.b16 %v706, %v705
      %v902 = vpack.c.b16 %v708, %v707
      %v903 = vpack.c.b16 %v710, %v709
      %v904 = vpack.c.b16 %v712, %v711
      %v905 = vpack.c.b16 %v714, %v713
      %v906 = vpack.c.b16 %v716, %v715
      %v907 = vpack.c.b16 %v718, %v717
      %v908 = vpack.c.b16 %v720, %v719
      %v909 = vpack.c.b16 %v722, %v721
      %v910 = vpack.c.b16 %v724, %v723
      %v911 = vpack.c.b16 %v726, %v725
      %v912 = vpack.c.b16 %v728, %v727
      %v913 = vpack.c.b16 %v730, %v729
      %v914 = vpack.c.b16 %v732, %v731
      %v915 = vpack.c.b16 %v734, %v733
      %v916 = vpack.c.b16 %v736, %v735
      %v917 = vpack.c.b16 %v738, %v737
      %v918 = vpack.c.b16 %v740, %v739
      %v919 = vpack.c.b16 %v742, %v741
      %v920 = vpack.c.b16 %v744, %v743
      %v921 = vpack.c.b16 %v746, %v745
      %v922 = vpack.c.b16 %v748, %v747
      %v923 = vpack.c.b16 %v750, %v749
      %v924 = vpack.c.b16 %v752, %v751
      %v925 = vpack.c.b16 %v754, %v753
      %v926 = vpack.c.b16 %v756, %v755
      %v927 = vpack.c.b16 %v758, %v757
      %v928 = vpack.c.b16 %v760, %v759
      %v929 = vpack.c.b16 %v762, %v761
      %v930 = vpack.c.b16 %v764, %v763
      %v931 = vpack.c.b16 %v766, %v765
      %v932 = vpack.c.b16 %v768, %v767
      %v933 = vpack.c.b16 %v770, %v769
      %v934 = vpack.c.b16 %v772, %v771
      %v935 = vpack.c.b16 %v774, %v773
      %v936 = vpack.c.b16 %v776, %v775
      %v937 = vpack.c.b16 %v778, %v777
      %v938 = vpack.c.b16 %v780, %v779
      %v939 = vpack.c.b16 %v782, %v781
      %v940 = vpack.c.b16 %v784, %v783
      %v941 = vpack.c.b16 %v786, %v785
      %v942 = vpack.c.b16 %v788, %v787
      %v943 = vpack.c.b16 %v790, %v789
      %v944 = vpack.c.b16 %v792, %v791
      %v945 = vpack.c.b16 %v794, %v793
      %v946 = vpack.c.b16 %v796, %v795
      %v947 = vpack.c.b16 %v798, %v797
      %v948 = vpack.c.b16 %v800, %v799
      %v949 = vpack.c.b16 %v802, %v801
      %v950 = vpack.c.b16 %v804, %v803
      %v951 = vpack.c.b16 %v806, %v805
      %v952 = vpack.c.b16 %v808, %v807
      %v953 = vpack.c.b16 %v810, %v809
      %v954 = vpack.c.b16 %v812, %v811
      %v955 = vpack.c.b16 %v814, %v813
      %v956 = vpack.c.b16 %v816, %v815
      %v957 = vpack.c.b16 %v818, %v817
      %v958 = vpack.c.b16 %v820, %v819
      %v959 = vpack.c.b16 %v822, %v821
      %v960 = vpack.c.b16 %v824, %v823
      %v961 = vpack.c.b16 %v826, %v825
      %v962 = vpack.c.b16 %v828, %v827
      %v963 = vpack.c.b16 %v830, %v829
      %v964 = vpack.c.b16 %v832, %v831
      %v965 = vpack.c.b16 %v834, %v833
      %v966 = vpack.c.b16 %v836, %v835
      %v967 = vpack.c.b16 %v838, %v837
      %v968 = vpack.c.b16 %v840, %v839
      %v969 = vpack.c.b16 %v842, %v841
      %v970 = vpack.c.b16 %v844, %v843
      %v971 = vpack.c.b16 %v846, %v845
      %v972 = vpack.c.b16 %v848, %v847
      %v973 = vpack.c.b16 %v850, %v849
      %v974 = vpack.c.b16 %v852, %v851
      %v975 = vpack.c.b16 %v854, %v853
      %v976 = vpack.c.b16 %v856, %v855
      %v977 = vpack.c.b16 %v858, %v857
      %v978 = vpack.c.b16 %v860, %v859
      %v979 = vpack.c.b16 %v862, %v861
      %v980 = vpack.c.b16 %v864, %v863
      %v981 = vpack.c.b16 %v866, %v865
      %v982 = vpack.c.b16 %v868, %v867
      %v983 = vpack.c.b16 %v870, %v869
      %v984 = vpack.c.b16 %v872, %v871
      %v1113 = vunpack.c.l.b16 %v409
      %v1114 = vunpack.c.l.b16 %v410
      %v1115 = vunpack.c.l.b16 %v411
      %v1116 = vunpack.c.l.b16 %v412
      %v1117 = vunpack.c.l.b16 %v413
      %v1118 = vunpack.c.l.b16 %v414
      %v1119 = vunpack.c.l.b16 %v415
      %v1120 = vunpack.c.l.b16 %v416
      %v1121 = vunpack.c.l.b16 %v417
      %v1122 = vunpack.c.l.b16 %v418
      %v1123 = vunpack.c.l.b16 %v419
      %v1124 = vunpack.c.l.b16 %v420
      %v1125 = vunpack.c.l.b16 %v421
      %v1126 = vunpack.c.l.b16 %v422
      %v1127 = vunpack.c.l.b16 %v423
      %v1128 = vunpack.c.l.b16 %v424
      %v1129 = vpack.c.b16 %v1114, %v1113
      %v1130 = vpack.c.b16 %v1116, %v1115
      %v1131 = vpack.c.b16 %v1118, %v1117
      %v1132 = vpack.c.b16 %v1120, %v1119
      %v1133 = vpack.c.b16 %v1122, %v1121
      %v1134 = vpack.c.b16 %v1124, %v1123
      %v1135 = vpack.c.b16 %v1126, %v1125
      %v1136 = vpack.c.b16 %v1128, %v1127
      %1145 = vmatprep.subr.bf16.mxu0 0
      %1146 = vmatpush1.bf16.msra.mxu0 %v1129
      %1147 = vmatprep.subr.bf16.mxu0 0
      %1148 = vmatpush1.bf16.msra.mxu0 %v1130
      %1149 = vmatprep.subr.bf16.mxu0 0
      %1150 = vmatpush1.bf16.msra.mxu0 %v1131
      %1151 = vmatprep.subr.bf16.mxu0 0
      %1152 = vmatpush1.bf16.msra.mxu0 %v1132
      %1153 = vmatprep.subr.bf16.mxu0 0
      %1154 = vmatpush1.bf16.msra.mxu0 %v1133
      %1155 = vmatprep.subr.bf16.mxu0 0
      %1156 = vmatpush1.bf16.msra.mxu0 %v1134
      %1157 = vmatprep.subr.bf16.mxu0 0
      %1158 = vmatpush1.bf16.msra.mxu0 %v1135
      %1159 = vmatprep.subr.bf16.mxu0 0
      %1160 = vmatpush1.bf16.msra.mxu0 %v1136
      %1161 = vmatprep.subr.bf16.mxu0 0
      %1162 = vmatpush1.bf16.msra.mxu0 0
      %1163 = vmatprep.subr.bf16.mxu0 0
      %1164 = vmatpush1.bf16.msra.mxu0 0
      %1165 = vmatprep.subr.bf16.mxu0 0
      %1166 = vmatpush1.bf16.msra.mxu0 0
      %1167 = vmatprep.subr.bf16.mxu0 0
      %1168 = vmatpush1.bf16.msra.mxu0 0
      %1169 = vmatprep.subr.bf16.mxu0 0
      %1170 = vmatpush1.bf16.msra.mxu0 0
      %1171 = vmatprep.subr.bf16.mxu0 0
      %1172 = vmatpush1.bf16.msra.mxu0 0
      %1173 = vmatprep.subr.bf16.mxu0 0
      %1174 = vmatpush1.bf16.msra.mxu0 0
      %1175 = vmatprep.subr.bf16.mxu0 0
      %1176 = vmatpush1.bf16.msra.mxu0 0
      %1177 = vmatprep.mubr.bf16.mxu0 0
      %1178 = vmatmul.mubr.bf16.gmra.mrb[0].mxu0 %v873
      %v1179 = vpop.f32.mrb[0].mxu0
      %v1180 = vadd.f32 0.0, %v1179
      %v1181 = vpop.f32.mrb[0].mxu0
      %v1182 = vpop.f32.mrb[0].mxu0
      %v1183 = vadd.f32 0.0, %v1182
      %v1184 = vpop.f32.mrb[0].mxu0
      %1185 = vmatprep.mubr.bf16.mxu0 0
      %1186 = vmatmul.mubr.bf16.gmra.mrb[0].mxu0 %v874
      %v1187 = vpop.f32.mrb[0].mxu0
      %v1188 = vadd.f32 0.0, %v1187
      %v1189 = vpop.f32.mrb[0].mxu0
      %v1190 = vpop.f32.mrb[0].mxu0
      %v1191 = vadd.f32 0.0, %v1190
      %v1192 = vpop.f32.mrb[0].mxu0
      %1193 = vmatprep.mubr.bf16.mxu0 0
      %1194 = vmatmul.mubr.bf16.gmra.mrb[0].mxu0 %v875
      %v1195 = vpop.f32.mrb[0].mxu0
      %v1196 = vadd.f32 0.0, %v1195
      %v1197 = vpop.f32.mrb[0].mxu0
      %v1198 = vpop.f32.mrb[0].mxu0
      %v1199 = vadd.f32 0.0, %v1198
      %v1200 = vpop.f32.mrb[0].mxu0
      %1201 = vmatprep.mubr.bf16.mxu0 0
      %1202 = vmatmul.mubr.bf16.gmra.mrb[0].mxu0 %v876
      %v1203 = vpop.f32.mrb[0].mxu0
      %v1204 = vadd.f32 0.0, %v1203
      %v1205 = vpop.f32.mrb[0].mxu0
      %v1206 = vpop.f32.mrb[0].mxu0
      %v1207 = vadd.f32 0.0, %v1206
      %v1208 = vpop.f32.mrb[0].mxu0
      %1209 = vmatprep.mubr.bf16.mxu0 0
      %1210 = vmatmul.mubr.bf16.gmra.mrb[0].mxu0 %v877
      %v1211 = vpop.f32.mrb[0].mxu0
      %v1212 = vadd.f32 0.0, %v1211
      %v1213 = vpop.f32.mrb[0].mxu0
      %v1214 = vpop.f32.mrb[0].mxu0
      %v1215 = vadd.f32 0.0, %v1214
      %v1216 = vpop.f32.mrb[0].mxu0
      %1217 = vmatprep.mubr.bf16.mxu0 0
      %1218 = vmatmul.mubr.bf16.gmra.mrb[0].mxu0 %v878
      %v1219 = vpop.f32.mrb[0].mxu0
      %v1220 = vadd.f32 0.0, %v1219
      %v1221 = vpop.f32.mrb[0].mxu0
      %v1222 = vpop.f32.mrb[0].mxu0
      %v1223 = vadd.f32 0.0, %v1222
      %v1224 = vpop.f32.mrb[0].mxu0
      %1225 = vmatprep.mubr.bf16.mxu0 0
      %1226 = vmatmul.mubr.bf16.gmra.mrb[0].mxu0 %v879
      %v1227 = vpop.f32.mrb[0].mxu0
      %v1228 = vadd.f32 0.0, %v1227
      %v1229 = vpop.f32.mrb[0].mxu0
      %v1230 = vpop.f32.mrb[0].mxu0
      %v1231 = vadd.f32 0.0, %v1230
      %v1232 = vpop.f32.mrb[0].mxu0
      %1233 = vmatprep.mubr.bf16.mxu0 0
      %1234 = vmatmul.mubr.bf16.gmra.mrb[0].mxu0 %v880
      %v1235 = vpop.f32.mrb[0].mxu0
      %v1236 = vadd.f32 0.0, %v1235
      %v1237 = vpop.f32.mrb[0].mxu0
      %v1238 = vpop.f32.mrb[0].mxu0
      %v1239 = vadd.f32 0.0, %v1238
      %v1240 = vpop.f32.mrb[0].mxu0
      %1241 = vmatprep.mubr.bf16.mxu0 0
      %1242 = vmatmul.mubr.bf16.gmra.mrb[0].mxu0 %v881
      %v1243 = vpop.f32.mrb[0].mxu0
      %v1244 = vadd.f32 0.0, %v1243
      %v1245 = vpop.f32.mrb[0].mxu0
      %v1246 = vpop.f32.mrb[0].mxu0
      %v1247 = vadd.f32 0.0, %v1246
      %v1248 = vpop.f32.mrb[0].mxu0
      %1249 = vmatprep.mubr.bf16.mxu0 0
      %1250 = vmatmul.mubr.bf16.gmra.mrb[0].mxu0 %v882
      %v1251 = vpop.f32.mrb[0].mxu0
      %v1252 = vadd.f32 0.0, %v1251
      %v1253 = vpop.f32.mrb[0].mxu0
      %v1254 = vpop.f32.mrb[0].mxu0
      %v1255 = vadd.f32 0.0, %v1254
      %v1256 = vpop.f32.mrb[0].mxu0
      %1257 = vmatprep.mubr.bf16.mxu0 0
      %1258 = vmatmul.mubr.bf16.gmra.mrb[0].mxu0 %v883
      %v1259 = vpop.f32.mrb[0].mxu0
      %v1260 = vadd.f32 0.0, %v1259
      %v1261 = vpop.f32.mrb[0].mxu0
      %v1262 = vpop.f32.mrb[0].mxu0
      %v1263 = vadd.f32 0.0, %v1262
      %v1264 = vpop.f32.mrb[0].mxu0
      %1265 = vmatprep.mubr.bf16.mxu0 0
      %1266 = vmatmul.mubr.bf16.gmra.mrb[0].mxu0 %v884
      %v1267 = vpop.f32.mrb[0].mxu0
      %v1268 = vadd.f32 0.0, %v1267
      %v1269 = vpop.f32.mrb[0].mxu0
      %v1270 = vpop.f32.mrb[0].mxu0
      %v1271 = vadd.f32 0.0, %v1270
      %v1272 = vpop.f32.mrb[0].mxu0
      %1273 = vmatprep.mubr.bf16.mxu0 0
      %1274 = vmatmul.mubr.bf16.gmra.mrb[0].mxu0 %v885
      %v1275 = vpop.f32.mrb[0].mxu0
      %v1276 = vadd.f32 0.0, %v1275
      %v1277 = vpop.f32.mrb[0].mxu0
      %v1278 = vpop.f32.mrb[0].mxu0
      %v1279 = vadd.f32 0.0, %v1278
      %v1280 = vpop.f32.mrb[0].mxu0
      %1281 = vmatprep.mubr.bf16.mxu0 0
      %1282 = vmatmul.mubr.bf16.gmra.mrb[0].mxu0 %v886
      %v1283 = vpop.f32.mrb[0].mxu0
      %v1284 = vadd.f32 0.0, %v1283
      %v1285 = vpop.f32.mrb[0].mxu0
      %v1286 = vpop.f32.mrb[0].mxu0
      %v1287 = vadd.f32 0.0, %v1286
      %v1288 = vpop.f32.mrb[0].mxu0
      %1289 = vmatprep.mubr.bf16.mxu0 0
      %1290 = vmatmul.mubr.bf16.gmra.mrb[0].mxu0 %v887
      %v1291 = vpop.f32.mrb[0].mxu0
      %v1292 = vadd.f32 0.0, %v1291
      %v1293 = vpop.f32.mrb[0].mxu0
      %v1294 = vpop.f32.mrb[0].mxu0
      %v1295 = vadd.f32 0.0, %v1294
      %v1296 = vpop.f32.mrb[0].mxu0
      %1297 = vmatprep.mubr.bf16.mxu0 0
      %1298 = vmatmul.mubr.bf16.gmra.mrb[0].mxu0 %v888
      %v1299 = vpop.f32.mrb[0].mxu0
      %v1300 = vadd.f32 0.0, %v1299
      %v1301 = vpop.f32.mrb[0].mxu0
      %v1302 = vpop.f32.mrb[0].mxu0
      %v1303 = vadd.f32 0.0, %v1302
      %v1304 = vpop.f32.mrb[0].mxu0
      %1305 = vmatprep.mubr.bf16.mxu0 0
      %1306 = vmatmul.mubr.bf16.gmra.mrb[0].mxu0 %v889
      %v1307 = vpop.f32.mrb[0].mxu0
      %v1308 = vadd.f32 0.0, %v1307
      %v1309 = vpop.f32.mrb[0].mxu0
      %v1310 = vpop.f32.mrb[0].mxu0
      %v1311 = vadd.f32 0.0, %v1310
      %v1312 = vpop.f32.mrb[0].mxu0
      %1313 = vmatprep.mubr.bf16.mxu0 0
      %1314 = vmatmul.mubr.bf16.gmra.mrb[0].mxu0 %v890
      %v1315 = vpop.f32.mrb[0].mxu0
      %v1316 = vadd.f32 0.0, %v1315
      %v1317 = vpop.f32.mrb[0].mxu0
      %v1318 = vpop.f32.mrb[0].mxu0
      %v1319 = vadd.f32 0.0, %v1318
      %v1320 = vpop.f32.mrb[0].mxu0
      %1321 = vmatprep.mubr.bf16.mxu0 0
      %1322 = vmatmul.mubr.bf16.gmra.mrb[0].mxu0 %v891
      %v1323 = vpop.f32.mrb[0].mxu0
      %v1324 = vadd.f32 0.0, %v1323
      %v1325 = vpop.f32.mrb[0].mxu0
      %v1326 = vpop.f32.mrb[0].mxu0
      %v1327 = vadd.f32 0.0, %v1326
      %v1328 = vpop.f32.mrb[0].mxu0
      %1329 = vmatprep.mubr.bf16.mxu0 0
      %1330 = vmatmul.mubr.bf16.gmra.mrb[0].mxu0 %v892
      %v1331 = vpop.f32.mrb[0].mxu0
      %v1332 = vadd.f32 0.0, %v1331
      %v1333 = vpop.f32.mrb[0].mxu0
      %v1334 = vpop.f32.mrb[0].mxu0
      %v1335 = vadd.f32 0.0, %v1334
      %v1336 = vpop.f32.mrb[0].mxu0
      %1337 = vmatprep.mubr.bf16.mxu0 0
      %1338 = vmatmul.mubr.bf16.gmra.mrb[0].mxu0 %v893
      %v1339 = vpop.f32.mrb[0].mxu0
      %v1340 = vadd.f32 0.0, %v1339
      %v1341 = vpop.f32.mrb[0].mxu0
      %v1342 = vpop.f32.mrb[0].mxu0
      %v1343 = vadd.f32 0.0, %v1342
      %v1344 = vpop.f32.mrb[0].mxu0
      %1345 = vmatprep.mubr.bf16.mxu0 0
      %1346 = vmatmul.mubr.bf16.gmra.mrb[0].mxu0 %v894
      %v1347 = vpop.f32.mrb[0].mxu0
      %v1348 = vadd.f32 0.0, %v1347
      %v1349 = vpop.f32.mrb[0].mxu0
      %v1350 = vpop.f32.mrb[0].mxu0
      %v1351 = vadd.f32 0.0, %v1350
      %v1352 = vpop.f32.mrb[0].mxu0
      %1353 = vmatprep.mubr.bf16.mxu0 0
      %1354 = vmatmul.mubr.bf16.gmra.mrb[0].mxu0 %v895
      %v1355 = vpop.f32.mrb[0].mxu0
      %v1356 = vadd.f32 0.0, %v1355
      %v1357 = vpop.f32.mrb[0].mxu0
      %v1358 = vpop.f32.mrb[0].mxu0
      %v1359 = vadd.f32 0.0, %v1358
      %v1360 = vpop.f32.mrb[0].mxu0
      %1361 = vmatprep.mubr.bf16.mxu0 0
      %1362 = vmatmul.mubr.bf16.gmra.mrb[0].mxu0 %v896
      %v1363 = vpop.f32.mrb[0].mxu0
      %v1364 = vadd.f32 0.0, %v1363
      %v1365 = vpop.f32.mrb[0].mxu0
      %v1366 = vpop.f32.mrb[0].mxu0
      %v1367 = vadd.f32 0.0, %v1366
      %v1368 = vpop.f32.mrb[0].mxu0
      %1369 = vmatprep.mubr.bf16.mxu0 0
      %1370 = vmatmul.mubr.bf16.gmra.mrb[0].mxu0 %v897
      %v1371 = vpop.f32.mrb[0].mxu0
      %v1372 = vadd.f32 0.0, %v1371
      %v1373 = vpop.f32.mrb[0].mxu0
      %v1374 = vpop.f32.mrb[0].mxu0
      %v1375 = vadd.f32 0.0, %v1374
      %v1376 = vpop.f32.mrb[0].mxu0
      %1377 = vmatprep.mubr.bf16.mxu0 0
      %1378 = vmatmul.mubr.bf16.gmra.mrb[0].mxu0 %v898
      %v1379 = vpop.f32.mrb[0].mxu0
      %v1380 = vadd.f32 0.0, %v1379
      %v1381 = vpop.f32.mrb[0].mxu0
      %v1382 = vpop.f32.mrb[0].mxu0
      %v1383 = vadd.f32 0.0, %v1382
      %v1384 = vpop.f32.mrb[0].mxu0
      %1385 = vmatprep.mubr.bf16.mxu0 0
      %1386 = vmatmul.mubr.bf16.gmra.mrb[0].mxu0 %v899
      %v1387 = vpop.f32.mrb[0].mxu0
      %v1388 = vadd.f32 0.0, %v1387
      %v1389 = vpop.f32.mrb[0].mxu0
      %v1390 = vpop.f32.mrb[0].mxu0
      %v1391 = vadd.f32 0.0, %v1390
      %v1392 = vpop.f32.mrb[0].mxu0
      %1393 = vmatprep.mubr.bf16.mxu0 0
      %1394 = vmatmul.mubr.bf16.gmra.mrb[0].mxu0 %v900
      %v1395 = vpop.f32.mrb[0].mxu0
      %v1396 = vadd.f32 0.0, %v1395
      %v1397 = vpop.f32.mrb[0].mxu0
      %v1398 = vpop.f32.mrb[0].mxu0
      %v1399 = vadd.f32 0.0, %v1398
      %v1400 = vpop.f32.mrb[0].mxu0
      %1401 = vmatprep.mubr.bf16.mxu0 0
      %1402 = vmatmul.mubr.bf16.gmra.mrb[0].mxu0 %v901
      %v1403 = vpop.f32.mrb[0].mxu0
      %v1404 = vadd.f32 0.0, %v1403
      %v1405 = vpop.f32.mrb[0].mxu0
      %v1406 = vpop.f32.mrb[0].mxu0
      %v1407 = vadd.f32 0.0, %v1406
      %v1408 = vpop.f32.mrb[0].mxu0
      %1409 = vmatprep.mubr.bf16.mxu0 0
      %1410 = vmatmul.mubr.bf16.gmra.mrb[0].mxu0 %v902
      %v1411 = vpop.f32.mrb[0].mxu0
      %v1412 = vadd.f32 0.0, %v1411
      %v1413 = vpop.f32.mrb[0].mxu0
      %v1414 = vpop.f32.mrb[0].mxu0
      %v1415 = vadd.f32 0.0, %v1414
      %v1416 = vpop.f32.mrb[0].mxu0
      %1417 = vmatprep.mubr.bf16.mxu0 0
      %1418 = vmatmul.mubr.bf16.gmra.mrb[0].mxu0 %v903
      %v1419 = vpop.f32.mrb[0].mxu0
      %v1420 = vadd.f32 0.0, %v1419
      %v1421 = vpop.f32.mrb[0].mxu0
      %v1422 = vpop.f32.mrb[0].mxu0
      %v1423 = vadd.f32 0.0, %v1422
      %v1424 = vpop.f32.mrb[0].mxu0
      %1425 = vmatprep.mubr.bf16.mxu0 0
      %1426 = vmatmul.mubr.bf16.gmra.mrb[0].mxu0 %v904
      %v1427 = vpop.f32.mrb[0].mxu0
      %v1428 = vadd.f32 0.0, %v1427
      %v1429 = vpop.f32.mrb[0].mxu0
      %v1430 = vpop.f32.mrb[0].mxu0
      %v1431 = vadd.f32 0.0, %v1430
      %v1432 = vpop.f32.mrb[0].mxu0
      %1433 = vmatprep.mubr.bf16.mxu0 0
      %1434 = vmatmul.mubr.bf16.gmra.mrb[0].mxu0 %v905
      %v1435 = vpop.f32.mrb[0].mxu0
      %v1436 = vadd.f32 0.0, %v1435
      %v1437 = vpop.f32.mrb[0].mxu0
      %v1438 = vpop.f32.mrb[0].mxu0
      %v1439 = vadd.f32 0.0, %v1438
      %v1440 = vpop.f32.mrb[0].mxu0
      %1441 = vmatprep.mubr.bf16.mxu0 0
      %1442 = vmatmul.mubr.bf16.gmra.mrb[0].mxu0 %v906
      %v1443 = vpop.f32.mrb[0].mxu0
      %v1444 = vadd.f32 0.0, %v1443
      %v1445 = vpop.f32.mrb[0].mxu0
      %v1446 = vpop.f32.mrb[0].mxu0
      %v1447 = vadd.f32 0.0, %v1446
      %v1448 = vpop.f32.mrb[0].mxu0
      %1449 = vmatprep.mubr.bf16.mxu0 0
      %1450 = vmatmul.mubr.bf16.gmra.mrb[0].mxu0 %v907
      %v1451 = vpop.f32.mrb[0].mxu0
      %v1452 = vadd.f32 0.0, %v1451
      %v1453 = vpop.f32.mrb[0].mxu0
      %v1454 = vpop.f32.mrb[0].mxu0
      %v1455 = vadd.f32 0.0, %v1454
      %v1456 = vpop.f32.mrb[0].mxu0
      %1457 = vmatprep.mubr.bf16.mxu0 0
      %1458 = vmatmul.mubr.bf16.gmra.mrb[0].mxu0 %v908
      %v1459 = vpop.f32.mrb[0].mxu0
      %v1460 = vadd.f32 0.0, %v1459
      %v1461 = vpop.f32.mrb[0].mxu0
      %v1462 = vpop.f32.mrb[0].mxu0
      %v1463 = vadd.f32 0.0, %v1462
      %v1464 = vpop.f32.mrb[0].mxu0
      %1465 = vmatprep.mubr.bf16.mxu0 0
      %1466 = vmatmul.mubr.bf16.gmra.mrb[0].mxu0 %v909
      %v1467 = vpop.f32.mrb[0].mxu0
      %v1468 = vadd.f32 0.0, %v1467
      %v1469 = vpop.f32.mrb[0].mxu0
      %v1470 = vpop.f32.mrb[0].mxu0
      %v1471 = vadd.f32 0.0, %v1470
      %v1472 = vpop.f32.mrb[0].mxu0
      %1473 = vmatprep.mubr.bf16.mxu0 0
      %1474 = vmatmul.mubr.bf16.gmra.mrb[0].mxu0 %v910
      %v1475 = vpop.f32.mrb[0].mxu0
      %v1476 = vadd.f32 0.0, %v1475
      %v1477 = vpop.f32.mrb[0].mxu0
      %v1478 = vpop.f32.mrb[0].mxu0
      %v1479 = vadd.f32 0.0, %v1478
      %v1480 = vpop.f32.mrb[0].mxu0
      %1481 = vmatprep.mubr.bf16.mxu0 0
      %1482 = vmatmul.mubr.bf16.gmra.mrb[0].mxu0 %v911
      %v1483 = vpop.f32.mrb[0].mxu0
      %v1484 = vadd.f32 0.0, %v1483
      %v1485 = vpop.f32.mrb[0].mxu0
      %v1486 = vpop.f32.mrb[0].mxu0
      %v1487 = vadd.f32 0.0, %v1486
      %v1488 = vpop.f32.mrb[0].mxu0
      %1489 = vmatprep.mubr.bf16.mxu0 0
      %1490 = vmatmul.mubr.bf16.gmra.mrb[0].mxu0 %v912
      %v1491 = vpop.f32.mrb[0].mxu0
      %v1492 = vadd.f32 0.0, %v1491
      %v1493 = vpop.f32.mrb[0].mxu0
      %v1494 = vpop.f32.mrb[0].mxu0
      %v1495 = vadd.f32 0.0, %v1494
      %v1496 = vpop.f32.mrb[0].mxu0
      %1497 = vmatprep.mubr.bf16.mxu0 0
      %1498 = vmatmul.mubr.bf16.gmra.mrb[0].mxu0 %v913
      %v1499 = vpop.f32.mrb[0].mxu0
      %v1500 = vadd.f32 0.0, %v1499
      %v1501 = vpop.f32.mrb[0].mxu0
      %v1502 = vpop.f32.mrb[0].mxu0
      %v1503 = vadd.f32 0.0, %v1502
      %v1504 = vpop.f32.mrb[0].mxu0
      %1505 = vmatprep.mubr.bf16.mxu0 0
      %1506 = vmatmul.mubr.bf16.gmra.mrb[0].mxu0 %v914
      %v1507 = vpop.f32.mrb[0].mxu0
      %v1508 = vadd.f32 0.0, %v1507
      %v1509 = vpop.f32.mrb[0].mxu0
      %v1510 = vpop.f32.mrb[0].mxu0
      %v1511 = vadd.f32 0.0, %v1510
      %v1512 = vpop.f32.mrb[0].mxu0
      %1513 = vmatprep.mubr.bf16.mxu0 0
      %1514 = vmatmul.mubr.bf16.gmra.mrb[0].mxu0 %v915
      %v1515 = vpop.f32.mrb[0].mxu0
      %v1516 = vadd.f32 0.0, %v1515
      %v1517 = vpop.f32.mrb[0].mxu0
      %v1518 = vpop.f32.mrb[0].mxu0
      %v1519 = vadd.f32 0.0, %v1518
      %v1520 = vpop.f32.mrb[0].mxu0
      %1521 = vmatprep.mubr.bf16.mxu0 0
      %1522 = vmatmul.mubr.bf16.gmra.mrb[0].mxu0 %v916
      %v1523 = vpop.f32.mrb[0].mxu0
      %v1524 = vadd.f32 0.0, %v1523
      %v1525 = vpop.f32.mrb[0].mxu0
      %v1526 = vpop.f32.mrb[0].mxu0
      %v1527 = vadd.f32 0.0, %v1526
      %v1528 = vpop.f32.mrb[0].mxu0
      %1529 = vmatprep.mubr.bf16.mxu0 0
      %1530 = vmatmul.mubr.bf16.gmra.mrb[0].mxu0 %v917
      %v1531 = vpop.f32.mrb[0].mxu0
      %v1532 = vadd.f32 0.0, %v1531
      %v1533 = vpop.f32.mrb[0].mxu0
      %v1534 = vpop.f32.mrb[0].mxu0
      %v1535 = vadd.f32 0.0, %v1534
      %v1536 = vpop.f32.mrb[0].mxu0
      %1537 = vmatprep.mubr.bf16.mxu0 0
      %1538 = vmatmul.mubr.bf16.gmra.mrb[0].mxu0 %v918
      %v1539 = vpop.f32.mrb[0].mxu0
      %v1540 = vadd.f32 0.0, %v1539
      %v1541 = vpop.f32.mrb[0].mxu0
      %v1542 = vpop.f32.mrb[0].mxu0
      %v1543 = vadd.f32 0.0, %v1542
      %v1544 = vpop.f32.mrb[0].mxu0
      %1545 = vmatprep.mubr.bf16.mxu0 0
      %1546 = vmatmul.mubr.bf16.gmra.mrb[0].mxu0 %v919
      %v1547 = vpop.f32.mrb[0].mxu0
      %v1548 = vadd.f32 0.0, %v1547
      %v1549 = vpop.f32.mrb[0].mxu0
      %v1550 = vpop.f32.mrb[0].mxu0
      %v1551 = vadd.f32 0.0, %v1550
      %v1552 = vpop.f32.mrb[0].mxu0
      %1553 = vmatprep.mubr.bf16.mxu0 0
      %1554 = vmatmul.mubr.bf16.gmra.mrb[0].mxu0 %v920
      %v1555 = vpop.f32.mrb[0].mxu0
      %v1556 = vadd.f32 0.0, %v1555
      %v1557 = vpop.f32.mrb[0].mxu0
      %v1558 = vpop.f32.mrb[0].mxu0
      %v1559 = vadd.f32 0.0, %v1558
      %v1560 = vpop.f32.mrb[0].mxu0
      %1561 = vmatprep.mubr.bf16.mxu0 0
      %1562 = vmatmul.mubr.bf16.gmra.mrb[0].mxu0 %v921
      %v1563 = vpop.f32.mrb[0].mxu0
      %v1564 = vadd.f32 0.0, %v1563
      %v1565 = vpop.f32.mrb[0].mxu0
      %v1566 = vpop.f32.mrb[0].mxu0
      %v1567 = vadd.f32 0.0, %v1566
      %v1568 = vpop.f32.mrb[0].mxu0
      %1569 = vmatprep.mubr.bf16.mxu0 0
      %1570 = vmatmul.mubr.bf16.gmra.mrb[0].mxu0 %v922
      %v1571 = vpop.f32.mrb[0].mxu0
      %v1572 = vadd.f32 0.0, %v1571
      %v1573 = vpop.f32.mrb[0].mxu0
      %v1574 = vpop.f32.mrb[0].mxu0
      %v1575 = vadd.f32 0.0, %v1574
      %v1576 = vpop.f32.mrb[0].mxu0
      %1577 = vmatprep.mubr.bf16.mxu0 0
      %1578 = vmatmul.mubr.bf16.gmra.mrb[0].mxu0 %v923
      %v1579 = vpop.f32.mrb[0].mxu0
      %v1580 = vadd.f32 0.0, %v1579
      %v1581 = vpop.f32.mrb[0].mxu0
      %v1582 = vpop.f32.mrb[0].mxu0
      %v1583 = vadd.f32 0.0, %v1582
      %v1584 = vpop.f32.mrb[0].mxu0
      %1585 = vmatprep.mubr.bf16.mxu0 0
      %1586 = vmatmul.mubr.bf16.gmra.mrb[0].mxu0 %v924
      %v1587 = vpop.f32.mrb[0].mxu0
      %v1588 = vadd.f32 0.0, %v1587
      %v1589 = vpop.f32.mrb[0].mxu0
      %v1590 = vpop.f32.mrb[0].mxu0
      %v1591 = vadd.f32 0.0, %v1590
      %v1592 = vpop.f32.mrb[0].mxu0
      %1593 = vmatprep.mubr.bf16.mxu0 0
      %1594 = vmatmul.mubr.bf16.gmra.mrb[0].mxu0 %v925
      %v1595 = vpop.f32.mrb[0].mxu0
      %v1596 = vadd.f32 0.0, %v1595
      %v1597 = vpop.f32.mrb[0].mxu0
      %v1598 = vpop.f32.mrb[0].mxu0
      %v1599 = vadd.f32 0.0, %v1598
      %v1600 = vpop.f32.mrb[0].mxu0
      %1601 = vmatprep.mubr.bf16.mxu0 0
      %1602 = vmatmul.mubr.bf16.gmra.mrb[0].mxu0 %v926
      %v1603 = vpop.f32.mrb[0].mxu0
      %v1604 = vadd.f32 0.0, %v1603
      %v1605 = vpop.f32.mrb[0].mxu0
      %v1606 = vpop.f32.mrb[0].mxu0
      %v1607 = vadd.f32 0.0, %v1606
      %v1608 = vpop.f32.mrb[0].mxu0
      %1609 = vmatprep.mubr.bf16.mxu0 0
      %1610 = vmatmul.mubr.bf16.gmra.mrb[0].mxu0 %v927
      %v1611 = vpop.f32.mrb[0].mxu0
      %v1612 = vadd.f32 0.0, %v1611
      %v1613 = vpop.f32.mrb[0].mxu0
      %v1614 = vpop.f32.mrb[0].mxu0
      %v1615 = vadd.f32 0.0, %v1614
      %v1616 = vpop.f32.mrb[0].mxu0
      %1617 = vmatprep.mubr.bf16.mxu0 0
      %1618 = vmatmul.mubr.bf16.gmra.mrb[0].mxu0 %v928
      %v1619 = vpop.f32.mrb[0].mxu0
      %v1620 = vadd.f32 0.0, %v1619
      %v1621 = vpop.f32.mrb[0].mxu0
      %v1622 = vpop.f32.mrb[0].mxu0
      %v1623 = vadd.f32 0.0, %v1622
      %v1624 = vpop.f32.mrb[0].mxu0
      %1625 = vmatprep.mubr.bf16.mxu0 0
      %1626 = vmatmul.mubr.bf16.gmra.mrb[0].mxu0 %v929
      %v1627 = vpop.f32.mrb[0].mxu0
      %v1628 = vadd.f32 0.0, %v1627
      %v1629 = vpop.f32.mrb[0].mxu0
      %v1630 = vpop.f32.mrb[0].mxu0
      %v1631 = vadd.f32 0.0, %v1630
      %v1632 = vpop.f32.mrb[0].mxu0
      %1633 = vmatprep.mubr.bf16.mxu0 0
      %1634 = vmatmul.mubr.bf16.gmra.mrb[0].mxu0 %v930
      %v1635 = vpop.f32.mrb[0].mxu0
      %v1636 = vadd.f32 0.0, %v1635
      %v1637 = vpop.f32.mrb[0].mxu0
      %v1638 = vpop.f32.mrb[0].mxu0
      %v1639 = vadd.f32 0.0, %v1638
      %v1640 = vpop.f32.mrb[0].mxu0
      %1641 = vmatprep.mubr.bf16.mxu0 0
      %1642 = vmatmul.mubr.bf16.gmra.mrb[0].mxu0 %v931
      %v1643 = vpop.f32.mrb[0].mxu0
      %v1644 = vadd.f32 0.0, %v1643
      %v1645 = vpop.f32.mrb[0].mxu0
      %v1646 = vpop.f32.mrb[0].mxu0
      %v1647 = vadd.f32 0.0, %v1646
      %v1648 = vpop.f32.mrb[0].mxu0
      %1649 = vmatprep.mubr.bf16.mxu0 0
      %1650 = vmatmul.mubr.bf16.gmra.mrb[0].mxu0 %v932
      %v1651 = vpop.f32.mrb[0].mxu0
      %v1652 = vadd.f32 0.0, %v1651
      %v1653 = vpop.f32.mrb[0].mxu0
      %v1654 = vpop.f32.mrb[0].mxu0
      %v1655 = vadd.f32 0.0, %v1654
      %v1656 = vpop.f32.mrb[0].mxu0
      %1657 = vmatprep.mubr.bf16.mxu0 0
      %1658 = vmatmul.mubr.bf16.gmra.mrb[0].mxu0 %v933
      %v1659 = vpop.f32.mrb[0].mxu0
      %v1660 = vadd.f32 0.0, %v1659
      %v1661 = vpop.f32.mrb[0].mxu0
      %v1662 = vpop.f32.mrb[0].mxu0
      %v1663 = vadd.f32 0.0, %v1662
      %v1664 = vpop.f32.mrb[0].mxu0
      %1665 = vmatprep.mubr.bf16.mxu0 0
      %1666 = vmatmul.mubr.bf16.gmra.mrb[0].mxu0 %v934
      %v1667 = vpop.f32.mrb[0].mxu0
      %v1668 = vadd.f32 0.0, %v1667
      %v1669 = vpop.f32.mrb[0].mxu0
      %v1670 = vpop.f32.mrb[0].mxu0
      %v1671 = vadd.f32 0.0, %v1670
      %v1672 = vpop.f32.mrb[0].mxu0
      %1673 = vmatprep.mubr.bf16.mxu0 0
      %1674 = vmatmul.mubr.bf16.gmra.mrb[0].mxu0 %v935
      %v1675 = vpop.f32.mrb[0].mxu0
      %v1676 = vadd.f32 0.0, %v1675
      %v1677 = vpop.f32.mrb[0].mxu0
      %v1678 = vpop.f32.mrb[0].mxu0
      %v1679 = vadd.f32 0.0, %v1678
      %v1680 = vpop.f32.mrb[0].mxu0
      %1681 = vmatprep.mubr.bf16.mxu0 0
      %1682 = vmatmul.mubr.bf16.gmra.mrb[0].mxu0 %v936
      %v1683 = vpop.f32.mrb[0].mxu0
      %v1684 = vadd.f32 0.0, %v1683
      %v1685 = vpop.f32.mrb[0].mxu0
      %v1686 = vpop.f32.mrb[0].mxu0
      %v1687 = vadd.f32 0.0, %v1686
      %v1688 = vpop.f32.mrb[0].mxu0
      %1689 = vmatprep.mubr.bf16.mxu0 0
      %1690 = vmatmul.mubr.bf16.gmra.mrb[0].mxu0 %v937
      %v1691 = vpop.f32.mrb[0].mxu0
      %v1692 = vadd.f32 0.0, %v1691
      %v1693 = vpop.f32.mrb[0].mxu0
      %v1694 = vpop.f32.mrb[0].mxu0
      %v1695 = vadd.f32 0.0, %v1694
      %v1696 = vpop.f32.mrb[0].mxu0
      %1697 = vmatprep.mubr.bf16.mxu0 0
      %1698 = vmatmul.mubr.bf16.gmra.mrb[0].mxu0 %v938
      %v1699 = vpop.f32.mrb[0].mxu0
      %v1700 = vadd.f32 0.0, %v1699
      %v1701 = vpop.f32.mrb[0].mxu0
      %v1702 = vpop.f32.mrb[0].mxu0
      %v1703 = vadd.f32 0.0, %v1702
      %v1704 = vpop.f32.mrb[0].mxu0
      %1705 = vmatprep.mubr.bf16.mxu0 0
      %1706 = vmatmul.mubr.bf16.gmra.mrb[0].mxu0 %v939
      %v1707 = vpop.f32.mrb[0].mxu0
      %v1708 = vadd.f32 0.0, %v1707
      %v1709 = vpop.f32.mrb[0].mxu0
      %v1710 = vpop.f32.mrb[0].mxu0
      %v1711 = vadd.f32 0.0, %v1710
      %v1712 = vpop.f32.mrb[0].mxu0
      %1713 = vmatprep.mubr.bf16.mxu0 0
      %1714 = vmatmul.mubr.bf16.gmra.mrb[0].mxu0 %v940
      %v1715 = vpop.f32.mrb[0].mxu0
      %v1716 = vadd.f32 0.0, %v1715
      %v1717 = vpop.f32.mrb[0].mxu0
      %v1718 = vpop.f32.mrb[0].mxu0
      %v1719 = vadd.f32 0.0, %v1718
      %v1720 = vpop.f32.mrb[0].mxu0
      %1721 = vmatprep.mubr.bf16.mxu0 0
      %1722 = vmatmul.mubr.bf16.gmra.mrb[0].mxu0 %v941
      %v1723 = vpop.f32.mrb[0].mxu0
      %v1724 = vadd.f32 0.0, %v1723
      %v1725 = vpop.f32.mrb[0].mxu0
      %v1726 = vpop.f32.mrb[0].mxu0
      %v1727 = vadd.f32 0.0, %v1726
      %v1728 = vpop.f32.mrb[0].mxu0
      %1729 = vmatprep.mubr.bf16.mxu0 0
      %1730 = vmatmul.mubr.bf16.gmra.mrb[0].mxu0 %v942
      %v1731 = vpop.f32.mrb[0].mxu0
      %v1732 = vadd.f32 0.0, %v1731
      %v1733 = vpop.f32.mrb[0].mxu0
      %v1734 = vpop.f32.mrb[0].mxu0
      %v1735 = vadd.f32 0.0, %v1734
      %v1736 = vpop.f32.mrb[0].mxu0
      %1737 = vmatprep.mubr.bf16.mxu0 0
      %1738 = vmatmul.mubr.bf16.gmra.mrb[0].mxu0 %v943
      %v1739 = vpop.f32.mrb[0].mxu0
      %v1740 = vadd.f32 0.0, %v1739
      %v1741 = vpop.f32.mrb[0].mxu0
      %v1742 = vpop.f32.mrb[0].mxu0
      %v1743 = vadd.f32 0.0, %v1742
      %v1744 = vpop.f32.mrb[0].mxu0
      %1745 = vmatprep.mubr.bf16.mxu0 0
      %1746 = vmatmul.mubr.bf16.gmra.mrb[0].mxu0 %v944
      %v1747 = vpop.f32.mrb[0].mxu0
      %v1748 = vadd.f32 0.0, %v1747
      %v1749 = vpop.f32.mrb[0].mxu0
      %v1750 = vpop.f32.mrb[0].mxu0
      %v1751 = vadd.f32 0.0, %v1750
      %v1752 = vpop.f32.mrb[0].mxu0
      %1753 = vmatprep.mubr.bf16.mxu0 0
      %1754 = vmatmul.mubr.bf16.gmra.mrb[0].mxu0 %v945
      %v1755 = vpop.f32.mrb[0].mxu0
      %v1756 = vadd.f32 0.0, %v1755
      %v1757 = vpop.f32.mrb[0].mxu0
      %v1758 = vpop.f32.mrb[0].mxu0
      %v1759 = vadd.f32 0.0, %v1758
      %v1760 = vpop.f32.mrb[0].mxu0
      %1761 = vmatprep.mubr.bf16.mxu0 0
      %1762 = vmatmul.mubr.bf16.gmra.mrb[0].mxu0 %v946
      %v1763 = vpop.f32.mrb[0].mxu0
      %v1764 = vadd.f32 0.0, %v1763
      %v1765 = vpop.f32.mrb[0].mxu0
      %v1766 = vpop.f32.mrb[0].mxu0
      %v1767 = vadd.f32 0.0, %v1766
      %v1768 = vpop.f32.mrb[0].mxu0
      %1769 = vmatprep.mubr.bf16.mxu0 0
      %1770 = vmatmul.mubr.bf16.gmra.mrb[0].mxu0 %v947
      %v1771 = vpop.f32.mrb[0].mxu0
      %v1772 = vadd.f32 0.0, %v1771
      %v1773 = vpop.f32.mrb[0].mxu0
      %v1774 = vpop.f32.mrb[0].mxu0
      %v1775 = vadd.f32 0.0, %v1774
      %v1776 = vpop.f32.mrb[0].mxu0
      %1777 = vmatprep.mubr.bf16.mxu0 0
      %1778 = vmatmul.mubr.bf16.gmra.mrb[0].mxu0 %v948
      %v1779 = vpop.f32.mrb[0].mxu0
      %v1780 = vadd.f32 0.0, %v1779
      %v1781 = vpop.f32.mrb[0].mxu0
      %v1782 = vpop.f32.mrb[0].mxu0
      %v1783 = vadd.f32 0.0, %v1782
      %v1784 = vpop.f32.mrb[0].mxu0
      %1785 = vmatprep.mubr.bf16.mxu0 0
      %1786 = vmatmul.mubr.bf16.gmra.mrb[0].mxu0 %v949
      %v1787 = vpop.f32.mrb[0].mxu0
      %v1788 = vadd.f32 0.0, %v1787
      %v1789 = vpop.f32.mrb[0].mxu0
      %v1790 = vpop.f32.mrb[0].mxu0
      %v1791 = vadd.f32 0.0, %v1790
      %v1792 = vpop.f32.mrb[0].mxu0
      %1793 = vmatprep.mubr.bf16.mxu0 0
      %1794 = vmatmul.mubr.bf16.gmra.mrb[0].mxu0 %v950
      %v1795 = vpop.f32.mrb[0].mxu0
      %v1796 = vadd.f32 0.0, %v1795
      %v1797 = vpop.f32.mrb[0].mxu0
      %v1798 = vpop.f32.mrb[0].mxu0
      %v1799 = vadd.f32 0.0, %v1798
      %v1800 = vpop.f32.mrb[0].mxu0
      %1801 = vmatprep.mubr.bf16.mxu0 0
      %1802 = vmatmul.mubr.bf16.gmra.mrb[0].mxu0 %v951
      %v1803 = vpop.f32.mrb[0].mxu0
      %v1804 = vadd.f32 0.0, %v1803
      %v1805 = vpop.f32.mrb[0].mxu0
      %v1806 = vpop.f32.mrb[0].mxu0
      %v1807 = vadd.f32 0.0, %v1806
      %v1808 = vpop.f32.mrb[0].mxu0
      %1809 = vmatprep.mubr.bf16.mxu0 0
      %1810 = vmatmul.mubr.bf16.gmra.mrb[0].mxu0 %v952
      %v1811 = vpop.f32.mrb[0].mxu0
      %v1812 = vadd.f32 0.0, %v1811
      %v1813 = vpop.f32.mrb[0].mxu0
      %v1814 = vpop.f32.mrb[0].mxu0
      %v1815 = vadd.f32 0.0, %v1814
      %v1816 = vpop.f32.mrb[0].mxu0
      %1817 = vmatprep.mubr.bf16.mxu0 0
      %1818 = vmatmul.mubr.bf16.gmra.mrb[0].mxu0 %v953
      %v1819 = vpop.f32.mrb[0].mxu0
      %v1820 = vadd.f32 0.0, %v1819
      %v1821 = vpop.f32.mrb[0].mxu0
      %v1822 = vpop.f32.mrb[0].mxu0
      %v1823 = vadd.f32 0.0, %v1822
      %v1824 = vpop.f32.mrb[0].mxu0
      %1825 = vmatprep.mubr.bf16.mxu0 0
      %1826 = vmatmul.mubr.bf16.gmra.mrb[0].mxu0 %v954
      %v1827 = vpop.f32.mrb[0].mxu0
      %v1828 = vadd.f32 0.0, %v1827
      %v1829 = vpop.f32.mrb[0].mxu0
      %v1830 = vpop.f32.mrb[0].mxu0
      %v1831 = vadd.f32 0.0, %v1830
      %v1832 = vpop.f32.mrb[0].mxu0
      %1833 = vmatprep.mubr.bf16.mxu0 0
      %1834 = vmatmul.mubr.bf16.gmra.mrb[0].mxu0 %v955
      %v1835 = vpop.f32.mrb[0].mxu0
      %v1836 = vadd.f32 0.0, %v1835
      %v1837 = vpop.f32.mrb[0].mxu0
      %v1838 = vpop.f32.mrb[0].mxu0
      %v1839 = vadd.f32 0.0, %v1838
      %v1840 = vpop.f32.mrb[0].mxu0
      %1841 = vmatprep.mubr.bf16.mxu0 0
      %1842 = vmatmul.mubr.bf16.gmra.mrb[0].mxu0 %v956
      %v1843 = vpop.f32.mrb[0].mxu0
      %v1844 = vadd.f32 0.0, %v1843
      %v1845 = vpop.f32.mrb[0].mxu0
      %v1846 = vpop.f32.mrb[0].mxu0
      %v1847 = vadd.f32 0.0, %v1846
      %v1848 = vpop.f32.mrb[0].mxu0
      %1849 = vmatprep.mubr.bf16.mxu0 0
      %1850 = vmatmul.mubr.bf16.gmra.mrb[0].mxu0 %v957
      %v1851 = vpop.f32.mrb[0].mxu0
      %v1852 = vadd.f32 0.0, %v1851
      %v1853 = vpop.f32.mrb[0].mxu0
      %v1854 = vpop.f32.mrb[0].mxu0
      %v1855 = vadd.f32 0.0, %v1854
      %v1856 = vpop.f32.mrb[0].mxu0
      %1857 = vmatprep.mubr.bf16.mxu0 0
      %1858 = vmatmul.mubr.bf16.gmra.mrb[0].mxu0 %v958
      %v1859 = vpop.f32.mrb[0].mxu0
      %v1860 = vadd.f32 0.0, %v1859
      %v1861 = vpop.f32.mrb[0].mxu0
      %v1862 = vpop.f32.mrb[0].mxu0
      %v1863 = vadd.f32 0.0, %v1862
      %v1864 = vpop.f32.mrb[0].mxu0
      %1865 = vmatprep.mubr.bf16.mxu0 0
      %1866 = vmatmul.mubr.bf16.gmra.mrb[0].mxu0 %v959
      %v1867 = vpop.f32.mrb[0].mxu0
      %v1868 = vadd.f32 0.0, %v1867
      %v1869 = vpop.f32.mrb[0].mxu0
      %v1870 = vpop.f32.mrb[0].mxu0
      %v1871 = vadd.f32 0.0, %v1870
      %v1872 = vpop.f32.mrb[0].mxu0
      %1873 = vmatprep.mubr.bf16.mxu0 0
      %1874 = vmatmul.mubr.bf16.gmra.mrb[0].mxu0 %v960
      %v1875 = vpop.f32.mrb[0].mxu0
      %v1876 = vadd.f32 0.0, %v1875
      %v1877 = vpop.f32.mrb[0].mxu0
      %v1878 = vpop.f32.mrb[0].mxu0
      %v1879 = vadd.f32 0.0, %v1878
      %v1880 = vpop.f32.mrb[0].mxu0
      %1881 = vmatprep.mubr.bf16.mxu0 0
      %1882 = vmatmul.mubr.bf16.gmra.mrb[0].mxu0 %v961
      %v1883 = vpop.f32.mrb[0].mxu0
      %v1884 = vadd.f32 0.0, %v1883
      %v1885 = vpop.f32.mrb[0].mxu0
      %v1886 = vpop.f32.mrb[0].mxu0
      %v1887 = vadd.f32 0.0, %v1886
      %v1888 = vpop.f32.mrb[0].mxu0
      %1889 = vmatprep.mubr.bf16.mxu0 0
      %1890 = vmatmul.mubr.bf16.gmra.mrb[0].mxu0 %v962
      %v1891 = vpop.f32.mrb[0].mxu0
      %v1892 = vadd.f32 0.0, %v1891
      %v1893 = vpop.f32.mrb[0].mxu0
      %v1894 = vpop.f32.mrb[0].mxu0
      %v1895 = vadd.f32 0.0, %v1894
      %v1896 = vpop.f32.mrb[0].mxu0
      %1897 = vmatprep.mubr.bf16.mxu0 0
      %1898 = vmatmul.mubr.bf16.gmra.mrb[0].mxu0 %v963
      %v1899 = vpop.f32.mrb[0].mxu0
      %v1900 = vadd.f32 0.0, %v1899
      %v1901 = vpop.f32.mrb[0].mxu0
      %v1902 = vpop.f32.mrb[0].mxu0
      %v1903 = vadd.f32 0.0, %v1902
      %v1904 = vpop.f32.mrb[0].mxu0
      %1905 = vmatprep.mubr.bf16.mxu0 0
      %1906 = vmatmul.mubr.bf16.gmra.mrb[0].mxu0 %v964
      %v1907 = vpop.f32.mrb[0].mxu0
      %v1908 = vadd.f32 0.0, %v1907
      %v1909 = vpop.f32.mrb[0].mxu0
      %v1910 = vpop.f32.mrb[0].mxu0
      %v1911 = vadd.f32 0.0, %v1910
      %v1912 = vpop.f32.mrb[0].mxu0
      %1913 = vmatprep.mubr.bf16.mxu0 0
      %1914 = vmatmul.mubr.bf16.gmra.mrb[0].mxu0 %v965
      %v1915 = vpop.f32.mrb[0].mxu0
      %v1916 = vadd.f32 0.0, %v1915
      %v1917 = vpop.f32.mrb[0].mxu0
      %v1918 = vpop.f32.mrb[0].mxu0
      %v1919 = vadd.f32 0.0, %v1918
      %v1920 = vpop.f32.mrb[0].mxu0
      %1921 = vmatprep.mubr.bf16.mxu0 0
      %1922 = vmatmul.mubr.bf16.gmra.mrb[0].mxu0 %v966
      %v1923 = vpop.f32.mrb[0].mxu0
      %v1924 = vadd.f32 0.0, %v1923
      %v1925 = vpop.f32.mrb[0].mxu0
      %v1926 = vpop.f32.mrb[0].mxu0
      %v1927 = vadd.f32 0.0, %v1926
      %v1928 = vpop.f32.mrb[0].mxu0
      %1929 = vmatprep.mubr.bf16.mxu0 0
      %1930 = vmatmul.mubr.bf16.gmra.mrb[0].mxu0 %v967
      %v1931 = vpop.f32.mrb[0].mxu0
      %v1932 = vadd.f32 0.0, %v1931
      %v1933 = vpop.f32.mrb[0].mxu0
      %v1934 = vpop.f32.mrb[0].mxu0
      %v1935 = vadd.f32 0.0, %v1934
      %v1936 = vpop.f32.mrb[0].mxu0
      %1937 = vmatprep.mubr.bf16.mxu0 0
      %1938 = vmatmul.mubr.bf16.gmra.mrb[0].mxu0 %v968
      %v1939 = vpop.f32.mrb[0].mxu0
      %v1940 = vadd.f32 0.0, %v1939
      %v1941 = vpop.f32.mrb[0].mxu0
      %v1942 = vpop.f32.mrb[0].mxu0
      %v1943 = vadd.f32 0.0, %v1942
      %v1944 = vpop.f32.mrb[0].mxu0
      %1945 = vmatprep.mubr.bf16.mxu0 0
      %1946 = vmatmul.mubr.bf16.gmra.mrb[0].mxu0 %v969
      %v1947 = vpop.f32.mrb[0].mxu0
      %v1948 = vadd.f32 0.0, %v1947
      %v1949 = vpop.f32.mrb[0].mxu0
      %v1950 = vpop.f32.mrb[0].mxu0
      %v1951 = vadd.f32 0.0, %v1950
      %v1952 = vpop.f32.mrb[0].mxu0
      %1953 = vmatprep.mubr.bf16.mxu0 0
      %1954 = vmatmul.mubr.bf16.gmra.mrb[0].mxu0 %v970
      %v1955 = vpop.f32.mrb[0].mxu0
      %v1956 = vadd.f32 0.0, %v1955
      %v1957 = vpop.f32.mrb[0].mxu0
      %v1958 = vpop.f32.mrb[0].mxu0
      %v1959 = vadd.f32 0.0, %v1958
      %v1960 = vpop.f32.mrb[0].mxu0
      %1961 = vmatprep.mubr.bf16.mxu0 0
      %1962 = vmatmul.mubr.bf16.gmra.mrb[0].mxu0 %v971
      %v1963 = vpop.f32.mrb[0].mxu0
      %v1964 = vadd.f32 0.0, %v1963
      %v1965 = vpop.f32.mrb[0].mxu0
      %v1966 = vpop.f32.mrb[0].mxu0
      %v1967 = vadd.f32 0.0, %v1966
      %v1968 = vpop.f32.mrb[0].mxu0
      %1969 = vmatprep.mubr.bf16.mxu0 0
      %1970 = vmatmul.mubr.bf16.gmra.mrb[0].mxu0 %v972
      %v1971 = vpop.f32.mrb[0].mxu0
      %v1972 = vadd.f32 0.0, %v1971
      %v1973 = vpop.f32.mrb[0].mxu0
      %v1974 = vpop.f32.mrb[0].mxu0
      %v1975 = vadd.f32 0.0, %v1974
      %v1976 = vpop.f32.mrb[0].mxu0
      %1977 = vmatprep.mubr.bf16.mxu0 0
      %1978 = vmatmul.mubr.bf16.gmra.mrb[0].mxu0 %v973
      %v1979 = vpop.f32.mrb[0].mxu0
      %v1980 = vadd.f32 0.0, %v1979
      %v1981 = vpop.f32.mrb[0].mxu0
      %v1982 = vpop.f32.mrb[0].mxu0
      %v1983 = vadd.f32 0.0, %v1982
      %v1984 = vpop.f32.mrb[0].mxu0
      %1985 = vmatprep.mubr.bf16.mxu0 0
      %1986 = vmatmul.mubr.bf16.gmra.mrb[0].mxu0 %v974
      %v1987 = vpop.f32.mrb[0].mxu0
      %v1988 = vadd.f32 0.0, %v1987
      %v1989 = vpop.f32.mrb[0].mxu0
      %v1990 = vpop.f32.mrb[0].mxu0
      %v1991 = vadd.f32 0.0, %v1990
      %v1992 = vpop.f32.mrb[0].mxu0
      %1993 = vmatprep.mubr.bf16.mxu0 0
      %1994 = vmatmul.mubr.bf16.gmra.mrb[0].mxu0 %v975
      %v1995 = vpop.f32.mrb[0].mxu0
      %v1996 = vadd.f32 0.0, %v1995
      %v1997 = vpop.f32.mrb[0].mxu0
      %v1998 = vpop.f32.mrb[0].mxu0
      %v1999 = vadd.f32 0.0, %v1998
      %v2000 = vpop.f32.mrb[0].mxu0
      %2001 = vmatprep.mubr.bf16.mxu0 0
      %2002 = vmatmul.mubr.bf16.gmra.mrb[0].mxu0 %v976
      %v2003 = vpop.f32.mrb[0].mxu0
      %v2004 = vadd.f32 0.0, %v2003
      %v2005 = vpop.f32.mrb[0].mxu0
      %v2006 = vpop.f32.mrb[0].mxu0
      %v2007 = vadd.f32 0.0, %v2006
      %v2008 = vpop.f32.mrb[0].mxu0
      %2009 = vmatprep.mubr.bf16.mxu0 0
      %2010 = vmatmul.mubr.bf16.gmra.mrb[0].mxu0 %v977
      %v2011 = vpop.f32.mrb[0].mxu0
      %v2012 = vadd.f32 0.0, %v2011
      %v2013 = vpop.f32.mrb[0].mxu0
      %v2014 = vpop.f32.mrb[0].mxu0
      %v2015 = vadd.f32 0.0, %v2014
      %v2016 = vpop.f32.mrb[0].mxu0
      %2017 = vmatprep.mubr.bf16.mxu0 0
      %2018 = vmatmul.mubr.bf16.gmra.mrb[0].mxu0 %v978
      %v2019 = vpop.f32.mrb[0].mxu0
      %v2020 = vadd.f32 0.0, %v2019
      %v2021 = vpop.f32.mrb[0].mxu0
      %v2022 = vpop.f32.mrb[0].mxu0
      %v2023 = vadd.f32 0.0, %v2022
      %v2024 = vpop.f32.mrb[0].mxu0
      %2025 = vmatprep.mubr.bf16.mxu0 0
      %2026 = vmatmul.mubr.bf16.gmra.mrb[0].mxu0 %v979
      %v2027 = vpop.f32.mrb[0].mxu0
      %v2028 = vadd.f32 0.0, %v2027
      %v2029 = vpop.f32.mrb[0].mxu0
      %v2030 = vpop.f32.mrb[0].mxu0
      %v2031 = vadd.f32 0.0, %v2030
      %v2032 = vpop.f32.mrb[0].mxu0
      %2033 = vmatprep.mubr.bf16.mxu0 0
      %2034 = vmatmul.mubr.bf16.gmra.mrb[0].mxu0 %v980
      %v2035 = vpop.f32.mrb[0].mxu0
      %v2036 = vadd.f32 0.0, %v2035
      %v2037 = vpop.f32.mrb[0].mxu0
      %v2038 = vpop.f32.mrb[0].mxu0
      %v2039 = vadd.f32 0.0, %v2038
      %v2040 = vpop.f32.mrb[0].mxu0
      %2041 = vmatprep.mubr.bf16.mxu0 0
      %2042 = vmatmul.mubr.bf16.gmra.mrb[0].mxu0 %v981
      %v2043 = vpop.f32.mrb[0].mxu0
      %v2044 = vadd.f32 0.0, %v2043
      %v2045 = vpop.f32.mrb[0].mxu0
      %v2046 = vpop.f32.mrb[0].mxu0
      %v2047 = vadd.f32 0.0, %v2046
      %v2048 = vpop.f32.mrb[0].mxu0
      %2049 = vmatprep.mubr.bf16.mxu0 0
      %2050 = vmatmul.mubr.bf16.gmra.mrb[0].mxu0 %v982
      %v2051 = vpop.f32.mrb[0].mxu0
      %v2052 = vadd.f32 0.0, %v2051
      %v2053 = vpop.f32.mrb[0].mxu0
      %v2054 = vpop.f32.mrb[0].mxu0
      %v2055 = vadd.f32 0.0, %v2054
      %v2056 = vpop.f32.mrb[0].mxu0
      %2057 = vmatprep.mubr.bf16.mxu0 0
      %2058 = vmatmul.mubr.bf16.gmra.mrb[0].mxu0 %v983
      %v2059 = vpop.f32.mrb[0].mxu0
      %v2060 = vadd.f32 0.0, %v2059
      %v2061 = vpop.f32.mrb[0].mxu0
      %v2062 = vpop.f32.mrb[0].mxu0
      %v2063 = vadd.f32 0.0, %v2062
      %v2064 = vpop.f32.mrb[0].mxu0
      %2065 = vmatprep.mubr.bf16.mxu0 0
      %2066 = vmatmul.mubr.bf16.gmra.mrb[0].mxu0 %v984
      %v2067 = vpop.f32.mrb[0].mxu0
      %v2068 = vadd.f32 0.0, %v2067
      %v2069 = vpop.f32.mrb[0].mxu0
      %v2070 = vpop.f32.mrb[0].mxu0
      %v2071 = vadd.f32 0.0, %v2070
      %v2072 = vpop.f32.mrb[0].mxu0
      %2073 = vdwg.mxu0
      %v2074 = vtanh.pop %v1180
      %v2075 = vtanh.pop %v1183
      %v2076 = vtanh.pop %v1188
      %v2077 = vtanh.pop %v1191
      %v2078 = vtanh.pop %v1196
      %v2079 = vtanh.pop %v1199
      %v2080 = vtanh.pop %v1204
      %v2081 = vtanh.pop %v1207
      %v2082 = vtanh.pop %v1212
      %v2083 = vtanh.pop %v1215
      %v2084 = vtanh.pop %v1220
      %v2085 = vtanh.pop %v1223
      %v2086 = vtanh.pop %v1228
      %v2087 = vtanh.pop %v1231
      %v2088 = vtanh.pop %v1236
      %v2089 = vtanh.pop %v1239
      %v2090 = vtanh.pop %v1244
      %v2091 = vtanh.pop %v1247
      %v2092 = vtanh.pop %v1252
      %v2093 = vtanh.pop %v1255
      %v2094 = vtanh.pop %v1260
      %v2095 = vtanh.pop %v1263
      %v2096 = vtanh.pop %v1268
      %v2097 = vtanh.pop %v1271
      %v2098 = vtanh.pop %v1276
      %v2099 = vtanh.pop %v1279
      %v2100 = vtanh.pop %v1284
      %v2101 = vtanh.pop %v1287
      %v2102 = vtanh.pop %v1292
      %v2103 = vtanh.pop %v1295
      %v2104 = vtanh.pop %v1300
      %v2105 = vtanh.pop %v1303
      %v2106 = vtanh.pop %v1308
      %v2107 = vtanh.pop %v1311
      %v2108 = vtanh.pop %v1316
      %v2109 = vtanh.pop %v1319
      %v2110 = vtanh.pop %v1324
      %v2111 = vtanh.pop %v1327
      %v2112 = vtanh.pop %v1332
      %v2113 = vtanh.pop %v1335
      %v2114 = vtanh.pop %v1340
      %v2115 = vtanh.pop %v1343
      %v2116 = vtanh.pop %v1348
      %v2117 = vtanh.pop %v1351
      %v2118 = vtanh.pop %v1356
      %v2119 = vtanh.pop %v1359
      %v2120 = vtanh.pop %v1364
      %v2121 = vtanh.pop %v1367
      %v2122 = vtanh.pop %v1372
      %v2123 = vtanh.pop %v1375
      %v2124 = vtanh.pop %v1380
      %v2125 = vtanh.pop %v1383
      %v2126 = vtanh.pop %v1388
      %v2127 = vtanh.pop %v1391
      %v2128 = vtanh.pop %v1396
      %v2129 = vtanh.pop %v1399
      %v2130 = vtanh.pop %v1404
      %v2131 = vtanh.pop %v1407
      %v2132 = vtanh.pop %v1412
      %v2133 = vtanh.pop %v1415
      %v2134 = vtanh.pop %v1420
      %v2135 = vtanh.pop %v1423
      %v2136 = vtanh.pop %v1428
      %v2137 = vtanh.pop %v1431
      %v2138 = vtanh.pop %v1436
      %v2139 = vtanh.pop %v1439
      %v2140 = vtanh.pop %v1444
      %v2141 = vtanh.pop %v1447
      %v2142 = vtanh.pop %v1452
      %v2143 = vtanh.pop %v1455
      %v2144 = vtanh.pop %v1460
      %v2145 = vtanh.pop %v1463
      %v2146 = vtanh.pop %v1468
      %v2147 = vtanh.pop %v1471
      %v2148 = vtanh.pop %v1476
      %v2149 = vtanh.pop %v1479
      %v2150 = vtanh.pop %v1484
      %v2151 = vtanh.pop %v1487
      %v2152 = vtanh.pop %v1492
      %v2153 = vtanh.pop %v1495
      %v2154 = vtanh.pop %v1500
      %v2155 = vtanh.pop %v1503
      %v2156 = vtanh.pop %v1508
      %v2157 = vtanh.pop %v1511
      %v2158 = vtanh.pop %v1516
      %v2159 = vtanh.pop %v1519
      %v2160 = vtanh.pop %v1524
      %v2161 = vtanh.pop %v1527
      %v2162 = vtanh.pop %v1532
      %v2163 = vtanh.pop %v1535
      %v2164 = vtanh.pop %v1540
      %v2165 = vtanh.pop %v1543
      %v2166 = vtanh.pop %v1548
      %v2167 = vtanh.pop %v1551
      %v2168 = vtanh.pop %v1556
      %v2169 = vtanh.pop %v1559
      %v2170 = vtanh.pop %v1564
      %v2171 = vtanh.pop %v1567
      %v2172 = vtanh.pop %v1572
      %v2173 = vtanh.pop %v1575
      %v2174 = vtanh.pop %v1580
      %v2175 = vtanh.pop %v1583
      %v2176 = vtanh.pop %v1588
      %v2177 = vtanh.pop %v1591
      %v2178 = vtanh.pop %v1596
      %v2179 = vtanh.pop %v1599
      %v2180 = vtanh.pop %v1604
      %v2181 = vtanh.pop %v1607
      %v2182 = vtanh.pop %v1612
      %v2183 = vtanh.pop %v1615
      %v2184 = vtanh.pop %v1620
      %v2185 = vtanh.pop %v1623
      %v2186 = vtanh.pop %v1628
      %v2187 = vtanh.pop %v1631
      %v2188 = vtanh.pop %v1636
      %v2189 = vtanh.pop %v1639
      %v2190 = vtanh.pop %v1644
      %v2191 = vtanh.pop %v1647
      %v2192 = vtanh.pop %v1652
      %v2193 = vtanh.pop %v1655
      %v2194 = vtanh.pop %v1660
      %v2195 = vtanh.pop %v1663
      %v2196 = vtanh.pop %v1668
      %v2197 = vtanh.pop %v1671
      %v2198 = vtanh.pop %v1676
      %v2199 = vtanh.pop %v1679
      %v2200 = vtanh.pop %v1684
      %v2201 = vtanh.pop %v1687
      %v2202 = vtanh.pop %v1692
      %v2203 = vtanh.pop %v1695
      %v2204 = vtanh.pop %v1700
      %v2205 = vtanh.pop %v1703
      %v2206 = vtanh.pop %v1708
      %v2207 = vtanh.pop %v1711
      %v2208 = vtanh.pop %v1716
      %v2209 = vtanh.pop %v1719
      %v2210 = vtanh.pop %v1724
      %v2211 = vtanh.pop %v1727
      %v2212 = vtanh.pop %v1732
      %v2213 = vtanh.pop %v1735
      %v2214 = vtanh.pop %v1740
      %v2215 = vtanh.pop %v1743
      %v2216 = vtanh.pop %v1748
      %v2217 = vtanh.pop %v1751
      %v2218 = vtanh.pop %v1756
      %v2219 = vtanh.pop %v1759
      %v2220 = vtanh.pop %v1764
      %v2221 = vtanh.pop %v1767
      %v2222 = vtanh.pop %v1772
      %v2223 = vtanh.pop %v1775
      %v2224 = vtanh.pop %v1780
      %v2225 = vtanh.pop %v1783
      %v2226 = vtanh.pop %v1788
      %v2227 = vtanh.pop %v1791
      %v2228 = vtanh.pop %v1796
      %v2229 = vtanh.pop %v1799
      %v2230 = vtanh.pop %v1804
      %v2231 = vtanh.pop %v1807
      %v2232 = vtanh.pop %v1812
      %v2233 = vtanh.pop %v1815
      %v2234 = vtanh.pop %v1820
      %v2235 = vtanh.pop %v1823
      %v2236 = vtanh.pop %v1828
      %v2237 = vtanh.pop %v1831
      %v2238 = vtanh.pop %v1836
      %v2239 = vtanh.pop %v1839
      %v2240 = vtanh.pop %v1844
      %v2241 = vtanh.pop %v1847
      %v2242 = vtanh.pop %v1852
      %v2243 = vtanh.pop %v1855
      %v2244 = vtanh.pop %v1860
      %v2245 = vtanh.pop %v1863
      %v2246 = vtanh.pop %v1868
      %v2247 = vtanh.pop %v1871
      %v2248 = vtanh.pop %v1876
      %v2249 = vtanh.pop %v1879
      %v2250 = vtanh.pop %v1884
      %v2251 = vtanh.pop %v1887
      %v2252 = vtanh.pop %v1892
      %v2253 = vtanh.pop %v1895
      %v2254 = vtanh.pop %v1900
      %v2255 = vtanh.pop %v1903
      %v2256 = vtanh.pop %v1908
      %v2257 = vtanh.pop %v1911
      %v2258 = vtanh.pop %v1916
      %v2259 = vtanh.pop %v1919
      %v2260 = vtanh.pop %v1924
      %v2261 = vtanh.pop %v1927
      %v2262 = vtanh.pop %v1932
      %v2263 = vtanh.pop %v1935
      %v2264 = vtanh.pop %v1940
      %v2265 = vtanh.pop %v1943
      %v2266 = vtanh.pop %v1948
      %v2267 = vtanh.pop %v1951
      %v2268 = vtanh.pop %v1956
      %v2269 = vtanh.pop %v1959
      %v2270 = vtanh.pop %v1964
      %v2271 = vtanh.pop %v1967
      %v2272 = vtanh.pop %v1972
      %v2273 = vtanh.pop %v1975
      %v2274 = vtanh.pop %v1980
      %v2275 = vtanh.pop %v1983
      %v2276 = vtanh.pop %v1988
      %v2277 = vtanh.pop %v1991
      %v2278 = vtanh.pop %v1996
      %v2279 = vtanh.pop %v1999
      %v2280 = vtanh.pop %v2004
      %v2281 = vtanh.pop %v2007
      %v2282 = vtanh.pop %v2012
      %v2283 = vtanh.pop %v2015
      %v2284 = vtanh.pop %v2020
      %v2285 = vtanh.pop %v2023
      %v2286 = vtanh.pop %v2028
      %v2287 = vtanh.pop %v2031
      %v2288 = vtanh.pop %v2036
      %v2289 = vtanh.pop %v2039
      %v2290 = vtanh.pop %v2044
      %v2291 = vtanh.pop %v2047
      %v2292 = vtanh.pop %v2052
      %v2293 = vtanh.pop %v2055
      %v2294 = vtanh.pop %v2060
      %v2295 = vtanh.pop %v2063
      %v2296 = vtanh.pop %v2068
      %v2297 = vtanh.pop %v2071
      %v2298 = vpack.c.bf16 %v2075, %v2074
      %v2299 = vpack.c.bf16 %v2077, %v2076
      %v2300 = vpack.c.bf16 %v2079, %v2078
      %v2301 = vpack.c.bf16 %v2081, %v2080
      %v2302 = vpack.c.bf16 %v2083, %v2082
      %v2303 = vpack.c.bf16 %v2085, %v2084
      %v2304 = vpack.c.bf16 %v2087, %v2086
      %v2305 = vpack.c.bf16 %v2089, %v2088
      %v2306 = vpack.c.bf16 %v2091, %v2090
      %v2307 = vpack.c.bf16 %v2093, %v2092
      %v2308 = vpack.c.bf16 %v2095, %v2094
      %v2309 = vpack.c.bf16 %v2097, %v2096
      %v2310 = vpack.c.bf16 %v2099, %v2098
      %v2311 = vpack.c.bf16 %v2101, %v2100
      %v2312 = vpack.c.bf16 %v2103, %v2102
      %v2313 = vpack.c.bf16 %v2105, %v2104
      %v2314 = vpack.c.bf16 %v2107, %v2106
      %v2315 = vpack.c.bf16 %v2109, %v2108
      %v2316 = vpack.c.bf16 %v2111, %v2110
      %v2317 = vpack.c.bf16 %v2113, %v2112
      %v2318 = vpack.c.bf16 %v2115, %v2114
      %v2319 = vpack.c.bf16 %v2117, %v2116
      %v2320 = vpack.c.bf16 %v2119, %v2118
      %v2321 = vpack.c.bf16 %v2121, %v2120
      %v2322 = vpack.c.bf16 %v2123, %v2122
      %v2323 = vpack.c.bf16 %v2125, %v2124
      %v2324 = vpack.c.bf16 %v2127, %v2126
      %v2325 = vpack.c.bf16 %v2129, %v2128
      %v2326 = vpack.c.bf16 %v2131, %v2130
      %v2327 = vpack.c.bf16 %v2133, %v2132
      %v2328 = vpack.c.bf16 %v2135, %v2134
      %v2329 = vpack.c.bf16 %v2137, %v2136
      %v2330 = vpack.c.bf16 %v2139, %v2138
      %v2331 = vpack.c.bf16 %v2141, %v2140
      %v2332 = vpack.c.bf16 %v2143, %v2142
      %v2333 = vpack.c.bf16 %v2145, %v2144
      %v2334 = vpack.c.bf16 %v2147, %v2146
      %v2335 = vpack.c.bf16 %v2149, %v2148
      %v2336 = vpack.c.bf16 %v2151, %v2150
      %v2337 = vpack.c.bf16 %v2153, %v2152
      %v2338 = vpack.c.bf16 %v2155, %v2154
      %v2339 = vpack.c.bf16 %v2157, %v2156
      %v2340 = vpack.c.bf16 %v2159, %v2158
      %v2341 = vpack.c.bf16 %v2161, %v2160
      %v2342 = vpack.c.bf16 %v2163, %v2162
      %v2343 = vpack.c.bf16 %v2165, %v2164
      %v2344 = vpack.c.bf16 %v2167, %v2166
      %v2345 = vpack.c.bf16 %v2169, %v2168
      %v2346 = vpack.c.bf16 %v2171, %v2170
      %v2347 = vpack.c.bf16 %v2173, %v2172
      %v2348 = vpack.c.bf16 %v2175, %v2174
      %v2349 = vpack.c.bf16 %v2177, %v2176
      %v2350 = vpack.c.bf16 %v2179, %v2178
      %v2351 = vpack.c.bf16 %v2181, %v2180
      %v2352 = vpack.c.bf16 %v2183, %v2182
      %v2353 = vpack.c.bf16 %v2185, %v2184
      %v2354 = vpack.c.bf16 %v2187, %v2186
      %v2355 = vpack.c.bf16 %v2189, %v2188
      %v2356 = vpack.c.bf16 %v2191, %v2190
      %v2357 = vpack.c.bf16 %v2193, %v2192
      %v2358 = vpack.c.bf16 %v2195, %v2194
      %v2359 = vpack.c.bf16 %v2197, %v2196
      %v2360 = vpack.c.bf16 %v2199, %v2198
      %v2361 = vpack.c.bf16 %v2201, %v2200
      %v2362 = vpack.c.bf16 %v2203, %v2202
      %v2363 = vpack.c.bf16 %v2205, %v2204
      %v2364 = vpack.c.bf16 %v2207, %v2206
      %v2365 = vpack.c.bf16 %v2209, %v2208
      %v2366 = vpack.c.bf16 %v2211, %v2210
      %v2367 = vpack.c.bf16 %v2213, %v2212
      %v2368 = vpack.c.bf16 %v2215, %v2214
      %v2369 = vpack.c.bf16 %v2217, %v2216
      %v2370 = vpack.c.bf16 %v2219, %v2218
      %v2371 = vpack.c.bf16 %v2221, %v2220
      %v2372 = vpack.c.bf16 %v2223, %v2222
      %v2373 = vpack.c.bf16 %v2225, %v2224
      %v2374 = vpack.c.bf16 %v2227, %v2226
      %v2375 = vpack.c.bf16 %v2229, %v2228
      %v2376 = vpack.c.bf16 %v2231, %v2230
      %v2377 = vpack.c.bf16 %v2233, %v2232
      %v2378 = vpack.c.bf16 %v2235, %v2234
      %v2379 = vpack.c.bf16 %v2237, %v2236
      %v2380 = vpack.c.bf16 %v2239, %v2238
      %v2381 = vpack.c.bf16 %v2241, %v2240
      %v2382 = vpack.c.bf16 %v2243, %v2242
      %v2383 = vpack.c.bf16 %v2245, %v2244
      %v2384 = vpack.c.bf16 %v2247, %v2246
      %v2385 = vpack.c.bf16 %v2249, %v2248
      %v2386 = vpack.c.bf16 %v2251, %v2250
      %v2387 = vpack.c.bf16 %v2253, %v2252
      %v2388 = vpack.c.bf16 %v2255, %v2254
      %v2389 = vpack.c.bf16 %v2257, %v2256
      %v2390 = vpack.c.bf16 %v2259, %v2258
      %v2391 = vpack.c.bf16 %v2261, %v2260
      %v2392 = vpack.c.bf16 %v2263, %v2262
      %v2393 = vpack.c.bf16 %v2265, %v2264
      %v2394 = vpack.c.bf16 %v2267, %v2266
      %v2395 = vpack.c.bf16 %v2269, %v2268
      %v2396 = vpack.c.bf16 %v2271, %v2270
      %v2397 = vpack.c.bf16 %v2273, %v2272
      %v2398 = vpack.c.bf16 %v2275, %v2274
      %v2399 = vpack.c.bf16 %v2277, %v2276
      %v2400 = vpack.c.bf16 %v2279, %v2278
      %v2401 = vpack.c.bf16 %v2281, %v2280
      %v2402 = vpack.c.bf16 %v2283, %v2282
      %v2403 = vpack.c.bf16 %v2285, %v2284
      %v2404 = vpack.c.bf16 %v2287, %v2286
      %v2405 = vpack.c.bf16 %v2289, %v2288
      %v2406 = vpack.c.bf16 %v2291, %v2290
      %v2407 = vpack.c.bf16 %v2293, %v2292
      %v2408 = vpack.c.bf16 %v2295, %v2294
      %v2409 = vpack.c.bf16 %v2297, %v2296
      %v2522 = vunpack.c.l.b16 %v2298
      %v2523 = vunpack.c.h.b16 %v2298
      %v2524 = vunpack.c.l.b16 %v2299
      %v2525 = vunpack.c.h.b16 %v2299
      %v2526 = vunpack.c.l.b16 %v2300
      %v2527 = vunpack.c.h.b16 %v2300
      %v2528 = vunpack.c.l.b16 %v2301
      %v2529 = vunpack.c.h.b16 %v2301
      %v2530 = vunpack.c.l.b16 %v2302
      %v2531 = vunpack.c.h.b16 %v2302
      %v2532 = vunpack.c.l.b16 %v2303
      %v2533 = vunpack.c.h.b16 %v2303
      %v2534 = vunpack.c.l.b16 %v2304
      %v2535 = vunpack.c.h.b16 %v2304
      %v2536 = vunpack.c.l.b16 %v2305
      %v2537 = vunpack.c.h.b16 %v2305
      %v2538 = vunpack.c.l.b16 %v2306
      %v2539 = vunpack.c.h.b16 %v2306
      %v2540 = vunpack.c.l.b16 %v2307
      %v2541 = vunpack.c.h.b16 %v2307
      %v2542 = vunpack.c.l.b16 %v2308
      %v2543 = vunpack.c.h.b16 %v2308
      %v2544 = vunpack.c.l.b16 %v2309
      %v2545 = vunpack.c.h.b16 %v2309
      %v2546 = vunpack.c.l.b16 %v2310
      %v2547 = vunpack.c.h.b16 %v2310
      %v2548 = vunpack.c.l.b16 %v2311
      %v2549 = vunpack.c.h.b16 %v2311
      %v2550 = vunpack.c.l.b16 %v2312
      %v2551 = vunpack.c.h.b16 %v2312
      %v2552 = vunpack.c.l.b16 %v2313
      %v2553 = vunpack.c.h.b16 %v2313
      %v2554 = vunpack.c.l.b16 %v2314
      %v2555 = vunpack.c.h.b16 %v2314
      %v2556 = vunpack.c.l.b16 %v2315
      %v2557 = vunpack.c.h.b16 %v2315
      %v2558 = vunpack.c.l.b16 %v2316
      %v2559 = vunpack.c.h.b16 %v2316
      %v2560 = vunpack.c.l.b16 %v2317
      %v2561 = vunpack.c.h.b16 %v2317
      %v2562 = vunpack.c.l.b16 %v2318
      %v2563 = vunpack.c.h.b16 %v2318
      %v2564 = vunpack.c.l.b16 %v2319
      %v2565 = vunpack.c.h.b16 %v2319
      %v2566 = vunpack.c.l.b16 %v2320
      %v2567 = vunpack.c.h.b16 %v2320
      %v2568 = vunpack.c.l.b16 %v2321
      %v2569 = vunpack.c.h.b16 %v2321
      %v2570 = vunpack.c.l.b16 %v2322
      %v2571 = vunpack.c.h.b16 %v2322
      %v2572 = vunpack.c.l.b16 %v2323
      %v2573 = vunpack.c.h.b16 %v2323
      %v2574 = vunpack.c.l.b16 %v2324
      %v2575 = vunpack.c.h.b16 %v2324
      %v2576 = vunpack.c.l.b16 %v2325
      %v2577 = vunpack.c.h.b16 %v2325
      %v2578 = vunpack.c.l.b16 %v2326
      %v2579 = vunpack.c.h.b16 %v2326
      %v2580 = vunpack.c.l.b16 %v2327
      %v2581 = vunpack.c.h.b16 %v2327
      %v2582 = vunpack.c.l.b16 %v2328
      %v2583 = vunpack.c.h.b16 %v2328
      %v2584 = vunpack.c.l.b16 %v2329
      %v2585 = vunpack.c.h.b16 %v2329
      %v2586 = vunpack.c.l.b16 %v2330
      %v2587 = vunpack.c.h.b16 %v2330
      %v2588 = vunpack.c.l.b16 %v2331
      %v2589 = vunpack.c.h.b16 %v2331
      %v2590 = vunpack.c.l.b16 %v2332
      %v2591 = vunpack.c.h.b16 %v2332
      %v2592 = vunpack.c.l.b16 %v2333
      %v2593 = vunpack.c.h.b16 %v2333
      %v2594 = vunpack.c.l.b16 %v2334
      %v2595 = vunpack.c.h.b16 %v2334
      %v2596 = vunpack.c.l.b16 %v2335
      %v2597 = vunpack.c.h.b16 %v2335
      %v2598 = vunpack.c.l.b16 %v2336
      %v2599 = vunpack.c.h.b16 %v2336
      %v2600 = vunpack.c.l.b16 %v2337
      %v2601 = vunpack.c.h.b16 %v2337
      %v2602 = vunpack.c.l.b16 %v2338
      %v2603 = vunpack.c.h.b16 %v2338
      %v2604 = vunpack.c.l.b16 %v2339
      %v2605 = vunpack.c.h.b16 %v2339
      %v2606 = vunpack.c.l.b16 %v2340
      %v2607 = vunpack.c.h.b16 %v2340
      %v2608 = vunpack.c.l.b16 %v2341
      %v2609 = vunpack.c.h.b16 %v2341
      %v2610 = vunpack.c.l.b16 %v2342
      %v2611 = vunpack.c.h.b16 %v2342
      %v2612 = vunpack.c.l.b16 %v2343
      %v2613 = vunpack.c.h.b16 %v2343
      %v2614 = vunpack.c.l.b16 %v2344
      %v2615 = vunpack.c.h.b16 %v2344
      %v2616 = vunpack.c.l.b16 %v2345
      %v2617 = vunpack.c.h.b16 %v2345
      %v2618 = vunpack.c.l.b16 %v2346
      %v2619 = vunpack.c.h.b16 %v2346
      %v2620 = vunpack.c.l.b16 %v2347
      %v2621 = vunpack.c.h.b16 %v2347
      %v2622 = vunpack.c.l.b16 %v2348
      %v2623 = vunpack.c.h.b16 %v2348
      %v2624 = vunpack.c.l.b16 %v2349
      %v2625 = vunpack.c.h.b16 %v2349
      %v2626 = vunpack.c.l.b16 %v2350
      %v2627 = vunpack.c.h.b16 %v2350
      %v2628 = vunpack.c.l.b16 %v2351
      %v2629 = vunpack.c.h.b16 %v2351
      %v2630 = vunpack.c.l.b16 %v2352
      %v2631 = vunpack.c.h.b16 %v2352
      %v2632 = vunpack.c.l.b16 %v2353
      %v2633 = vunpack.c.h.b16 %v2353
      %v2634 = vunpack.c.l.b16 %v2354
      %v2635 = vunpack.c.h.b16 %v2354
      %v2636 = vunpack.c.l.b16 %v2355
      %v2637 = vunpack.c.h.b16 %v2355
      %v2638 = vunpack.c.l.b16 %v2356
      %v2639 = vunpack.c.h.b16 %v2356
      %v2640 = vunpack.c.l.b16 %v2357
      %v2641 = vunpack.c.h.b16 %v2357
      %v2642 = vunpack.c.l.b16 %v2358
      %v2643 = vunpack.c.h.b16 %v2358
      %v2644 = vunpack.c.l.b16 %v2359
      %v2645 = vunpack.c.h.b16 %v2359
      %v2646 = vunpack.c.l.b16 %v2360
      %v2647 = vunpack.c.h.b16 %v2360
      %v2648 = vunpack.c.l.b16 %v2361
      %v2649 = vunpack.c.h.b16 %v2361
      %v2650 = vunpack.c.l.b16 %v2362
      %v2651 = vunpack.c.h.b16 %v2362
      %v2652 = vunpack.c.l.b16 %v2363
      %v2653 = vunpack.c.h.b16 %v2363
      %v2654 = vunpack.c.l.b16 %v2364
      %v2655 = vunpack.c.h.b16 %v2364
      %v2656 = vunpack.c.l.b16 %v2365
      %v2657 = vunpack.c.h.b16 %v2365
      %v2658 = vunpack.c.l.b16 %v2366
      %v2659 = vunpack.c.h.b16 %v2366
      %v2660 = vunpack.c.l.b16 %v2367
      %v2661 = vunpack.c.h.b16 %v2367
      %v2662 = vunpack.c.l.b16 %v2368
      %v2663 = vunpack.c.h.b16 %v2368
      %v2664 = vunpack.c.l.b16 %v2369
      %v2665 = vunpack.c.h.b16 %v2369
      %v2666 = vunpack.c.l.b16 %v2370
      %v2667 = vunpack.c.h.b16 %v2370
      %v2668 = vunpack.c.l.b16 %v2371
      %v2669 = vunpack.c.h.b16 %v2371
      %v2670 = vunpack.c.l.b16 %v2372
      %v2671 = vunpack.c.h.b16 %v2372
      %v2672 = vunpack.c.l.b16 %v2373
      %v2673 = vunpack.c.h.b16 %v2373
      %v2674 = vunpack.c.l.b16 %v2374
      %v2675 = vunpack.c.h.b16 %v2374
      %v2676 = vunpack.c.l.b16 %v2375
      %v2677 = vunpack.c.h.b16 %v2375
      %v2678 = vunpack.c.l.b16 %v2376
      %v2679 = vunpack.c.h.b16 %v2376
      %v2680 = vunpack.c.l.b16 %v2377
      %v2681 = vunpack.c.h.b16 %v2377
      %v2682 = vunpack.c.l.b16 %v2378
      %v2683 = vunpack.c.h.b16 %v2378
      %v2684 = vunpack.c.l.b16 %v2379
      %v2685 = vunpack.c.h.b16 %v2379
      %v2686 = vunpack.c.l.b16 %v2380
      %v2687 = vunpack.c.h.b16 %v2380
      %v2688 = vunpack.c.l.b16 %v2381
      %v2689 = vunpack.c.h.b16 %v2381
      %v2690 = vunpack.c.l.b16 %v2382
      %v2691 = vunpack.c.h.b16 %v2382
      %v2692 = vunpack.c.l.b16 %v2383
      %v2693 = vunpack.c.h.b16 %v2383
      %v2694 = vunpack.c.l.b16 %v2384
      %v2695 = vunpack.c.h.b16 %v2384
      %v2696 = vunpack.c.l.b16 %v2385
      %v2697 = vunpack.c.h.b16 %v2385
      %v2698 = vunpack.c.l.b16 %v2386
      %v2699 = vunpack.c.h.b16 %v2386
      %v2700 = vunpack.c.l.b16 %v2387
      %v2701 = vunpack.c.h.b16 %v2387
      %v2702 = vunpack.c.l.b16 %v2388
      %v2703 = vunpack.c.h.b16 %v2388
      %v2704 = vunpack.c.l.b16 %v2389
      %v2705 = vunpack.c.h.b16 %v2389
      %v2706 = vunpack.c.l.b16 %v2390
      %v2707 = vunpack.c.h.b16 %v2390
      %v2708 = vunpack.c.l.b16 %v2391
      %v2709 = vunpack.c.h.b16 %v2391
      %v2710 = vunpack.c.l.b16 %v2392
      %v2711 = vunpack.c.h.b16 %v2392
      %v2712 = vunpack.c.l.b16 %v2393
      %v2713 = vunpack.c.h.b16 %v2393
      %v2714 = vunpack.c.l.b16 %v2394
      %v2715 = vunpack.c.h.b16 %v2394
      %v2716 = vunpack.c.l.b16 %v2395
      %v2717 = vunpack.c.h.b16 %v2395
      %v2718 = vunpack.c.l.b16 %v2396
      %v2719 = vunpack.c.h.b16 %v2396
      %v2720 = vunpack.c.l.b16 %v2397
      %v2721 = vunpack.c.h.b16 %v2397
      %v2722 = vunpack.c.l.b16 %v2398
      %v2723 = vunpack.c.h.b16 %v2398
      %v2724 = vunpack.c.l.b16 %v2399
      %v2725 = vunpack.c.h.b16 %v2399
      %v2726 = vunpack.c.l.b16 %v2400
      %v2727 = vunpack.c.h.b16 %v2400
      %v2728 = vunpack.c.l.b16 %v2401
      %v2729 = vunpack.c.h.b16 %v2401
      %v2730 = vunpack.c.l.b16 %v2402
      %v2731 = vunpack.c.h.b16 %v2402
      %v2732 = vunpack.c.l.b16 %v2403
      %v2733 = vunpack.c.h.b16 %v2403
      %v2734 = vunpack.c.l.b16 %v2404
      %v2735 = vunpack.c.h.b16 %v2404
      %v2736 = vunpack.c.l.b16 %v2405
      %v2737 = vunpack.c.h.b16 %v2405
      %v2738 = vunpack.c.l.b16 %v2406
      %v2739 = vunpack.c.h.b16 %v2406
      %v2740 = vunpack.c.l.b16 %v2407
      %v2741 = vunpack.c.h.b16 %v2407
      %v2742 = vunpack.c.l.b16 %v2408
      %v2743 = vunpack.c.h.b16 %v2408
      %v2744 = vunpack.c.l.b16 %v2409
      %v2745 = vunpack.c.h.b16 %v2409
      %v2746 = vpack.c.b16 %v2522, %v2522
      %v2747 = vpack.c.b16 %v2523, %v2523
      %v2748 = vpack.c.b16 %v2524, %v2524
      %v2749 = vpack.c.b16 %v2525, %v2525
      %v2750 = vpack.c.b16 %v2526, %v2526
      %v2751 = vpack.c.b16 %v2527, %v2527
      %v2752 = vpack.c.b16 %v2528, %v2528
      %v2753 = vpack.c.b16 %v2529, %v2529
      %v2754 = vpack.c.b16 %v2530, %v2530
      %v2755 = vpack.c.b16 %v2531, %v2531
      %v2756 = vpack.c.b16 %v2532, %v2532
      %v2757 = vpack.c.b16 %v2533, %v2533
      %v2758 = vpack.c.b16 %v2534, %v2534
      %v2759 = vpack.c.b16 %v2535, %v2535
      %v2760 = vpack.c.b16 %v2536, %v2536
      %v2761 = vpack.c.b16 %v2537, %v2537
      %v2762 = vpack.c.b16 %v2538, %v2538
      %v2763 = vpack.c.b16 %v2539, %v2539
      %v2764 = vpack.c.b16 %v2540, %v2540
      %v2765 = vpack.c.b16 %v2541, %v2541
      %v2766 = vpack.c.b16 %v2542, %v2542
      %v2767 = vpack.c.b16 %v2543, %v2543
      %v2768 = vpack.c.b16 %v2544, %v2544
      %v2769 = vpack.c.b16 %v2545, %v2545
      %v2770 = vpack.c.b16 %v2546, %v2546
      %v2771 = vpack.c.b16 %v2547, %v2547
      %v2772 = vpack.c.b16 %v2548, %v2548
      %v2773 = vpack.c.b16 %v2549, %v2549
      %v2774 = vpack.c.b16 %v2550, %v2550
      %v2775 = vpack.c.b16 %v2551, %v2551
      %v2776 = vpack.c.b16 %v2552, %v2552
      %v2777 = vpack.c.b16 %v2553, %v2553
      %v2778 = vpack.c.b16 %v2554, %v2554
      %v2779 = vpack.c.b16 %v2555, %v2555
      %v2780 = vpack.c.b16 %v2556, %v2556
      %v2781 = vpack.c.b16 %v2557, %v2557
      %v2782 = vpack.c.b16 %v2558, %v2558
      %v2783 = vpack.c.b16 %v2559, %v2559
      %v2784 = vpack.c.b16 %v2560, %v2560
      %v2785 = vpack.c.b16 %v2561, %v2561
      %v2786 = vpack.c.b16 %v2562, %v2562
      %v2787 = vpack.c.b16 %v2563, %v2563
      %v2788 = vpack.c.b16 %v2564, %v2564
      %v2789 = vpack.c.b16 %v2565, %v2565
      %v2790 = vpack.c.b16 %v2566, %v2566
      %v2791 = vpack.c.b16 %v2567, %v2567
      %v2792 = vpack.c.b16 %v2568, %v2568
      %v2793 = vpack.c.b16 %v2569, %v2569
      %v2794 = vpack.c.b16 %v2570, %v2570
      %v2795 = vpack.c.b16 %v2571, %v2571
      %v2796 = vpack.c.b16 %v2572, %v2572
      %v2797 = vpack.c.b16 %v2573, %v2573
      %v2798 = vpack.c.b16 %v2574, %v2574
      %v2799 = vpack.c.b16 %v2575, %v2575
      %v2800 = vpack.c.b16 %v2576, %v2576
      %v2801 = vpack.c.b16 %v2577, %v2577
      %v2802 = vpack.c.b16 %v2578, %v2578
      %v2803 = vpack.c.b16 %v2579, %v2579
      %v2804 = vpack.c.b16 %v2580, %v2580
      %v2805 = vpack.c.b16 %v2581, %v2581
      %v2806 = vpack.c.b16 %v2582, %v2582
      %v2807 = vpack.c.b16 %v2583, %v2583
      %v2808 = vpack.c.b16 %v2584, %v2584
      %v2809 = vpack.c.b16 %v2585, %v2585
      %v2810 = vpack.c.b16 %v2586, %v2586
      %v2811 = vpack.c.b16 %v2587, %v2587
      %v2812 = vpack.c.b16 %v2588, %v2588
      %v2813 = vpack.c.b16 %v2589, %v2589
      %v2814 = vpack.c.b16 %v2590, %v2590
      %v2815 = vpack.c.b16 %v2591, %v2591
      %v2816 = vpack.c.b16 %v2592, %v2592
      %v2817 = vpack.c.b16 %v2593, %v2593
      %v2818 = vpack.c.b16 %v2594, %v2594
      %v2819 = vpack.c.b16 %v2595, %v2595
      %v2820 = vpack.c.b16 %v2596, %v2596
      %v2821 = vpack.c.b16 %v2597, %v2597
      %v2822 = vpack.c.b16 %v2598, %v2598
      %v2823 = vpack.c.b16 %v2599, %v2599
      %v2824 = vpack.c.b16 %v2600, %v2600
      %v2825 = vpack.c.b16 %v2601, %v2601
      %v2826 = vpack.c.b16 %v2602, %v2602
      %v2827 = vpack.c.b16 %v2603, %v2603
      %v2828 = vpack.c.b16 %v2604, %v2604
      %v2829 = vpack.c.b16 %v2605, %v2605
      %v2830 = vpack.c.b16 %v2606, %v2606
      %v2831 = vpack.c.b16 %v2607, %v2607
      %v2832 = vpack.c.b16 %v2608, %v2608
      %v2833 = vpack.c.b16 %v2609, %v2609
      %v2834 = vpack.c.b16 %v2610, %v2610
      %v2835 = vpack.c.b16 %v2611, %v2611
      %v2836 = vpack.c.b16 %v2612, %v2612
      %v2837 = vpack.c.b16 %v2613, %v2613
      %v2838 = vpack.c.b16 %v2614, %v2614
      %v2839 = vpack.c.b16 %v2615, %v2615
      %v2840 = vpack.c.b16 %v2616, %v2616
      %v2841 = vpack.c.b16 %v2617, %v2617
      %v2842 = vpack.c.b16 %v2618, %v2618
      %v2843 = vpack.c.b16 %v2619, %v2619
      %v2844 = vpack.c.b16 %v2620, %v2620
      %v2845 = vpack.c.b16 %v2621, %v2621
      %v2846 = vpack.c.b16 %v2622, %v2622
      %v2847 = vpack.c.b16 %v2623, %v2623
      %v2848 = vpack.c.b16 %v2624, %v2624
      %v2849 = vpack.c.b16 %v2625, %v2625
      %v2850 = vpack.c.b16 %v2626, %v2626
      %v2851 = vpack.c.b16 %v2627, %v2627
      %v2852 = vpack.c.b16 %v2628, %v2628
      %v2853 = vpack.c.b16 %v2629, %v2629
      %v2854 = vpack.c.b16 %v2630, %v2630
      %v2855 = vpack.c.b16 %v2631, %v2631
      %v2856 = vpack.c.b16 %v2632, %v2632
      %v2857 = vpack.c.b16 %v2633, %v2633
      %v2858 = vpack.c.b16 %v2634, %v2634
      %v2859 = vpack.c.b16 %v2635, %v2635
      %v2860 = vpack.c.b16 %v2636, %v2636
      %v2861 = vpack.c.b16 %v2637, %v2637
      %v2862 = vpack.c.b16 %v2638, %v2638
      %v2863 = vpack.c.b16 %v2639, %v2639
      %v2864 = vpack.c.b16 %v2640, %v2640
      %v2865 = vpack.c.b16 %v2641, %v2641
      %v2866 = vpack.c.b16 %v2642, %v2642
      %v2867 = vpack.c.b16 %v2643, %v2643
      %v2868 = vpack.c.b16 %v2644, %v2644
      %v2869 = vpack.c.b16 %v2645, %v2645
      %v2870 = vpack.c.b16 %v2646, %v2646
      %v2871 = vpack.c.b16 %v2647, %v2647
      %v2872 = vpack.c.b16 %v2648, %v2648
      %v2873 = vpack.c.b16 %v2649, %v2649
      %v2874 = vpack.c.b16 %v2650, %v2650
      %v2875 = vpack.c.b16 %v2651, %v2651
      %v2876 = vpack.c.b16 %v2652, %v2652
      %v2877 = vpack.c.b16 %v2653, %v2653
      %v2878 = vpack.c.b16 %v2654, %v2654
      %v2879 = vpack.c.b16 %v2655, %v2655
      %v2880 = vpack.c.b16 %v2656, %v2656
      %v2881 = vpack.c.b16 %v2657, %v2657
      %v2882 = vpack.c.b16 %v2658, %v2658
      %v2883 = vpack.c.b16 %v2659, %v2659
      %v2884 = vpack.c.b16 %v2660, %v2660
      %v2885 = vpack.c.b16 %v2661, %v2661
      %v2886 = vpack.c.b16 %v2662, %v2662
      %v2887 = vpack.c.b16 %v2663, %v2663
      %v2888 = vpack.c.b16 %v2664, %v2664
      %v2889 = vpack.c.b16 %v2665, %v2665
      %v2890 = vpack.c.b16 %v2666, %v2666
      %v2891 = vpack.c.b16 %v2667, %v2667
      %v2892 = vpack.c.b16 %v2668, %v2668
      %v2893 = vpack.c.b16 %v2669, %v2669
      %v2894 = vpack.c.b16 %v2670, %v2670
      %v2895 = vpack.c.b16 %v2671, %v2671
      %v2896 = vpack.c.b16 %v2672, %v2672
      %v2897 = vpack.c.b16 %v2673, %v2673
      %v2898 = vpack.c.b16 %v2674, %v2674
      %v2899 = vpack.c.b16 %v2675, %v2675
      %v2900 = vpack.c.b16 %v2676, %v2676
      %v2901 = vpack.c.b16 %v2677, %v2677
      %v2902 = vpack.c.b16 %v2678, %v2678
      %v2903 = vpack.c.b16 %v2679, %v2679
      %v2904 = vpack.c.b16 %v2680, %v2680
      %v2905 = vpack.c.b16 %v2681, %v2681
      %v2906 = vpack.c.b16 %v2682, %v2682
      %v2907 = vpack.c.b16 %v2683, %v2683
      %v2908 = vpack.c.b16 %v2684, %v2684
      %v2909 = vpack.c.b16 %v2685, %v2685
      %v2910 = vpack.c.b16 %v2686, %v2686
      %v2911 = vpack.c.b16 %v2687, %v2687
      %v2912 = vpack.c.b16 %v2688, %v2688
      %v2913 = vpack.c.b16 %v2689, %v2689
      %v2914 = vpack.c.b16 %v2690, %v2690
      %v2915 = vpack.c.b16 %v2691, %v2691
      %v2916 = vpack.c.b16 %v2692, %v2692
      %v2917 = vpack.c.b16 %v2693, %v2693
      %v2918 = vpack.c.b16 %v2694, %v2694
      %v2919 = vpack.c.b16 %v2695, %v2695
      %v2920 = vpack.c.b16 %v2696, %v2696
      %v2921 = vpack.c.b16 %v2697, %v2697
      %v2922 = vpack.c.b16 %v2698, %v2698
      %v2923 = vpack.c.b16 %v2699, %v2699
      %v2924 = vpack.c.b16 %v2700, %v2700
      %v2925 = vpack.c.b16 %v2701, %v2701
      %v2926 = vpack.c.b16 %v2702, %v2702
      %v2927 = vpack.c.b16 %v2703, %v2703
      %v2928 = vpack.c.b16 %v2704, %v2704
      %v2929 = vpack.c.b16 %v2705, %v2705
      %v2930 = vpack.c.b16 %v2706, %v2706
      %v2931 = vpack.c.b16 %v2707, %v2707
      %v2932 = vpack.c.b16 %v2708, %v2708
      %v2933 = vpack.c.b16 %v2709, %v2709
      %v2934 = vpack.c.b16 %v2710, %v2710
      %v2935 = vpack.c.b16 %v2711, %v2711
      %v2936 = vpack.c.b16 %v2712, %v2712
      %v2937 = vpack.c.b16 %v2713, %v2713
      %v2938 = vpack.c.b16 %v2714, %v2714
      %v2939 = vpack.c.b16 %v2715, %v2715
      %v2940 = vpack.c.b16 %v2716, %v2716
      %v2941 = vpack.c.b16 %v2717, %v2717
      %v2942 = vpack.c.b16 %v2718, %v2718
      %v2943 = vpack.c.b16 %v2719, %v2719
      %v2944 = vpack.c.b16 %v2720, %v2720
      %v2945 = vpack.c.b16 %v2721, %v2721
      %v2946 = vpack.c.b16 %v2722, %v2722
      %v2947 = vpack.c.b16 %v2723, %v2723
      %v2948 = vpack.c.b16 %v2724, %v2724
      %v2949 = vpack.c.b16 %v2725, %v2725
      %v2950 = vpack.c.b16 %v2726, %v2726
      %v2951 = vpack.c.b16 %v2727, %v2727
      %v2952 = vpack.c.b16 %v2728, %v2728
      %v2953 = vpack.c.b16 %v2729, %v2729
      %v2954 = vpack.c.b16 %v2730, %v2730
      %v2955 = vpack.c.b16 %v2731, %v2731
      %v2956 = vpack.c.b16 %v2732, %v2732
      %v2957 = vpack.c.b16 %v2733, %v2733
      %v2958 = vpack.c.b16 %v2734, %v2734
      %v2959 = vpack.c.b16 %v2735, %v2735
      %v2960 = vpack.c.b16 %v2736, %v2736
      %v2961 = vpack.c.b16 %v2737, %v2737
      %v2962 = vpack.c.b16 %v2738, %v2738
      %v2963 = vpack.c.b16 %v2739, %v2739
      %v2964 = vpack.c.b16 %v2740, %v2740
      %v2965 = vpack.c.b16 %v2741, %v2741
      %v2966 = vpack.c.b16 %v2742, %v2742
      %v2967 = vpack.c.b16 %v2743, %v2743
      %v2968 = vpack.c.b16 %v2744, %v2744
      %v2969 = vpack.c.b16 %v2745, %v2745
      %3194 = vst [vmem:[%s182] sm:$0xf] %v2746
      %3195 = vst [vmem:[%s182 + $0x4] sm:$0xf] %v2747
      %3196 = vst [vmem:[%s182 + $0x8] sm:$0xf] %v2748
      %3197 = vst [vmem:[%s182 + $0xc] sm:$0xf] %v2749
      %3198 = vst [vmem:[%s182 + $0x10] sm:$0xf] %v2750
      %3199 = vst [vmem:[%s182 + $0x14] sm:$0xf] %v2751
      %3200 = vst [vmem:[%s182 + $0x18] sm:$0xf] %v2752
      %3201 = vst [vmem:[%s182 + $0x1c] sm:$0xf] %v2753
      %3202 = vst [vmem:[%s182 + $0x20] sm:$0xf] %v2754
      %3203 = vst [vmem:[%s182 + $0x24] sm:$0xf] %v2755
      %3204 = vst [vmem:[%s182 + $0x28] sm:$0xf] %v2756
      %3205 = vst [vmem:[%s182 + $0x2c] sm:$0xf] %v2757
      %3206 = vst [vmem:[%s182 + $0x30] sm:$0xf] %v2758
      %3207 = vst [vmem:[%s182 + $0x34] sm:$0xf] %v2759
      %3208 = vst [vmem:[%s182 + $0x38] sm:$0xf] %v2760
      %3209 = vst [vmem:[%s182 + $0x3c] sm:$0xf] %v2761
      %3210 = vst [vmem:[%s182 + $0x40] sm:$0xf] %v2762
      %3211 = vst [vmem:[%s182 + $0x44] sm:$0xf] %v2763
      %3212 = vst [vmem:[%s182 + $0x48] sm:$0xf] %v2764
      %3213 = vst [vmem:[%s182 + $0x4c] sm:$0xf] %v2765
      %3214 = vst [vmem:[%s182 + $0x50] sm:$0xf] %v2766
      %3215 = vst [vmem:[%s182 + $0x54] sm:$0xf] %v2767
      %3216 = vst [vmem:[%s182 + $0x58] sm:$0xf] %v2768
      %3217 = vst [vmem:[%s182 + $0x5c] sm:$0xf] %v2769
      %3218 = vst [vmem:[%s182 + $0x60] sm:$0xf] %v2770
      %3219 = vst [vmem:[%s182 + $0x64] sm:$0xf] %v2771
      %3220 = vst [vmem:[%s182 + $0x68] sm:$0xf] %v2772
      %3221 = vst [vmem:[%s182 + $0x6c] sm:$0xf] %v2773
      %3222 = vst [vmem:[%s182 + $0x70] sm:$0xf] %v2774
      %3223 = vst [vmem:[%s182 + $0x74] sm:$0xf] %v2775
      %3224 = vst [vmem:[%s182 + $0x78] sm:$0xf] %v2776
      %3225 = vst [vmem:[%s182 + $0x7c] sm:$0xf] %v2777
      %3226 = vst [vmem:[%s182 + $0x80] sm:$0xf] %v2778
      %3227 = vst [vmem:[%s182 + $0x84] sm:$0xf] %v2779
      %3228 = vst [vmem:[%s182 + $0x88] sm:$0xf] %v2780
      %3229 = vst [vmem:[%s182 + $0x8c] sm:$0xf] %v2781
      %3230 = vst [vmem:[%s182 + $0x90] sm:$0xf] %v2782
      %3231 = vst [vmem:[%s182 + $0x94] sm:$0xf] %v2783
      %3232 = vst [vmem:[%s182 + $0x98] sm:$0xf] %v2784
      %3233 = vst [vmem:[%s182 + $0x9c] sm:$0xf] %v2785
      %3234 = vst [vmem:[%s182 + $0xa0] sm:$0xf] %v2786
      %3235 = vst [vmem:[%s182 + $0xa4] sm:$0xf] %v2787
      %3236 = vst [vmem:[%s182 + $0xa8] sm:$0xf] %v2788
      %3237 = vst [vmem:[%s182 + $0xac] sm:$0xf] %v2789
      %3238 = vst [vmem:[%s182 + $0xb0] sm:$0xf] %v2790
      %3239 = vst [vmem:[%s182 + $0xb4] sm:$0xf] %v2791
      %3240 = vst [vmem:[%s182 + $0xb8] sm:$0xf] %v2792
      %3241 = vst [vmem:[%s182 + $0xbc] sm:$0xf] %v2793
      %3242 = vst [vmem:[%s182 + $0xc0] sm:$0xf] %v2794
      %3243 = vst [vmem:[%s182 + $0xc4] sm:$0xf] %v2795
      %3244 = vst [vmem:[%s182 + $0xc8] sm:$0xf] %v2796
      %3245 = vst [vmem:[%s182 + $0xcc] sm:$0xf] %v2797
      %3246 = vst [vmem:[%s182 + $0xd0] sm:$0xf] %v2798
      %3247 = vst [vmem:[%s182 + $0xd4] sm:$0xf] %v2799
      %3248 = vst [vmem:[%s182 + $0xd8] sm:$0xf] %v2800
      %3249 = vst [vmem:[%s182 + $0xdc] sm:$0xf] %v2801
      %3250 = vst [vmem:[%s182 + $0xe0] sm:$0xf] %v2802
      %3251 = vst [vmem:[%s182 + $0xe4] sm:$0xf] %v2803
      %3252 = vst [vmem:[%s182 + $0xe8] sm:$0xf] %v2804
      %3253 = vst [vmem:[%s182 + $0xec] sm:$0xf] %v2805
      %3254 = vst [vmem:[%s182 + $0xf0] sm:$0xf] %v2806
      %3255 = vst [vmem:[%s182 + $0xf4] sm:$0xf] %v2807
      %3256 = vst [vmem:[%s182 + $0xf8] sm:$0xf] %v2808
      %3257 = vst [vmem:[%s182 + $0xfc] sm:$0xf] %v2809
      %3258 = vst [vmem:[%s182 + $0x100] sm:$0xf] %v2810
      %3259 = vst [vmem:[%s182 + $0x104] sm:$0xf] %v2811
      %3260 = vst [vmem:[%s182 + $0x108] sm:$0xf] %v2812
      %3261 = vst [vmem:[%s182 + $0x10c] sm:$0xf] %v2813
      %3262 = vst [vmem:[%s182 + $0x110] sm:$0xf] %v2814
      %3263 = vst [vmem:[%s182 + $0x114] sm:$0xf] %v2815
      %3264 = vst [vmem:[%s182 + $0x118] sm:$0xf] %v2816
      %3265 = vst [vmem:[%s182 + $0x11c] sm:$0xf] %v2817
      %3266 = vst [vmem:[%s182 + $0x120] sm:$0xf] %v2818
      %3267 = vst [vmem:[%s182 + $0x124] sm:$0xf] %v2819
      %3268 = vst [vmem:[%s182 + $0x128] sm:$0xf] %v2820
      %3269 = vst [vmem:[%s182 + $0x12c] sm:$0xf] %v2821
      %3270 = vst [vmem:[%s182 + $0x130] sm:$0xf] %v2822
      %3271 = vst [vmem:[%s182 + $0x134] sm:$0xf] %v2823
      %3272 = vst [vmem:[%s182 + $0x138] sm:$0xf] %v2824
      %3273 = vst [vmem:[%s182 + $0x13c] sm:$0xf] %v2825
      %3274 = vst [vmem:[%s182 + $0x140] sm:$0xf] %v2826
      %3275 = vst [vmem:[%s182 + $0x144] sm:$0xf] %v2827
      %3276 = vst [vmem:[%s182 + $0x148] sm:$0xf] %v2828
      %3277 = vst [vmem:[%s182 + $0x14c] sm:$0xf] %v2829
      %3278 = vst [vmem:[%s182 + $0x150] sm:$0xf] %v2830
      %3279 = vst [vmem:[%s182 + $0x154] sm:$0xf] %v2831
      %3280 = vst [vmem:[%s182 + $0x158] sm:$0xf] %v2832
      %3281 = vst [vmem:[%s182 + $0x15c] sm:$0xf] %v2833
      %3282 = vst [vmem:[%s182 + $0x160] sm:$0xf] %v2834
      %3283 = vst [vmem:[%s182 + $0x164] sm:$0xf] %v2835
      %3284 = vst [vmem:[%s182 + $0x168] sm:$0xf] %v2836
      %3285 = vst [vmem:[%s182 + $0x16c] sm:$0xf] %v2837
      %3286 = vst [vmem:[%s182 + $0x170] sm:$0xf] %v2838
      %3287 = vst [vmem:[%s182 + $0x174] sm:$0xf] %v2839
      %3288 = vst [vmem:[%s182 + $0x178] sm:$0xf] %v2840
      %3289 = vst [vmem:[%s182 + $0x17c] sm:$0xf] %v2841
      %3290 = vst [vmem:[%s182 + $0x180] sm:$0xf] %v2842
      %3291 = vst [vmem:[%s182 + $0x184] sm:$0xf] %v2843
      %3292 = vst [vmem:[%s182 + $0x188] sm:$0xf] %v2844
      %3293 = vst [vmem:[%s182 + $0x18c] sm:$0xf] %v2845
      %3294 = vst [vmem:[%s182 + $0x190] sm:$0xf] %v2846
      %3295 = vst [vmem:[%s182 + $0x194] sm:$0xf] %v2847
      %3296 = vst [vmem:[%s182 + $0x198] sm:$0xf] %v2848
      %3297 = vst [vmem:[%s182 + $0x19c] sm:$0xf] %v2849
      %3298 = vst [vmem:[%s182 + $0x1a0] sm:$0xf] %v2850
      %3299 = vst [vmem:[%s182 + $0x1a4] sm:$0xf] %v2851
      %3300 = vst [vmem:[%s182 + $0x1a8] sm:$0xf] %v2852
      %3301 = vst [vmem:[%s182 + $0x1ac] sm:$0xf] %v2853
      %3302 = vst [vmem:[%s182 + $0x1b0] sm:$0xf] %v2854
      %3303 = vst [vmem:[%s182 + $0x1b4] sm:$0xf] %v2855
      %3304 = vst [vmem:[%s182 + $0x1b8] sm:$0xf] %v2856
      %3305 = vst [vmem:[%s182 + $0x1bc] sm:$0xf] %v2857
      %3306 = vst [vmem:[%s182 + $0x1c0] sm:$0xf] %v2858
      %3307 = vst [vmem:[%s182 + $0x1c4] sm:$0xf] %v2859
      %3308 = vst [vmem:[%s182 + $0x1c8] sm:$0xf] %v2860
      %3309 = vst [vmem:[%s182 + $0x1cc] sm:$0xf] %v2861
      %3310 = vst [vmem:[%s182 + $0x1d0] sm:$0xf] %v2862
      %3311 = vst [vmem:[%s182 + $0x1d4] sm:$0xf] %v2863
      %3312 = vst [vmem:[%s182 + $0x1d8] sm:$0xf] %v2864
      %3313 = vst [vmem:[%s182 + $0x1dc] sm:$0xf] %v2865
      %3314 = vst [vmem:[%s182 + $0x1e0] sm:$0xf] %v2866
      %3315 = vst [vmem:[%s182 + $0x1e4] sm:$0xf] %v2867
      %3316 = vst [vmem:[%s182 + $0x1e8] sm:$0xf] %v2868
      %3317 = vst [vmem:[%s182 + $0x1ec] sm:$0xf] %v2869
      %3318 = vst [vmem:[%s182 + $0x1f0] sm:$0xf] %v2870
      %3319 = vst [vmem:[%s182 + $0x1f4] sm:$0xf] %v2871
      %3320 = vst [vmem:[%s182 + $0x1f8] sm:$0xf] %v2872
      %3321 = vst [vmem:[%s182 + $0x1fc] sm:$0xf] %v2873
      %3322 = vst [vmem:[%s182 + $0x200] sm:$0xf] %v2874
      %3323 = vst [vmem:[%s182 + $0x204] sm:$0xf] %v2875
      %3324 = vst [vmem:[%s182 + $0x208] sm:$0xf] %v2876
      %3325 = vst [vmem:[%s182 + $0x20c] sm:$0xf] %v2877
      %3326 = vst [vmem:[%s182 + $0x210] sm:$0xf] %v2878
      %3327 = vst [vmem:[%s182 + $0x214] sm:$0xf] %v2879
      %3328 = vst [vmem:[%s182 + $0x218] sm:$0xf] %v2880
      %3329 = vst [vmem:[%s182 + $0x21c] sm:$0xf] %v2881
      %3330 = vst [vmem:[%s182 + $0x220] sm:$0xf] %v2882
      %3331 = vst [vmem:[%s182 + $0x224] sm:$0xf] %v2883
      %3332 = vst [vmem:[%s182 + $0x228] sm:$0xf] %v2884
      %3333 = vst [vmem:[%s182 + $0x22c] sm:$0xf] %v2885
      %3334 = vst [vmem:[%s182 + $0x230] sm:$0xf] %v2886
      %3335 = vst [vmem:[%s182 + $0x234] sm:$0xf] %v2887
      %3336 = vst [vmem:[%s182 + $0x238] sm:$0xf] %v2888
      %3337 = vst [vmem:[%s182 + $0x23c] sm:$0xf] %v2889
      %3338 = vst [vmem:[%s182 + $0x240] sm:$0xf] %v2890
      %3339 = vst [vmem:[%s182 + $0x244] sm:$0xf] %v2891
      %3340 = vst [vmem:[%s182 + $0x248] sm:$0xf] %v2892
      %3341 = vst [vmem:[%s182 + $0x24c] sm:$0xf] %v2893
      %3342 = vst [vmem:[%s182 + $0x250] sm:$0xf] %v2894
      %3343 = vst [vmem:[%s182 + $0x254] sm:$0xf] %v2895
      %3344 = vst [vmem:[%s182 + $0x258] sm:$0xf] %v2896
      %3345 = vst [vmem:[%s182 + $0x25c] sm:$0xf] %v2897
      %3346 = vst [vmem:[%s182 + $0x260] sm:$0xf] %v2898
      %3347 = vst [vmem:[%s182 + $0x264] sm:$0xf] %v2899
      %3348 = vst [vmem:[%s182 + $0x268] sm:$0xf] %v2900
      %3349 = vst [vmem:[%s182 + $0x26c] sm:$0xf] %v2901
      %3350 = vst [vmem:[%s182 + $0x270] sm:$0xf] %v2902
      %3351 = vst [vmem:[%s182 + $0x274] sm:$0xf] %v2903
      %3352 = vst [vmem:[%s182 + $0x278] sm:$0xf] %v2904
      %3353 = vst [vmem:[%s182 + $0x27c] sm:$0xf] %v2905
      %3354 = vst [vmem:[%s182 + $0x280] sm:$0xf] %v2906
      %3355 = vst [vmem:[%s182 + $0x284] sm:$0xf] %v2907
      %3356 = vst [vmem:[%s182 + $0x288] sm:$0xf] %v2908
      %3357 = vst [vmem:[%s182 + $0x28c] sm:$0xf] %v2909
      %3358 = vst [vmem:[%s182 + $0x290] sm:$0xf] %v2910
      %3359 = vst [vmem:[%s182 + $0x294] sm:$0xf] %v2911
      %3360 = vst [vmem:[%s182 + $0x298] sm:$0xf] %v2912
      %3361 = vst [vmem:[%s182 + $0x29c] sm:$0xf] %v2913
      %3362 = vst [vmem:[%s182 + $0x2a0] sm:$0xf] %v2914
      %3363 = vst [vmem:[%s182 + $0x2a4] sm:$0xf] %v2915
      %3364 = vst [vmem:[%s182 + $0x2a8] sm:$0xf] %v2916
      %3365 = vst [vmem:[%s182 + $0x2ac] sm:$0xf] %v2917
      %3366 = vst [vmem:[%s182 + $0x2b0] sm:$0xf] %v2918
      %3367 = vst [vmem:[%s182 + $0x2b4] sm:$0xf] %v2919
      %3368 = vst [vmem:[%s182 + $0x2b8] sm:$0xf] %v2920
      %3369 = vst [vmem:[%s182 + $0x2bc] sm:$0xf] %v2921
      %3370 = vst [vmem:[%s182 + $0x2c0] sm:$0xf] %v2922
      %3371 = vst [vmem:[%s182 + $0x2c4] sm:$0xf] %v2923
      %3372 = vst [vmem:[%s182 + $0x2c8] sm:$0xf] %v2924
      %3373 = vst [vmem:[%s182 + $0x2cc] sm:$0xf] %v2925
      %3374 = vst [vmem:[%s182 + $0x2d0] sm:$0xf] %v2926
      %3375 = vst [vmem:[%s182 + $0x2d4] sm:$0xf] %v2927
      %3376 = vst [vmem:[%s182 + $0x2d8] sm:$0xf] %v2928
      %3377 = vst [vmem:[%s182 + $0x2dc] sm:$0xf] %v2929
      %3378 = vst [vmem:[%s182 + $0x2e0] sm:$0xf] %v2930
      %3379 = vst [vmem:[%s182 + $0x2e4] sm:$0xf] %v2931
      %3380 = vst [vmem:[%s182 + $0x2e8] sm:$0xf] %v2932
      %3381 = vst [vmem:[%s182 + $0x2ec] sm:$0xf] %v2933
      %3382 = vst [vmem:[%s182 + $0x2f0] sm:$0xf] %v2934
      %3383 = vst [vmem:[%s182 + $0x2f4] sm:$0xf] %v2935
      %3384 = vst [vmem:[%s182 + $0x2f8] sm:$0xf] %v2936
      %3385 = vst [vmem:[%s182 + $0x2fc] sm:$0xf] %v2937
      %3386 = vst [vmem:[%s182 + $0x300] sm:$0xf] %v2938
      %3387 = vst [vmem:[%s182 + $0x304] sm:$0xf] %v2939
      %3388 = vst [vmem:[%s182 + $0x308] sm:$0xf] %v2940
      %3389 = vst [vmem:[%s182 + $0x30c] sm:$0xf] %v2941
      %3390 = vst [vmem:[%s182 + $0x310] sm:$0xf] %v2942
      %3391 = vst [vmem:[%s182 + $0x314] sm:$0xf] %v2943
      %3392 = vst [vmem:[%s182 + $0x318] sm:$0xf] %v2944
      %3393 = vst [vmem:[%s182 + $0x31c] sm:$0xf] %v2945
      %3394 = vst [vmem:[%s182 + $0x320] sm:$0xf] %v2946
      %3395 = vst [vmem:[%s182 + $0x324] sm:$0xf] %v2947
      %3396 = vst [vmem:[%s182 + $0x328] sm:$0xf] %v2948
      %3397 = vst [vmem:[%s182 + $0x32c] sm:$0xf] %v2949
      %3398 = vst [vmem:[%s182 + $0x330] sm:$0xf] %v2950
      %3399 = vst [vmem:[%s182 + $0x334] sm:$0xf] %v2951
      %3400 = vst [vmem:[%s182 + $0x338] sm:$0xf] %v2952
      %3401 = vst [vmem:[%s182 + $0x33c] sm:$0xf] %v2953
      %3402 = vst [vmem:[%s182 + $0x340] sm:$0xf] %v2954
      %3403 = vst [vmem:[%s182 + $0x344] sm:$0xf] %v2955
      %3404 = vst [vmem:[%s182 + $0x348] sm:$0xf] %v2956
      %3405 = vst [vmem:[%s182 + $0x34c] sm:$0xf] %v2957
      %3406 = vst [vmem:[%s182 + $0x350] sm:$0xf] %v2958
      %3407 = vst [vmem:[%s182 + $0x354] sm:$0xf] %v2959
      %3408 = vst [vmem:[%s182 + $0x358] sm:$0xf] %v2960
      %3409 = vst [vmem:[%s182 + $0x35c] sm:$0xf] %v2961
      %3410 = vst [vmem:[%s182 + $0x360] sm:$0xf] %v2962
      %3411 = vst [vmem:[%s182 + $0x364] sm:$0xf] %v2963
      %3412 = vst [vmem:[%s182 + $0x368] sm:$0xf] %v2964
      %3413 = vst [vmem:[%s182 + $0x36c] sm:$0xf] %v2965
      %3414 = vst [vmem:[%s182 + $0x370] sm:$0xf] %v2966
      %3415 = vst [vmem:[%s182 + $0x374] sm:$0xf] %v2967
      %3416 = vst [vmem:[%s182 + $0x378] sm:$0xf] %v2968
      %3417 = vst [vmem:[%s182 + $0x37c] sm:$0xf] %v2969
      %s3418 = smul.u32 224, %s17
      %p3419 = scmp.lt.s32.totalorder %s3418, 3135
      %s3420 = scalar_select %p3419, %s3418, 3135
      %p3421 = scmp.lt.s32.totalorder %s18, 0
      %s3422 = scalar_select %p3421, %s18, 0
      %s3423 = sadd.s32 %s3422, %s3420
      %s3424 = smul.addr %s3423, 4
      %s3425 = scalar_lea.vmem %s2, %s3424
      // Predicated region
      $region29: #{generator_forward.9} parent=27 // pred_check
        %p3426 = pneg %p97
      $region30: #{generator_forward.9} parent=27 // pred_check_branch
        %3428 = sbr.rel (%p3426) target = $region32
      $region31: #{generator_forward.9} parent=27 // pred_region
        %s3429 = smul.u32 224, %s17
      $region32: #{generator_forward.9} parent=27 // pred_fallthru
        _
    $region28: #{generator_forward.9} parent=5 // pred_fallthru
      _
    %p3430 = scmp.le.s32.totalorder 2, %s8
    // Predicated region
    $region33: #{generator_forward.9} parent=5 // pred_check
      %p3431 = pneg %p3430
    $region34: #{generator_forward.9} parent=5 // pred_check_branch
      %3433 = sbr.rel (%p3431) target = $region36
    $region35: #{generator_forward.9} parent=5 // pred_region
      %s3434 = ssub.s32 %s8, 2
      // Predicated region
      $region37: #{generator_forward.9} parent=35 // pred_check
        %p3435 = pneg %p103
      $region38: #{generator_forward.9} parent=35 // pred_check_branch
        %3437 = sbr.rel (%p3435) target = $region40
      $region39: #{generator_forward.9} parent=35 // pred_region
        %s3438 = smul.u32 224, %s19
        %p3439 = scmp.lt.s32.totalorder %s3438, 3135
        %s3440 = scalar_select %p3439, %s3438, 3135
        %p3441 = scmp.lt.s32.totalorder %s20, 0
        %s3442 = scalar_select %p3441, %s20, 0
        %s3443 = sadd.s32 %s3442, %s3440
        %s3444 = smul.addr %s3443, 4
        %s3445 = scalar_lea.vmem %s2, %s3444
      $region40: #{generator_forward.9} parent=35 // pred_fallthru
        _
    $region36: #{generator_forward.9} parent=5 // pred_fallthru
      _
  $region6: #{generator_forward.9} parent=0 // loop_footer
    %s12 = sadd.s32 1, %s8
  $region7: #{generator_forward.9} parent=0 // loop_footer_branch
    %7 = sbr.rel target = $region3
  $region8: #{generator_forward.9} parent=0 // loop_exit
    _

</llo_original>
